<compile_context>
chip_gen: v5e
topology: v5e:2x2
jax: 0.10.0
libtpu: 0.0.40
codegen_flags: <defaults>
</compile_context>

<pallas_src>
import functools
from collections import namedtuple

import numpy as np

import jax
import jax.numpy as jnp
from jax.experimental import pallas as pl
from jax.experimental.pallas import tpu as pltpu


def _vmem_spec():
    return pl.BlockSpec(memory_space=pltpu.MemorySpace.VMEM)


# ---------------------------------------------------------------------------
# Static conv geometry (conv1 8/4, conv2 4/2, conv3 3/1 -- fixed by the module)
# ---------------------------------------------------------------------------
ConvCfg = namedtuple("ConvCfg", "kh kw s Hin Win Cin Cout oh ow Hb")

_CONV_ARCH = [(8, 8, 4, 32), (4, 4, 2, 64), (3, 3, 1, 64)]


def make_conv_cfgs(c, h, w):
    cfgs = []
    cin, hh, ww = c, h, w
    for kh, kw, s, cout in _CONV_ARCH:
        oh = (hh - kh) // s + 1
        ow = (ww - kw) // s + 1
        assert hh % s == 0, "stride-blocked layout needs H divisible by stride"
        assert (kh - 1) // s + oh <= hh // s
        cfgs.append(ConvCfg(kh=kh, kw=kw, s=s, Hin=hh, Win=ww, Cin=cin,
                            Cout=cout, oh=oh, ow=ow, Hb=hh // s))
        cin, hh, ww = cout, oh, ow
    assert cfgs[-1].s == 1, "last conv is expected to be stride 1"
    return tuple(cfgs)


# ---------------------------------------------------------------------------
# Fused forward kernel: conv1 -> conv2 -> conv3 -> fc1 -> actor/critic heads
# Activation layout inside the kernel: rows = (batch, image row), lanes = (w, c)
# so every conv is  sum_over_kernel_rows( row_slab @ W_folded_row )  with
# W_folded_row of shape (W_in*C_in, ow*C_out) precomputed outside.
# ---------------------------------------------------------------------------
def _fused_policy_kernel(cfgs, n_actions,
                         x3_ref,
                         wc1_ref, bc1_ref, wc2_ref, bc2_ref, wc3_ref, bc3_ref,
                         wfc1_ref, bfc1_ref,
                         w0_ref, b0_ref,
                         aw1_ref, ab1_ref, cw1_ref, cb1_ref,
                         aw2_ref, ab2_ref, cw2_ref, cb2_ref,
                         out_ref,
                         x2_scr, x_scr):
    l1, l2, l3 = cfgs
    batch = out_ref.shape[0]
    f32 = jnp.float32
    bf16 = jnp.bfloat16

    # ---- conv1: per-(batch, kernel-row) folded matmuls ---------------------
    out1 = []
    for b in range(batch):
        acc = None
        base = b * l1.Hb
        for i in range(l1.kh):
            qi, ri = i // l1.s, i % l1.s
            slab = x3_ref[ri, base + qi: base + qi + l1.oh, :].astype(bf16)
            t = jnp.dot(slab, wc1_ref[i], preferred_element_type=f32)
            acc = t if acc is None else acc + t
        out1.append(jnp.maximum(acc + bc1_ref[...], 0.0))         # (oh1, ow1*C1)

    # ---- regroup conv1 output rows into conv2's stride-blocked scratch -----
    for b in range(batch):
        for a in range(l1.oh):
            r, hb = a % l2.s, a // l2.s
            dst = b * l2.Hb + hb
            x2_scr[r, dst: dst + 1, :] = out1[b][a: a + 1, :]

    # ---- conv2 -> conv3 -> fc1 (fc1 consumes the flatten row-by-row) -------
    for b in range(batch):
        acc = None
        base = b * l2.Hb
        for i in range(l2.kh):
            qi, ri = i // l2.s, i % l2.s
            slab = x2_scr[ri, base + qi: base + qi + l2.oh, :].astype(bf16)
            t = jnp.dot(slab, wc2_ref[i], preferred_element_type=f32)
            acc = t if acc is None else acc + t
        h2 = jnp.maximum(acc + bc2_ref[...], 0.0)                 # (oh2, ow2*C2)

        acc = None
        for i in range(l3.kh):                                    # stride-1 conv
            slab = h2[i: i + l3.oh, :].astype(bf16)
            t = jnp.dot(slab, wc3_ref[i], preferred_element_type=f32)
            acc = t if acc is None else acc + t
        h3 = jnp.maximum(acc + bc3_ref[...], 0.0)                 # (oh3, ow3*C3)

        acc = None
        for h in range(l3.oh):                                    # flatten folded in fc1
            t = jnp.dot(h3[h: h + 1, :].astype(bf16), wfc1_ref[h],
                        preferred_element_type=f32)
            acc = t if acc is None else acc + t
        x_scr[b: b + 1, :] = jnp.maximum(acc + bfc1_ref[...], 0.0)

    # ---- fused actor/critic heads ------------------------------------------
    x = x_scr[...].astype(bf16)                                   # (B, 512)
    hid = aw1_ref.shape[0]

    h0 = jnp.dot(x, w0_ref[...], preferred_element_type=f32) + b0_ref[...]
    h0 = jnp.maximum(h0, 0.0)                                     # (B, 1024)

    a1 = jnp.dot(h0[:, :hid].astype(bf16), aw1_ref[...],
                 preferred_element_type=f32) + ab1_ref[...]
    a1 = jnp.maximum(a1, 0.0)
    c1 = jnp.dot(h0[:, hid:].astype(bf16), cw1_ref[...],
                 preferred_element_type=f32) + cb1_ref[...]
    c1 = jnp.maximum(c1, 0.0)

    logits = jnp.dot(a1.astype(bf16), aw2_ref[...],
                     preferred_element_type=f32) + ab2_ref[...]   # (B, n_actions)
    value = jnp.dot(c1.astype(bf16), cw2_ref[...],
                    preferred_element_type=f32) + cb2_ref[...]    # (B, 1)

    # exact log_softmax over the true n_actions width (exp/log land on the EUP)
    m = jnp.max(logits, axis=-1, keepdims=True)
    s = logits - m
    lse = jnp.log(jnp.sum(jnp.exp(s), axis=-1, keepdims=True))
    logp = s - lse

    pad = out_ref.shape[1] - n_actions - 1
    out_ref[...] = jnp.concatenate(
        [logp, value, jnp.zeros((batch, pad), f32)], axis=-1)


def fused_policy_call(x3, q, cfgs, n_actions, batch):
    assert n_actions + 1 <= 128
    l2, l3 = cfgs[1], cfgs[2]
    args = (x3,
            q["wc1"], q["bc1"], q["wc2"], q["bc2"], q["wc3"], q["bc3"],
            q["wfc1"], q["bfc1"],
            q["w0"], q["b0"],
            q["aw1"], q["ab1"], q["cw1"], q["cb1"],
            q["aw2"], q["ab2"], q["cw2"], q["cb2"])

    flops = 2 * batch * sum(c.kh * c.oh * (c.Win * c.Cin) * (c.ow * c.Cout)
                            for c in cfgs)
    flops += 2 * batch * l3.oh * (l3.ow * l3.Cout) * 512
    flops += 2 * batch * (512 * 1024 + 2 * 512 * 512 + 512 * (n_actions + 1))
    bytes_accessed = sum(a.size * a.dtype.itemsize for a in args) + batch * 128 * 4
    cost = pl.CostEstimate(flops=int(flops),
                           transcendentals=int(batch * (n_actions + 2)),
                           bytes_accessed=int(bytes_accessed))

    kernel = functools.partial(_fused_policy_kernel, cfgs, n_actions)
    return pl.pallas_call(
        kernel,
        out_shape=jax.ShapeDtypeStruct((batch, 128), jnp.float32),
        in_specs=[_vmem_spec() for _ in args],
        out_specs=_vmem_spec(),
        scratch_shapes=[
            pltpu.VMEM((l2.s, batch * l2.Hb, l2.Win * l2.Cin), jnp.float32),
            pltpu.VMEM((batch, 512), jnp.float32),
        ],
        compiler_params=pltpu.CompilerParams(vmem_limit_bytes=32 * 1024 * 1024),
        cost_estimate=cost,
    )(*args)


# ---------------------------------------------------------------------------
# Forward pass wrapper (explorer policy, use_memory=False)
# ---------------------------------------------------------------------------
def policy_forward(prepared, image_nchw, *, cfgs, n_actions):
    l1 = cfgs[0]
    batch = image_nchw.shape[0]
    # NCHW -> NHWC -> stride-blocked (s, B*H/s, W*C) layout expected by the kernel.
    x = jnp.transpose(image_nchw, (0, 2, 3, 1))
    x = x.reshape(batch, l1.Hb, l1.s, l1.Win * l1.Cin)
    x3 = jnp.transpose(x, (2, 0, 1, 3)).reshape(l1.s, batch * l1.Hb,
                                                l1.Win * l1.Cin)
    out = fused_policy_call(x3, prepared, cfgs, n_actions, batch)
    log_probs = out[:, :n_actions]
    value = out[:, n_actions]
    return log_probs, value


# ---------------------------------------------------------------------------
# Parameter construction (deterministic, synthetic, PyTorch layout)
# ---------------------------------------------------------------------------
def _uniform(key, shape, fan_in):
    bound = 1.0 / jnp.sqrt(jnp.float32(fan_in))
    return jax.random.uniform(key, shape, jnp.float32, -bound, bound)


def init_params(key, cfgs, n_actions):
    keys = iter(jax.random.split(key, 24))
    p = {}
    for idx, cfg in enumerate(cfgs, start=1):
        fan_in = cfg.Cin * cfg.kh * cfg.kw
        p[f"conv{idx}_w"] = _uniform(next(keys),
                                     (cfg.Cout, cfg.Cin, cfg.kh, cfg.kw), fan_in)
        p[f"conv{idx}_b"] = _uniform(next(keys), (cfg.Cout,), fan_in)
    l3 = cfgs[-1]
    conv_out = l3.Cout * l3.oh * l3.ow
    p["fc1_w"] = _uniform(next(keys), (conv_out, 512), conv_out)   # rows: NCHW flatten
    p["fc1_b"] = _uniform(next(keys), (512,), conv_out)

    def head(prefix, out_ch, in_ch=512, hid=512):
        p[f"{prefix}_w0"] = _uniform(next(keys), (in_ch, hid), in_ch)
        p[f"{prefix}_b0"] = _uniform(next(keys), (hid,), in_ch)
        p[f"{prefix}_w1"] = _uniform(next(keys), (hid, hid), hid)
        p[f"{prefix}_b1"] = _uniform(next(keys), (hid,), hid)
        p[f"{prefix}_w2"] = _uniform(next(keys), (hid, out_ch), hid)
        p[f"{prefix}_b2"] = _uniform(next(keys), (out_ch,), hid)

    head("actor", n_actions)
    head("critic", 1)
    return p


def _fold_conv_weight(w_oihw, w_in, stride):
    """(Cout, Cin, kh, kw) PyTorch weight -> per-kernel-row matrices
    (kh, W_in*Cin, ow*Cout) that fold the width/channel window selection
    (zero-padded) so each conv becomes a sum over kernel rows of 2D matmuls."""
    w_np = np.asarray(w_oihw, dtype=np.float32)
    cout, cin, kh, kw = w_np.shape
    ow = (w_in - kw) // stride + 1
    wt = np.transpose(w_np, (2, 3, 1, 0))                  # (kh, kw, Cin, Cout)
    folded = np.zeros((kh, w_in, cin, ow, cout), np.float32)
    for i in range(kh):
        for wo in range(ow):
            for j in range(kw):
                folded[i, stride * wo + j, :, wo, :] = wt[i, j]
    return folded.reshape(kh, w_in * cin, ow * cout)


def prepare_params(p, cfgs):
    """One-time layout prep (NOT per forward): folded bf16 conv matrices,
    width-tiled f32 conv biases, fc1 reordered to the (h, (w, c)) lane layout,
    concatenated actor/critic first layer, 2D biases, bf16 weight storage."""
    q = {}
    for idx, cfg in enumerate(cfgs, start=1):
        q[f"wc{idx}"] = jnp.asarray(
            _fold_conv_weight(p[f"conv{idx}_w"], cfg.Win, cfg.s), jnp.bfloat16)
        q[f"bc{idx}"] = jnp.asarray(
            np.tile(np.asarray(p[f"conv{idx}_b"], np.float32), cfg.ow)[None, :],
            jnp.float32)

    l3 = cfgs[-1]
    fc1_r = p["fc1_w"].reshape(l3.Cout, l3.oh, l3.ow, 512)         # (c, h, w, out)
    q["wfc1"] = jnp.transpose(fc1_r, (1, 2, 0, 3)).reshape(
        l3.oh, l3.ow * l3.Cout, 512).astype(jnp.bfloat16)          # (h, (w,c), out)
    q["bfc1"] = p["fc1_b"].reshape(1, -1)

    q["w0"] = jnp.concatenate([p["actor_w0"], p["critic_w0"]], axis=1).astype(jnp.bfloat16)
    q["b0"] = jnp.concatenate([p["actor_b0"], p["critic_b0"]]).reshape(1, -1)
    q["aw1"] = p["actor_w1"].astype(jnp.bfloat16);  q["ab1"] = p["actor_b1"].reshape(1, -1)
    q["cw1"] = p["critic_w1"].astype(jnp.bfloat16); q["cb1"] = p["critic_b1"].reshape(1, -1)
    q["aw2"] = p["actor_w2"].astype(jnp.bfloat16);  q["ab2"] = p["actor_b2"].reshape(1, -1)
    q["cw2"] = p["critic_w2"].astype(jnp.bfloat16); q["cb2"] = p["critic_b2"].reshape(1, -1)
    return q


# ---------------------------------------------------------------------------
# Pure-JAX references (PyTorch layout / semantics) for correctness checks.
# matmul_dtype=bfloat16 rounds matmul/conv operands exactly like the kernel.
# ---------------------------------------------------------------------------
def _ref_forward(params, image_nchw, matmul_dtype):
    dt = matmul_dtype

    def conv(x, w, b, stride):
        y = jax.lax.conv_general_dilated(
            x.astype(dt), w.astype(dt), window_strides=(stride, stride),
            padding="VALID", dimension_numbers=("NCHW", "OIHW", "NCHW"),
            preferred_element_type=jnp.float32)
        return jax.nn.relu(y + b[None, :, None, None])

    def linear(x, w, b):
        return jnp.dot(x.astype(dt), w.astype(dt),
                       preferred_element_type=jnp.float32) + b

    x = conv(image_nchw, params["conv1_w"], params["conv1_b"], 4)
    x = conv(x, params["conv2_w"], params["conv2_b"], 2)
    x = conv(x, params["conv3_w"], params["conv3_b"], 1)
    x = x.reshape(x.shape[0], -1)                                   # NCHW flatten
    x = jax.nn.relu(linear(x, params["fc1_w"], params["fc1_b"]))

    v = jax.nn.relu(linear(x, params["critic_w0"], params["critic_b0"]))
    v = jax.nn.relu(linear(v, params["critic_w1"], params["critic_b1"]))
    value = linear(v, params["critic_w2"], params["critic_b2"]).reshape(-1)

    a = jax.nn.relu(linear(x, params["actor_w0"], params["actor_b0"]))
    a = jax.nn.relu(linear(a, params["actor_w1"], params["actor_b1"]))
    logits = linear(a, params["actor_w2"], params["actor_b2"])
    return jax.nn.log_softmax(logits, axis=-1), value


if __name__ == "__main__":
    # obs image (B, C, H, W) = (2, 3, 44, 44) -> conv stack -> (B, 64, 2, 2)
    # -> flatten 256 -> fc1 512 -> heads (7 actions / 1 value).
    B, C, H, W = 2, 3, 44, 44
    N_ACTIONS = 7

    cfgs = make_conv_cfgs(C, H, W)

    key = jax.random.PRNGKey(0)
    k_param, k_img = jax.random.split(key)
    params = init_params(k_param, cfgs, N_ACTIONS)
    prepared = prepare_params(params, cfgs)        # one-time layout/bf16 prep
    image = jax.random.uniform(k_img, (B, C, H, W), jnp.float32)

    fwd = jax.jit(lambda q, img: policy_forward(q, img, cfgs=cfgs,
                                                n_actions=N_ACTIONS))
    log_probs, value = fwd(prepared, image)
    jax.block_until_ready((log_probs, value))

    assert log_probs.shape == (B, N_ACTIONS) and value.shape == (B,)

    # Tight check against a reference that rounds matmul/conv operands to bf16
    # exactly like the kernel does (f32 accumulation everywhere).
    ref_lp, ref_v = _ref_forward(params, image, jnp.bfloat16)
    assert jnp.allclose(log_probs, ref_lp, atol=1e-2, rtol=1e-2), "log-prob mismatch"
    assert jnp.allclose(value, ref_v, atol=1e-2, rtol=1e-2), "value mismatch"

    # Loose sanity check against the exact f32 PyTorch-semantics reference
    # (difference is only the bf16 weight/activation rounding).
    ref_lp32, ref_v32 = _ref_forward(params, image, jnp.float32)
    assert jnp.allclose(log_probs, ref_lp32, atol=1e-1), "f32 log-prob sanity failed"
    assert jnp.allclose(value, ref_v32, atol=1e-1), "f32 value sanity failed"

    # distribution sanity: probabilities normalize
    assert jnp.allclose(jnp.sum(jnp.exp(log_probs), axis=-1), 1.0, atol=1e-3)

    print("KERNEL_OK")
</pallas_src>

<mosaic_0001>
module attributes {stable_mosaic.version = 11 : i64} {
  func.func @_fused_policy_kernel(%arg0: memref<4x22x132xf32, #tpu.memory_space<vmem>>, %arg1: memref<8x132x320xbf16, #tpu.memory_space<vmem>>, %arg2: memref<1x320xf32, #tpu.memory_space<vmem>>, %arg3: memref<4x320x256xbf16, #tpu.memory_space<vmem>>, %arg4: memref<1x256xf32, #tpu.memory_space<vmem>>, %arg5: memref<3x256x128xbf16, #tpu.memory_space<vmem>>, %arg6: memref<1x128xf32, #tpu.memory_space<vmem>>, %arg7: memref<2x128x512xbf16, #tpu.memory_space<vmem>>, %arg8: memref<1x512xf32, #tpu.memory_space<vmem>>, %arg9: memref<512x1024xbf16, #tpu.memory_space<vmem>>, %arg10: memref<1x1024xf32, #tpu.memory_space<vmem>>, %arg11: memref<512x512xbf16, #tpu.memory_space<vmem>>, %arg12: memref<1x512xf32, #tpu.memory_space<vmem>>, %arg13: memref<512x512xbf16, #tpu.memory_space<vmem>>, %arg14: memref<1x512xf32, #tpu.memory_space<vmem>>, %arg15: memref<512x7xbf16, #tpu.memory_space<vmem>>, %arg16: memref<1x7xf32, #tpu.memory_space<vmem>>, %arg17: memref<512x1xbf16, #tpu.memory_space<vmem>>, %arg18: memref<1x1xf32, #tpu.memory_space<vmem>>, %arg19: memref<2x128xf32, #tpu.memory_space<vmem>>, %arg20: memref<2x10x320xf32, #tpu.memory_space<vmem>>, %arg21: memref<2x512xf32, #tpu.memory_space<vmem>>) attributes {dimension_semantics = [], scalar_prefetch = 0 : i64, scratch_operands = 2 : i64, tpu.core_type = #tpu.core_type<tc>} {
    %c0 = arith.constant 0 : index
    %c0_0 = arith.constant 0 : index
    %c0_1 = arith.constant 0 : index
    %0 = vector.load %arg0[%c0, %c0_0, %c0_1] : memref<4x22x132xf32, #tpu.memory_space<vmem>>, vector<1x10x132xf32>
    %1 = vector.shape_cast %0 : vector<1x10x132xf32> to vector<10x132xf32>
    %2 = arith.truncf %1 : vector<10x132xf32> to vector<10x132xbf16>
    %c0_2 = arith.constant 0 : index
    %c0_3 = arith.constant 0 : index
    %c0_4 = arith.constant 0 : index
    %3 = vector.load %arg1[%c0_2, %c0_3, %c0_4] : memref<8x132x320xbf16, #tpu.memory_space<vmem>>, vector<1x132x320xbf16>
    %4 = vector.shape_cast %3 : vector<1x132x320xbf16> to vector<132x320xbf16>
    %cst = arith.constant dense<0.000000e+00> : vector<10x320xf32>
    %5 = tpu.matmul %2, %4, %cst {dimension_numbers = #tpu.dot_dimension_numbers<[1], [0], [0], [1], [0, 0, 1, 1], [], []>} : vector<10x132xbf16>, vector<132x320xbf16>, vector<10x320xf32> -> vector<10x320xf32>
    %c1 = arith.constant 1 : index
    %c0_5 = arith.constant 0 : index
    %c0_6 = arith.constant 0 : index
    %6 = vector.load %arg0[%c1, %c0_5, %c0_6] : memref<4x22x132xf32, #tpu.memory_space<vmem>>, vector<1x10x132xf32>
    %7 = vector.shape_cast %6 : vector<1x10x132xf32> to vector<10x132xf32>
    %8 = arith.truncf %7 : vector<10x132xf32> to vector<10x132xbf16>
    %c1_7 = arith.constant 1 : index
    %c0_8 = arith.constant 0 : index
    %c0_9 = arith.constant 0 : index
    %9 = vector.load %arg1[%c1_7, %c0_8, %c0_9] : memref<8x132x320xbf16, #tpu.memory_space<vmem>>, vector<1x132x320xbf16>
    %10 = vector.shape_cast %9 : vector<1x132x320xbf16> to vector<132x320xbf16>
    %cst_10 = arith.constant dense<0.000000e+00> : vector<10x320xf32>
    %11 = tpu.matmul %8, %10, %cst_10 {dimension_numbers = #tpu.dot_dimension_numbers<[1], [0], [0], [1], [0, 0, 1, 1], [], []>} : vector<10x132xbf16>, vector<132x320xbf16>, vector<10x320xf32> -> vector<10x320xf32>
    %12 = arith.addf %5, %11 : vector<10x320xf32>
    %c2 = arith.constant 2 : index
    %c0_11 = arith.constant 0 : index
    %c0_12 = arith.constant 0 : index
    %13 = vector.load %arg0[%c2, %c0_11, %c0_12] : memref<4x22x132xf32, #tpu.memory_space<vmem>>, vector<1x10x132xf32>
    %14 = vector.shape_cast %13 : vector<1x10x132xf32> to vector<10x132xf32>
    %15 = arith.truncf %14 : vector<10x132xf32> to vector<10x132xbf16>
    %c2_13 = arith.constant 2 : index
    %c0_14 = arith.constant 0 : index
    %c0_15 = arith.constant 0 : index
    %16 = vector.load %arg1[%c2_13, %c0_14, %c0_15] : memref<8x132x320xbf16, #tpu.memory_space<vmem>>, vector<1x132x320xbf16>
    %17 = vector.shape_cast %16 : vector<1x132x320xbf16> to vector<132x320xbf16>
    %cst_16 = arith.constant dense<0.000000e+00> : vector<10x320xf32>
    %18 = tpu.matmul %15, %17, %cst_16 {dimension_numbers = #tpu.dot_dimension_numbers<[1], [0], [0], [1], [0, 0, 1, 1], [], []>} : vector<10x132xbf16>, vector<132x320xbf16>, vector<10x320xf32> -> vector<10x320xf32>
    %19 = arith.addf %12, %18 : vector<10x320xf32>
    %c3 = arith.constant 3 : index
    %c0_17 = arith.constant 0 : index
    %c0_18 = arith.constant 0 : index
    %20 = vector.load %arg0[%c3, %c0_17, %c0_18] : memref<4x22x132xf32, #tpu.memory_space<vmem>>, vector<1x10x132xf32>
    %21 = vector.shape_cast %20 : vector<1x10x132xf32> to vector<10x132xf32>
    %22 = arith.truncf %21 : vector<10x132xf32> to vector<10x132xbf16>
    %c3_19 = arith.constant 3 : index
    %c0_20 = arith.constant 0 : index
    %c0_21 = arith.constant 0 : index
    %23 = vector.load %arg1[%c3_19, %c0_20, %c0_21] : memref<8x132x320xbf16, #tpu.memory_space<vmem>>, vector<1x132x320xbf16>
    %24 = vector.shape_cast %23 : vector<1x132x320xbf16> to vector<132x320xbf16>
    %cst_22 = arith.constant dense<0.000000e+00> : vector<10x320xf32>
    %25 = tpu.matmul %22, %24, %cst_22 {dimension_numbers = #tpu.dot_dimension_numbers<[1], [0], [0], [1], [0, 0, 1, 1], [], []>} : vector<10x132xbf16>, vector<132x320xbf16>, vector<10x320xf32> -> vector<10x320xf32>
    %26 = arith.addf %19, %25 : vector<10x320xf32>
    %c0_23 = arith.constant 0 : index
    %c1_24 = arith.constant 1 : index
    %c0_25 = arith.constant 0 : index
    %27 = vector.load %arg0[%c0_23, %c1_24, %c0_25] : memref<4x22x132xf32, #tpu.memory_space<vmem>>, vector<1x10x132xf32>
    %28 = vector.shape_cast %27 : vector<1x10x132xf32> to vector<10x132xf32>
    %29 = arith.truncf %28 : vector<10x132xf32> to vector<10x132xbf16>
    %c4 = arith.constant 4 : index
    %c0_26 = arith.constant 0 : index
    %c0_27 = arith.constant 0 : index
    %30 = vector.load %arg1[%c4, %c0_26, %c0_27] : memref<8x132x320xbf16, #tpu.memory_space<vmem>>, vector<1x132x320xbf16>
    %31 = vector.shape_cast %30 : vector<1x132x320xbf16> to vector<132x320xbf16>
    %cst_28 = arith.constant dense<0.000000e+00> : vector<10x320xf32>
    %32 = tpu.matmul %29, %31, %cst_28 {dimension_numbers = #tpu.dot_dimension_numbers<[1], [0], [0], [1], [0, 0, 1, 1], [], []>} : vector<10x132xbf16>, vector<132x320xbf16>, vector<10x320xf32> -> vector<10x320xf32>
    %33 = arith.addf %26, %32 : vector<10x320xf32>
    %c1_29 = arith.constant 1 : index
    %c1_30 = arith.constant 1 : index
    %c0_31 = arith.constant 0 : index
    %34 = vector.load %arg0[%c1_29, %c1_30, %c0_31] : memref<4x22x132xf32, #tpu.memory_space<vmem>>, vector<1x10x132xf32>
    %35 = vector.shape_cast %34 : vector<1x10x132xf32> to vector<10x132xf32>
    %36 = arith.truncf %35 : vector<10x132xf32> to vector<10x132xbf16>
    %c5 = arith.constant 5 : index
    %c0_32 = arith.constant 0 : index
    %c0_33 = arith.constant 0 : index
    %37 = vector.load %arg1[%c5, %c0_32, %c0_33] : memref<8x132x320xbf16, #tpu.memory_space<vmem>>, vector<1x132x320xbf16>
    %38 = vector.shape_cast %37 : vector<1x132x320xbf16> to vector<132x320xbf16>
    %cst_34 = arith.constant dense<0.000000e+00> : vector<10x320xf32>
    %39 = tpu.matmul %36, %38, %cst_34 {dimension_numbers = #tpu.dot_dimension_numbers<[1], [0], [0], [1], [0, 0, 1, 1], [], []>} : vector<10x132xbf16>, vector<132x320xbf16>, vector<10x320xf32> -> vector<10x320xf32>
    %40 = arith.addf %33, %39 : vector<10x320xf32>
    %c2_35 = arith.constant 2 : index
    %c1_36 = arith.constant 1 : index
    %c0_37 = arith.constant 0 : index
    %41 = vector.load %arg0[%c2_35, %c1_36, %c0_37] : memref<4x22x132xf32, #tpu.memory_space<vmem>>, vector<1x10x132xf32>
    %42 = vector.shape_cast %41 : vector<1x10x132xf32> to vector<10x132xf32>
    %43 = arith.truncf %42 : vector<10x132xf32> to vector<10x132xbf16>
    %c6 = arith.constant 6 : index
    %c0_38 = arith.constant 0 : index
    %c0_39 = arith.constant 0 : index
    %44 = vector.load %arg1[%c6, %c0_38, %c0_39] : memref<8x132x320xbf16, #tpu.memory_space<vmem>>, vector<1x132x320xbf16>
    %45 = vector.shape_cast %44 : vector<1x132x320xbf16> to vector<132x320xbf16>
    %cst_40 = arith.constant dense<0.000000e+00> : vector<10x320xf32>
    %46 = tpu.matmul %43, %45, %cst_40 {dimension_numbers = #tpu.dot_dimension_numbers<[1], [0], [0], [1], [0, 0, 1, 1], [], []>} : vector<10x132xbf16>, vector<132x320xbf16>, vector<10x320xf32> -> vector<10x320xf32>
    %47 = arith.addf %40, %46 : vector<10x320xf32>
    %c3_41 = arith.constant 3 : index
    %c1_42 = arith.constant 1 : index
    %c0_43 = arith.constant 0 : index
    %48 = vector.load %arg0[%c3_41, %c1_42, %c0_43] : memref<4x22x132xf32, #tpu.memory_space<vmem>>, vector<1x10x132xf32>
    %49 = vector.shape_cast %48 : vector<1x10x132xf32> to vector<10x132xf32>
    %50 = arith.truncf %49 : vector<10x132xf32> to vector<10x132xbf16>
    %c7 = arith.constant 7 : index
    %c0_44 = arith.constant 0 : index
    %c0_45 = arith.constant 0 : index
    %51 = vector.load %arg1[%c7, %c0_44, %c0_45] : memref<8x132x320xbf16, #tpu.memory_space<vmem>>, vector<1x132x320xbf16>
    %52 = vector.shape_cast %51 : vector<1x132x320xbf16> to vector<132x320xbf16>
    %cst_46 = arith.constant dense<0.000000e+00> : vector<10x320xf32>
    %53 = tpu.matmul %50, %52, %cst_46 {dimension_numbers = #tpu.dot_dimension_numbers<[1], [0], [0], [1], [0, 0, 1, 1], [], []>} : vector<10x132xbf16>, vector<132x320xbf16>, vector<10x320xf32> -> vector<10x320xf32>
    %54 = arith.addf %47, %53 : vector<10x320xf32>
    %c0_47 = arith.constant 0 : index
    %c0_48 = arith.constant 0 : index
    %55 = vector.load %arg2[%c0_47, %c0_48] : memref<1x320xf32, #tpu.memory_space<vmem>>, vector<1x320xf32>
    %56 = vector.broadcast %55 : vector<1x320xf32> to vector<10x320xf32>
    %57 = arith.addf %54, %56 : vector<10x320xf32>
    %cst_49 = arith.constant 0.000000e+00 : f32
    %58 = vector.broadcast %cst_49 : f32 to vector<10x320xf32>
    %59 = arith.maximumf %57, %58 : vector<10x320xf32>
    %c0_50 = arith.constant 0 : index
    %c11 = arith.constant 11 : index
    %c0_51 = arith.constant 0 : index
    %60 = vector.load %arg0[%c0_50, %c11, %c0_51] : memref<4x22x132xf32, #tpu.memory_space<vmem>>, vector<1x10x132xf32>
    %61 = vector.shape_cast %60 : vector<1x10x132xf32> to vector<10x132xf32>
    %62 = arith.truncf %61 : vector<10x132xf32> to vector<10x132xbf16>
    %c0_52 = arith.constant 0 : index
    %c0_53 = arith.constant 0 : index
    %c0_54 = arith.constant 0 : index
    %63 = vector.load %arg1[%c0_52, %c0_53, %c0_54] : memref<8x132x320xbf16, #tpu.memory_space<vmem>>, vector<1x132x320xbf16>
    %64 = vector.shape_cast %63 : vector<1x132x320xbf16> to vector<132x320xbf16>
    %cst_55 = arith.constant dense<0.000000e+00> : vector<10x320xf32>
    %65 = tpu.matmul %62, %64, %cst_55 {dimension_numbers = #tpu.dot_dimension_numbers<[1], [0], [0], [1], [0, 0, 1, 1], [], []>} : vector<10x132xbf16>, vector<132x320xbf16>, vector<10x320xf32> -> vector<10x320xf32>
    %c1_56 = arith.constant 1 : index
    %c11_57 = arith.constant 11 : index
    %c0_58 = arith.constant 0 : index
    %66 = vector.load %arg0[%c1_56, %c11_57, %c0_58] : memref<4x22x132xf32, #tpu.memory_space<vmem>>, vector<1x10x132xf32>
    %67 = vector.shape_cast %66 : vector<1x10x132xf32> to vector<10x132xf32>
    %68 = arith.truncf %67 : vector<10x132xf32> to vector<10x132xbf16>
    %c1_59 = arith.constant 1 : index
    %c0_60 = arith.constant 0 : index
    %c0_61 = arith.constant 0 : index
    %69 = vector.load %arg1[%c1_59, %c0_60, %c0_61] : memref<8x132x320xbf16, #tpu.memory_space<vmem>>, vector<1x132x320xbf16>
    %70 = vector.shape_cast %69 : vector<1x132x320xbf16> to vector<132x320xbf16>
    %cst_62 = arith.constant dense<0.000000e+00> : vector<10x320xf32>
    %71 = tpu.matmul %68, %70, %cst_62 {dimension_numbers = #tpu.dot_dimension_numbers<[1], [0], [0], [1], [0, 0, 1, 1], [], []>} : vector<10x132xbf16>, vector<132x320xbf16>, vector<10x320xf32> -> vector<10x320xf32>
    %72 = arith.addf %65, %71 : vector<10x320xf32>
    %c2_63 = arith.constant 2 : index
    %c11_64 = arith.constant 11 : index
    %c0_65 = arith.constant 0 : index
    %73 = vector.load %arg0[%c2_63, %c11_64, %c0_65] : memref<4x22x132xf32, #tpu.memory_space<vmem>>, vector<1x10x132xf32>
    %74 = vector.shape_cast %73 : vector<1x10x132xf32> to vector<10x132xf32>
    %75 = arith.truncf %74 : vector<10x132xf32> to vector<10x132xbf16>
    %c2_66 = arith.constant 2 : index
    %c0_67 = arith.constant 0 : index
    %c0_68 = arith.constant 0 : index
    %76 = vector.load %arg1[%c2_66, %c0_67, %c0_68] : memref<8x132x320xbf16, #tpu.memory_space<vmem>>, vector<1x132x320xbf16>
    %77 = vector.shape_cast %76 : vector<1x132x320xbf16> to vector<132x320xbf16>
    %cst_69 = arith.constant dense<0.000000e+00> : vector<10x320xf32>
    %78 = tpu.matmul %75, %77, %cst_69 {dimension_numbers = #tpu.dot_dimension_numbers<[1], [0], [0], [1], [0, 0, 1, 1], [], []>} : vector<10x132xbf16>, vector<132x320xbf16>, vector<10x320xf32> -> vector<10x320xf32>
    %79 = arith.addf %72, %78 : vector<10x320xf32>
    %c3_70 = arith.constant 3 : index
    %c11_71 = arith.constant 11 : index
    %c0_72 = arith.constant 0 : index
    %80 = vector.load %arg0[%c3_70, %c11_71, %c0_72] : memref<4x22x132xf32, #tpu.memory_space<vmem>>, vector<1x10x132xf32>
    %81 = vector.shape_cast %80 : vector<1x10x132xf32> to vector<10x132xf32>
    %82 = arith.truncf %81 : vector<10x132xf32> to vector<10x132xbf16>
    %c3_73 = arith.constant 3 : index
    %c0_74 = arith.constant 0 : index
    %c0_75 = arith.constant 0 : index
    %83 = vector.load %arg1[%c3_73, %c0_74, %c0_75] : memref<8x132x320xbf16, #tpu.memory_space<vmem>>, vector<1x132x320xbf16>
    %84 = vector.shape_cast %83 : vector<1x132x320xbf16> to vector<132x320xbf16>
    %cst_76 = arith.constant dense<0.000000e+00> : vector<10x320xf32>
    %85 = tpu.matmul %82, %84, %cst_76 {dimension_numbers = #tpu.dot_dimension_numbers<[1], [0], [0], [1], [0, 0, 1, 1], [], []>} : vector<10x132xbf16>, vector<132x320xbf16>, vector<10x320xf32> -> vector<10x320xf32>
    %86 = arith.addf %79, %85 : vector<10x320xf32>
    %c0_77 = arith.constant 0 : index
    %c12 = arith.constant 12 : index
    %c0_78 = arith.constant 0 : index
    %87 = vector.load %arg0[%c0_77, %c12, %c0_78] : memref<4x22x132xf32, #tpu.memory_space<vmem>>, vector<1x10x132xf32>
    %88 = vector.shape_cast %87 : vector<1x10x132xf32> to vector<10x132xf32>
    %89 = arith.truncf %88 : vector<10x132xf32> to vector<10x132xbf16>
    %c4_79 = arith.constant 4 : index
    %c0_80 = arith.constant 0 : index
    %c0_81 = arith.constant 0 : index
    %90 = vector.load %arg1[%c4_79, %c0_80, %c0_81] : memref<8x132x320xbf16, #tpu.memory_space<vmem>>, vector<1x132x320xbf16>
    %91 = vector.shape_cast %90 : vector<1x132x320xbf16> to vector<132x320xbf16>
    %cst_82 = arith.constant dense<0.000000e+00> : vector<10x320xf32>
    %92 = tpu.matmul %89, %91, %cst_82 {dimension_numbers = #tpu.dot_dimension_numbers<[1], [0], [0], [1], [0, 0, 1, 1], [], []>} : vector<10x132xbf16>, vector<132x320xbf16>, vector<10x320xf32> -> vector<10x320xf32>
    %93 = arith.addf %86, %92 : vector<10x320xf32>
    %c1_83 = arith.constant 1 : index
    %c12_84 = arith.constant 12 : index
    %c0_85 = arith.constant 0 : index
    %94 = vector.load %arg0[%c1_83, %c12_84, %c0_85] : memref<4x22x132xf32, #tpu.memory_space<vmem>>, vector<1x10x132xf32>
    %95 = vector.shape_cast %94 : vector<1x10x132xf32> to vector<10x132xf32>
    %96 = arith.truncf %95 : vector<10x132xf32> to vector<10x132xbf16>
    %c5_86 = arith.constant 5 : index
    %c0_87 = arith.constant 0 : index
    %c0_88 = arith.constant 0 : index
    %97 = vector.load %arg1[%c5_86, %c0_87, %c0_88] : memref<8x132x320xbf16, #tpu.memory_space<vmem>>, vector<1x132x320xbf16>
    %98 = vector.shape_cast %97 : vector<1x132x320xbf16> to vector<132x320xbf16>
    %cst_89 = arith.constant dense<0.000000e+00> : vector<10x320xf32>
    %99 = tpu.matmul %96, %98, %cst_89 {dimension_numbers = #tpu.dot_dimension_numbers<[1], [0], [0], [1], [0, 0, 1, 1], [], []>} : vector<10x132xbf16>, vector<132x320xbf16>, vector<10x320xf32> -> vector<10x320xf32>
    %100 = arith.addf %93, %99 : vector<10x320xf32>
    %c2_90 = arith.constant 2 : index
    %c12_91 = arith.constant 12 : index
    %c0_92 = arith.constant 0 : index
    %101 = vector.load %arg0[%c2_90, %c12_91, %c0_92] : memref<4x22x132xf32, #tpu.memory_space<vmem>>, vector<1x10x132xf32>
    %102 = vector.shape_cast %101 : vector<1x10x132xf32> to vector<10x132xf32>
    %103 = arith.truncf %102 : vector<10x132xf32> to vector<10x132xbf16>
    %c6_93 = arith.constant 6 : index
    %c0_94 = arith.constant 0 : index
    %c0_95 = arith.constant 0 : index
    %104 = vector.load %arg1[%c6_93, %c0_94, %c0_95] : memref<8x132x320xbf16, #tpu.memory_space<vmem>>, vector<1x132x320xbf16>
    %105 = vector.shape_cast %104 : vector<1x132x320xbf16> to vector<132x320xbf16>
    %cst_96 = arith.constant dense<0.000000e+00> : vector<10x320xf32>
    %106 = tpu.matmul %103, %105, %cst_96 {dimension_numbers = #tpu.dot_dimension_numbers<[1], [0], [0], [1], [0, 0, 1, 1], [], []>} : vector<10x132xbf16>, vector<132x320xbf16>, vector<10x320xf32> -> vector<10x320xf32>
    %107 = arith.addf %100, %106 : vector<10x320xf32>
    %c3_97 = arith.constant 3 : index
    %c12_98 = arith.constant 12 : index
    %c0_99 = arith.constant 0 : index
    %108 = vector.load %arg0[%c3_97, %c12_98, %c0_99] : memref<4x22x132xf32, #tpu.memory_space<vmem>>, vector<1x10x132xf32>
    %109 = vector.shape_cast %108 : vector<1x10x132xf32> to vector<10x132xf32>
    %110 = arith.truncf %109 : vector<10x132xf32> to vector<10x132xbf16>
    %c7_100 = arith.constant 7 : index
    %c0_101 = arith.constant 0 : index
    %c0_102 = arith.constant 0 : index
    %111 = vector.load %arg1[%c7_100, %c0_101, %c0_102] : memref<8x132x320xbf16, #tpu.memory_space<vmem>>, vector<1x132x320xbf16>
    %112 = vector.shape_cast %111 : vector<1x132x320xbf16> to vector<132x320xbf16>
    %cst_103 = arith.constant dense<0.000000e+00> : vector<10x320xf32>
    %113 = tpu.matmul %110, %112, %cst_103 {dimension_numbers = #tpu.dot_dimension_numbers<[1], [0], [0], [1], [0, 0, 1, 1], [], []>} : vector<10x132xbf16>, vector<132x320xbf16>, vector<10x320xf32> -> vector<10x320xf32>
    %114 = arith.addf %107, %113 : vector<10x320xf32>
    %c0_104 = arith.constant 0 : index
    %c0_105 = arith.constant 0 : index
    %115 = vector.load %arg2[%c0_104, %c0_105] : memref<1x320xf32, #tpu.memory_space<vmem>>, vector<1x320xf32>
    %116 = vector.broadcast %115 : vector<1x320xf32> to vector<10x320xf32>
    %117 = arith.addf %114, %116 : vector<10x320xf32>
    %cst_106 = arith.constant 0.000000e+00 : f32
    %118 = vector.broadcast %cst_106 : f32 to vector<10x320xf32>
    %119 = arith.maximumf %117, %118 : vector<10x320xf32>
    %120 = vector.extract_strided_slice %59 {offsets = [0, 0], sizes = [1, 320], strides = [1, 1]} : vector<10x320xf32> to vector<1x320xf32>
    %c0_107 = arith.constant 0 : index
    %c0_108 = arith.constant 0 : index
    %c0_109 = arith.constant 0 : index
    %121 = vector.load %arg20[%c0_107, %c0_108, %c0_109] : memref<2x10x320xf32, #tpu.memory_space<vmem>>, vector<1x1x320xf32>
    %122 = vector.shape_cast %121 : vector<1x1x320xf32> to vector<1x320xf32>
    %123 = vector.shape_cast %120 : vector<1x320xf32> to vector<1x1x320xf32>
    tpu.vector_store %arg20[%c0_107, %c0_108, %c0_109], %123 {strides = array<i32>} : memref<2x10x320xf32, #tpu.memory_space<vmem>>, vector<1x1x320xf32>,
    %124 = vector.extract_strided_slice %59 {offsets = [1, 0], sizes = [1, 320], strides = [1, 1]} : vector<10x320xf32> to vector<1x320xf32>
    %c1_110 = arith.constant 1 : index
    %c0_111 = arith.constant 0 : index
    %c0_112 = arith.constant 0 : index
    %125 = vector.load %arg20[%c1_110, %c0_111, %c0_112] : memref<2x10x320xf32, #tpu.memory_space<vmem>>, vector<1x1x320xf32>
    %126 = vector.shape_cast %125 : vector<1x1x320xf32> to vector<1x320xf32>
    %127 = vector.shape_cast %124 : vector<1x320xf32> to vector<1x1x320xf32>
    tpu.vector_store %arg20[%c1_110, %c0_111, %c0_112], %127 {strides = array<i32>} : memref<2x10x320xf32, #tpu.memory_space<vmem>>, vector<1x1x320xf32>,
    %128 = vector.extract_strided_slice %59 {offsets = [2, 0], sizes = [1, 320], strides = [1, 1]} : vector<10x320xf32> to vector<1x320xf32>
    %c0_113 = arith.constant 0 : index
    %c1_114 = arith.constant 1 : index
    %c0_115 = arith.constant 0 : index
    %129 = vector.load %arg20[%c0_113, %c1_114, %c0_115] : memref<2x10x320xf32, #tpu.memory_space<vmem>>, vector<1x1x320xf32>
    %130 = vector.shape_cast %129 : vector<1x1x320xf32> to vector<1x320xf32>
    %131 = vector.shape_cast %128 : vector<1x320xf32> to vector<1x1x320xf32>
    tpu.vector_store %arg20[%c0_113, %c1_114, %c0_115], %131 {strides = array<i32>} : memref<2x10x320xf32, #tpu.memory_space<vmem>>, vector<1x1x320xf32>,
    %132 = vector.extract_strided_slice %59 {offsets = [3, 0], sizes = [1, 320], strides = [1, 1]} : vector<10x320xf32> to vector<1x320xf32>
    %c1_116 = arith.constant 1 : index
    %c1_117 = arith.constant 1 : index
    %c0_118 = arith.constant 0 : index
    %133 = vector.load %arg20[%c1_116, %c1_117, %c0_118] : memref<2x10x320xf32, #tpu.memory_space<vmem>>, vector<1x1x320xf32>
    %134 = vector.shape_cast %133 : vector<1x1x320xf32> to vector<1x320xf32>
    %135 = vector.shape_cast %132 : vector<1x320xf32> to vector<1x1x320xf32>
    tpu.vector_store %arg20[%c1_116, %c1_117, %c0_118], %135 {strides = array<i32>} : memref<2x10x320xf32, #tpu.memory_space<vmem>>, vector<1x1x320xf32>,
    %136 = vector.extract_strided_slice %59 {offsets = [4, 0], sizes = [1, 320], strides = [1, 1]} : vector<10x320xf32> to vector<1x320xf32>
    %c0_119 = arith.constant 0 : index
    %c2_120 = arith.constant 2 : index
    %c0_121 = arith.constant 0 : index
    %137 = vector.load %arg20[%c0_119, %c2_120, %c0_121] : memref<2x10x320xf32, #tpu.memory_space<vmem>>, vector<1x1x320xf32>
    %138 = vector.shape_cast %137 : vector<1x1x320xf32> to vector<1x320xf32>
    %139 = vector.shape_cast %136 : vector<1x320xf32> to vector<1x1x320xf32>
    tpu.vector_store %arg20[%c0_119, %c2_120, %c0_121], %139 {strides = array<i32>} : memref<2x10x320xf32, #tpu.memory_space<vmem>>, vector<1x1x320xf32>,
    %140 = vector.extract_strided_slice %59 {offsets = [5, 0], sizes = [1, 320], strides = [1, 1]} : vector<10x320xf32> to vector<1x320xf32>
    %c1_122 = arith.constant 1 : index
    %c2_123 = arith.constant 2 : index
    %c0_124 = arith.constant 0 : index
    %141 = vector.load %arg20[%c1_122, %c2_123, %c0_124] : memref<2x10x320xf32, #tpu.memory_space<vmem>>, vector<1x1x320xf32>
    %142 = vector.shape_cast %141 : vector<1x1x320xf32> to vector<1x320xf32>
    %143 = vector.shape_cast %140 : vector<1x320xf32> to vector<1x1x320xf32>
    tpu.vector_store %arg20[%c1_122, %c2_123, %c0_124], %143 {strides = array<i32>} : memref<2x10x320xf32, #tpu.memory_space<vmem>>, vector<1x1x320xf32>,
    %144 = vector.extract_strided_slice %59 {offsets = [6, 0], sizes = [1, 320], strides = [1, 1]} : vector<10x320xf32> to vector<1x320xf32>
    %c0_125 = arith.constant 0 : index
    %c3_126 = arith.constant 3 : index
    %c0_127 = arith.constant 0 : index
    %145 = vector.load %arg20[%c0_125, %c3_126, %c0_127] : memref<2x10x320xf32, #tpu.memory_space<vmem>>, vector<1x1x320xf32>
    %146 = vector.shape_cast %145 : vector<1x1x320xf32> to vector<1x320xf32>
    %147 = vector.shape_cast %144 : vector<1x320xf32> to vector<1x1x320xf32>
    tpu.vector_store %arg20[%c0_125, %c3_126, %c0_127], %147 {strides = array<i32>} : memref<2x10x320xf32, #tpu.memory_space<vmem>>, vector<1x1x320xf32>,
    %148 = vector.extract_strided_slice %59 {offsets = [7, 0], sizes = [1, 320], strides = [1, 1]} : vector<10x320xf32> to vector<1x320xf32>
    %c1_128 = arith.constant 1 : index
    %c3_129 = arith.constant 3 : index
    %c0_130 = arith.constant 0 : index
    %149 = vector.load %arg20[%c1_128, %c3_129, %c0_130] : memref<2x10x320xf32, #tpu.memory_space<vmem>>, vector<1x1x320xf32>
    %150 = vector.shape_cast %149 : vector<1x1x320xf32> to vector<1x320xf32>
    %151 = vector.shape_cast %148 : vector<1x320xf32> to vector<1x1x320xf32>
    tpu.vector_store %arg20[%c1_128, %c3_129, %c0_130], %151 {strides = array<i32>} : memref<2x10x320xf32, #tpu.memory_space<vmem>>, vector<1x1x320xf32>,
    %152 = vector.extract_strided_slice %59 {offsets = [8, 0], sizes = [1, 320], strides = [1, 1]} : vector<10x320xf32> to vector<1x320xf32>
    %c0_131 = arith.constant 0 : index
    %c4_132 = arith.constant 4 : index
    %c0_133 = arith.constant 0 : index
    %153 = vector.load %arg20[%c0_131, %c4_132, %c0_133] : memref<2x10x320xf32, #tpu.memory_space<vmem>>, vector<1x1x320xf32>
    %154 = vector.shape_cast %153 : vector<1x1x320xf32> to vector<1x320xf32>
    %155 = vector.shape_cast %152 : vector<1x320xf32> to vector<1x1x320xf32>
    tpu.vector_store %arg20[%c0_131, %c4_132, %c0_133], %155 {strides = array<i32>} : memref<2x10x320xf32, #tpu.memory_space<vmem>>, vector<1x1x320xf32>,
    %156 = vector.extract_strided_slice %59 {offsets = [9, 0], sizes = [1, 320], strides = [1, 1]} : vector<10x320xf32> to vector<1x320xf32>
    %c1_134 = arith.constant 1 : index
    %c4_135 = arith.constant 4 : index
    %c0_136 = arith.constant 0 : index
    %157 = vector.load %arg20[%c1_134, %c4_135, %c0_136] : memref<2x10x320xf32, #tpu.memory_space<vmem>>, vector<1x1x320xf32>
    %158 = vector.shape_cast %157 : vector<1x1x320xf32> to vector<1x320xf32>
    %159 = vector.shape_cast %156 : vector<1x320xf32> to vector<1x1x320xf32>
    tpu.vector_store %arg20[%c1_134, %c4_135, %c0_136], %159 {strides = array<i32>} : memref<2x10x320xf32, #tpu.memory_space<vmem>>, vector<1x1x320xf32>,
    %160 = vector.extract_strided_slice %119 {offsets = [0, 0], sizes = [1, 320], strides = [1, 1]} : vector<10x320xf32> to vector<1x320xf32>
    %c0_137 = arith.constant 0 : index
    %c5_138 = arith.constant 5 : index
    %c0_139 = arith.constant 0 : index
    %161 = vector.load %arg20[%c0_137, %c5_138, %c0_139] : memref<2x10x320xf32, #tpu.memory_space<vmem>>, vector<1x1x320xf32>
    %162 = vector.shape_cast %161 : vector<1x1x320xf32> to vector<1x320xf32>
    %163 = vector.shape_cast %160 : vector<1x320xf32> to vector<1x1x320xf32>
    tpu.vector_store %arg20[%c0_137, %c5_138, %c0_139], %163 {strides = array<i32>} : memref<2x10x320xf32, #tpu.memory_space<vmem>>, vector<1x1x320xf32>,
    %164 = vector.extract_strided_slice %119 {offsets = [1, 0], sizes = [1, 320], strides = [1, 1]} : vector<10x320xf32> to vector<1x320xf32>
    %c1_140 = arith.constant 1 : index
    %c5_141 = arith.constant 5 : index
    %c0_142 = arith.constant 0 : index
    %165 = vector.load %arg20[%c1_140, %c5_141, %c0_142] : memref<2x10x320xf32, #tpu.memory_space<vmem>>, vector<1x1x320xf32>
    %166 = vector.shape_cast %165 : vector<1x1x320xf32> to vector<1x320xf32>
    %167 = vector.shape_cast %164 : vector<1x320xf32> to vector<1x1x320xf32>
    tpu.vector_store %arg20[%c1_140, %c5_141, %c0_142], %167 {strides = array<i32>} : memref<2x10x320xf32, #tpu.memory_space<vmem>>, vector<1x1x320xf32>,
    %168 = vector.extract_strided_slice %119 {offsets = [2, 0], sizes = [1, 320], strides = [1, 1]} : vector<10x320xf32> to vector<1x320xf32>
    %c0_143 = arith.constant 0 : index
    %c6_144 = arith.constant 6 : index
    %c0_145 = arith.constant 0 : index
    %169 = vector.load %arg20[%c0_143, %c6_144, %c0_145] : memref<2x10x320xf32, #tpu.memory_space<vmem>>, vector<1x1x320xf32>
    %170 = vector.shape_cast %169 : vector<1x1x320xf32> to vector<1x320xf32>
    %171 = vector.shape_cast %168 : vector<1x320xf32> to vector<1x1x320xf32>
    tpu.vector_store %arg20[%c0_143, %c6_144, %c0_145], %171 {strides = array<i32>} : memref<2x10x320xf32, #tpu.memory_space<vmem>>, vector<1x1x320xf32>,
    %172 = vector.extract_strided_slice %119 {offsets = [3, 0], sizes = [1, 320], strides = [1, 1]} : vector<10x320xf32> to vector<1x320xf32>
    %c1_146 = arith.constant 1 : index
    %c6_147 = arith.constant 6 : index
    %c0_148 = arith.constant 0 : index
    %173 = vector.load %arg20[%c1_146, %c6_147, %c0_148] : memref<2x10x320xf32, #tpu.memory_space<vmem>>, vector<1x1x320xf32>
    %174 = vector.shape_cast %173 : vector<1x1x320xf32> to vector<1x320xf32>
    %175 = vector.shape_cast %172 : vector<1x320xf32> to vector<1x1x320xf32>
    tpu.vector_store %arg20[%c1_146, %c6_147, %c0_148], %175 {strides = array<i32>} : memref<2x10x320xf32, #tpu.memory_space<vmem>>, vector<1x1x320xf32>,
    %176 = vector.extract_strided_slice %119 {offsets = [4, 0], sizes = [1, 320], strides = [1, 1]} : vector<10x320xf32> to vector<1x320xf32>
    %c0_149 = arith.constant 0 : index
    %c7_150 = arith.constant 7 : index
    %c0_151 = arith.constant 0 : index
    %177 = vector.load %arg20[%c0_149, %c7_150, %c0_151] : memref<2x10x320xf32, #tpu.memory_space<vmem>>, vector<1x1x320xf32>
    %178 = vector.shape_cast %177 : vector<1x1x320xf32> to vector<1x320xf32>
    %179 = vector.shape_cast %176 : vector<1x320xf32> to vector<1x1x320xf32>
    tpu.vector_store %arg20[%c0_149, %c7_150, %c0_151], %179 {strides = array<i32>} : memref<2x10x320xf32, #tpu.memory_space<vmem>>, vector<1x1x320xf32>,
    %180 = vector.extract_strided_slice %119 {offsets = [5, 0], sizes = [1, 320], strides = [1, 1]} : vector<10x320xf32> to vector<1x320xf32>
    %c1_152 = arith.constant 1 : index
    %c7_153 = arith.constant 7 : index
    %c0_154 = arith.constant 0 : index
    %181 = vector.load %arg20[%c1_152, %c7_153, %c0_154] : memref<2x10x320xf32, #tpu.memory_space<vmem>>, vector<1x1x320xf32>
    %182 = vector.shape_cast %181 : vector<1x1x320xf32> to vector<1x320xf32>
    %183 = vector.shape_cast %180 : vector<1x320xf32> to vector<1x1x320xf32>
    tpu.vector_store %arg20[%c1_152, %c7_153, %c0_154], %183 {strides = array<i32>} : memref<2x10x320xf32, #tpu.memory_space<vmem>>, vector<1x1x320xf32>,
    %184 = vector.extract_strided_slice %119 {offsets = [6, 0], sizes = [1, 320], strides = [1, 1]} : vector<10x320xf32> to vector<1x320xf32>
    %c0_155 = arith.constant 0 : index
    %c8 = arith.constant 8 : index
    %c0_156 = arith.constant 0 : index
    %185 = vector.load %arg20[%c0_155, %c8, %c0_156] : memref<2x10x320xf32, #tpu.memory_space<vmem>>, vector<1x1x320xf32>
    %186 = vector.shape_cast %185 : vector<1x1x320xf32> to vector<1x320xf32>
    %187 = vector.shape_cast %184 : vector<1x320xf32> to vector<1x1x320xf32>
    tpu.vector_store %arg20[%c0_155, %c8, %c0_156], %187 {strides = array<i32>} : memref<2x10x320xf32, #tpu.memory_space<vmem>>, vector<1x1x320xf32>,
    %188 = vector.extract_strided_slice %119 {offsets = [7, 0], sizes = [1, 320], strides = [1, 1]} : vector<10x320xf32> to vector<1x320xf32>
    %c1_157 = arith.constant 1 : index
    %c8_158 = arith.constant 8 : index
    %c0_159 = arith.constant 0 : index
    %189 = vector.load %arg20[%c1_157, %c8_158, %c0_159] : memref<2x10x320xf32, #tpu.memory_space<vmem>>, vector<1x1x320xf32>
    %190 = vector.shape_cast %189 : vector<1x1x320xf32> to vector<1x320xf32>
    %191 = vector.shape_cast %188 : vector<1x320xf32> to vector<1x1x320xf32>
    tpu.vector_store %arg20[%c1_157, %c8_158, %c0_159], %191 {strides = array<i32>} : memref<2x10x320xf32, #tpu.memory_space<vmem>>, vector<1x1x320xf32>,
    %192 = vector.extract_strided_slice %119 {offsets = [8, 0], sizes = [1, 320], strides = [1, 1]} : vector<10x320xf32> to vector<1x320xf32>
    %c0_160 = arith.constant 0 : index
    %c9 = arith.constant 9 : index
    %c0_161 = arith.constant 0 : index
    %193 = vector.load %arg20[%c0_160, %c9, %c0_161] : memref<2x10x320xf32, #tpu.memory_space<vmem>>, vector<1x1x320xf32>
    %194 = vector.shape_cast %193 : vector<1x1x320xf32> to vector<1x320xf32>
    %195 = vector.shape_cast %192 : vector<1x320xf32> to vector<1x1x320xf32>
    tpu.vector_store %arg20[%c0_160, %c9, %c0_161], %195 {strides = array<i32>} : memref<2x10x320xf32, #tpu.memory_space<vmem>>, vector<1x1x320xf32>,
    %196 = vector.extract_strided_slice %119 {offsets = [9, 0], sizes = [1, 320], strides = [1, 1]} : vector<10x320xf32> to vector<1x320xf32>
    %c1_162 = arith.constant 1 : index
    %c9_163 = arith.constant 9 : index
    %c0_164 = arith.constant 0 : index
    %197 = vector.load %arg20[%c1_162, %c9_163, %c0_164] : memref<2x10x320xf32, #tpu.memory_space<vmem>>, vector<1x1x320xf32>
    %198 = vector.shape_cast %197 : vector<1x1x320xf32> to vector<1x320xf32>
    %199 = vector.shape_cast %196 : vector<1x320xf32> to vector<1x1x320xf32>
    tpu.vector_store %arg20[%c1_162, %c9_163, %c0_164], %199 {strides = array<i32>} : memref<2x10x320xf32, #tpu.memory_space<vmem>>, vector<1x1x320xf32>,
    %c0_165 = arith.constant 0 : index
    %c0_166 = arith.constant 0 : index
    %c0_167 = arith.constant 0 : index
    %200 = vector.load %arg20[%c0_165, %c0_166, %c0_167] : memref<2x10x320xf32, #tpu.memory_space<vmem>>, vector<1x4x320xf32>
    %201 = vector.shape_cast %200 : vector<1x4x320xf32> to vector<4x320xf32>
    %202 = arith.truncf %201 : vector<4x320xf32> to vector<4x320xbf16>
    %c0_168 = arith.constant 0 : index
    %c0_169 = arith.constant 0 : index
    %c0_170 = arith.constant 0 : index
    %203 = vector.load %arg3[%c0_168, %c0_169, %c0_170] : memref<4x320x256xbf16, #tpu.memory_space<vmem>>, vector<1x320x256xbf16>
    %204 = vector.shape_cast %203 : vector<1x320x256xbf16> to vector<320x256xbf16>
    %cst_171 = arith.constant dense<0.000000e+00> : vector<4x256xf32>
    %205 = tpu.matmul %202, %204, %cst_171 {dimension_numbers = #tpu.dot_dimension_numbers<[1], [0], [0], [1], [0, 0, 1, 1], [], []>} : vector<4x320xbf16>, vector<320x256xbf16>, vector<4x256xf32> -> vector<4x256xf32>
    %c1_172 = arith.constant 1 : index
    %c0_173 = arith.constant 0 : index
    %c0_174 = arith.constant 0 : index
    %206 = vector.load %arg20[%c1_172, %c0_173, %c0_174] : memref<2x10x320xf32, #tpu.memory_space<vmem>>, vector<1x4x320xf32>
    %207 = vector.shape_cast %206 : vector<1x4x320xf32> to vector<4x320xf32>
    %208 = arith.truncf %207 : vector<4x320xf32> to vector<4x320xbf16>
    %c1_175 = arith.constant 1 : index
    %c0_176 = arith.constant 0 : index
    %c0_177 = arith.constant 0 : index
    %209 = vector.load %arg3[%c1_175, %c0_176, %c0_177] : memref<4x320x256xbf16, #tpu.memory_space<vmem>>, vector<1x320x256xbf16>
    %210 = vector.shape_cast %209 : vector<1x320x256xbf16> to vector<320x256xbf16>
    %cst_178 = arith.constant dense<0.000000e+00> : vector<4x256xf32>
    %211 = tpu.matmul %208, %210, %cst_178 {dimension_numbers = #tpu.dot_dimension_numbers<[1], [0], [0], [1], [0, 0, 1, 1], [], []>} : vector<4x320xbf16>, vector<320x256xbf16>, vector<4x256xf32> -> vector<4x256xf32>
    %212 = arith.addf %205, %211 : vector<4x256xf32>
    %c0_179 = arith.constant 0 : index
    %c1_180 = arith.constant 1 : index
    %c0_181 = arith.constant 0 : index
    %213 = vector.load %arg20[%c0_179, %c1_180, %c0_181] : memref<2x10x320xf32, #tpu.memory_space<vmem>>, vector<1x4x320xf32>
    %214 = vector.shape_cast %213 : vector<1x4x320xf32> to vector<4x320xf32>
    %215 = arith.truncf %214 : vector<4x320xf32> to vector<4x320xbf16>
    %c2_182 = arith.constant 2 : index
    %c0_183 = arith.constant 0 : index
    %c0_184 = arith.constant 0 : index
    %216 = vector.load %arg3[%c2_182, %c0_183, %c0_184] : memref<4x320x256xbf16, #tpu.memory_space<vmem>>, vector<1x320x256xbf16>
    %217 = vector.shape_cast %216 : vector<1x320x256xbf16> to vector<320x256xbf16>
    %cst_185 = arith.constant dense<0.000000e+00> : vector<4x256xf32>
    %218 = tpu.matmul %215, %217, %cst_185 {dimension_numbers = #tpu.dot_dimension_numbers<[1], [0], [0], [1], [0, 0, 1, 1], [], []>} : vector<4x320xbf16>, vector<320x256xbf16>, vector<4x256xf32> -> vector<4x256xf32>
    %219 = arith.addf %212, %218 : vector<4x256xf32>
    %c1_186 = arith.constant 1 : index
    %c1_187 = arith.constant 1 : index
    %c0_188 = arith.constant 0 : index
    %220 = vector.load %arg20[%c1_186, %c1_187, %c0_188] : memref<2x10x320xf32, #tpu.memory_space<vmem>>, vector<1x4x320xf32>
    %221 = vector.shape_cast %220 : vector<1x4x320xf32> to vector<4x320xf32>
    %222 = arith.truncf %221 : vector<4x320xf32> to vector<4x320xbf16>
    %c3_189 = arith.constant 3 : index
    %c0_190 = arith.constant 0 : index
    %c0_191 = arith.constant 0 : index
    %223 = vector.load %arg3[%c3_189, %c0_190, %c0_191] : memref<4x320x256xbf16, #tpu.memory_space<vmem>>, vector<1x320x256xbf16>
    %224 = vector.shape_cast %223 : vector<1x320x256xbf16> to vector<320x256xbf16>
    %cst_192 = arith.constant dense<0.000000e+00> : vector<4x256xf32>
    %225 = tpu.matmul %222, %224, %cst_192 {dimension_numbers = #tpu.dot_dimension_numbers<[1], [0], [0], [1], [0, 0, 1, 1], [], []>} : vector<4x320xbf16>, vector<320x256xbf16>, vector<4x256xf32> -> vector<4x256xf32>
    %226 = arith.addf %219, %225 : vector<4x256xf32>
    %c0_193 = arith.constant 0 : index
    %c0_194 = arith.constant 0 : index
    %227 = vector.load %arg4[%c0_193, %c0_194] : memref<1x256xf32, #tpu.memory_space<vmem>>, vector<1x256xf32>
    %228 = vector.broadcast %227 : vector<1x256xf32> to vector<4x256xf32>
    %229 = arith.addf %226, %228 : vector<4x256xf32>
    %cst_195 = arith.constant 0.000000e+00 : f32
    %230 = vector.broadcast %cst_195 : f32 to vector<4x256xf32>
    %231 = arith.maximumf %229, %230 : vector<4x256xf32>
    %232 = vector.extract_strided_slice %231 {offsets = [0, 0], sizes = [2, 256], strides = [1, 1]} : vector<4x256xf32> to vector<2x256xf32>
    %233 = arith.truncf %232 : vector<2x256xf32> to vector<2x256xbf16>
    %c0_196 = arith.constant 0 : index
    %c0_197 = arith.constant 0 : index
    %c0_198 = arith.constant 0 : index
    %234 = vector.load %arg5[%c0_196, %c0_197, %c0_198] : memref<3x256x128xbf16, #tpu.memory_space<vmem>>, vector<1x256x128xbf16>
    %235 = vector.shape_cast %234 : vector<1x256x128xbf16> to vector<256x128xbf16>
    %cst_199 = arith.constant dense<0.000000e+00> : vector<2x128xf32>
    %236 = tpu.matmul %233, %235, %cst_199 {dimension_numbers = #tpu.dot_dimension_numbers<[1], [0], [0], [1], [0, 0, 1, 1], [], []>} : vector<2x256xbf16>, vector<256x128xbf16>, vector<2x128xf32> -> vector<2x128xf32>
    %237 = vector.extract_strided_slice %231 {offsets = [1, 0], sizes = [2, 256], strides = [1, 1]} : vector<4x256xf32> to vector<2x256xf32>
    %238 = arith.truncf %237 : vector<2x256xf32> to vector<2x256xbf16>
    %c1_200 = arith.constant 1 : index
    %c0_201 = arith.constant 0 : index
    %c0_202 = arith.constant 0 : index
    %239 = vector.load %arg5[%c1_200, %c0_201, %c0_202] : memref<3x256x128xbf16, #tpu.memory_space<vmem>>, vector<1x256x128xbf16>
    %240 = vector.shape_cast %239 : vector<1x256x128xbf16> to vector<256x128xbf16>
    %cst_203 = arith.constant dense<0.000000e+00> : vector<2x128xf32>
    %241 = tpu.matmul %238, %240, %cst_203 {dimension_numbers = #tpu.dot_dimension_numbers<[1], [0], [0], [1], [0, 0, 1, 1], [], []>} : vector<2x256xbf16>, vector<256x128xbf16>, vector<2x128xf32> -> vector<2x128xf32>
    %242 = arith.addf %236, %241 : vector<2x128xf32>
    %243 = vector.extract_strided_slice %231 {offsets = [2, 0], sizes = [2, 256], strides = [1, 1]} : vector<4x256xf32> to vector<2x256xf32>
    %244 = arith.truncf %243 : vector<2x256xf32> to vector<2x256xbf16>
    %c2_204 = arith.constant 2 : index
    %c0_205 = arith.constant 0 : index
    %c0_206 = arith.constant 0 : index
    %245 = vector.load %arg5[%c2_204, %c0_205, %c0_206] : memref<3x256x128xbf16, #tpu.memory_space<vmem>>, vector<1x256x128xbf16>
    %246 = vector.shape_cast %245 : vector<1x256x128xbf16> to vector<256x128xbf16>
    %cst_207 = arith.constant dense<0.000000e+00> : vector<2x128xf32>
    %247 = tpu.matmul %244, %246, %cst_207 {dimension_numbers = #tpu.dot_dimension_numbers<[1], [0], [0], [1], [0, 0, 1, 1], [], []>} : vector<2x256xbf16>, vector<256x128xbf16>, vector<2x128xf32> -> vector<2x128xf32>
    %248 = arith.addf %242, %247 : vector<2x128xf32>
    %c0_208 = arith.constant 0 : index
    %c0_209 = arith.constant 0 : index
    %249 = vector.load %arg6[%c0_208, %c0_209] : memref<1x128xf32, #tpu.memory_space<vmem>>, vector<1x128xf32>
    %250 = vector.broadcast %249 : vector<1x128xf32> to vector<2x128xf32>
    %251 = arith.addf %248, %250 : vector<2x128xf32>
    %cst_210 = arith.constant 0.000000e+00 : f32
    %252 = vector.broadcast %cst_210 : f32 to vector<2x128xf32>
    %253 = arith.maximumf %251, %252 : vector<2x128xf32>
    %254 = vector.extract_strided_slice %253 {offsets = [0, 0], sizes = [1, 128], strides = [1, 1]} : vector<2x128xf32> to vector<1x128xf32>
    %255 = arith.truncf %254 : vector<1x128xf32> to vector<1x128xbf16>
    %c0_211 = arith.constant 0 : index
    %c0_212 = arith.constant 0 : index
    %c0_213 = arith.constant 0 : index
    %256 = vector.load %arg7[%c0_211, %c0_212, %c0_213] : memref<2x128x512xbf16, #tpu.memory_space<vmem>>, vector<1x128x512xbf16>
    %257 = vector.shape_cast %256 : vector<1x128x512xbf16> to vector<128x512xbf16>
    %cst_214 = arith.constant dense<0.000000e+00> : vector<1x512xf32>
    %258 = tpu.matmul %255, %257, %cst_214 {dimension_numbers = #tpu.dot_dimension_numbers<[1], [0], [0], [1], [0, 0, 1, 1], [], []>} : vector<1x128xbf16>, vector<128x512xbf16>, vector<1x512xf32> -> vector<1x512xf32>
    %259 = vector.extract_strided_slice %253 {offsets = [1, 0], sizes = [1, 128], strides = [1, 1]} : vector<2x128xf32> to vector<1x128xf32>
    %260 = arith.truncf %259 : vector<1x128xf32> to vector<1x128xbf16>
    %c1_215 = arith.constant 1 : index
    %c0_216 = arith.constant 0 : index
    %c0_217 = arith.constant 0 : index
    %261 = vector.load %arg7[%c1_215, %c0_216, %c0_217] : memref<2x128x512xbf16, #tpu.memory_space<vmem>>, vector<1x128x512xbf16>
    %262 = vector.shape_cast %261 : vector<1x128x512xbf16> to vector<128x512xbf16>
    %cst_218 = arith.constant dense<0.000000e+00> : vector<1x512xf32>
    %263 = tpu.matmul %260, %262, %cst_218 {dimension_numbers = #tpu.dot_dimension_numbers<[1], [0], [0], [1], [0, 0, 1, 1], [], []>} : vector<1x128xbf16>, vector<128x512xbf16>, vector<1x512xf32> -> vector<1x512xf32>
    %264 = arith.addf %258, %263 : vector<1x512xf32>
    %c0_219 = arith.constant 0 : index
    %c0_220 = arith.constant 0 : index
    %265 = vector.load %arg8[%c0_219, %c0_220] : memref<1x512xf32, #tpu.memory_space<vmem>>, vector<1x512xf32>
    %266 = arith.addf %264, %265 : vector<1x512xf32>
    %cst_221 = arith.constant 0.000000e+00 : f32
    %267 = vector.broadcast %cst_221 : f32 to vector<1x512xf32>
    %268 = arith.maximumf %266, %267 : vector<1x512xf32>
    %c0_222 = arith.constant 0 : index
    %c0_223 = arith.constant 0 : index
    %269 = vector.load %arg21[%c0_222, %c0_223] : memref<2x512xf32, #tpu.memory_space<vmem>>, vector<1x512xf32>
    tpu.vector_store %arg21[%c0_222, %c0_223], %268 {strides = array<i32>} : memref<2x512xf32, #tpu.memory_space<vmem>>, vector<1x512xf32>,
    %c0_224 = arith.constant 0 : index
    %c5_225 = arith.constant 5 : index
    %c0_226 = arith.constant 0 : index
    %270 = vector.load %arg20[%c0_224, %c5_225, %c0_226] : memref<2x10x320xf32, #tpu.memory_space<vmem>>, vector<1x4x320xf32>
    %271 = vector.shape_cast %270 : vector<1x4x320xf32> to vector<4x320xf32>
    %272 = arith.truncf %271 : vector<4x320xf32> to vector<4x320xbf16>
    %c0_227 = arith.constant 0 : index
    %c0_228 = arith.constant 0 : index
    %c0_229 = arith.constant 0 : index
    %273 = vector.load %arg3[%c0_227, %c0_228, %c0_229] : memref<4x320x256xbf16, #tpu.memory_space<vmem>>, vector<1x320x256xbf16>
    %274 = vector.shape_cast %273 : vector<1x320x256xbf16> to vector<320x256xbf16>
    %cst_230 = arith.constant dense<0.000000e+00> : vector<4x256xf32>
    %275 = tpu.matmul %272, %274, %cst_230 {dimension_numbers = #tpu.dot_dimension_numbers<[1], [0], [0], [1], [0, 0, 1, 1], [], []>} : vector<4x320xbf16>, vector<320x256xbf16>, vector<4x256xf32> -> vector<4x256xf32>
    %c1_231 = arith.constant 1 : index
    %c5_232 = arith.constant 5 : index
    %c0_233 = arith.constant 0 : index
    %276 = vector.load %arg20[%c1_231, %c5_232, %c0_233] : memref<2x10x320xf32, #tpu.memory_space<vmem>>, vector<1x4x320xf32>
    %277 = vector.shape_cast %276 : vector<1x4x320xf32> to vector<4x320xf32>
    %278 = arith.truncf %277 : vector<4x320xf32> to vector<4x320xbf16>
    %c1_234 = arith.constant 1 : index
    %c0_235 = arith.constant 0 : index
    %c0_236 = arith.constant 0 : index
    %279 = vector.load %arg3[%c1_234, %c0_235, %c0_236] : memref<4x320x256xbf16, #tpu.memory_space<vmem>>, vector<1x320x256xbf16>
    %280 = vector.shape_cast %279 : vector<1x320x256xbf16> to vector<320x256xbf16>
    %cst_237 = arith.constant dense<0.000000e+00> : vector<4x256xf32>
    %281 = tpu.matmul %278, %280, %cst_237 {dimension_numbers = #tpu.dot_dimension_numbers<[1], [0], [0], [1], [0, 0, 1, 1], [], []>} : vector<4x320xbf16>, vector<320x256xbf16>, vector<4x256xf32> -> vector<4x256xf32>
    %282 = arith.addf %275, %281 : vector<4x256xf32>
    %c0_238 = arith.constant 0 : index
    %c6_239 = arith.constant 6 : index
    %c0_240 = arith.constant 0 : index
    %283 = vector.load %arg20[%c0_238, %c6_239, %c0_240] : memref<2x10x320xf32, #tpu.memory_space<vmem>>, vector<1x4x320xf32>
    %284 = vector.shape_cast %283 : vector<1x4x320xf32> to vector<4x320xf32>
    %285 = arith.truncf %284 : vector<4x320xf32> to vector<4x320xbf16>
    %c2_241 = arith.constant 2 : index
    %c0_242 = arith.constant 0 : index
    %c0_243 = arith.constant 0 : index
    %286 = vector.load %arg3[%c2_241, %c0_242, %c0_243] : memref<4x320x256xbf16, #tpu.memory_space<vmem>>, vector<1x320x256xbf16>
    %287 = vector.shape_cast %286 : vector<1x320x256xbf16> to vector<320x256xbf16>
    %cst_244 = arith.constant dense<0.000000e+00> : vector<4x256xf32>
    %288 = tpu.matmul %285, %287, %cst_244 {dimension_numbers = #tpu.dot_dimension_numbers<[1], [0], [0], [1], [0, 0, 1, 1], [], []>} : vector<4x320xbf16>, vector<320x256xbf16>, vector<4x256xf32> -> vector<4x256xf32>
    %289 = arith.addf %282, %288 : vector<4x256xf32>
    %c1_245 = arith.constant 1 : index
    %c6_246 = arith.constant 6 : index
    %c0_247 = arith.constant 0 : index
    %290 = vector.load %arg20[%c1_245, %c6_246, %c0_247] : memref<2x10x320xf32, #tpu.memory_space<vmem>>, vector<1x4x320xf32>
    %291 = vector.shape_cast %290 : vector<1x4x320xf32> to vector<4x320xf32>
    %292 = arith.truncf %291 : vector<4x320xf32> to vector<4x320xbf16>
    %c3_248 = arith.constant 3 : index
    %c0_249 = arith.constant 0 : index
    %c0_250 = arith.constant 0 : index
    %293 = vector.load %arg3[%c3_248, %c0_249, %c0_250] : memref<4x320x256xbf16, #tpu.memory_space<vmem>>, vector<1x320x256xbf16>
    %294 = vector.shape_cast %293 : vector<1x320x256xbf16> to vector<320x256xbf16>
    %cst_251 = arith.constant dense<0.000000e+00> : vector<4x256xf32>
    %295 = tpu.matmul %292, %294, %cst_251 {dimension_numbers = #tpu.dot_dimension_numbers<[1], [0], [0], [1], [0, 0, 1, 1], [], []>} : vector<4x320xbf16>, vector<320x256xbf16>, vector<4x256xf32> -> vector<4x256xf32>
    %296 = arith.addf %289, %295 : vector<4x256xf32>
    %c0_252 = arith.constant 0 : index
    %c0_253 = arith.constant 0 : index
    %297 = vector.load %arg4[%c0_252, %c0_253] : memref<1x256xf32, #tpu.memory_space<vmem>>, vector<1x256xf32>
    %298 = vector.broadcast %297 : vector<1x256xf32> to vector<4x256xf32>
    %299 = arith.addf %296, %298 : vector<4x256xf32>
    %cst_254 = arith.constant 0.000000e+00 : f32
    %300 = vector.broadcast %cst_254 : f32 to vector<4x256xf32>
    %301 = arith.maximumf %299, %300 : vector<4x256xf32>
    %302 = vector.extract_strided_slice %301 {offsets = [0, 0], sizes = [2, 256], strides = [1, 1]} : vector<4x256xf32> to vector<2x256xf32>
    %303 = arith.truncf %302 : vector<2x256xf32> to vector<2x256xbf16>
    %c0_255 = arith.constant 0 : index
    %c0_256 = arith.constant 0 : index
    %c0_257 = arith.constant 0 : index
    %304 = vector.load %arg5[%c0_255, %c0_256, %c0_257] : memref<3x256x128xbf16, #tpu.memory_space<vmem>>, vector<1x256x128xbf16>
    %305 = vector.shape_cast %304 : vector<1x256x128xbf16> to vector<256x128xbf16>
    %cst_258 = arith.constant dense<0.000000e+00> : vector<2x128xf32>
    %306 = tpu.matmul %303, %305, %cst_258 {dimension_numbers = #tpu.dot_dimension_numbers<[1], [0], [0], [1], [0, 0, 1, 1], [], []>} : vector<2x256xbf16>, vector<256x128xbf16>, vector<2x128xf32> -> vector<2x128xf32>
    %307 = vector.extract_strided_slice %301 {offsets = [1, 0], sizes = [2, 256], strides = [1, 1]} : vector<4x256xf32> to vector<2x256xf32>
    %308 = arith.truncf %307 : vector<2x256xf32> to vector<2x256xbf16>
    %c1_259 = arith.constant 1 : index
    %c0_260 = arith.constant 0 : index
    %c0_261 = arith.constant 0 : index
    %309 = vector.load %arg5[%c1_259, %c0_260, %c0_261] : memref<3x256x128xbf16, #tpu.memory_space<vmem>>, vector<1x256x128xbf16>
    %310 = vector.shape_cast %309 : vector<1x256x128xbf16> to vector<256x128xbf16>
    %cst_262 = arith.constant dense<0.000000e+00> : vector<2x128xf32>
    %311 = tpu.matmul %308, %310, %cst_262 {dimension_numbers = #tpu.dot_dimension_numbers<[1], [0], [0], [1], [0, 0, 1, 1], [], []>} : vector<2x256xbf16>, vector<256x128xbf16>, vector<2x128xf32> -> vector<2x128xf32>
    %312 = arith.addf %306, %311 : vector<2x128xf32>
    %313 = vector.extract_strided_slice %301 {offsets = [2, 0], sizes = [2, 256], strides = [1, 1]} : vector<4x256xf32> to vector<2x256xf32>
    %314 = arith.truncf %313 : vector<2x256xf32> to vector<2x256xbf16>
    %c2_263 = arith.constant 2 : index
    %c0_264 = arith.constant 0 : index
    %c0_265 = arith.constant 0 : index
    %315 = vector.load %arg5[%c2_263, %c0_264, %c0_265] : memref<3x256x128xbf16, #tpu.memory_space<vmem>>, vector<1x256x128xbf16>
    %316 = vector.shape_cast %315 : vector<1x256x128xbf16> to vector<256x128xbf16>
    %cst_266 = arith.constant dense<0.000000e+00> : vector<2x128xf32>
    %317 = tpu.matmul %314, %316, %cst_266 {dimension_numbers = #tpu.dot_dimension_numbers<[1], [0], [0], [1], [0, 0, 1, 1], [], []>} : vector<2x256xbf16>, vector<256x128xbf16>, vector<2x128xf32> -> vector<2x128xf32>
    %318 = arith.addf %312, %317 : vector<2x128xf32>
    %c0_267 = arith.constant 0 : index
    %c0_268 = arith.constant 0 : index
    %319 = vector.load %arg6[%c0_267, %c0_268] : memref<1x128xf32, #tpu.memory_space<vmem>>, vector<1x128xf32>
    %320 = vector.broadcast %319 : vector<1x128xf32> to vector<2x128xf32>
    %321 = arith.addf %318, %320 : vector<2x128xf32>
    %cst_269 = arith.constant 0.000000e+00 : f32
    %322 = vector.broadcast %cst_269 : f32 to vector<2x128xf32>
    %323 = arith.maximumf %321, %322 : vector<2x128xf32>
    %324 = vector.extract_strided_slice %323 {offsets = [0, 0], sizes = [1, 128], strides = [1, 1]} : vector<2x128xf32> to vector<1x128xf32>
    %325 = arith.truncf %324 : vector<1x128xf32> to vector<1x128xbf16>
    %c0_270 = arith.constant 0 : index
    %c0_271 = arith.constant 0 : index
    %c0_272 = arith.constant 0 : index
    %326 = vector.load %arg7[%c0_270, %c0_271, %c0_272] : memref<2x128x512xbf16, #tpu.memory_space<vmem>>, vector<1x128x512xbf16>
    %327 = vector.shape_cast %326 : vector<1x128x512xbf16> to vector<128x512xbf16>
    %cst_273 = arith.constant dense<0.000000e+00> : vector<1x512xf32>
    %328 = tpu.matmul %325, %327, %cst_273 {dimension_numbers = #tpu.dot_dimension_numbers<[1], [0], [0], [1], [0, 0, 1, 1], [], []>} : vector<1x128xbf16>, vector<128x512xbf16>, vector<1x512xf32> -> vector<1x512xf32>
    %329 = vector.extract_strided_slice %323 {offsets = [1, 0], sizes = [1, 128], strides = [1, 1]} : vector<2x128xf32> to vector<1x128xf32>
    %330 = arith.truncf %329 : vector<1x128xf32> to vector<1x128xbf16>
    %c1_274 = arith.constant 1 : index
    %c0_275 = arith.constant 0 : index
    %c0_276 = arith.constant 0 : index
    %331 = vector.load %arg7[%c1_274, %c0_275, %c0_276] : memref<2x128x512xbf16, #tpu.memory_space<vmem>>, vector<1x128x512xbf16>
    %332 = vector.shape_cast %331 : vector<1x128x512xbf16> to vector<128x512xbf16>
    %cst_277 = arith.constant dense<0.000000e+00> : vector<1x512xf32>
    %333 = tpu.matmul %330, %332, %cst_277 {dimension_numbers = #tpu.dot_dimension_numbers<[1], [0], [0], [1], [0, 0, 1, 1], [], []>} : vector<1x128xbf16>, vector<128x512xbf16>, vector<1x512xf32> -> vector<1x512xf32>
    %334 = arith.addf %328, %333 : vector<1x512xf32>
    %c0_278 = arith.constant 0 : index
    %c0_279 = arith.constant 0 : index
    %335 = vector.load %arg8[%c0_278, %c0_279] : memref<1x512xf32, #tpu.memory_space<vmem>>, vector<1x512xf32>
    %336 = arith.addf %334, %335 : vector<1x512xf32>
    %cst_280 = arith.constant 0.000000e+00 : f32
    %337 = vector.broadcast %cst_280 : f32 to vector<1x512xf32>
    %338 = arith.maximumf %336, %337 : vector<1x512xf32>
    %c1_281 = arith.constant 1 : index
    %c0_282 = arith.constant 0 : index
    %339 = vector.load %arg21[%c1_281, %c0_282] : memref<2x512xf32, #tpu.memory_space<vmem>>, vector<1x512xf32>
    tpu.vector_store %arg21[%c1_281, %c0_282], %338 {strides = array<i32>} : memref<2x512xf32, #tpu.memory_space<vmem>>, vector<1x512xf32>,
    %c0_283 = arith.constant 0 : index
    %c0_284 = arith.constant 0 : index
    %340 = vector.load %arg21[%c0_283, %c0_284] : memref<2x512xf32, #tpu.memory_space<vmem>>, vector<2x512xf32>
    %341 = arith.truncf %340 : vector<2x512xf32> to vector<2x512xbf16>
    %c0_285 = arith.constant 0 : index
    %c0_286 = arith.constant 0 : index
    %342 = vector.load %arg9[%c0_285, %c0_286] : memref<512x1024xbf16, #tpu.memory_space<vmem>>, vector<512x1024xbf16>
    %cst_287 = arith.constant dense<0.000000e+00> : vector<2x1024xf32>
    %343 = tpu.matmul %341, %342, %cst_287 {dimension_numbers = #tpu.dot_dimension_numbers<[1], [0], [0], [1], [0, 0, 1, 1], [], []>} : vector<2x512xbf16>, vector<512x1024xbf16>, vector<2x1024xf32> -> vector<2x1024xf32>
    %c0_288 = arith.constant 0 : index
    %c0_289 = arith.constant 0 : index
    %344 = vector.load %arg10[%c0_288, %c0_289] : memref<1x1024xf32, #tpu.memory_space<vmem>>, vector<1x1024xf32>
    %345 = vector.broadcast %344 : vector<1x1024xf32> to vector<2x1024xf32>
    %346 = arith.addf %343, %345 : vector<2x1024xf32>
    %cst_290 = arith.constant 0.000000e+00 : f32
    %347 = vector.broadcast %cst_290 : f32 to vector<2x1024xf32>
    %348 = arith.maximumf %346, %347 : vector<2x1024xf32>
    %349 = vector.extract_strided_slice %348 {offsets = [0, 0], sizes = [2, 512], strides = [1, 1]} : vector<2x1024xf32> to vector<2x512xf32>
    %350 = arith.truncf %349 : vector<2x512xf32> to vector<2x512xbf16>
    %c0_291 = arith.constant 0 : index
    %c0_292 = arith.constant 0 : index
    %351 = vector.load %arg11[%c0_291, %c0_292] : memref<512x512xbf16, #tpu.memory_space<vmem>>, vector<512x512xbf16>
    %cst_293 = arith.constant dense<0.000000e+00> : vector<2x512xf32>
    %352 = tpu.matmul %350, %351, %cst_293 {dimension_numbers = #tpu.dot_dimension_numbers<[1], [0], [0], [1], [0, 0, 1, 1], [], []>} : vector<2x512xbf16>, vector<512x512xbf16>, vector<2x512xf32> -> vector<2x512xf32>
    %c0_294 = arith.constant 0 : index
    %c0_295 = arith.constant 0 : index
    %353 = vector.load %arg12[%c0_294, %c0_295] : memref<1x512xf32, #tpu.memory_space<vmem>>, vector<1x512xf32>
    %354 = vector.broadcast %353 : vector<1x512xf32> to vector<2x512xf32>
    %355 = arith.addf %352, %354 : vector<2x512xf32>
    %cst_296 = arith.constant 0.000000e+00 : f32
    %356 = vector.broadcast %cst_296 : f32 to vector<2x512xf32>
    %357 = arith.maximumf %355, %356 : vector<2x512xf32>
    %358 = vector.extract_strided_slice %348 {offsets = [0, 512], sizes = [2, 512], strides = [1, 1]} : vector<2x1024xf32> to vector<2x512xf32>
    %359 = arith.truncf %358 : vector<2x512xf32> to vector<2x512xbf16>
    %c0_297 = arith.constant 0 : index
    %c0_298 = arith.constant 0 : index
    %360 = vector.load %arg13[%c0_297, %c0_298] : memref<512x512xbf16, #tpu.memory_space<vmem>>, vector<512x512xbf16>
    %cst_299 = arith.constant dense<0.000000e+00> : vector<2x512xf32>
    %361 = tpu.matmul %359, %360, %cst_299 {dimension_numbers = #tpu.dot_dimension_numbers<[1], [0], [0], [1], [0, 0, 1, 1], [], []>} : vector<2x512xbf16>, vector<512x512xbf16>, vector<2x512xf32> -> vector<2x512xf32>
    %c0_300 = arith.constant 0 : index
    %c0_301 = arith.constant 0 : index
    %362 = vector.load %arg14[%c0_300, %c0_301] : memref<1x512xf32, #tpu.memory_space<vmem>>, vector<1x512xf32>
    %363 = vector.broadcast %362 : vector<1x512xf32> to vector<2x512xf32>
    %364 = arith.addf %361, %363 : vector<2x512xf32>
    %cst_302 = arith.constant 0.000000e+00 : f32
    %365 = vector.broadcast %cst_302 : f32 to vector<2x512xf32>
    %366 = arith.maximumf %364, %365 : vector<2x512xf32>
    %367 = arith.truncf %357 : vector<2x512xf32> to vector<2x512xbf16>
    %c0_303 = arith.constant 0 : index
    %c0_304 = arith.constant 0 : index
    %368 = vector.load %arg15[%c0_303, %c0_304] : memref<512x7xbf16, #tpu.memory_space<vmem>>, vector<512x7xbf16>
    %cst_305 = arith.constant dense<0.000000e+00> : vector<2x7xf32>
    %369 = tpu.matmul %367, %368, %cst_305 {dimension_numbers = #tpu.dot_dimension_numbers<[1], [0], [0], [1], [0, 0, 1, 1], [], []>} : vector<2x512xbf16>, vector<512x7xbf16>, vector<2x7xf32> -> vector<2x7xf32>
    %c0_306 = arith.constant 0 : index
    %c0_307 = arith.constant 0 : index
    %370 = vector.load %arg16[%c0_306, %c0_307] : memref<1x7xf32, #tpu.memory_space<vmem>>, vector<1x7xf32>
    %371 = vector.broadcast %370 : vector<1x7xf32> to vector<2x7xf32>
    %372 = arith.addf %369, %371 : vector<2x7xf32>
    %373 = arith.truncf %366 : vector<2x512xf32> to vector<2x512xbf16>
    %c0_308 = arith.constant 0 : index
    %c0_309 = arith.constant 0 : index
    %374 = vector.load %arg17[%c0_308, %c0_309] : memref<512x1xbf16, #tpu.memory_space<vmem>>, vector<512x1xbf16>
    %cst_310 = arith.constant dense<0.000000e+00> : vector<2x1xf32>
    %375 = tpu.matmul %373, %374, %cst_310 {dimension_numbers = #tpu.dot_dimension_numbers<[1], [0], [0], [1], [0, 0, 1, 1], [], []>} : vector<2x512xbf16>, vector<512x1xbf16>, vector<2x1xf32> -> vector<2x1xf32>
    %c0_311 = arith.constant 0 : index
    %c0_312 = arith.constant 0 : index
    %376 = vector.load %arg18[%c0_311, %c0_312] : memref<1x1xf32, #tpu.memory_space<vmem>>, vector<1x1xf32>
    %377 = vector.broadcast %376 : vector<1x1xf32> to vector<2x1xf32>
    %378 = arith.addf %375, %377 : vector<2x1xf32>
    %cst_313 = arith.constant dense<0xFF800000> : vector<2xf32>
    %379 = vector.multi_reduction <maximumf>, %372, %cst_313 [1] : vector<2x7xf32> to vector<2xf32>
    %380 = vector.shape_cast %379 : vector<2xf32> to vector<2x1xf32>
    %381 = vector.broadcast %380 : vector<2x1xf32> to vector<2x7xf32>
    %382 = arith.subf %372, %381 : vector<2x7xf32>
    %383 = math.exp %382 : vector<2x7xf32>
    %cst_314 = arith.constant dense<0.000000e+00> : vector<2xf32>
    %384 = vector.multi_reduction <add>, %383, %cst_314 [1] : vector<2x7xf32> to vector<2xf32>
    %385 = vector.shape_cast %384 : vector<2xf32> to vector<2x1xf32>
    %386 = math.log %385 : vector<2x1xf32>
    %387 = vector.broadcast %386 : vector<2x1xf32> to vector<2x7xf32>
    %388 = arith.subf %382, %387 : vector<2x7xf32>
    %cst_315 = arith.constant 0.000000e+00 : f32
    %389 = vector.broadcast %cst_315 : f32 to vector<2x120xf32>
    %390 = tpu.concatenate %388, %378, %389 in 1 : vector<2x7xf32>, vector<2x1xf32>, vector<2x120xf32> -> vector<2x128xf32>
    %c0_316 = arith.constant 0 : index
    %c0_317 = arith.constant 0 : index
    %391 = vector.load %arg19[%c0_316, %c0_317] : memref<2x128xf32, #tpu.memory_space<vmem>>, vector<2x128xf32>
    tpu.vector_store %arg19[%c0_316, %c0_317], %390 {strides = array<i32>} : memref<2x128xf32, #tpu.memory_space<vmem>>, vector<2x128xf32>,
    return
  }
}

</mosaic_0001>

<llo_original>
// kernel: _lambda_.1
$region0: #{_lambda_.1}
  #allocation0 [shape = 'u32[]', space=smem, size = 0x4, offset = 0x4, fixed_abs, tag = 'smem constant byte address 0x4 - core index']
  #allocation1 [shape = 'u32[72,128]{1,0:T(1,128)}', space=vmem, size = 0x9000, scoped, tag = 'internal scratch']
  #allocation2 [shape = 'f32[2,10,320]{2,1,0:T(8,128)}', space=vmem, size = 0xc000, scoped, tag = 'scratch operand']
  #allocation3 [shape = 'f32[2,512]{1,0:T(2,128)}', space=vmem, size = 0x1000, scoped, tag = 'scratch operand']
  #allocation4 [shape = 'f32[1,1]{1,0:T(1,128)S(1)}', space=vmem, size = 0x200, scoped, tag = 'scoped memory for _lambda_.1']
  %s0 = inlined_call_operand.vmem [shape: f32[4,22,132], index: 0, kind: input, shape index: {}]
  %s1 = inlined_call_operand.vmem [shape: bf16[8,132,320], index: 1, kind: input, shape index: {}]
  %s2 = inlined_call_operand.vmem [shape: f32[1,320], index: 2, kind: input, shape index: {}]
  %s3 = inlined_call_operand.vmem [shape: bf16[4,320,256], index: 3, kind: input, shape index: {}]
  %s4 = inlined_call_operand.vmem [shape: f32[1,256], index: 4, kind: input, shape index: {}]
  %s5 = inlined_call_operand.vmem [shape: bf16[3,256,128], index: 5, kind: input, shape index: {}]
  %s6 = inlined_call_operand.vmem [shape: f32[1,128], index: 6, kind: input, shape index: {}]
  %s7 = inlined_call_operand.vmem [shape: bf16[2,128,512], index: 7, kind: input, shape index: {}]
  %s8 = inlined_call_operand.vmem [shape: f32[1,512], index: 8, kind: input, shape index: {}]
  %s9 = inlined_call_operand.vmem [shape: bf16[512,1024], index: 9, kind: input, shape index: {}]
  %s10 = inlined_call_operand.vmem [shape: f32[1,1024], index: 10, kind: input, shape index: {}]
  %s11 = inlined_call_operand.vmem [shape: bf16[512,512], index: 11, kind: input, shape index: {}]
  %s12 = inlined_call_operand.vmem [shape: f32[1,512], index: 12, kind: input, shape index: {}]
  %s13 = inlined_call_operand.vmem [shape: bf16[512,512], index: 13, kind: input, shape index: {}]
  %s14 = inlined_call_operand.vmem [shape: f32[1,512], index: 14, kind: input, shape index: {}]
  %s15 = inlined_call_operand.vmem [shape: bf16[512,7], index: 15, kind: input, shape index: {}]
  %s16 = inlined_call_operand.vmem [shape: f32[1,7], index: 16, kind: input, shape index: {}]
  %s17 = inlined_call_operand.vmem [shape: bf16[512,1], index: 17, kind: input, shape index: {}]
  %s18 = inlined_call_operand.<no memory space> [shape: f32[1,1], index: 18, kind: input, shape index: {}]
  %s19 = inlined_call_operand.vmem [shape: f32[2,128], index: 19, kind: output, shape index: {}]
  %s20 = sld [smem:[#allocation0]]
  $region86: #{_lambda_.1} parent=0
    _
  %s22 = ssub.s32 1, %s20
  %s23 = scalar_select 0, %s22, %s20
  %v24 = vstv %s18
  %25 = vst [vmem:[#allocation4] sm:$0x1] %v24
  // Predicated region
  $region2: #{_lambda_.1} parent=0 // pred_check
    _
  $region3: #{_lambda_.1} parent=0 // pred_check_branch
    %27 = sbr.rel (0) target = $region5
  $region4: #{_lambda_.1} parent=0 // pred_region
    _
  $region5: #{_lambda_.1} parent=0 // pred_fallthru
    _
  // Predicated region
  $region6: #{_lambda_.1} parent=0 // pred_check
    _
  $region7: #{_lambda_.1} parent=0 // pred_check_branch
    %29 = sbr.rel (0) target = $region9
  $region8: #{_lambda_.1} parent=0 // pred_region
    _
  $region9: #{_lambda_.1} parent=0 // pred_fallthru
    _
  // Predicated region
  $region10: #{_lambda_.1} parent=0 // pred_check
    _
  $region11: #{_lambda_.1} parent=0 // pred_check_branch
    %31 = sbr.rel (0) target = $region13
  $region12: #{_lambda_.1} parent=0 // pred_region
    _
  $region13: #{_lambda_.1} parent=0 // pred_fallthru
    _
  // Predicated region
  $region14: #{_lambda_.1} parent=0 // pred_check
    _
  $region15: #{_lambda_.1} parent=0 // pred_check_branch
    %33 = sbr.rel (0) target = $region17
  $region16: #{_lambda_.1} parent=0 // pred_region
    _
  $region17: #{_lambda_.1} parent=0 // pred_fallthru
    _
  // Predicated region
  $region18: #{_lambda_.1} parent=0 // pred_check
    _
  $region19: #{_lambda_.1} parent=0 // pred_check_branch
    %35 = sbr.rel (0) target = $region21
  $region20: #{_lambda_.1} parent=0 // pred_region
    _
  $region21: #{_lambda_.1} parent=0 // pred_fallthru
    _
  // Predicated region
  $region22: #{_lambda_.1} parent=0 // pred_check
    _
  $region23: #{_lambda_.1} parent=0 // pred_check_branch
    %37 = sbr.rel (0) target = $region25
  $region24: #{_lambda_.1} parent=0 // pred_region
    _
  $region25: #{_lambda_.1} parent=0 // pred_fallthru
    _
  // Predicated region
  $region26: #{_lambda_.1} parent=0 // pred_check
    _
  $region27: #{_lambda_.1} parent=0 // pred_check_branch
    %39 = sbr.rel (0) target = $region29
  $region28: #{_lambda_.1} parent=0 // pred_region
    _
  $region29: #{_lambda_.1} parent=0 // pred_fallthru
    _
  // Predicated region
  $region30: #{_lambda_.1} parent=0 // pred_check
    _
  $region31: #{_lambda_.1} parent=0 // pred_check_branch
    %41 = sbr.rel (0) target = $region33
  $region32: #{_lambda_.1} parent=0 // pred_region
    _
  $region33: #{_lambda_.1} parent=0 // pred_fallthru
    _
  // Predicated region
  $region34: #{_lambda_.1} parent=0 // pred_check
    _
  $region35: #{_lambda_.1} parent=0 // pred_check_branch
    %43 = sbr.rel (0) target = $region37
  $region36: #{_lambda_.1} parent=0 // pred_region
    _
  $region37: #{_lambda_.1} parent=0 // pred_fallthru
    _
  // Predicated region
  $region38: #{_lambda_.1} parent=0 // pred_check
    _
  $region39: #{_lambda_.1} parent=0 // pred_check_branch
    %45 = sbr.rel (0) target = $region41
  $region40: #{_lambda_.1} parent=0 // pred_region
    _
  $region41: #{_lambda_.1} parent=0 // pred_fallthru
    _
  // Predicated region
  $region42: #{_lambda_.1} parent=0 // pred_check
    _
  $region43: #{_lambda_.1} parent=0 // pred_check_branch
    %47 = sbr.rel (0) target = $region45
  $region44: #{_lambda_.1} parent=0 // pred_region
    _
  $region45: #{_lambda_.1} parent=0 // pred_fallthru
    _
  // Predicated region
  $region46: #{_lambda_.1} parent=0 // pred_check
    _
  $region47: #{_lambda_.1} parent=0 // pred_check_branch
    %49 = sbr.rel (0) target = $region49
  $region48: #{_lambda_.1} parent=0 // pred_region
    _
  $region49: #{_lambda_.1} parent=0 // pred_fallthru
    _
  // Predicated region
  $region50: #{_lambda_.1} parent=0 // pred_check
    _
  $region51: #{_lambda_.1} parent=0 // pred_check_branch
    %51 = sbr.rel (0) target = $region53
  $region52: #{_lambda_.1} parent=0 // pred_region
    _
  $region53: #{_lambda_.1} parent=0 // pred_fallthru
    _
  // Predicated region
  $region54: #{_lambda_.1} parent=0 // pred_check
    _
  $region55: #{_lambda_.1} parent=0 // pred_check_branch
    %53 = sbr.rel (0) target = $region57
  $region56: #{_lambda_.1} parent=0 // pred_region
    _
  $region57: #{_lambda_.1} parent=0 // pred_fallthru
    _
  // Predicated region
  $region58: #{_lambda_.1} parent=0 // pred_check
    _
  $region59: #{_lambda_.1} parent=0 // pred_check_branch
    %55 = sbr.rel (0) target = $region61
  $region60: #{_lambda_.1} parent=0 // pred_region
    _
  $region61: #{_lambda_.1} parent=0 // pred_fallthru
    _
  // Predicated region
  $region62: #{_lambda_.1} parent=0 // pred_check
    _
  $region63: #{_lambda_.1} parent=0 // pred_check_branch
    %57 = sbr.rel (0) target = $region65
  $region64: #{_lambda_.1} parent=0 // pred_region
    _
  $region65: #{_lambda_.1} parent=0 // pred_fallthru
    _
  // Predicated region
  $region66: #{_lambda_.1} parent=0 // pred_check
    _
  $region67: #{_lambda_.1} parent=0 // pred_check_branch
    %59 = sbr.rel (0) target = $region69
  $region68: #{_lambda_.1} parent=0 // pred_region
    _
  $region69: #{_lambda_.1} parent=0 // pred_fallthru
    _
  // Predicated region
  $region70: #{_lambda_.1} parent=0 // pred_check
    _
  $region71: #{_lambda_.1} parent=0 // pred_check_branch
    %61 = sbr.rel (0) target = $region73
  $region72: #{_lambda_.1} parent=0 // pred_region
    _
  $region73: #{_lambda_.1} parent=0 // pred_fallthru
    _
  // Predicated region
  $region74: #{_lambda_.1} parent=0 // pred_check
    _
  $region75: #{_lambda_.1} parent=0 // pred_check_branch
    %63 = sbr.rel (0) target = $region77
  $region76: #{_lambda_.1} parent=0 // pred_region
    _
  $region77: #{_lambda_.1} parent=0 // pred_fallthru
    _
  %v65 = vld [vmem:[%s0] sm:$0xff]
  %v66 = vld [vmem:[%s0 + $0x8] sm:$0xff]
  %v67 = vld [vmem:[%s0 + $0x10] sm:$0x3]
  %v68 = vld [vmem:[%s0 + $0x18] sm:$0x3]
  %v69 = vpack.c.bf16 %v67, %v65
  %v70 = vpack.c.bf16 %v68, %v66
  %v71 = vld [vmem:[%s1] sm:$0xff]
  %v72 = vld [vmem:[%s1 + $0x8] sm:$0xf]
  %v73 = vld [vmem:[%s1 + $0xc] sm:$0xff]
  %v74 = vld [vmem:[%s1 + $0x14] sm:$0xf]
  %v75 = vld [vmem:[%s1 + $0x18] sm:$0xff]
  %v76 = vld [vmem:[%s1 + $0x20] sm:$0xf]
  %v77 = vld [vmem:[%s1 + $0x24] sm:$0xff]
  %v78 = vld [vmem:[%s1 + $0x2c] sm:$0xf]
  %v79 = vld [vmem:[%s1 + $0x30] sm:$0xff]
  %v80 = vld [vmem:[%s1 + $0x38] sm:$0xf]
  %v81 = vld [vmem:[%s1 + $0x3c] sm:$0xff]
  %v82 = vld [vmem:[%s1 + $0x44] sm:$0xf]
  %v83 = vld [vmem:[%s1 + $0x48] sm:$0xff]
  %v84 = vld [vmem:[%s1 + $0x50] sm:$0xf]
  %v85 = vld [vmem:[%s1 + $0x54] sm:$0xff]
  %v86 = vld [vmem:[%s1 + $0x5c] sm:$0xf]
  %v87 = vld [vmem:[%s1 + $0x60] sm:$0xff]
  %v88 = vld [vmem:[%s1 + $0x68] sm:$0xf]
  %v89 = vld [vmem:[%s1 + $0x6c] sm:$0xff]
  %v90 = vld [vmem:[%s1 + $0x74] sm:$0xf]
  %v91 = vld [vmem:[%s1 + $0x78] sm:$0xff]
  %v92 = vld [vmem:[%s1 + $0x80] sm:$0xf]
  %v93 = vld [vmem:[%s1 + $0x84] sm:$0xff]
  %v94 = vld [vmem:[%s1 + $0x8c] sm:$0xf]
  %v95 = vld [vmem:[%s1 + $0x90] sm:$0xff]
  %v96 = vld [vmem:[%s1 + $0x98] sm:$0xf]
  %v97 = vld [vmem:[%s1 + $0x9c] sm:$0xff]
  %v98 = vld [vmem:[%s1 + $0xa4] sm:$0xf]
  %v99 = vld [vmem:[%s1 + $0xa8] sm:$0xff]
  %v100 = vld [vmem:[%s1 + $0xb0] sm:$0xf]
  %v101 = vld [vmem:[%s1 + $0xb4] sm:$0xff]
  %v102 = vld [vmem:[%s1 + $0xbc] sm:$0xf]
  %v103 = vld [vmem:[%s1 + $0xc0] sm:$0x33]
  %v104 = vld [vmem:[%s1 + $0xc8] sm:$0x3]
  %s105 = scalar_lea.vmem %s0, 48
  %v106 = vld [vmem:[%s105] sm:$0xff]
  %v107 = vld [vmem:[%s105 + $0x8] sm:$0xff]
  %v108 = vld [vmem:[%s105 + $0x10] sm:$0x3]
  %v109 = vld [vmem:[%s105 + $0x18] sm:$0x3]
  %v110 = vpack.c.bf16 %v108, %v106
  %v111 = vpack.c.bf16 %v109, %v107
  %s112 = scalar_lea.vmem %s1, 204
  %v113 = vld [vmem:[%s112] sm:$0xff]
  %v114 = vld [vmem:[%s112 + $0x8] sm:$0xf]
  %v115 = vld [vmem:[%s112 + $0xc] sm:$0xff]
  %v116 = vld [vmem:[%s112 + $0x14] sm:$0xf]
  %v117 = vld [vmem:[%s112 + $0x18] sm:$0xff]
  %v118 = vld [vmem:[%s112 + $0x20] sm:$0xf]
  %v119 = vld [vmem:[%s112 + $0x24] sm:$0xff]
  %v120 = vld [vmem:[%s112 + $0x2c] sm:$0xf]
  %v121 = vld [vmem:[%s112 + $0x30] sm:$0xff]
  %v122 = vld [vmem:[%s112 + $0x38] sm:$0xf]
  %v123 = vld [vmem:[%s112 + $0x3c] sm:$0xff]
  %v124 = vld [vmem:[%s112 + $0x44] sm:$0xf]
  %v125 = vld [vmem:[%s112 + $0x48] sm:$0xff]
  %v126 = vld [vmem:[%s112 + $0x50] sm:$0xf]
  %v127 = vld [vmem:[%s112 + $0x54] sm:$0xff]
  %v128 = vld [vmem:[%s112 + $0x5c] sm:$0xf]
  %v129 = vld [vmem:[%s112 + $0x60] sm:$0xff]
  %v130 = vld [vmem:[%s112 + $0x68] sm:$0xf]
  %v131 = vld [vmem:[%s112 + $0x6c] sm:$0xff]
  %v132 = vld [vmem:[%s112 + $0x74] sm:$0xf]
  %v133 = vld [vmem:[%s112 + $0x78] sm:$0xff]
  %v134 = vld [vmem:[%s112 + $0x80] sm:$0xf]
  %v135 = vld [vmem:[%s112 + $0x84] sm:$0xff]
  %v136 = vld [vmem:[%s112 + $0x8c] sm:$0xf]
  %v137 = vld [vmem:[%s112 + $0x90] sm:$0xff]
  %v138 = vld [vmem:[%s112 + $0x98] sm:$0xf]
  %v139 = vld [vmem:[%s112 + $0x9c] sm:$0xff]
  %v140 = vld [vmem:[%s112 + $0xa4] sm:$0xf]
  %v141 = vld [vmem:[%s112 + $0xa8] sm:$0xff]
  %v142 = vld [vmem:[%s112 + $0xb0] sm:$0xf]
  %v143 = vld [vmem:[%s112 + $0xb4] sm:$0xff]
  %v144 = vld [vmem:[%s112 + $0xbc] sm:$0xf]
  %v145 = vld [vmem:[%s112 + $0xc0] sm:$0x33]
  %v146 = vld [vmem:[%s112 + $0xc8] sm:$0x3]
  %v181 = vunpack.c.l.b16 %v113
  %v182 = vunpack.c.h.b16 %v113
  %v183 = vunpack.c.l.b16 %v114
  %v184 = vunpack.c.l.b16 %v115
  %v185 = vunpack.c.h.b16 %v115
  %v186 = vunpack.c.l.b16 %v116
  %v187 = vunpack.c.l.b16 %v117
  %v188 = vunpack.c.h.b16 %v117
  %v189 = vunpack.c.l.b16 %v118
  %v190 = vunpack.c.l.b16 %v119
  %v191 = vunpack.c.h.b16 %v119
  %v192 = vunpack.c.l.b16 %v120
  %v193 = vunpack.c.l.b16 %v121
  %v194 = vunpack.c.h.b16 %v121
  %v195 = vunpack.c.l.b16 %v122
  %v196 = vunpack.c.l.b16 %v123
  %v197 = vunpack.c.h.b16 %v123
  %v198 = vunpack.c.l.b16 %v124
  %v199 = vunpack.c.l.b16 %v125
  %v200 = vunpack.c.h.b16 %v125
  %v201 = vunpack.c.l.b16 %v126
  %v202 = vunpack.c.l.b16 %v127
  %v203 = vunpack.c.h.b16 %v127
  %v204 = vunpack.c.l.b16 %v128
  %v205 = vunpack.c.l.b16 %v129
  %v206 = vunpack.c.h.b16 %v129
  %v207 = vunpack.c.l.b16 %v130
  %v208 = vunpack.c.l.b16 %v131
  %v209 = vunpack.c.h.b16 %v131
  %v210 = vunpack.c.l.b16 %v132
  %v211 = vunpack.c.l.b16 %v133
  %v212 = vunpack.c.h.b16 %v133
  %v213 = vunpack.c.l.b16 %v134
  %v214 = vunpack.c.l.b16 %v135
  %v215 = vunpack.c.h.b16 %v135
  %v216 = vunpack.c.l.b16 %v136
  %v217 = vunpack.c.l.b16 %v137
  %v218 = vunpack.c.h.b16 %v137
  %v219 = vunpack.c.l.b16 %v138
  %v220 = vunpack.c.l.b16 %v139
  %v221 = vunpack.c.h.b16 %v139
  %v222 = vunpack.c.l.b16 %v140
  %v223 = vunpack.c.l.b16 %v141
  %v224 = vunpack.c.h.b16 %v141
  %v225 = vunpack.c.l.b16 %v142
  %v226 = vunpack.c.l.b16 %v143
  %v227 = vunpack.c.h.b16 %v143
  %v228 = vunpack.c.l.b16 %v144
  %v229 = vunpack.c.l.b16 %v145
  %v230 = vunpack.c.h.b16 %v145
  %v231 = vunpack.c.l.b16 %v146
  %v232 = vpack.c.b16 %v184, %v181
  %v233 = vpack.c.b16 %v185, %v182
  %v234 = vpack.c.b16 %v186, %v183
  %v235 = vpack.c.b16 %v190, %v187
  %v236 = vpack.c.b16 %v191, %v188
  %v237 = vpack.c.b16 %v192, %v189
  %v238 = vpack.c.b16 %v196, %v193
  %v239 = vpack.c.b16 %v197, %v194
  %v240 = vpack.c.b16 %v198, %v195
  %v241 = vpack.c.b16 %v202, %v199
  %v242 = vpack.c.b16 %v203, %v200
  %v243 = vpack.c.b16 %v204, %v201
  %v244 = vpack.c.b16 %v208, %v205
  %v245 = vpack.c.b16 %v209, %v206
  %v246 = vpack.c.b16 %v210, %v207
  %v247 = vpack.c.b16 %v214, %v211
  %v248 = vpack.c.b16 %v215, %v212
  %v249 = vpack.c.b16 %v216, %v213
  %v250 = vpack.c.b16 %v220, %v217
  %v251 = vpack.c.b16 %v221, %v218
  %v252 = vpack.c.b16 %v222, %v219
  %v253 = vpack.c.b16 %v226, %v223
  %v254 = vpack.c.b16 %v227, %v224
  %v255 = vpack.c.b16 %v228, %v225
  %v256 = vpack.c.b16 %v229, %v229
  %v257 = vpack.c.b16 %v230, %v230
  %v258 = vpack.c.b16 %v231, %v231
  %vm283 = vcmask 31744
  %v285 = vsel %vm283, %v111, 0
  %vm287 = vcmask 1041408
  %v289 = vsel %vm287, %v256, 0
  %v292 = vsel %vm287, %v257, 0
  %v295 = vsel %vm287, %v258, 0
  %297 = vmatpush.bf16.msra.mxu0 %v253
  %298 = vmatpush.bf16.msra.mxu0 %v250
  %299 = vmatpush.bf16.msra.mxu0 %v247
  %300 = vmatpush.bf16.msra.mxu0 %v244
  %301 = vmatpush.bf16.msra.mxu0 %v241
  %302 = vmatpush.bf16.msra.mxu0 %v238
  %303 = vmatpush.bf16.msra.mxu0 %v235
  %304 = vmatpush.bf16.msra.mxu0 %v232
  %305 = vmatmul.bf16.gmra.mxu0 %v110
  %v306 = vpop.f32.mrf.mxu0
  %v307 = vadd.f32 0.0, %v306
  %v308 = vpop.f32.mrf.mxu0
  %v309 = vadd.f32 0.0, %v308
  %310 = vdwg.mxu0
  %311 = vmatpush.bf16.msra.mxu0 0
  %312 = vmatpush.bf16.msra.mxu0 0
  %313 = vmatpush.bf16.msra.mxu0 0
  %314 = vmatpush.bf16.msra.mxu0 0
  %315 = vmatpush.bf16.msra.mxu0 0
  %316 = vmatpush.bf16.msra.mxu0 0
  %317 = vmatpush.bf16.msra.mxu0 0
  %318 = vmatpush.bf16.msra.mxu0 %v289
  %319 = vmatmul.bf16.gmra.mxu0 %v285
  %v320 = vpop.f32.mrf.mxu0
  %v321 = vadd.f32 %v307, %v320
  %v322 = vpop.f32.mrf.mxu0
  %v323 = vadd.f32 %v309, %v322
  %324 = vdwg.mxu0
  %325 = vmatpush.bf16.msra.mxu0 %v254
  %326 = vmatpush.bf16.msra.mxu0 %v251
  %327 = vmatpush.bf16.msra.mxu0 %v248
  %328 = vmatpush.bf16.msra.mxu0 %v245
  %329 = vmatpush.bf16.msra.mxu0 %v242
  %330 = vmatpush.bf16.msra.mxu0 %v239
  %331 = vmatpush.bf16.msra.mxu0 %v236
  %332 = vmatpush.bf16.msra.mxu0 %v233
  %333 = vmatmul.bf16.gmra.mxu0 %v110
  %v334 = vpop.f32.mrf.mxu0
  %v335 = vadd.f32 0.0, %v334
  %v336 = vpop.f32.mrf.mxu0
  %v337 = vadd.f32 0.0, %v336
  %338 = vdwg.mxu0
  %339 = vmatpush.bf16.msra.mxu0 0
  %340 = vmatpush.bf16.msra.mxu0 0
  %341 = vmatpush.bf16.msra.mxu0 0
  %342 = vmatpush.bf16.msra.mxu0 0
  %343 = vmatpush.bf16.msra.mxu0 0
  %344 = vmatpush.bf16.msra.mxu0 0
  %345 = vmatpush.bf16.msra.mxu0 0
  %346 = vmatpush.bf16.msra.mxu0 %v292
  %347 = vmatmul.bf16.gmra.mxu0 %v285
  %v348 = vpop.f32.mrf.mxu0
  %v349 = vadd.f32 %v335, %v348
  %v350 = vpop.f32.mrf.mxu0
  %v351 = vadd.f32 %v337, %v350
  %352 = vdwg.mxu0
  %353 = vmatpush.bf16.msra.mxu0 %v255
  %354 = vmatpush.bf16.msra.mxu0 %v252
  %355 = vmatpush.bf16.msra.mxu0 %v249
  %356 = vmatpush.bf16.msra.mxu0 %v246
  %357 = vmatpush.bf16.msra.mxu0 %v243
  %358 = vmatpush.bf16.msra.mxu0 %v240
  %359 = vmatpush.bf16.msra.mxu0 %v237
  %360 = vmatpush.bf16.msra.mxu0 %v234
  %361 = vmatmul.bf16.gmra.mxu0 %v110
  %v362 = vpop.f32.mrf.mxu0
  %v363 = vadd.f32 0.0, %v362
  %v364 = vpop.f32.mrf.mxu0
  %v365 = vadd.f32 0.0, %v364
  %366 = vdwg.mxu0
  %367 = vmatpush.bf16.msra.mxu0 0
  %368 = vmatpush.bf16.msra.mxu0 0
  %369 = vmatpush.bf16.msra.mxu0 0
  %370 = vmatpush.bf16.msra.mxu0 0
  %371 = vmatpush.bf16.msra.mxu0 0
  %372 = vmatpush.bf16.msra.mxu0 0
  %373 = vmatpush.bf16.msra.mxu0 0
  %374 = vmatpush.bf16.msra.mxu0 %v295
  %375 = vmatmul.bf16.gmra.mxu0 %v285
  %v376 = vpop.f32.mrf.mxu0
  %v377 = vadd.f32 %v363, %v376
  %v378 = vpop.f32.mrf.mxu0
  %v379 = vadd.f32 %v365, %v378
  %380 = vdwg.mxu0
  %v415 = vunpack.c.l.b16 %v71
  %v416 = vunpack.c.h.b16 %v71
  %v417 = vunpack.c.l.b16 %v72
  %v418 = vunpack.c.l.b16 %v73
  %v419 = vunpack.c.h.b16 %v73
  %v420 = vunpack.c.l.b16 %v74
  %v421 = vunpack.c.l.b16 %v75
  %v422 = vunpack.c.h.b16 %v75
  %v423 = vunpack.c.l.b16 %v76
  %v424 = vunpack.c.l.b16 %v77
  %v425 = vunpack.c.h.b16 %v77
  %v426 = vunpack.c.l.b16 %v78
  %v427 = vunpack.c.l.b16 %v79
  %v428 = vunpack.c.h.b16 %v79
  %v429 = vunpack.c.l.b16 %v80
  %v430 = vunpack.c.l.b16 %v81
  %v431 = vunpack.c.h.b16 %v81
  %v432 = vunpack.c.l.b16 %v82
  %v433 = vunpack.c.l.b16 %v83
  %v434 = vunpack.c.h.b16 %v83
  %v435 = vunpack.c.l.b16 %v84
  %v436 = vunpack.c.l.b16 %v85
  %v437 = vunpack.c.h.b16 %v85
  %v438 = vunpack.c.l.b16 %v86
  %v439 = vunpack.c.l.b16 %v87
  %v440 = vunpack.c.h.b16 %v87
  %v441 = vunpack.c.l.b16 %v88
  %v442 = vunpack.c.l.b16 %v89
  %v443 = vunpack.c.h.b16 %v89
  %v444 = vunpack.c.l.b16 %v90
  %v445 = vunpack.c.l.b16 %v91
  %v446 = vunpack.c.h.b16 %v91
  %v447 = vunpack.c.l.b16 %v92
  %v448 = vunpack.c.l.b16 %v93
  %v449 = vunpack.c.h.b16 %v93
  %v450 = vunpack.c.l.b16 %v94
  %v451 = vunpack.c.l.b16 %v95
  %v452 = vunpack.c.h.b16 %v95
  %v453 = vunpack.c.l.b16 %v96
  %v454 = vunpack.c.l.b16 %v97
  %v455 = vunpack.c.h.b16 %v97
  %v456 = vunpack.c.l.b16 %v98
  %v457 = vunpack.c.l.b16 %v99
  %v458 = vunpack.c.h.b16 %v99
  %v459 = vunpack.c.l.b16 %v100
  %v460 = vunpack.c.l.b16 %v101
  %v461 = vunpack.c.h.b16 %v101
  %v462 = vunpack.c.l.b16 %v102
  %v463 = vunpack.c.l.b16 %v103
  %v464 = vunpack.c.h.b16 %v103
  %v465 = vunpack.c.l.b16 %v104
  %v466 = vpack.c.b16 %v418, %v415
  %v467 = vpack.c.b16 %v419, %v416
  %v468 = vpack.c.b16 %v420, %v417
  %v469 = vpack.c.b16 %v424, %v421
  %v470 = vpack.c.b16 %v425, %v422
  %v471 = vpack.c.b16 %v426, %v423
  %v472 = vpack.c.b16 %v430, %v427
  %v473 = vpack.c.b16 %v431, %v428
  %v474 = vpack.c.b16 %v432, %v429
  %v475 = vpack.c.b16 %v436, %v433
  %v476 = vpack.c.b16 %v437, %v434
  %v477 = vpack.c.b16 %v438, %v435
  %v478 = vpack.c.b16 %v442, %v439
  %v479 = vpack.c.b16 %v443, %v440
  %v480 = vpack.c.b16 %v444, %v441
  %v481 = vpack.c.b16 %v448, %v445
  %v482 = vpack.c.b16 %v449, %v446
  %v483 = vpack.c.b16 %v450, %v447
  %v484 = vpack.c.b16 %v454, %v451
  %v485 = vpack.c.b16 %v455, %v452
  %v486 = vpack.c.b16 %v456, %v453
  %v487 = vpack.c.b16 %v460, %v457
  %v488 = vpack.c.b16 %v461, %v458
  %v489 = vpack.c.b16 %v462, %v459
  %v490 = vpack.c.b16 %v463, %v463
  %v491 = vpack.c.b16 %v464, %v464
  %v492 = vpack.c.b16 %v465, %v465
  %v518 = vsel %vm283, %v70, 0
  %v521 = vsel %vm287, %v490, 0
  %v524 = vsel %vm287, %v491, 0
  %v527 = vsel %vm287, %v492, 0
  %529 = vmatpush.bf16.msra.mxu0 %v487
  %530 = vmatpush.bf16.msra.mxu0 %v484
  %531 = vmatpush.bf16.msra.mxu0 %v481
  %532 = vmatpush.bf16.msra.mxu0 %v478
  %533 = vmatpush.bf16.msra.mxu0 %v475
  %534 = vmatpush.bf16.msra.mxu0 %v472
  %535 = vmatpush.bf16.msra.mxu0 %v469
  %536 = vmatpush.bf16.msra.mxu0 %v466
  %537 = vmatmul.bf16.gmra.mxu0 %v69
  %v538 = vpop.f32.mrf.mxu0
  %v539 = vadd.f32 %v321, %v538
  %v540 = vpop.f32.mrf.mxu0
  %v541 = vadd.f32 %v323, %v540
  %542 = vdwg.mxu0
  %543 = vmatpush.bf16.msra.mxu0 0
  %544 = vmatpush.bf16.msra.mxu0 0
  %545 = vmatpush.bf16.msra.mxu0 0
  %546 = vmatpush.bf16.msra.mxu0 0
  %547 = vmatpush.bf16.msra.mxu0 0
  %548 = vmatpush.bf16.msra.mxu0 0
  %549 = vmatpush.bf16.msra.mxu0 0
  %550 = vmatpush.bf16.msra.mxu0 %v521
  %551 = vmatmul.bf16.gmra.mxu0 %v518
  %v552 = vpop.f32.mrf.mxu0
  %v553 = vadd.f32 %v539, %v552
  %v554 = vpop.f32.mrf.mxu0
  %v555 = vadd.f32 %v541, %v554
  %556 = vdwg.mxu0
  %557 = vmatpush.bf16.msra.mxu0 %v488
  %558 = vmatpush.bf16.msra.mxu0 %v485
  %559 = vmatpush.bf16.msra.mxu0 %v482
  %560 = vmatpush.bf16.msra.mxu0 %v479
  %561 = vmatpush.bf16.msra.mxu0 %v476
  %562 = vmatpush.bf16.msra.mxu0 %v473
  %563 = vmatpush.bf16.msra.mxu0 %v470
  %564 = vmatpush.bf16.msra.mxu0 %v467
  %565 = vmatmul.bf16.gmra.mxu0 %v69
  %v566 = vpop.f32.mrf.mxu0
  %v567 = vadd.f32 %v349, %v566
  %v568 = vpop.f32.mrf.mxu0
  %v569 = vadd.f32 %v351, %v568
  %570 = vdwg.mxu0
  %571 = vmatpush.bf16.msra.mxu0 0
  %572 = vmatpush.bf16.msra.mxu0 0
  %573 = vmatpush.bf16.msra.mxu0 0
  %574 = vmatpush.bf16.msra.mxu0 0
  %575 = vmatpush.bf16.msra.mxu0 0
  %576 = vmatpush.bf16.msra.mxu0 0
  %577 = vmatpush.bf16.msra.mxu0 0
  %578 = vmatpush.bf16.msra.mxu0 %v524
  %579 = vmatmul.bf16.gmra.mxu0 %v518
  %v580 = vpop.f32.mrf.mxu0
  %v581 = vadd.f32 %v567, %v580
  %v582 = vpop.f32.mrf.mxu0
  %v583 = vadd.f32 %v569, %v582
  %584 = vdwg.mxu0
  %585 = vmatpush.bf16.msra.mxu0 %v489
  %586 = vmatpush.bf16.msra.mxu0 %v486
  %587 = vmatpush.bf16.msra.mxu0 %v483
  %588 = vmatpush.bf16.msra.mxu0 %v480
  %589 = vmatpush.bf16.msra.mxu0 %v477
  %590 = vmatpush.bf16.msra.mxu0 %v474
  %591 = vmatpush.bf16.msra.mxu0 %v471
  %592 = vmatpush.bf16.msra.mxu0 %v468
  %593 = vmatmul.bf16.gmra.mxu0 %v69
  %v594 = vpop.f32.mrf.mxu0
  %v595 = vadd.f32 %v377, %v594
  %v596 = vpop.f32.mrf.mxu0
  %v597 = vadd.f32 %v379, %v596
  %598 = vdwg.mxu0
  %599 = vmatpush.bf16.msra.mxu0 0
  %600 = vmatpush.bf16.msra.mxu0 0
  %601 = vmatpush.bf16.msra.mxu0 0
  %602 = vmatpush.bf16.msra.mxu0 0
  %603 = vmatpush.bf16.msra.mxu0 0
  %604 = vmatpush.bf16.msra.mxu0 0
  %605 = vmatpush.bf16.msra.mxu0 0
  %606 = vmatpush.bf16.msra.mxu0 %v527
  %607 = vmatmul.bf16.gmra.mxu0 %v518
  %v608 = vpop.f32.mrf.mxu0
  %v609 = vadd.f32 %v595, %v608
  %v610 = vpop.f32.mrf.mxu0
  %v611 = vadd.f32 %v597, %v610
  %612 = vdwg.mxu0
  %s613 = scalar_lea.vmem %s0, 96
  %v614 = vld [vmem:[%s613] sm:$0xff]
  %v615 = vld [vmem:[%s613 + $0x8] sm:$0xff]
  %v616 = vld [vmem:[%s613 + $0x10] sm:$0x3]
  %v617 = vld [vmem:[%s613 + $0x18] sm:$0x3]
  %v618 = vpack.c.bf16 %v616, %v614
  %v619 = vpack.c.bf16 %v617, %v615
  %s620 = scalar_lea.vmem %s1, 408
  %v621 = vld [vmem:[%s620] sm:$0xff]
  %v622 = vld [vmem:[%s620 + $0x8] sm:$0xf]
  %v623 = vld [vmem:[%s620 + $0xc] sm:$0xff]
  %v624 = vld [vmem:[%s620 + $0x14] sm:$0xf]
  %v625 = vld [vmem:[%s620 + $0x18] sm:$0xff]
  %v626 = vld [vmem:[%s620 + $0x20] sm:$0xf]
  %v627 = vld [vmem:[%s620 + $0x24] sm:$0xff]
  %v628 = vld [vmem:[%s620 + $0x2c] sm:$0xf]
  %v629 = vld [vmem:[%s620 + $0x30] sm:$0xff]
  %v630 = vld [vmem:[%s620 + $0x38] sm:$0xf]
  %v631 = vld [vmem:[%s620 + $0x3c] sm:$0xff]
  %v632 = vld [vmem:[%s620 + $0x44] sm:$0xf]
  %v633 = vld [vmem:[%s620 + $0x48] sm:$0xff]
  %v634 = vld [vmem:[%s620 + $0x50] sm:$0xf]
  %v635 = vld [vmem:[%s620 + $0x54] sm:$0xff]
  %v636 = vld [vmem:[%s620 + $0x5c] sm:$0xf]
  %v637 = vld [vmem:[%s620 + $0x60] sm:$0xff]
  %v638 = vld [vmem:[%s620 + $0x68] sm:$0xf]
  %v639 = vld [vmem:[%s620 + $0x6c] sm:$0xff]
  %v640 = vld [vmem:[%s620 + $0x74] sm:$0xf]
  %v641 = vld [vmem:[%s620 + $0x78] sm:$0xff]
  %v642 = vld [vmem:[%s620 + $0x80] sm:$0xf]
  %v643 = vld [vmem:[%s620 + $0x84] sm:$0xff]
  %v644 = vld [vmem:[%s620 + $0x8c] sm:$0xf]
  %v645 = vld [vmem:[%s620 + $0x90] sm:$0xff]
  %v646 = vld [vmem:[%s620 + $0x98] sm:$0xf]
  %v647 = vld [vmem:[%s620 + $0x9c] sm:$0xff]
  %v648 = vld [vmem:[%s620 + $0xa4] sm:$0xf]
  %v649 = vld [vmem:[%s620 + $0xa8] sm:$0xff]
  %v650 = vld [vmem:[%s620 + $0xb0] sm:$0xf]
  %v651 = vld [vmem:[%s620 + $0xb4] sm:$0xff]
  %v652 = vld [vmem:[%s620 + $0xbc] sm:$0xf]
  %v653 = vld [vmem:[%s620 + $0xc0] sm:$0x33]
  %v654 = vld [vmem:[%s620 + $0xc8] sm:$0x3]
  %v689 = vunpack.c.l.b16 %v621
  %v690 = vunpack.c.h.b16 %v621
  %v691 = vunpack.c.l.b16 %v622
  %v692 = vunpack.c.l.b16 %v623
  %v693 = vunpack.c.h.b16 %v623
  %v694 = vunpack.c.l.b16 %v624
  %v695 = vunpack.c.l.b16 %v625
  %v696 = vunpack.c.h.b16 %v625
  %v697 = vunpack.c.l.b16 %v626
  %v698 = vunpack.c.l.b16 %v627
  %v699 = vunpack.c.h.b16 %v627
  %v700 = vunpack.c.l.b16 %v628
  %v701 = vunpack.c.l.b16 %v629
  %v702 = vunpack.c.h.b16 %v629
  %v703 = vunpack.c.l.b16 %v630
  %v704 = vunpack.c.l.b16 %v631
  %v705 = vunpack.c.h.b16 %v631
  %v706 = vunpack.c.l.b16 %v632
  %v707 = vunpack.c.l.b16 %v633
  %v708 = vunpack.c.h.b16 %v633
  %v709 = vunpack.c.l.b16 %v634
  %v710 = vunpack.c.l.b16 %v635
  %v711 = vunpack.c.h.b16 %v635
  %v712 = vunpack.c.l.b16 %v636
  %v713 = vunpack.c.l.b16 %v637
  %v714 = vunpack.c.h.b16 %v637
  %v715 = vunpack.c.l.b16 %v638
  %v716 = vunpack.c.l.b16 %v639
  %v717 = vunpack.c.h.b16 %v639
  %v718 = vunpack.c.l.b16 %v640
  %v719 = vunpack.c.l.b16 %v641
  %v720 = vunpack.c.h.b16 %v641
  %v721 = vunpack.c.l.b16 %v642
  %v722 = vunpack.c.l.b16 %v643
  %v723 = vunpack.c.h.b16 %v643
  %v724 = vunpack.c.l.b16 %v644
  %v725 = vunpack.c.l.b16 %v645
  %v726 = vunpack.c.h.b16 %v645
  %v727 = vunpack.c.l.b16 %v646
  %v728 = vunpack.c.l.b16 %v647
  %v729 = vunpack.c.h.b16 %v647
  %v730 = vunpack.c.l.b16 %v648
  %v731 = vunpack.c.l.b16 %v649
  %v732 = vunpack.c.h.b16 %v649
  %v733 = vunpack.c.l.b16 %v650
  %v734 = vunpack.c.l.b16 %v651
  %v735 = vunpack.c.h.b16 %v651
  %v736 = vunpack.c.l.b16 %v652
  %v737 = vunpack.c.l.b16 %v653
  %v738 = vunpack.c.h.b16 %v653
  %v739 = vunpack.c.l.b16 %v654
  %v740 = vpack.c.b16 %v692, %v689
  %v741 = vpack.c.b16 %v693, %v690
  %v742 = vpack.c.b16 %v694, %v691
  %v743 = vpack.c.b16 %v698, %v695
  %v744 = vpack.c.b16 %v699, %v696
  %v745 = vpack.c.b16 %v700, %v697
  %v746 = vpack.c.b16 %v704, %v701
  %v747 = vpack.c.b16 %v705, %v702
  %v748 = vpack.c.b16 %v706, %v703
  %v749 = vpack.c.b16 %v710, %v707
  %v750 = vpack.c.b16 %v711, %v708
  %v751 = vpack.c.b16 %v712, %v709
  %v752 = vpack.c.b16 %v716, %v713
  %v753 = vpack.c.b16 %v717, %v714
  %v754 = vpack.c.b16 %v718, %v715
  %v755 = vpack.c.b16 %v722, %v719
  %v756 = vpack.c.b16 %v723, %v720
  %v757 = vpack.c.b16 %v724, %v721
  %v758 = vpack.c.b16 %v728, %v725
  %v759 = vpack.c.b16 %v729, %v726
  %v760 = vpack.c.b16 %v730, %v727
  %v761 = vpack.c.b16 %v734, %v731
  %v762 = vpack.c.b16 %v735, %v732
  %v763 = vpack.c.b16 %v736, %v733
  %v764 = vpack.c.b16 %v737, %v737
  %v765 = vpack.c.b16 %v738, %v738
  %v766 = vpack.c.b16 %v739, %v739
  %v792 = vsel %vm283, %v619, 0
  %v795 = vsel %vm287, %v764, 0
  %v798 = vsel %vm287, %v765, 0
  %v801 = vsel %vm287, %v766, 0
  %803 = vmatpush.bf16.msra.mxu0 %v761
  %804 = vmatpush.bf16.msra.mxu0 %v758
  %805 = vmatpush.bf16.msra.mxu0 %v755
  %806 = vmatpush.bf16.msra.mxu0 %v752
  %807 = vmatpush.bf16.msra.mxu0 %v749
  %808 = vmatpush.bf16.msra.mxu0 %v746
  %809 = vmatpush.bf16.msra.mxu0 %v743
  %810 = vmatpush.bf16.msra.mxu0 %v740
  %811 = vmatmul.bf16.gmra.mxu0 %v618
  %v812 = vpop.f32.mrf.mxu0
  %v813 = vadd.f32 0.0, %v812
  %v814 = vpop.f32.mrf.mxu0
  %v815 = vadd.f32 0.0, %v814
  %816 = vdwg.mxu0
  %817 = vmatpush.bf16.msra.mxu0 0
  %818 = vmatpush.bf16.msra.mxu0 0
  %819 = vmatpush.bf16.msra.mxu0 0
  %820 = vmatpush.bf16.msra.mxu0 0
  %821 = vmatpush.bf16.msra.mxu0 0
  %822 = vmatpush.bf16.msra.mxu0 0
  %823 = vmatpush.bf16.msra.mxu0 0
  %824 = vmatpush.bf16.msra.mxu0 %v795
  %825 = vmatmul.bf16.gmra.mxu0 %v792
  %v826 = vpop.f32.mrf.mxu0
  %v827 = vadd.f32 %v813, %v826
  %v828 = vpop.f32.mrf.mxu0
  %v829 = vadd.f32 %v815, %v828
  %830 = vdwg.mxu0
  %831 = vmatpush.bf16.msra.mxu0 %v762
  %832 = vmatpush.bf16.msra.mxu0 %v759
  %833 = vmatpush.bf16.msra.mxu0 %v756
  %834 = vmatpush.bf16.msra.mxu0 %v753
  %835 = vmatpush.bf16.msra.mxu0 %v750
  %836 = vmatpush.bf16.msra.mxu0 %v747
  %837 = vmatpush.bf16.msra.mxu0 %v744
  %838 = vmatpush.bf16.msra.mxu0 %v741
  %839 = vmatmul.bf16.gmra.mxu0 %v618
  %v840 = vpop.f32.mrf.mxu0
  %v841 = vadd.f32 0.0, %v840
  %v842 = vpop.f32.mrf.mxu0
  %v843 = vadd.f32 0.0, %v842
  %844 = vdwg.mxu0
  %845 = vmatpush.bf16.msra.mxu0 0
  %846 = vmatpush.bf16.msra.mxu0 0
  %847 = vmatpush.bf16.msra.mxu0 0
  %848 = vmatpush.bf16.msra.mxu0 0
  %849 = vmatpush.bf16.msra.mxu0 0
  %850 = vmatpush.bf16.msra.mxu0 0
  %851 = vmatpush.bf16.msra.mxu0 0
  %852 = vmatpush.bf16.msra.mxu0 %v798
  %853 = vmatmul.bf16.gmra.mxu0 %v792
  %v854 = vpop.f32.mrf.mxu0
  %v855 = vadd.f32 %v841, %v854
  %v856 = vpop.f32.mrf.mxu0
  %v857 = vadd.f32 %v843, %v856
  %858 = vdwg.mxu0
  %859 = vmatpush.bf16.msra.mxu0 %v763
  %860 = vmatpush.bf16.msra.mxu0 %v760
  %861 = vmatpush.bf16.msra.mxu0 %v757
  %862 = vmatpush.bf16.msra.mxu0 %v754
  %863 = vmatpush.bf16.msra.mxu0 %v751
  %864 = vmatpush.bf16.msra.mxu0 %v748
  %865 = vmatpush.bf16.msra.mxu0 %v745
  %866 = vmatpush.bf16.msra.mxu0 %v742
  %867 = vmatmul.bf16.gmra.mxu0 %v618
  %v868 = vpop.f32.mrf.mxu0
  %v869 = vadd.f32 0.0, %v868
  %v870 = vpop.f32.mrf.mxu0
  %v871 = vadd.f32 0.0, %v870
  %872 = vdwg.mxu0
  %873 = vmatpush.bf16.msra.mxu0 0
  %874 = vmatpush.bf16.msra.mxu0 0
  %875 = vmatpush.bf16.msra.mxu0 0
  %876 = vmatpush.bf16.msra.mxu0 0
  %877 = vmatpush.bf16.msra.mxu0 0
  %878 = vmatpush.bf16.msra.mxu0 0
  %879 = vmatpush.bf16.msra.mxu0 0
  %880 = vmatpush.bf16.msra.mxu0 %v801
  %881 = vmatmul.bf16.gmra.mxu0 %v792
  %v882 = vpop.f32.mrf.mxu0
  %v883 = vadd.f32 %v869, %v882
  %v884 = vpop.f32.mrf.mxu0
  %v885 = vadd.f32 %v871, %v884
  %886 = vdwg.mxu0
  %v887 = vadd.f32 %v553, %v827
  %v888 = vadd.f32 %v581, %v855
  %v889 = vadd.f32 %v609, %v883
  %v890 = vadd.f32 %v555, %v829
  %v891 = vadd.f32 %v583, %v857
  %v892 = vadd.f32 %v611, %v885
  %s893 = scalar_lea.vmem %s0, 144
  %v894 = vld [vmem:[%s893] sm:$0xff]
  %v895 = vld [vmem:[%s893 + $0x8] sm:$0xff]
  %v896 = vld [vmem:[%s893 + $0x10] sm:$0x3]
  %v897 = vld [vmem:[%s893 + $0x18] sm:$0x3]
  %v898 = vpack.c.bf16 %v896, %v894
  %v899 = vpack.c.bf16 %v897, %v895
  %s900 = scalar_lea.vmem %s1, 612
  %v901 = vld [vmem:[%s900] sm:$0xff]
  %v902 = vld [vmem:[%s900 + $0x8] sm:$0xf]
  %v903 = vld [vmem:[%s900 + $0xc] sm:$0xff]
  %v904 = vld [vmem:[%s900 + $0x14] sm:$0xf]
  %v905 = vld [vmem:[%s900 + $0x18] sm:$0xff]
  %v906 = vld [vmem:[%s900 + $0x20] sm:$0xf]
  %v907 = vld [vmem:[%s900 + $0x24] sm:$0xff]
  %v908 = vld [vmem:[%s900 + $0x2c] sm:$0xf]
  %v909 = vld [vmem:[%s900 + $0x30] sm:$0xff]
  %v910 = vld [vmem:[%s900 + $0x38] sm:$0xf]
  %v911 = vld [vmem:[%s900 + $0x3c] sm:$0xff]
  %v912 = vld [vmem:[%s900 + $0x44] sm:$0xf]
  %v913 = vld [vmem:[%s900 + $0x48] sm:$0xff]
  %v914 = vld [vmem:[%s900 + $0x50] sm:$0xf]
  %v915 = vld [vmem:[%s900 + $0x54] sm:$0xff]
  %v916 = vld [vmem:[%s900 + $0x5c] sm:$0xf]
  %v917 = vld [vmem:[%s900 + $0x60] sm:$0xff]
  %v918 = vld [vmem:[%s900 + $0x68] sm:$0xf]
  %v919 = vld [vmem:[%s900 + $0x6c] sm:$0xff]
  %v920 = vld [vmem:[%s900 + $0x74] sm:$0xf]
  %v921 = vld [vmem:[%s900 + $0x78] sm:$0xff]
  %v922 = vld [vmem:[%s900 + $0x80] sm:$0xf]
  %v923 = vld [vmem:[%s900 + $0x84] sm:$0xff]
  %v924 = vld [vmem:[%s900 + $0x8c] sm:$0xf]
  %v925 = vld [vmem:[%s900 + $0x90] sm:$0xff]
  %v926 = vld [vmem:[%s900 + $0x98] sm:$0xf]
  %v927 = vld [vmem:[%s900 + $0x9c] sm:$0xff]
  %v928 = vld [vmem:[%s900 + $0xa4] sm:$0xf]
  %v929 = vld [vmem:[%s900 + $0xa8] sm:$0xff]
  %v930 = vld [vmem:[%s900 + $0xb0] sm:$0xf]
  %v931 = vld [vmem:[%s900 + $0xb4] sm:$0xff]
  %v932 = vld [vmem:[%s900 + $0xbc] sm:$0xf]
  %v933 = vld [vmem:[%s900 + $0xc0] sm:$0x33]
  %v934 = vld [vmem:[%s900 + $0xc8] sm:$0x3]
  %v969 = vunpack.c.l.b16 %v901
  %v970 = vunpack.c.h.b16 %v901
  %v971 = vunpack.c.l.b16 %v902
  %v972 = vunpack.c.l.b16 %v903
  %v973 = vunpack.c.h.b16 %v903
  %v974 = vunpack.c.l.b16 %v904
  %v975 = vunpack.c.l.b16 %v905
  %v976 = vunpack.c.h.b16 %v905
  %v977 = vunpack.c.l.b16 %v906
  %v978 = vunpack.c.l.b16 %v907
  %v979 = vunpack.c.h.b16 %v907
  %v980 = vunpack.c.l.b16 %v908
  %v981 = vunpack.c.l.b16 %v909
  %v982 = vunpack.c.h.b16 %v909
  %v983 = vunpack.c.l.b16 %v910
  %v984 = vunpack.c.l.b16 %v911
  %v985 = vunpack.c.h.b16 %v911
  %v986 = vunpack.c.l.b16 %v912
  %v987 = vunpack.c.l.b16 %v913
  %v988 = vunpack.c.h.b16 %v913
  %v989 = vunpack.c.l.b16 %v914
  %v990 = vunpack.c.l.b16 %v915
  %v991 = vunpack.c.h.b16 %v915
  %v992 = vunpack.c.l.b16 %v916
  %v993 = vunpack.c.l.b16 %v917
  %v994 = vunpack.c.h.b16 %v917
  %v995 = vunpack.c.l.b16 %v918
  %v996 = vunpack.c.l.b16 %v919
  %v997 = vunpack.c.h.b16 %v919
  %v998 = vunpack.c.l.b16 %v920
  %v999 = vunpack.c.l.b16 %v921
  %v1000 = vunpack.c.h.b16 %v921
  %v1001 = vunpack.c.l.b16 %v922
  %v1002 = vunpack.c.l.b16 %v923
  %v1003 = vunpack.c.h.b16 %v923
  %v1004 = vunpack.c.l.b16 %v924
  %v1005 = vunpack.c.l.b16 %v925
  %v1006 = vunpack.c.h.b16 %v925
  %v1007 = vunpack.c.l.b16 %v926
  %v1008 = vunpack.c.l.b16 %v927
  %v1009 = vunpack.c.h.b16 %v927
  %v1010 = vunpack.c.l.b16 %v928
  %v1011 = vunpack.c.l.b16 %v929
  %v1012 = vunpack.c.h.b16 %v929
  %v1013 = vunpack.c.l.b16 %v930
  %v1014 = vunpack.c.l.b16 %v931
  %v1015 = vunpack.c.h.b16 %v931
  %v1016 = vunpack.c.l.b16 %v932
  %v1017 = vunpack.c.l.b16 %v933
  %v1018 = vunpack.c.h.b16 %v933
  %v1019 = vunpack.c.l.b16 %v934
  %v1020 = vpack.c.b16 %v972, %v969
  %v1021 = vpack.c.b16 %v973, %v970
  %v1022 = vpack.c.b16 %v974, %v971
  %v1023 = vpack.c.b16 %v978, %v975
  %v1024 = vpack.c.b16 %v979, %v976
  %v1025 = vpack.c.b16 %v980, %v977
  %v1026 = vpack.c.b16 %v984, %v981
  %v1027 = vpack.c.b16 %v985, %v982
  %v1028 = vpack.c.b16 %v986, %v983
  %v1029 = vpack.c.b16 %v990, %v987
  %v1030 = vpack.c.b16 %v991, %v988
  %v1031 = vpack.c.b16 %v992, %v989
  %v1032 = vpack.c.b16 %v996, %v993
  %v1033 = vpack.c.b16 %v997, %v994
  %v1034 = vpack.c.b16 %v998, %v995
  %v1035 = vpack.c.b16 %v1002, %v999
  %v1036 = vpack.c.b16 %v1003, %v1000
  %v1037 = vpack.c.b16 %v1004, %v1001
  %v1038 = vpack.c.b16 %v1008, %v1005
  %v1039 = vpack.c.b16 %v1009, %v1006
  %v1040 = vpack.c.b16 %v1010, %v1007
  %v1041 = vpack.c.b16 %v1014, %v1011
  %v1042 = vpack.c.b16 %v1015, %v1012
  %v1043 = vpack.c.b16 %v1016, %v1013
  %v1044 = vpack.c.b16 %v1017, %v1017
  %v1045 = vpack.c.b16 %v1018, %v1018
  %v1046 = vpack.c.b16 %v1019, %v1019
  %v1072 = vsel %vm283, %v899, 0
  %v1075 = vsel %vm287, %v1044, 0
  %v1078 = vsel %vm287, %v1045, 0
  %v1081 = vsel %vm287, %v1046, 0
  %1083 = vmatpush.bf16.msra.mxu0 %v1041
  %1084 = vmatpush.bf16.msra.mxu0 %v1038
  %1085 = vmatpush.bf16.msra.mxu0 %v1035
  %1086 = vmatpush.bf16.msra.mxu0 %v1032
  %1087 = vmatpush.bf16.msra.mxu0 %v1029
  %1088 = vmatpush.bf16.msra.mxu0 %v1026
  %1089 = vmatpush.bf16.msra.mxu0 %v1023
  %1090 = vmatpush.bf16.msra.mxu0 %v1020
  %1091 = vmatmul.bf16.gmra.mxu0 %v898
  %v1092 = vpop.f32.mrf.mxu0
  %v1093 = vadd.f32 0.0, %v1092
  %v1094 = vpop.f32.mrf.mxu0
  %v1095 = vadd.f32 0.0, %v1094
  %1096 = vdwg.mxu0
  %1097 = vmatpush.bf16.msra.mxu0 0
  %1098 = vmatpush.bf16.msra.mxu0 0
  %1099 = vmatpush.bf16.msra.mxu0 0
  %1100 = vmatpush.bf16.msra.mxu0 0
  %1101 = vmatpush.bf16.msra.mxu0 0
  %1102 = vmatpush.bf16.msra.mxu0 0
  %1103 = vmatpush.bf16.msra.mxu0 0
  %1104 = vmatpush.bf16.msra.mxu0 %v1075
  %1105 = vmatmul.bf16.gmra.mxu0 %v1072
  %v1106 = vpop.f32.mrf.mxu0
  %v1107 = vadd.f32 %v1093, %v1106
  %v1108 = vpop.f32.mrf.mxu0
  %v1109 = vadd.f32 %v1095, %v1108
  %1110 = vdwg.mxu0
  %1111 = vmatpush.bf16.msra.mxu0 %v1042
  %1112 = vmatpush.bf16.msra.mxu0 %v1039
  %1113 = vmatpush.bf16.msra.mxu0 %v1036
  %1114 = vmatpush.bf16.msra.mxu0 %v1033
  %1115 = vmatpush.bf16.msra.mxu0 %v1030
  %1116 = vmatpush.bf16.msra.mxu0 %v1027
  %1117 = vmatpush.bf16.msra.mxu0 %v1024
  %1118 = vmatpush.bf16.msra.mxu0 %v1021
  %1119 = vmatmul.bf16.gmra.mxu0 %v898
  %v1120 = vpop.f32.mrf.mxu0
  %v1121 = vadd.f32 0.0, %v1120
  %v1122 = vpop.f32.mrf.mxu0
  %v1123 = vadd.f32 0.0, %v1122
  %1124 = vdwg.mxu0
  %1125 = vmatpush.bf16.msra.mxu0 0
  %1126 = vmatpush.bf16.msra.mxu0 0
  %1127 = vmatpush.bf16.msra.mxu0 0
  %1128 = vmatpush.bf16.msra.mxu0 0
  %1129 = vmatpush.bf16.msra.mxu0 0
  %1130 = vmatpush.bf16.msra.mxu0 0
  %1131 = vmatpush.bf16.msra.mxu0 0
  %1132 = vmatpush.bf16.msra.mxu0 %v1078
  %1133 = vmatmul.bf16.gmra.mxu0 %v1072
  %v1134 = vpop.f32.mrf.mxu0
  %v1135 = vadd.f32 %v1121, %v1134
  %v1136 = vpop.f32.mrf.mxu0
  %v1137 = vadd.f32 %v1123, %v1136
  %1138 = vdwg.mxu0
  %1139 = vmatpush.bf16.msra.mxu0 %v1043
  %1140 = vmatpush.bf16.msra.mxu0 %v1040
  %1141 = vmatpush.bf16.msra.mxu0 %v1037
  %1142 = vmatpush.bf16.msra.mxu0 %v1034
  %1143 = vmatpush.bf16.msra.mxu0 %v1031
  %1144 = vmatpush.bf16.msra.mxu0 %v1028
  %1145 = vmatpush.bf16.msra.mxu0 %v1025
  %1146 = vmatpush.bf16.msra.mxu0 %v1022
  %1147 = vmatmul.bf16.gmra.mxu0 %v898
  %v1148 = vpop.f32.mrf.mxu0
  %v1149 = vadd.f32 0.0, %v1148
  %v1150 = vpop.f32.mrf.mxu0
  %v1151 = vadd.f32 0.0, %v1150
  %1152 = vdwg.mxu0
  %1153 = vmatpush.bf16.msra.mxu0 0
  %1154 = vmatpush.bf16.msra.mxu0 0
  %1155 = vmatpush.bf16.msra.mxu0 0
  %1156 = vmatpush.bf16.msra.mxu0 0
  %1157 = vmatpush.bf16.msra.mxu0 0
  %1158 = vmatpush.bf16.msra.mxu0 0
  %1159 = vmatpush.bf16.msra.mxu0 0
  %1160 = vmatpush.bf16.msra.mxu0 %v1081
  %1161 = vmatmul.bf16.gmra.mxu0 %v1072
  %v1162 = vpop.f32.mrf.mxu0
  %v1163 = vadd.f32 %v1149, %v1162
  %v1164 = vpop.f32.mrf.mxu0
  %v1165 = vadd.f32 %v1151, %v1164
  %1166 = vdwg.mxu0
  %v1167 = vadd.f32 %v887, %v1107
  %v1168 = vadd.f32 %v888, %v1135
  %v1169 = vadd.f32 %v889, %v1163
  %v1170 = vadd.f32 %v890, %v1109
  %v1171 = vadd.f32 %v891, %v1137
  %v1172 = vadd.f32 %v892, %v1165
  %v1173 = vld [vmem:[%s0] sm:$0xfe]
  %v1174 = vld [vmem:[%s0 + $0x8] sm:$0xfe]
  %v1175 = vld [vmem:[%s0 + $0x10] sm:$0x7]
  %v1176 = vld [vmem:[%s0 + $0x18] sm:$0x7]
  %v1177 = vpack.c.bf16 %v1175, %v1173
  %v1178 = vpack.c.bf16 %v1176, %v1174
  %s1179 = scalar_lea.vmem %s1, 816
  %v1180 = vld [vmem:[%s1179] sm:$0xff]
  %v1181 = vld [vmem:[%s1179 + $0x8] sm:$0xf]
  %v1182 = vld [vmem:[%s1179 + $0xc] sm:$0xff]
  %v1183 = vld [vmem:[%s1179 + $0x14] sm:$0xf]
  %v1184 = vld [vmem:[%s1179 + $0x18] sm:$0xff]
  %v1185 = vld [vmem:[%s1179 + $0x20] sm:$0xf]
  %v1186 = vld [vmem:[%s1179 + $0x24] sm:$0xff]
  %v1187 = vld [vmem:[%s1179 + $0x2c] sm:$0xf]
  %v1188 = vld [vmem:[%s1179 + $0x30] sm:$0xff]
  %v1189 = vld [vmem:[%s1179 + $0x38] sm:$0xf]
  %v1190 = vld [vmem:[%s1179 + $0x3c] sm:$0xff]
  %v1191 = vld [vmem:[%s1179 + $0x44] sm:$0xf]
  %v1192 = vld [vmem:[%s1179 + $0x48] sm:$0xff]
  %v1193 = vld [vmem:[%s1179 + $0x50] sm:$0xf]
  %v1194 = vld [vmem:[%s1179 + $0x54] sm:$0xff]
  %v1195 = vld [vmem:[%s1179 + $0x5c] sm:$0xf]
  %v1196 = vld [vmem:[%s1179 + $0x60] sm:$0xff]
  %v1197 = vld [vmem:[%s1179 + $0x68] sm:$0xf]
  %v1198 = vld [vmem:[%s1179 + $0x6c] sm:$0xff]
  %v1199 = vld [vmem:[%s1179 + $0x74] sm:$0xf]
  %v1200 = vld [vmem:[%s1179 + $0x78] sm:$0xff]
  %v1201 = vld [vmem:[%s1179 + $0x80] sm:$0xf]
  %v1202 = vld [vmem:[%s1179 + $0x84] sm:$0xff]
  %v1203 = vld [vmem:[%s1179 + $0x8c] sm:$0xf]
  %v1204 = vld [vmem:[%s1179 + $0x90] sm:$0xff]
  %v1205 = vld [vmem:[%s1179 + $0x98] sm:$0xf]
  %v1206 = vld [vmem:[%s1179 + $0x9c] sm:$0xff]
  %v1207 = vld [vmem:[%s1179 + $0xa4] sm:$0xf]
  %v1208 = vld [vmem:[%s1179 + $0xa8] sm:$0xff]
  %v1209 = vld [vmem:[%s1179 + $0xb0] sm:$0xf]
  %v1210 = vld [vmem:[%s1179 + $0xb4] sm:$0xff]
  %v1211 = vld [vmem:[%s1179 + $0xbc] sm:$0xf]
  %v1212 = vld [vmem:[%s1179 + $0xc0] sm:$0x33]
  %v1213 = vld [vmem:[%s1179 + $0xc8] sm:$0x3]
  %v1215 = vshrl.u32 %v1177, 16
  %v1217 = vshll.u32 %v1177, 16
  %v1219 = vrot.slane %v1217, 1
  %v1220 = vor.u32 %v1215, %v1219
  %v1222 = vshrl.u32 %v1178, 16
  %v1224 = vshll.u32 %v1178, 16
  %v1226 = vrot.slane %v1224, 1
  %v1227 = vor.u32 %v1222, %v1226
  %v1263 = vunpack.c.l.b16 %v1180
  %v1264 = vunpack.c.h.b16 %v1180
  %v1265 = vunpack.c.l.b16 %v1181
  %v1266 = vunpack.c.l.b16 %v1182
  %v1267 = vunpack.c.h.b16 %v1182
  %v1268 = vunpack.c.l.b16 %v1183
  %v1269 = vunpack.c.l.b16 %v1184
  %v1270 = vunpack.c.h.b16 %v1184
  %v1271 = vunpack.c.l.b16 %v1185
  %v1272 = vunpack.c.l.b16 %v1186
  %v1273 = vunpack.c.h.b16 %v1186
  %v1274 = vunpack.c.l.b16 %v1187
  %v1275 = vunpack.c.l.b16 %v1188
  %v1276 = vunpack.c.h.b16 %v1188
  %v1277 = vunpack.c.l.b16 %v1189
  %v1278 = vunpack.c.l.b16 %v1190
  %v1279 = vunpack.c.h.b16 %v1190
  %v1280 = vunpack.c.l.b16 %v1191
  %v1281 = vunpack.c.l.b16 %v1192
  %v1282 = vunpack.c.h.b16 %v1192
  %v1283 = vunpack.c.l.b16 %v1193
  %v1284 = vunpack.c.l.b16 %v1194
  %v1285 = vunpack.c.h.b16 %v1194
  %v1286 = vunpack.c.l.b16 %v1195
  %v1287 = vunpack.c.l.b16 %v1196
  %v1288 = vunpack.c.h.b16 %v1196
  %v1289 = vunpack.c.l.b16 %v1197
  %v1290 = vunpack.c.l.b16 %v1198
  %v1291 = vunpack.c.h.b16 %v1198
  %v1292 = vunpack.c.l.b16 %v1199
  %v1293 = vunpack.c.l.b16 %v1200
  %v1294 = vunpack.c.h.b16 %v1200
  %v1295 = vunpack.c.l.b16 %v1201
  %v1296 = vunpack.c.l.b16 %v1202
  %v1297 = vunpack.c.h.b16 %v1202
  %v1298 = vunpack.c.l.b16 %v1203
  %v1299 = vunpack.c.l.b16 %v1204
  %v1300 = vunpack.c.h.b16 %v1204
  %v1301 = vunpack.c.l.b16 %v1205
  %v1302 = vunpack.c.l.b16 %v1206
  %v1303 = vunpack.c.h.b16 %v1206
  %v1304 = vunpack.c.l.b16 %v1207
  %v1305 = vunpack.c.l.b16 %v1208
  %v1306 = vunpack.c.h.b16 %v1208
  %v1307 = vunpack.c.l.b16 %v1209
  %v1308 = vunpack.c.l.b16 %v1210
  %v1309 = vunpack.c.h.b16 %v1210
  %v1310 = vunpack.c.l.b16 %v1211
  %v1311 = vunpack.c.l.b16 %v1212
  %v1312 = vunpack.c.h.b16 %v1212
  %v1313 = vunpack.c.l.b16 %v1213
  %v1314 = vpack.c.b16 %v1266, %v1263
  %v1315 = vpack.c.b16 %v1267, %v1264
  %v1316 = vpack.c.b16 %v1268, %v1265
  %v1317 = vpack.c.b16 %v1272, %v1269
  %v1318 = vpack.c.b16 %v1273, %v1270
  %v1319 = vpack.c.b16 %v1274, %v1271
  %v1320 = vpack.c.b16 %v1278, %v1275
  %v1321 = vpack.c.b16 %v1279, %v1276
  %v1322 = vpack.c.b16 %v1280, %v1277
  %v1323 = vpack.c.b16 %v1284, %v1281
  %v1324 = vpack.c.b16 %v1285, %v1282
  %v1325 = vpack.c.b16 %v1286, %v1283
  %v1326 = vpack.c.b16 %v1290, %v1287
  %v1327 = vpack.c.b16 %v1291, %v1288
  %v1328 = vpack.c.b16 %v1292, %v1289
  %v1329 = vpack.c.b16 %v1296, %v1293
  %v1330 = vpack.c.b16 %v1297, %v1294
  %v1331 = vpack.c.b16 %v1298, %v1295
  %v1332 = vpack.c.b16 %v1302, %v1299
  %v1333 = vpack.c.b16 %v1303, %v1300
  %v1334 = vpack.c.b16 %v1304, %v1301
  %v1335 = vpack.c.b16 %v1308, %v1305
  %v1336 = vpack.c.b16 %v1309, %v1306
  %v1337 = vpack.c.b16 %v1310, %v1307
  %v1338 = vpack.c.b16 %v1311, %v1311
  %v1339 = vpack.c.b16 %v1312, %v1312
  %v1340 = vpack.c.b16 %v1313, %v1313
  %v1366 = vsel %vm283, %v1227, 0
  %v1369 = vsel %vm287, %v1338, 0
  %v1372 = vsel %vm287, %v1339, 0
  %v1375 = vsel %vm287, %v1340, 0
  %1377 = vmatpush.bf16.msra.mxu0 %v1335
  %1378 = vmatpush.bf16.msra.mxu0 %v1332
  %1379 = vmatpush.bf16.msra.mxu0 %v1329
  %1380 = vmatpush.bf16.msra.mxu0 %v1326
  %1381 = vmatpush.bf16.msra.mxu0 %v1323
  %1382 = vmatpush.bf16.msra.mxu0 %v1320
  %1383 = vmatpush.bf16.msra.mxu0 %v1317
  %1384 = vmatpush.bf16.msra.mxu0 %v1314
  %1385 = vmatmul.bf16.gmra.mxu0 %v1220
  %v1386 = vpop.f32.mrf.mxu0
  %v1387 = vadd.f32 0.0, %v1386
  %v1388 = vpop.f32.mrf.mxu0
  %v1389 = vadd.f32 0.0, %v1388
  %1390 = vdwg.mxu0
  %1391 = vmatpush.bf16.msra.mxu0 0
  %1392 = vmatpush.bf16.msra.mxu0 0
  %1393 = vmatpush.bf16.msra.mxu0 0
  %1394 = vmatpush.bf16.msra.mxu0 0
  %1395 = vmatpush.bf16.msra.mxu0 0
  %1396 = vmatpush.bf16.msra.mxu0 0
  %1397 = vmatpush.bf16.msra.mxu0 0
  %1398 = vmatpush.bf16.msra.mxu0 %v1369
  %1399 = vmatmul.bf16.gmra.mxu0 %v1366
  %v1400 = vpop.f32.mrf.mxu0
  %v1401 = vadd.f32 %v1387, %v1400
  %v1402 = vpop.f32.mrf.mxu0
  %v1403 = vadd.f32 %v1389, %v1402
  %1404 = vdwg.mxu0
  %1405 = vmatpush.bf16.msra.mxu0 %v1336
  %1406 = vmatpush.bf16.msra.mxu0 %v1333
  %1407 = vmatpush.bf16.msra.mxu0 %v1330
  %1408 = vmatpush.bf16.msra.mxu0 %v1327
  %1409 = vmatpush.bf16.msra.mxu0 %v1324
  %1410 = vmatpush.bf16.msra.mxu0 %v1321
  %1411 = vmatpush.bf16.msra.mxu0 %v1318
  %1412 = vmatpush.bf16.msra.mxu0 %v1315
  %1413 = vmatmul.bf16.gmra.mxu0 %v1220
  %v1414 = vpop.f32.mrf.mxu0
  %v1415 = vadd.f32 0.0, %v1414
  %v1416 = vpop.f32.mrf.mxu0
  %v1417 = vadd.f32 0.0, %v1416
  %1418 = vdwg.mxu0
  %1419 = vmatpush.bf16.msra.mxu0 0
  %1420 = vmatpush.bf16.msra.mxu0 0
  %1421 = vmatpush.bf16.msra.mxu0 0
  %1422 = vmatpush.bf16.msra.mxu0 0
  %1423 = vmatpush.bf16.msra.mxu0 0
  %1424 = vmatpush.bf16.msra.mxu0 0
  %1425 = vmatpush.bf16.msra.mxu0 0
  %1426 = vmatpush.bf16.msra.mxu0 %v1372
  %1427 = vmatmul.bf16.gmra.mxu0 %v1366
  %v1428 = vpop.f32.mrf.mxu0
  %v1429 = vadd.f32 %v1415, %v1428
  %v1430 = vpop.f32.mrf.mxu0
  %v1431 = vadd.f32 %v1417, %v1430
  %1432 = vdwg.mxu0
  %1433 = vmatpush.bf16.msra.mxu0 %v1337
  %1434 = vmatpush.bf16.msra.mxu0 %v1334
  %1435 = vmatpush.bf16.msra.mxu0 %v1331
  %1436 = vmatpush.bf16.msra.mxu0 %v1328
  %1437 = vmatpush.bf16.msra.mxu0 %v1325
  %1438 = vmatpush.bf16.msra.mxu0 %v1322
  %1439 = vmatpush.bf16.msra.mxu0 %v1319
  %1440 = vmatpush.bf16.msra.mxu0 %v1316
  %1441 = vmatmul.bf16.gmra.mxu0 %v1220
  %v1442 = vpop.f32.mrf.mxu0
  %v1443 = vadd.f32 0.0, %v1442
  %v1444 = vpop.f32.mrf.mxu0
  %v1445 = vadd.f32 0.0, %v1444
  %1446 = vdwg.mxu0
  %1447 = vmatpush.bf16.msra.mxu0 0
  %1448 = vmatpush.bf16.msra.mxu0 0
  %1449 = vmatpush.bf16.msra.mxu0 0
  %1450 = vmatpush.bf16.msra.mxu0 0
  %1451 = vmatpush.bf16.msra.mxu0 0
  %1452 = vmatpush.bf16.msra.mxu0 0
  %1453 = vmatpush.bf16.msra.mxu0 0
  %1454 = vmatpush.bf16.msra.mxu0 %v1375
  %1455 = vmatmul.bf16.gmra.mxu0 %v1366
  %v1456 = vpop.f32.mrf.mxu0
  %v1457 = vadd.f32 %v1443, %v1456
  %v1458 = vpop.f32.mrf.mxu0
  %v1459 = vadd.f32 %v1445, %v1458
  %1460 = vdwg.mxu0
  %v1461 = vadd.f32 %v1167, %v1401
  %v1462 = vadd.f32 %v1168, %v1429
  %v1463 = vadd.f32 %v1169, %v1457
  %v1464 = vadd.f32 %v1170, %v1403
  %v1465 = vadd.f32 %v1171, %v1431
  %v1466 = vadd.f32 %v1172, %v1459
  %v1467 = vld [vmem:[%s105] sm:$0xfe]
  %v1468 = vld [vmem:[%s105 + $0x8] sm:$0xfe]
  %v1469 = vld [vmem:[%s105 + $0x10] sm:$0x7]
  %v1470 = vld [vmem:[%s105 + $0x18] sm:$0x7]
  %v1471 = vpack.c.bf16 %v1469, %v1467
  %v1472 = vpack.c.bf16 %v1470, %v1468
  %s1473 = scalar_lea.vmem %s1, 1020
  %v1474 = vld [vmem:[%s1473] sm:$0xff]
  %v1475 = vld [vmem:[%s1473 + $0x8] sm:$0xf]
  %v1476 = vld [vmem:[%s1473 + $0xc] sm:$0xff]
  %v1477 = vld [vmem:[%s1473 + $0x14] sm:$0xf]
  %v1478 = vld [vmem:[%s1473 + $0x18] sm:$0xff]
  %v1479 = vld [vmem:[%s1473 + $0x20] sm:$0xf]
  %v1480 = vld [vmem:[%s1473 + $0x24] sm:$0xff]
  %v1481 = vld [vmem:[%s1473 + $0x2c] sm:$0xf]
  %v1482 = vld [vmem:[%s1473 + $0x30] sm:$0xff]
  %v1483 = vld [vmem:[%s1473 + $0x38] sm:$0xf]
  %v1484 = vld [vmem:[%s1473 + $0x3c] sm:$0xff]
  %v1485 = vld [vmem:[%s1473 + $0x44] sm:$0xf]
  %v1486 = vld [vmem:[%s1473 + $0x48] sm:$0xff]
  %v1487 = vld [vmem:[%s1473 + $0x50] sm:$0xf]
  %v1488 = vld [vmem:[%s1473 + $0x54] sm:$0xff]
  %v1489 = vld [vmem:[%s1473 + $0x5c] sm:$0xf]
  %v1490 = vld [vmem:[%s1473 + $0x60] sm:$0xff]
  %v1491 = vld [vmem:[%s1473 + $0x68] sm:$0xf]
  %v1492 = vld [vmem:[%s1473 + $0x6c] sm:$0xff]
  %v1493 = vld [vmem:[%s1473 + $0x74] sm:$0xf]
  %v1494 = vld [vmem:[%s1473 + $0x78] sm:$0xff]
  %v1495 = vld [vmem:[%s1473 + $0x80] sm:$0xf]
  %v1496 = vld [vmem:[%s1473 + $0x84] sm:$0xff]
  %v1497 = vld [vmem:[%s1473 + $0x8c] sm:$0xf]
  %v1498 = vld [vmem:[%s1473 + $0x90] sm:$0xff]
  %v1499 = vld [vmem:[%s1473 + $0x98] sm:$0xf]
  %v1500 = vld [vmem:[%s1473 + $0x9c] sm:$0xff]
  %v1501 = vld [vmem:[%s1473 + $0xa4] sm:$0xf]
  %v1502 = vld [vmem:[%s1473 + $0xa8] sm:$0xff]
  %v1503 = vld [vmem:[%s1473 + $0xb0] sm:$0xf]
  %v1504 = vld [vmem:[%s1473 + $0xb4] sm:$0xff]
  %v1505 = vld [vmem:[%s1473 + $0xbc] sm:$0xf]
  %v1506 = vld [vmem:[%s1473 + $0xc0] sm:$0x33]
  %v1507 = vld [vmem:[%s1473 + $0xc8] sm:$0x3]
  %v1509 = vshrl.u32 %v1471, 16
  %v1511 = vshll.u32 %v1471, 16
  %v1513 = vrot.slane %v1511, 1
  %v1514 = vor.u32 %v1509, %v1513
  %v1516 = vshrl.u32 %v1472, 16
  %v1518 = vshll.u32 %v1472, 16
  %v1520 = vrot.slane %v1518, 1
  %v1521 = vor.u32 %v1516, %v1520
  %v1557 = vunpack.c.l.b16 %v1474
  %v1558 = vunpack.c.h.b16 %v1474
  %v1559 = vunpack.c.l.b16 %v1475
  %v1560 = vunpack.c.l.b16 %v1476
  %v1561 = vunpack.c.h.b16 %v1476
  %v1562 = vunpack.c.l.b16 %v1477
  %v1563 = vunpack.c.l.b16 %v1478
  %v1564 = vunpack.c.h.b16 %v1478
  %v1565 = vunpack.c.l.b16 %v1479
  %v1566 = vunpack.c.l.b16 %v1480
  %v1567 = vunpack.c.h.b16 %v1480
  %v1568 = vunpack.c.l.b16 %v1481
  %v1569 = vunpack.c.l.b16 %v1482
  %v1570 = vunpack.c.h.b16 %v1482
  %v1571 = vunpack.c.l.b16 %v1483
  %v1572 = vunpack.c.l.b16 %v1484
  %v1573 = vunpack.c.h.b16 %v1484
  %v1574 = vunpack.c.l.b16 %v1485
  %v1575 = vunpack.c.l.b16 %v1486
  %v1576 = vunpack.c.h.b16 %v1486
  %v1577 = vunpack.c.l.b16 %v1487
  %v1578 = vunpack.c.l.b16 %v1488
  %v1579 = vunpack.c.h.b16 %v1488
  %v1580 = vunpack.c.l.b16 %v1489
  %v1581 = vunpack.c.l.b16 %v1490
  %v1582 = vunpack.c.h.b16 %v1490
  %v1583 = vunpack.c.l.b16 %v1491
  %v1584 = vunpack.c.l.b16 %v1492
  %v1585 = vunpack.c.h.b16 %v1492
  %v1586 = vunpack.c.l.b16 %v1493
  %v1587 = vunpack.c.l.b16 %v1494
  %v1588 = vunpack.c.h.b16 %v1494
  %v1589 = vunpack.c.l.b16 %v1495
  %v1590 = vunpack.c.l.b16 %v1496
  %v1591 = vunpack.c.h.b16 %v1496
  %v1592 = vunpack.c.l.b16 %v1497
  %v1593 = vunpack.c.l.b16 %v1498
  %v1594 = vunpack.c.h.b16 %v1498
  %v1595 = vunpack.c.l.b16 %v1499
  %v1596 = vunpack.c.l.b16 %v1500
  %v1597 = vunpack.c.h.b16 %v1500
  %v1598 = vunpack.c.l.b16 %v1501
  %v1599 = vunpack.c.l.b16 %v1502
  %v1600 = vunpack.c.h.b16 %v1502
  %v1601 = vunpack.c.l.b16 %v1503
  %v1602 = vunpack.c.l.b16 %v1504
  %v1603 = vunpack.c.h.b16 %v1504
  %v1604 = vunpack.c.l.b16 %v1505
  %v1605 = vunpack.c.l.b16 %v1506
  %v1606 = vunpack.c.h.b16 %v1506
  %v1607 = vunpack.c.l.b16 %v1507
  %v1608 = vpack.c.b16 %v1560, %v1557
  %v1609 = vpack.c.b16 %v1561, %v1558
  %v1610 = vpack.c.b16 %v1562, %v1559
  %v1611 = vpack.c.b16 %v1566, %v1563
  %v1612 = vpack.c.b16 %v1567, %v1564
  %v1613 = vpack.c.b16 %v1568, %v1565
  %v1614 = vpack.c.b16 %v1572, %v1569
  %v1615 = vpack.c.b16 %v1573, %v1570
  %v1616 = vpack.c.b16 %v1574, %v1571
  %v1617 = vpack.c.b16 %v1578, %v1575
  %v1618 = vpack.c.b16 %v1579, %v1576
  %v1619 = vpack.c.b16 %v1580, %v1577
  %v1620 = vpack.c.b16 %v1584, %v1581
  %v1621 = vpack.c.b16 %v1585, %v1582
  %v1622 = vpack.c.b16 %v1586, %v1583
  %v1623 = vpack.c.b16 %v1590, %v1587
  %v1624 = vpack.c.b16 %v1591, %v1588
  %v1625 = vpack.c.b16 %v1592, %v1589
  %v1626 = vpack.c.b16 %v1596, %v1593
  %v1627 = vpack.c.b16 %v1597, %v1594
  %v1628 = vpack.c.b16 %v1598, %v1595
  %v1629 = vpack.c.b16 %v1602, %v1599
  %v1630 = vpack.c.b16 %v1603, %v1600
  %v1631 = vpack.c.b16 %v1604, %v1601
  %v1632 = vpack.c.b16 %v1605, %v1605
  %v1633 = vpack.c.b16 %v1606, %v1606
  %v1634 = vpack.c.b16 %v1607, %v1607
  %v1660 = vsel %vm283, %v1521, 0
  %v1663 = vsel %vm287, %v1632, 0
  %v1666 = vsel %vm287, %v1633, 0
  %v1669 = vsel %vm287, %v1634, 0
  %1671 = vmatpush.bf16.msra.mxu0 %v1629
  %1672 = vmatpush.bf16.msra.mxu0 %v1626
  %1673 = vmatpush.bf16.msra.mxu0 %v1623
  %1674 = vmatpush.bf16.msra.mxu0 %v1620
  %1675 = vmatpush.bf16.msra.mxu0 %v1617
  %1676 = vmatpush.bf16.msra.mxu0 %v1614
  %1677 = vmatpush.bf16.msra.mxu0 %v1611
  %1678 = vmatpush.bf16.msra.mxu0 %v1608
  %1679 = vmatmul.bf16.gmra.mxu0 %v1514
  %v1680 = vpop.f32.mrf.mxu0
  %v1681 = vadd.f32 0.0, %v1680
  %v1682 = vpop.f32.mrf.mxu0
  %v1683 = vadd.f32 0.0, %v1682
  %1684 = vdwg.mxu0
  %1685 = vmatpush.bf16.msra.mxu0 0
  %1686 = vmatpush.bf16.msra.mxu0 0
  %1687 = vmatpush.bf16.msra.mxu0 0
  %1688 = vmatpush.bf16.msra.mxu0 0
  %1689 = vmatpush.bf16.msra.mxu0 0
  %1690 = vmatpush.bf16.msra.mxu0 0
  %1691 = vmatpush.bf16.msra.mxu0 0
  %1692 = vmatpush.bf16.msra.mxu0 %v1663
  %1693 = vmatmul.bf16.gmra.mxu0 %v1660
  %v1694 = vpop.f32.mrf.mxu0
  %v1695 = vadd.f32 %v1681, %v1694
  %v1696 = vpop.f32.mrf.mxu0
  %v1697 = vadd.f32 %v1683, %v1696
  %1698 = vdwg.mxu0
  %1699 = vmatpush.bf16.msra.mxu0 %v1630
  %1700 = vmatpush.bf16.msra.mxu0 %v1627
  %1701 = vmatpush.bf16.msra.mxu0 %v1624
  %1702 = vmatpush.bf16.msra.mxu0 %v1621
  %1703 = vmatpush.bf16.msra.mxu0 %v1618
  %1704 = vmatpush.bf16.msra.mxu0 %v1615
  %1705 = vmatpush.bf16.msra.mxu0 %v1612
  %1706 = vmatpush.bf16.msra.mxu0 %v1609
  %1707 = vmatmul.bf16.gmra.mxu0 %v1514
  %v1708 = vpop.f32.mrf.mxu0
  %v1709 = vadd.f32 0.0, %v1708
  %v1710 = vpop.f32.mrf.mxu0
  %v1711 = vadd.f32 0.0, %v1710
  %1712 = vdwg.mxu0
  %1713 = vmatpush.bf16.msra.mxu0 0
  %1714 = vmatpush.bf16.msra.mxu0 0
  %1715 = vmatpush.bf16.msra.mxu0 0
  %1716 = vmatpush.bf16.msra.mxu0 0
  %1717 = vmatpush.bf16.msra.mxu0 0
  %1718 = vmatpush.bf16.msra.mxu0 0
  %1719 = vmatpush.bf16.msra.mxu0 0
  %1720 = vmatpush.bf16.msra.mxu0 %v1666
  %1721 = vmatmul.bf16.gmra.mxu0 %v1660
  %v1722 = vpop.f32.mrf.mxu0
  %v1723 = vadd.f32 %v1709, %v1722
  %v1724 = vpop.f32.mrf.mxu0
  %v1725 = vadd.f32 %v1711, %v1724
  %1726 = vdwg.mxu0
  %1727 = vmatpush.bf16.msra.mxu0 %v1631
  %1728 = vmatpush.bf16.msra.mxu0 %v1628
  %1729 = vmatpush.bf16.msra.mxu0 %v1625
  %1730 = vmatpush.bf16.msra.mxu0 %v1622
  %1731 = vmatpush.bf16.msra.mxu0 %v1619
  %1732 = vmatpush.bf16.msra.mxu0 %v1616
  %1733 = vmatpush.bf16.msra.mxu0 %v1613
  %1734 = vmatpush.bf16.msra.mxu0 %v1610
  %1735 = vmatmul.bf16.gmra.mxu0 %v1514
  %v1736 = vpop.f32.mrf.mxu0
  %v1737 = vadd.f32 0.0, %v1736
  %v1738 = vpop.f32.mrf.mxu0
  %v1739 = vadd.f32 0.0, %v1738
  %1740 = vdwg.mxu0
  %1741 = vmatpush.bf16.msra.mxu0 0
  %1742 = vmatpush.bf16.msra.mxu0 0
  %1743 = vmatpush.bf16.msra.mxu0 0
  %1744 = vmatpush.bf16.msra.mxu0 0
  %1745 = vmatpush.bf16.msra.mxu0 0
  %1746 = vmatpush.bf16.msra.mxu0 0
  %1747 = vmatpush.bf16.msra.mxu0 0
  %1748 = vmatpush.bf16.msra.mxu0 %v1669
  %1749 = vmatmul.bf16.gmra.mxu0 %v1660
  %v1750 = vpop.f32.mrf.mxu0
  %v1751 = vadd.f32 %v1737, %v1750
  %v1752 = vpop.f32.mrf.mxu0
  %v1753 = vadd.f32 %v1739, %v1752
  %1754 = vdwg.mxu0
  %v1755 = vadd.f32 %v1461, %v1695
  %v1756 = vadd.f32 %v1462, %v1723
  %v1757 = vadd.f32 %v1463, %v1751
  %v1758 = vadd.f32 %v1464, %v1697
  %v1759 = vadd.f32 %v1465, %v1725
  %v1760 = vadd.f32 %v1466, %v1753
  %v1761 = vld [vmem:[%s613] sm:$0xfe]
  %v1762 = vld [vmem:[%s613 + $0x8] sm:$0xfe]
  %v1763 = vld [vmem:[%s613 + $0x10] sm:$0x7]
  %v1764 = vld [vmem:[%s613 + $0x18] sm:$0x7]
  %v1765 = vpack.c.bf16 %v1763, %v1761
  %v1766 = vpack.c.bf16 %v1764, %v1762
  %s1767 = scalar_lea.vmem %s1, 1224
  %v1768 = vld [vmem:[%s1767] sm:$0xff]
  %v1769 = vld [vmem:[%s1767 + $0x8] sm:$0xf]
  %v1770 = vld [vmem:[%s1767 + $0xc] sm:$0xff]
  %v1771 = vld [vmem:[%s1767 + $0x14] sm:$0xf]
  %v1772 = vld [vmem:[%s1767 + $0x18] sm:$0xff]
  %v1773 = vld [vmem:[%s1767 + $0x20] sm:$0xf]
  %v1774 = vld [vmem:[%s1767 + $0x24] sm:$0xff]
  %v1775 = vld [vmem:[%s1767 + $0x2c] sm:$0xf]
  %v1776 = vld [vmem:[%s1767 + $0x30] sm:$0xff]
  %v1777 = vld [vmem:[%s1767 + $0x38] sm:$0xf]
  %v1778 = vld [vmem:[%s1767 + $0x3c] sm:$0xff]
  %v1779 = vld [vmem:[%s1767 + $0x44] sm:$0xf]
  %v1780 = vld [vmem:[%s1767 + $0x48] sm:$0xff]
  %v1781 = vld [vmem:[%s1767 + $0x50] sm:$0xf]
  %v1782 = vld [vmem:[%s1767 + $0x54] sm:$0xff]
  %v1783 = vld [vmem:[%s1767 + $0x5c] sm:$0xf]
  %v1784 = vld [vmem:[%s1767 + $0x60] sm:$0xff]
  %v1785 = vld [vmem:[%s1767 + $0x68] sm:$0xf]
  %v1786 = vld [vmem:[%s1767 + $0x6c] sm:$0xff]
  %v1787 = vld [vmem:[%s1767 + $0x74] sm:$0xf]
  %v1788 = vld [vmem:[%s1767 + $0x78] sm:$0xff]
  %v1789 = vld [vmem:[%s1767 + $0x80] sm:$0xf]
  %v1790 = vld [vmem:[%s1767 + $0x84] sm:$0xff]
  %v1791 = vld [vmem:[%s1767 + $0x8c] sm:$0xf]
  %v1792 = vld [vmem:[%s1767 + $0x90] sm:$0xff]
  %v1793 = vld [vmem:[%s1767 + $0x98] sm:$0xf]
  %v1794 = vld [vmem:[%s1767 + $0x9c] sm:$0xff]
  %v1795 = vld [vmem:[%s1767 + $0xa4] sm:$0xf]
  %v1796 = vld [vmem:[%s1767 + $0xa8] sm:$0xff]
  %v1797 = vld [vmem:[%s1767 + $0xb0] sm:$0xf]
  %v1798 = vld [vmem:[%s1767 + $0xb4] sm:$0xff]
  %v1799 = vld [vmem:[%s1767 + $0xbc] sm:$0xf]
  %v1800 = vld [vmem:[%s1767 + $0xc0] sm:$0x33]
  %v1801 = vld [vmem:[%s1767 + $0xc8] sm:$0x3]
  %v1803 = vshrl.u32 %v1765, 16
  %v1805 = vshll.u32 %v1765, 16
  %v1807 = vrot.slane %v1805, 1
  %v1808 = vor.u32 %v1803, %v1807
  %v1810 = vshrl.u32 %v1766, 16
  %v1812 = vshll.u32 %v1766, 16
  %v1814 = vrot.slane %v1812, 1
  %v1815 = vor.u32 %v1810, %v1814
  %v1851 = vunpack.c.l.b16 %v1768
  %v1852 = vunpack.c.h.b16 %v1768
  %v1853 = vunpack.c.l.b16 %v1769
  %v1854 = vunpack.c.l.b16 %v1770
  %v1855 = vunpack.c.h.b16 %v1770
  %v1856 = vunpack.c.l.b16 %v1771
  %v1857 = vunpack.c.l.b16 %v1772
  %v1858 = vunpack.c.h.b16 %v1772
  %v1859 = vunpack.c.l.b16 %v1773
  %v1860 = vunpack.c.l.b16 %v1774
  %v1861 = vunpack.c.h.b16 %v1774
  %v1862 = vunpack.c.l.b16 %v1775
  %v1863 = vunpack.c.l.b16 %v1776
  %v1864 = vunpack.c.h.b16 %v1776
  %v1865 = vunpack.c.l.b16 %v1777
  %v1866 = vunpack.c.l.b16 %v1778
  %v1867 = vunpack.c.h.b16 %v1778
  %v1868 = vunpack.c.l.b16 %v1779
  %v1869 = vunpack.c.l.b16 %v1780
  %v1870 = vunpack.c.h.b16 %v1780
  %v1871 = vunpack.c.l.b16 %v1781
  %v1872 = vunpack.c.l.b16 %v1782
  %v1873 = vunpack.c.h.b16 %v1782
  %v1874 = vunpack.c.l.b16 %v1783
  %v1875 = vunpack.c.l.b16 %v1784
  %v1876 = vunpack.c.h.b16 %v1784
  %v1877 = vunpack.c.l.b16 %v1785
  %v1878 = vunpack.c.l.b16 %v1786
  %v1879 = vunpack.c.h.b16 %v1786
  %v1880 = vunpack.c.l.b16 %v1787
  %v1881 = vunpack.c.l.b16 %v1788
  %v1882 = vunpack.c.h.b16 %v1788
  %v1883 = vunpack.c.l.b16 %v1789
  %v1884 = vunpack.c.l.b16 %v1790
  %v1885 = vunpack.c.h.b16 %v1790
  %v1886 = vunpack.c.l.b16 %v1791
  %v1887 = vunpack.c.l.b16 %v1792
  %v1888 = vunpack.c.h.b16 %v1792
  %v1889 = vunpack.c.l.b16 %v1793
  %v1890 = vunpack.c.l.b16 %v1794
  %v1891 = vunpack.c.h.b16 %v1794
  %v1892 = vunpack.c.l.b16 %v1795
  %v1893 = vunpack.c.l.b16 %v1796
  %v1894 = vunpack.c.h.b16 %v1796
  %v1895 = vunpack.c.l.b16 %v1797
  %v1896 = vunpack.c.l.b16 %v1798
  %v1897 = vunpack.c.h.b16 %v1798
  %v1898 = vunpack.c.l.b16 %v1799
  %v1899 = vunpack.c.l.b16 %v1800
  %v1900 = vunpack.c.h.b16 %v1800
  %v1901 = vunpack.c.l.b16 %v1801
  %v1902 = vpack.c.b16 %v1854, %v1851
  %v1903 = vpack.c.b16 %v1855, %v1852
  %v1904 = vpack.c.b16 %v1856, %v1853
  %v1905 = vpack.c.b16 %v1860, %v1857
  %v1906 = vpack.c.b16 %v1861, %v1858
  %v1907 = vpack.c.b16 %v1862, %v1859
  %v1908 = vpack.c.b16 %v1866, %v1863
  %v1909 = vpack.c.b16 %v1867, %v1864
  %v1910 = vpack.c.b16 %v1868, %v1865
  %v1911 = vpack.c.b16 %v1872, %v1869
  %v1912 = vpack.c.b16 %v1873, %v1870
  %v1913 = vpack.c.b16 %v1874, %v1871
  %v1914 = vpack.c.b16 %v1878, %v1875
  %v1915 = vpack.c.b16 %v1879, %v1876
  %v1916 = vpack.c.b16 %v1880, %v1877
  %v1917 = vpack.c.b16 %v1884, %v1881
  %v1918 = vpack.c.b16 %v1885, %v1882
  %v1919 = vpack.c.b16 %v1886, %v1883
  %v1920 = vpack.c.b16 %v1890, %v1887
  %v1921 = vpack.c.b16 %v1891, %v1888
  %v1922 = vpack.c.b16 %v1892, %v1889
  %v1923 = vpack.c.b16 %v1896, %v1893
  %v1924 = vpack.c.b16 %v1897, %v1894
  %v1925 = vpack.c.b16 %v1898, %v1895
  %v1926 = vpack.c.b16 %v1899, %v1899
  %v1927 = vpack.c.b16 %v1900, %v1900
  %v1928 = vpack.c.b16 %v1901, %v1901
  %v1954 = vsel %vm283, %v1815, 0
  %v1957 = vsel %vm287, %v1926, 0
  %v1960 = vsel %vm287, %v1927, 0
  %v1963 = vsel %vm287, %v1928, 0
  %1965 = vmatpush.bf16.msra.mxu0 %v1923
  %1966 = vmatpush.bf16.msra.mxu0 %v1920
  %1967 = vmatpush.bf16.msra.mxu0 %v1917
  %1968 = vmatpush.bf16.msra.mxu0 %v1914
  %1969 = vmatpush.bf16.msra.mxu0 %v1911
  %1970 = vmatpush.bf16.msra.mxu0 %v1908
  %1971 = vmatpush.bf16.msra.mxu0 %v1905
  %1972 = vmatpush.bf16.msra.mxu0 %v1902
  %1973 = vmatmul.bf16.gmra.mxu0 %v1808
  %v1974 = vpop.f32.mrf.mxu0
  %v1975 = vadd.f32 0.0, %v1974
  %v1976 = vpop.f32.mrf.mxu0
  %v1977 = vadd.f32 0.0, %v1976
  %1978 = vdwg.mxu0
  %1979 = vmatpush.bf16.msra.mxu0 0
  %1980 = vmatpush.bf16.msra.mxu0 0
  %1981 = vmatpush.bf16.msra.mxu0 0
  %1982 = vmatpush.bf16.msra.mxu0 0
  %1983 = vmatpush.bf16.msra.mxu0 0
  %1984 = vmatpush.bf16.msra.mxu0 0
  %1985 = vmatpush.bf16.msra.mxu0 0
  %1986 = vmatpush.bf16.msra.mxu0 %v1957
  %1987 = vmatmul.bf16.gmra.mxu0 %v1954
  %v1988 = vpop.f32.mrf.mxu0
  %v1989 = vadd.f32 %v1975, %v1988
  %v1990 = vpop.f32.mrf.mxu0
  %v1991 = vadd.f32 %v1977, %v1990
  %1992 = vdwg.mxu0
  %1993 = vmatpush.bf16.msra.mxu0 %v1924
  %1994 = vmatpush.bf16.msra.mxu0 %v1921
  %1995 = vmatpush.bf16.msra.mxu0 %v1918
  %1996 = vmatpush.bf16.msra.mxu0 %v1915
  %1997 = vmatpush.bf16.msra.mxu0 %v1912
  %1998 = vmatpush.bf16.msra.mxu0 %v1909
  %1999 = vmatpush.bf16.msra.mxu0 %v1906
  %2000 = vmatpush.bf16.msra.mxu0 %v1903
  %2001 = vmatmul.bf16.gmra.mxu0 %v1808
  %v2002 = vpop.f32.mrf.mxu0
  %v2003 = vadd.f32 0.0, %v2002
  %v2004 = vpop.f32.mrf.mxu0
  %v2005 = vadd.f32 0.0, %v2004
  %2006 = vdwg.mxu0
  %2007 = vmatpush.bf16.msra.mxu0 0
  %2008 = vmatpush.bf16.msra.mxu0 0
  %2009 = vmatpush.bf16.msra.mxu0 0
  %2010 = vmatpush.bf16.msra.mxu0 0
  %2011 = vmatpush.bf16.msra.mxu0 0
  %2012 = vmatpush.bf16.msra.mxu0 0
  %2013 = vmatpush.bf16.msra.mxu0 0
  %2014 = vmatpush.bf16.msra.mxu0 %v1960
  %2015 = vmatmul.bf16.gmra.mxu0 %v1954
  %v2016 = vpop.f32.mrf.mxu0
  %v2017 = vadd.f32 %v2003, %v2016
  %v2018 = vpop.f32.mrf.mxu0
  %v2019 = vadd.f32 %v2005, %v2018
  %2020 = vdwg.mxu0
  %2021 = vmatpush.bf16.msra.mxu0 %v1925
  %2022 = vmatpush.bf16.msra.mxu0 %v1922
  %2023 = vmatpush.bf16.msra.mxu0 %v1919
  %2024 = vmatpush.bf16.msra.mxu0 %v1916
  %2025 = vmatpush.bf16.msra.mxu0 %v1913
  %2026 = vmatpush.bf16.msra.mxu0 %v1910
  %2027 = vmatpush.bf16.msra.mxu0 %v1907
  %2028 = vmatpush.bf16.msra.mxu0 %v1904
  %2029 = vmatmul.bf16.gmra.mxu0 %v1808
  %v2030 = vpop.f32.mrf.mxu0
  %v2031 = vadd.f32 0.0, %v2030
  %v2032 = vpop.f32.mrf.mxu0
  %v2033 = vadd.f32 0.0, %v2032
  %2034 = vdwg.mxu0
  %2035 = vmatpush.bf16.msra.mxu0 0
  %2036 = vmatpush.bf16.msra.mxu0 0
  %2037 = vmatpush.bf16.msra.mxu0 0
  %2038 = vmatpush.bf16.msra.mxu0 0
  %2039 = vmatpush.bf16.msra.mxu0 0
  %2040 = vmatpush.bf16.msra.mxu0 0
  %2041 = vmatpush.bf16.msra.mxu0 0
  %2042 = vmatpush.bf16.msra.mxu0 %v1963
  %2043 = vmatmul.bf16.gmra.mxu0 %v1954
  %v2044 = vpop.f32.mrf.mxu0
  %v2045 = vadd.f32 %v2031, %v2044
  %v2046 = vpop.f32.mrf.mxu0
  %v2047 = vadd.f32 %v2033, %v2046
  %2048 = vdwg.mxu0
  %v2049 = vadd.f32 %v1755, %v1989
  %v2050 = vadd.f32 %v1756, %v2017
  %v2051 = vadd.f32 %v1757, %v2045
  %v2052 = vadd.f32 %v1758, %v1991
  %v2053 = vadd.f32 %v1759, %v2019
  %v2054 = vadd.f32 %v1760, %v2047
  %v2055 = vld [vmem:[%s893] sm:$0xfe]
  %v2056 = vld [vmem:[%s893 + $0x8] sm:$0xfe]
  %v2057 = vld [vmem:[%s893 + $0x10] sm:$0x7]
  %v2058 = vld [vmem:[%s893 + $0x18] sm:$0x7]
  %v2059 = vpack.c.bf16 %v2057, %v2055
  %v2060 = vpack.c.bf16 %v2058, %v2056
  %s2061 = scalar_lea.vmem %s1, 1428
  %v2062 = vld [vmem:[%s2061] sm:$0xff]
  %v2063 = vld [vmem:[%s2061 + $0x8] sm:$0xf]
  %v2064 = vld [vmem:[%s2061 + $0xc] sm:$0xff]
  %v2065 = vld [vmem:[%s2061 + $0x14] sm:$0xf]
  %v2066 = vld [vmem:[%s2061 + $0x18] sm:$0xff]
  %v2067 = vld [vmem:[%s2061 + $0x20] sm:$0xf]
  %v2068 = vld [vmem:[%s2061 + $0x24] sm:$0xff]
  %v2069 = vld [vmem:[%s2061 + $0x2c] sm:$0xf]
  %v2070 = vld [vmem:[%s2061 + $0x30] sm:$0xff]
  %v2071 = vld [vmem:[%s2061 + $0x38] sm:$0xf]
  %v2072 = vld [vmem:[%s2061 + $0x3c] sm:$0xff]
  %v2073 = vld [vmem:[%s2061 + $0x44] sm:$0xf]
  %v2074 = vld [vmem:[%s2061 + $0x48] sm:$0xff]
  %v2075 = vld [vmem:[%s2061 + $0x50] sm:$0xf]
  %v2076 = vld [vmem:[%s2061 + $0x54] sm:$0xff]
  %v2077 = vld [vmem:[%s2061 + $0x5c] sm:$0xf]
  %v2078 = vld [vmem:[%s2061 + $0x60] sm:$0xff]
  %v2079 = vld [vmem:[%s2061 + $0x68] sm:$0xf]
  %v2080 = vld [vmem:[%s2061 + $0x6c] sm:$0xff]
  %v2081 = vld [vmem:[%s2061 + $0x74] sm:$0xf]
  %v2082 = vld [vmem:[%s2061 + $0x78] sm:$0xff]
  %v2083 = vld [vmem:[%s2061 + $0x80] sm:$0xf]
  %v2084 = vld [vmem:[%s2061 + $0x84] sm:$0xff]
  %v2085 = vld [vmem:[%s2061 + $0x8c] sm:$0xf]
  %v2086 = vld [vmem:[%s2061 + $0x90] sm:$0xff]
  %v2087 = vld [vmem:[%s2061 + $0x98] sm:$0xf]
  %v2088 = vld [vmem:[%s2061 + $0x9c] sm:$0xff]
  %v2089 = vld [vmem:[%s2061 + $0xa4] sm:$0xf]
  %v2090 = vld [vmem:[%s2061 + $0xa8] sm:$0xff]
  %v2091 = vld [vmem:[%s2061 + $0xb0] sm:$0xf]
  %v2092 = vld [vmem:[%s2061 + $0xb4] sm:$0xff]
  %v2093 = vld [vmem:[%s2061 + $0xbc] sm:$0xf]
  %v2094 = vld [vmem:[%s2061 + $0xc0] sm:$0x33]
  %v2095 = vld [vmem:[%s2061 + $0xc8] sm:$0x3]
  %v2097 = vshrl.u32 %v2059, 16
  %v2099 = vshll.u32 %v2059, 16
  %v2101 = vrot.slane %v2099, 1
  %v2102 = vor.u32 %v2097, %v2101
  %v2104 = vshrl.u32 %v2060, 16
  %v2106 = vshll.u32 %v2060, 16
  %v2108 = vrot.slane %v2106, 1
  %v2109 = vor.u32 %v2104, %v2108
  %v2145 = vunpack.c.l.b16 %v2062
  %v2146 = vunpack.c.h.b16 %v2062
  %v2147 = vunpack.c.l.b16 %v2063
  %v2148 = vunpack.c.l.b16 %v2064
  %v2149 = vunpack.c.h.b16 %v2064
  %v2150 = vunpack.c.l.b16 %v2065
  %v2151 = vunpack.c.l.b16 %v2066
  %v2152 = vunpack.c.h.b16 %v2066
  %v2153 = vunpack.c.l.b16 %v2067
  %v2154 = vunpack.c.l.b16 %v2068
  %v2155 = vunpack.c.h.b16 %v2068
  %v2156 = vunpack.c.l.b16 %v2069
  %v2157 = vunpack.c.l.b16 %v2070
  %v2158 = vunpack.c.h.b16 %v2070
  %v2159 = vunpack.c.l.b16 %v2071
  %v2160 = vunpack.c.l.b16 %v2072
  %v2161 = vunpack.c.h.b16 %v2072
  %v2162 = vunpack.c.l.b16 %v2073
  %v2163 = vunpack.c.l.b16 %v2074
  %v2164 = vunpack.c.h.b16 %v2074
  %v2165 = vunpack.c.l.b16 %v2075
  %v2166 = vunpack.c.l.b16 %v2076
  %v2167 = vunpack.c.h.b16 %v2076
  %v2168 = vunpack.c.l.b16 %v2077
  %v2169 = vunpack.c.l.b16 %v2078
  %v2170 = vunpack.c.h.b16 %v2078
  %v2171 = vunpack.c.l.b16 %v2079
  %v2172 = vunpack.c.l.b16 %v2080
  %v2173 = vunpack.c.h.b16 %v2080
  %v2174 = vunpack.c.l.b16 %v2081
  %v2175 = vunpack.c.l.b16 %v2082
  %v2176 = vunpack.c.h.b16 %v2082
  %v2177 = vunpack.c.l.b16 %v2083
  %v2178 = vunpack.c.l.b16 %v2084
  %v2179 = vunpack.c.h.b16 %v2084
  %v2180 = vunpack.c.l.b16 %v2085
  %v2181 = vunpack.c.l.b16 %v2086
  %v2182 = vunpack.c.h.b16 %v2086
  %v2183 = vunpack.c.l.b16 %v2087
  %v2184 = vunpack.c.l.b16 %v2088
  %v2185 = vunpack.c.h.b16 %v2088
  %v2186 = vunpack.c.l.b16 %v2089
  %v2187 = vunpack.c.l.b16 %v2090
  %v2188 = vunpack.c.h.b16 %v2090
  %v2189 = vunpack.c.l.b16 %v2091
  %v2190 = vunpack.c.l.b16 %v2092
  %v2191 = vunpack.c.h.b16 %v2092
  %v2192 = vunpack.c.l.b16 %v2093
  %v2193 = vunpack.c.l.b16 %v2094
  %v2194 = vunpack.c.h.b16 %v2094
  %v2195 = vunpack.c.l.b16 %v2095
  %v2196 = vpack.c.b16 %v2148, %v2145
  %v2197 = vpack.c.b16 %v2149, %v2146
  %v2198 = vpack.c.b16 %v2150, %v2147
  %v2199 = vpack.c.b16 %v2154, %v2151
  %v2200 = vpack.c.b16 %v2155, %v2152
  %v2201 = vpack.c.b16 %v2156, %v2153
  %v2202 = vpack.c.b16 %v2160, %v2157
  %v2203 = vpack.c.b16 %v2161, %v2158
  %v2204 = vpack.c.b16 %v2162, %v2159
  %v2205 = vpack.c.b16 %v2166, %v2163
  %v2206 = vpack.c.b16 %v2167, %v2164
  %v2207 = vpack.c.b16 %v2168, %v2165
  %v2208 = vpack.c.b16 %v2172, %v2169
  %v2209 = vpack.c.b16 %v2173, %v2170
  %v2210 = vpack.c.b16 %v2174, %v2171
  %v2211 = vpack.c.b16 %v2178, %v2175
  %v2212 = vpack.c.b16 %v2179, %v2176
  %v2213 = vpack.c.b16 %v2180, %v2177
  %v2214 = vpack.c.b16 %v2184, %v2181
  %v2215 = vpack.c.b16 %v2185, %v2182
  %v2216 = vpack.c.b16 %v2186, %v2183
  %v2217 = vpack.c.b16 %v2190, %v2187
  %v2218 = vpack.c.b16 %v2191, %v2188
  %v2219 = vpack.c.b16 %v2192, %v2189
  %v2220 = vpack.c.b16 %v2193, %v2193
  %v2221 = vpack.c.b16 %v2194, %v2194
  %v2222 = vpack.c.b16 %v2195, %v2195
  %v2248 = vsel %vm283, %v2109, 0
  %v2251 = vsel %vm287, %v2220, 0
  %v2254 = vsel %vm287, %v2221, 0
  %v2257 = vsel %vm287, %v2222, 0
  %2259 = vmatpush.bf16.msra.mxu0 %v2217
  %2260 = vmatpush.bf16.msra.mxu0 %v2214
  %2261 = vmatpush.bf16.msra.mxu0 %v2211
  %2262 = vmatpush.bf16.msra.mxu0 %v2208
  %2263 = vmatpush.bf16.msra.mxu0 %v2205
  %2264 = vmatpush.bf16.msra.mxu0 %v2202
  %2265 = vmatpush.bf16.msra.mxu0 %v2199
  %2266 = vmatpush.bf16.msra.mxu0 %v2196
  %2267 = vmatmul.bf16.gmra.mxu0 %v2102
  %v2268 = vpop.f32.mrf.mxu0
  %v2269 = vadd.f32 0.0, %v2268
  %v2270 = vpop.f32.mrf.mxu0
  %v2271 = vadd.f32 0.0, %v2270
  %2272 = vdwg.mxu0
  %2273 = vmatpush.bf16.msra.mxu0 0
  %2274 = vmatpush.bf16.msra.mxu0 0
  %2275 = vmatpush.bf16.msra.mxu0 0
  %2276 = vmatpush.bf16.msra.mxu0 0
  %2277 = vmatpush.bf16.msra.mxu0 0
  %2278 = vmatpush.bf16.msra.mxu0 0
  %2279 = vmatpush.bf16.msra.mxu0 0
  %2280 = vmatpush.bf16.msra.mxu0 %v2251
  %2281 = vmatmul.bf16.gmra.mxu0 %v2248
  %v2282 = vpop.f32.mrf.mxu0
  %v2283 = vadd.f32 %v2269, %v2282
  %v2284 = vpop.f32.mrf.mxu0
  %v2285 = vadd.f32 %v2271, %v2284
  %2286 = vdwg.mxu0
  %2287 = vmatpush.bf16.msra.mxu0 %v2218
  %2288 = vmatpush.bf16.msra.mxu0 %v2215
  %2289 = vmatpush.bf16.msra.mxu0 %v2212
  %2290 = vmatpush.bf16.msra.mxu0 %v2209
  %2291 = vmatpush.bf16.msra.mxu0 %v2206
  %2292 = vmatpush.bf16.msra.mxu0 %v2203
  %2293 = vmatpush.bf16.msra.mxu0 %v2200
  %2294 = vmatpush.bf16.msra.mxu0 %v2197
  %2295 = vmatmul.bf16.gmra.mxu0 %v2102
  %v2296 = vpop.f32.mrf.mxu0
  %v2297 = vadd.f32 0.0, %v2296
  %v2298 = vpop.f32.mrf.mxu0
  %v2299 = vadd.f32 0.0, %v2298
  %2300 = vdwg.mxu0
  %2301 = vmatpush.bf16.msra.mxu0 0
  %2302 = vmatpush.bf16.msra.mxu0 0
  %2303 = vmatpush.bf16.msra.mxu0 0
  %2304 = vmatpush.bf16.msra.mxu0 0
  %2305 = vmatpush.bf16.msra.mxu0 0
  %2306 = vmatpush.bf16.msra.mxu0 0
  %2307 = vmatpush.bf16.msra.mxu0 0
  %2308 = vmatpush.bf16.msra.mxu0 %v2254
  %2309 = vmatmul.bf16.gmra.mxu0 %v2248
  %v2310 = vpop.f32.mrf.mxu0
  %v2311 = vadd.f32 %v2297, %v2310
  %v2312 = vpop.f32.mrf.mxu0
  %v2313 = vadd.f32 %v2299, %v2312
  %2314 = vdwg.mxu0
  %2315 = vmatpush.bf16.msra.mxu0 %v2219
  %2316 = vmatpush.bf16.msra.mxu0 %v2216
  %2317 = vmatpush.bf16.msra.mxu0 %v2213
  %2318 = vmatpush.bf16.msra.mxu0 %v2210
  %2319 = vmatpush.bf16.msra.mxu0 %v2207
  %2320 = vmatpush.bf16.msra.mxu0 %v2204
  %2321 = vmatpush.bf16.msra.mxu0 %v2201
  %2322 = vmatpush.bf16.msra.mxu0 %v2198
  %2323 = vmatmul.bf16.gmra.mxu0 %v2102
  %v2324 = vpop.f32.mrf.mxu0
  %v2325 = vadd.f32 0.0, %v2324
  %v2326 = vpop.f32.mrf.mxu0
  %v2327 = vadd.f32 0.0, %v2326
  %2328 = vdwg.mxu0
  %2329 = vmatpush.bf16.msra.mxu0 0
  %2330 = vmatpush.bf16.msra.mxu0 0
  %2331 = vmatpush.bf16.msra.mxu0 0
  %2332 = vmatpush.bf16.msra.mxu0 0
  %2333 = vmatpush.bf16.msra.mxu0 0
  %2334 = vmatpush.bf16.msra.mxu0 0
  %2335 = vmatpush.bf16.msra.mxu0 0
  %2336 = vmatpush.bf16.msra.mxu0 %v2257
  %2337 = vmatmul.bf16.gmra.mxu0 %v2248
  %v2338 = vpop.f32.mrf.mxu0
  %v2339 = vadd.f32 %v2325, %v2338
  %v2340 = vpop.f32.mrf.mxu0
  %v2341 = vadd.f32 %v2327, %v2340
  %2342 = vdwg.mxu0
  %v2343 = vadd.f32 %v2049, %v2283
  %v2344 = vadd.f32 %v2050, %v2311
  %v2345 = vadd.f32 %v2051, %v2339
  %v2346 = vadd.f32 %v2052, %v2285
  %v2347 = vadd.f32 %v2053, %v2313
  %v2348 = vadd.f32 %v2054, %v2341
  %v2349 = vld [vmem:[%s2] sm:$0x7]
  %v2351 = vperm.slane %v2349, 0
  %v2352 = vperm.slane %v2349, 1
  %v2353 = vperm.slane %v2349, 2
  %v2357 = vadd.f32 %v2343, %v2351
  %v2358 = vadd.f32 %v2344, %v2352
  %v2359 = vadd.f32 %v2345, %v2353
  %v2360 = vadd.f32 %v2346, %v2351
  %v2361 = vadd.f32 %v2347, %v2352
  %v2362 = vadd.f32 %v2348, %v2353
  %v2363 = vmax.f32 %v2357, 0.0
  %v2364 = vmax.f32 %v2358, 0.0
  %v2365 = vmax.f32 %v2359, 0.0
  %v2366 = vmax.f32 %v2360, 0.0
  %v2367 = vmax.f32 %v2361, 0.0
  %v2368 = vmax.f32 %v2362, 0.0
  %v2369 = vld [vmem:[%s0 + $0x10] sm:$0xf8]
  %v2370 = vld [vmem:[%s0 + $0x18] sm:$0xf8]
  %v2371 = vld [vmem:[%s0 + $0x20] sm:$0x1f]
  %v2372 = vld [vmem:[%s0 + $0x28] sm:$0x1f]
  %v2373 = vpack.c.bf16 %v2371, %v2369
  %v2374 = vpack.c.bf16 %v2372, %v2370
  %v2375 = vld [vmem:[%s105 + $0x10] sm:$0xf8]
  %v2376 = vld [vmem:[%s105 + $0x18] sm:$0xf8]
  %v2377 = vld [vmem:[%s105 + $0x20] sm:$0x1f]
  %v2378 = vld [vmem:[%s105 + $0x28] sm:$0x1f]
  %v2379 = vpack.c.bf16 %v2377, %v2375
  %v2380 = vpack.c.bf16 %v2378, %v2376
  %v2382 = vshrl.u32 %v2379, 16
  %v2384 = vrot.slane %v2382, 1
  %v2385 = vshll.u32 %v2379, 16
  %v2387 = vrot.slane %v2385, 2
  %v2388 = vor.u32 %v2384, %v2387
  %v2390 = vshrl.u32 %v2380, 16
  %v2392 = vrot.slane %v2390, 1
  %v2393 = vshll.u32 %v2380, 16
  %v2395 = vrot.slane %v2393, 2
  %v2396 = vor.u32 %v2392, %v2395
  %v2399 = vsel %vm283, %v2396, 0
  %2401 = vmatpush.bf16.msra.mxu0 %v253
  %2402 = vmatpush.bf16.msra.mxu0 %v250
  %2403 = vmatpush.bf16.msra.mxu0 %v247
  %2404 = vmatpush.bf16.msra.mxu0 %v244
  %2405 = vmatpush.bf16.msra.mxu0 %v241
  %2406 = vmatpush.bf16.msra.mxu0 %v238
  %2407 = vmatpush.bf16.msra.mxu0 %v235
  %2408 = vmatpush.bf16.msra.mxu0 %v232
  %2409 = vmatmul.bf16.gmra.mxu0 %v2388
  %v2410 = vpop.f32.mrf.mxu0
  %v2411 = vadd.f32 0.0, %v2410
  %v2412 = vpop.f32.mrf.mxu0
  %v2413 = vadd.f32 0.0, %v2412
  %2414 = vdwg.mxu0
  %2415 = vmatpush.bf16.msra.mxu0 0
  %2416 = vmatpush.bf16.msra.mxu0 0
  %2417 = vmatpush.bf16.msra.mxu0 0
  %2418 = vmatpush.bf16.msra.mxu0 0
  %2419 = vmatpush.bf16.msra.mxu0 0
  %2420 = vmatpush.bf16.msra.mxu0 0
  %2421 = vmatpush.bf16.msra.mxu0 0
  %2422 = vmatpush.bf16.msra.mxu0 %v289
  %2423 = vmatmul.bf16.gmra.mxu0 %v2399
  %v2424 = vpop.f32.mrf.mxu0
  %v2425 = vadd.f32 %v2411, %v2424
  %v2426 = vpop.f32.mrf.mxu0
  %v2427 = vadd.f32 %v2413, %v2426
  %2428 = vdwg.mxu0
  %2429 = vmatpush.bf16.msra.mxu0 %v254
  %2430 = vmatpush.bf16.msra.mxu0 %v251
  %2431 = vmatpush.bf16.msra.mxu0 %v248
  %2432 = vmatpush.bf16.msra.mxu0 %v245
  %2433 = vmatpush.bf16.msra.mxu0 %v242
  %2434 = vmatpush.bf16.msra.mxu0 %v239
  %2435 = vmatpush.bf16.msra.mxu0 %v236
  %2436 = vmatpush.bf16.msra.mxu0 %v233
  %2437 = vmatmul.bf16.gmra.mxu0 %v2388
  %v2438 = vpop.f32.mrf.mxu0
  %v2439 = vadd.f32 0.0, %v2438
  %v2440 = vpop.f32.mrf.mxu0
  %v2441 = vadd.f32 0.0, %v2440
  %2442 = vdwg.mxu0
  %2443 = vmatpush.bf16.msra.mxu0 0
  %2444 = vmatpush.bf16.msra.mxu0 0
  %2445 = vmatpush.bf16.msra.mxu0 0
  %2446 = vmatpush.bf16.msra.mxu0 0
  %2447 = vmatpush.bf16.msra.mxu0 0
  %2448 = vmatpush.bf16.msra.mxu0 0
  %2449 = vmatpush.bf16.msra.mxu0 0
  %2450 = vmatpush.bf16.msra.mxu0 %v292
  %2451 = vmatmul.bf16.gmra.mxu0 %v2399
  %v2452 = vpop.f32.mrf.mxu0
  %v2453 = vadd.f32 %v2439, %v2452
  %v2454 = vpop.f32.mrf.mxu0
  %v2455 = vadd.f32 %v2441, %v2454
  %2456 = vdwg.mxu0
  %2457 = vmatpush.bf16.msra.mxu0 %v255
  %2458 = vmatpush.bf16.msra.mxu0 %v252
  %2459 = vmatpush.bf16.msra.mxu0 %v249
  %2460 = vmatpush.bf16.msra.mxu0 %v246
  %2461 = vmatpush.bf16.msra.mxu0 %v243
  %2462 = vmatpush.bf16.msra.mxu0 %v240
  %2463 = vmatpush.bf16.msra.mxu0 %v237
  %2464 = vmatpush.bf16.msra.mxu0 %v234
  %2465 = vmatmul.bf16.gmra.mxu0 %v2388
  %v2466 = vpop.f32.mrf.mxu0
  %v2467 = vadd.f32 0.0, %v2466
  %v2468 = vpop.f32.mrf.mxu0
  %v2469 = vadd.f32 0.0, %v2468
  %2470 = vdwg.mxu0
  %2471 = vmatpush.bf16.msra.mxu0 0
  %2472 = vmatpush.bf16.msra.mxu0 0
  %2473 = vmatpush.bf16.msra.mxu0 0
  %2474 = vmatpush.bf16.msra.mxu0 0
  %2475 = vmatpush.bf16.msra.mxu0 0
  %2476 = vmatpush.bf16.msra.mxu0 0
  %2477 = vmatpush.bf16.msra.mxu0 0
  %2478 = vmatpush.bf16.msra.mxu0 %v295
  %2479 = vmatmul.bf16.gmra.mxu0 %v2399
  %v2480 = vpop.f32.mrf.mxu0
  %v2481 = vadd.f32 %v2467, %v2480
  %v2482 = vpop.f32.mrf.mxu0
  %v2483 = vadd.f32 %v2469, %v2482
  %2484 = vdwg.mxu0
  %v2486 = vshrl.u32 %v2373, 16
  %v2488 = vrot.slane %v2486, 1
  %v2489 = vshll.u32 %v2373, 16
  %v2491 = vrot.slane %v2489, 2
  %v2492 = vor.u32 %v2488, %v2491
  %v2494 = vshrl.u32 %v2374, 16
  %v2496 = vrot.slane %v2494, 1
  %v2497 = vshll.u32 %v2374, 16
  %v2499 = vrot.slane %v2497, 2
  %v2500 = vor.u32 %v2496, %v2499
  %v2503 = vsel %vm283, %v2500, 0
  %2505 = vmatpush.bf16.msra.mxu0 %v487
  %2506 = vmatpush.bf16.msra.mxu0 %v484
  %2507 = vmatpush.bf16.msra.mxu0 %v481
  %2508 = vmatpush.bf16.msra.mxu0 %v478
  %2509 = vmatpush.bf16.msra.mxu0 %v475
  %2510 = vmatpush.bf16.msra.mxu0 %v472
  %2511 = vmatpush.bf16.msra.mxu0 %v469
  %2512 = vmatpush.bf16.msra.mxu0 %v466
  %2513 = vmatmul.bf16.gmra.mxu0 %v2492
  %v2514 = vpop.f32.mrf.mxu0
  %v2515 = vadd.f32 %v2425, %v2514
  %v2516 = vpop.f32.mrf.mxu0
  %v2517 = vadd.f32 %v2427, %v2516
  %2518 = vdwg.mxu0
  %2519 = vmatpush.bf16.msra.mxu0 0
  %2520 = vmatpush.bf16.msra.mxu0 0
  %2521 = vmatpush.bf16.msra.mxu0 0
  %2522 = vmatpush.bf16.msra.mxu0 0
  %2523 = vmatpush.bf16.msra.mxu0 0
  %2524 = vmatpush.bf16.msra.mxu0 0
  %2525 = vmatpush.bf16.msra.mxu0 0
  %2526 = vmatpush.bf16.msra.mxu0 %v521
  %2527 = vmatmul.bf16.gmra.mxu0 %v2503
  %v2528 = vpop.f32.mrf.mxu0
  %v2529 = vadd.f32 %v2515, %v2528
  %v2530 = vpop.f32.mrf.mxu0
  %v2531 = vadd.f32 %v2517, %v2530
  %2532 = vdwg.mxu0
  %2533 = vmatpush.bf16.msra.mxu0 %v488
  %2534 = vmatpush.bf16.msra.mxu0 %v485
  %2535 = vmatpush.bf16.msra.mxu0 %v482
  %2536 = vmatpush.bf16.msra.mxu0 %v479
  %2537 = vmatpush.bf16.msra.mxu0 %v476
  %2538 = vmatpush.bf16.msra.mxu0 %v473
  %2539 = vmatpush.bf16.msra.mxu0 %v470
  %2540 = vmatpush.bf16.msra.mxu0 %v467
  %2541 = vmatmul.bf16.gmra.mxu0 %v2492
  %v2542 = vpop.f32.mrf.mxu0
  %v2543 = vadd.f32 %v2453, %v2542
  %v2544 = vpop.f32.mrf.mxu0
  %v2545 = vadd.f32 %v2455, %v2544
  %2546 = vdwg.mxu0
  %2547 = vmatpush.bf16.msra.mxu0 0
  %2548 = vmatpush.bf16.msra.mxu0 0
  %2549 = vmatpush.bf16.msra.mxu0 0
  %2550 = vmatpush.bf16.msra.mxu0 0
  %2551 = vmatpush.bf16.msra.mxu0 0
  %2552 = vmatpush.bf16.msra.mxu0 0
  %2553 = vmatpush.bf16.msra.mxu0 0
  %2554 = vmatpush.bf16.msra.mxu0 %v524
  %2555 = vmatmul.bf16.gmra.mxu0 %v2503
  %v2556 = vpop.f32.mrf.mxu0
  %v2557 = vadd.f32 %v2543, %v2556
  %v2558 = vpop.f32.mrf.mxu0
  %v2559 = vadd.f32 %v2545, %v2558
  %2560 = vdwg.mxu0
  %2561 = vmatpush.bf16.msra.mxu0 %v489
  %2562 = vmatpush.bf16.msra.mxu0 %v486
  %2563 = vmatpush.bf16.msra.mxu0 %v483
  %2564 = vmatpush.bf16.msra.mxu0 %v480
  %2565 = vmatpush.bf16.msra.mxu0 %v477
  %2566 = vmatpush.bf16.msra.mxu0 %v474
  %2567 = vmatpush.bf16.msra.mxu0 %v471
  %2568 = vmatpush.bf16.msra.mxu0 %v468
  %2569 = vmatmul.bf16.gmra.mxu0 %v2492
  %v2570 = vpop.f32.mrf.mxu0
  %v2571 = vadd.f32 %v2481, %v2570
  %v2572 = vpop.f32.mrf.mxu0
  %v2573 = vadd.f32 %v2483, %v2572
  %2574 = vdwg.mxu0
  %2575 = vmatpush.bf16.msra.mxu0 0
  %2576 = vmatpush.bf16.msra.mxu0 0
  %2577 = vmatpush.bf16.msra.mxu0 0
  %2578 = vmatpush.bf16.msra.mxu0 0
  %2579 = vmatpush.bf16.msra.mxu0 0
  %2580 = vmatpush.bf16.msra.mxu0 0
  %2581 = vmatpush.bf16.msra.mxu0 0
  %2582 = vmatpush.bf16.msra.mxu0 %v527
  %2583 = vmatmul.bf16.gmra.mxu0 %v2503
  %v2584 = vpop.f32.mrf.mxu0
  %v2585 = vadd.f32 %v2571, %v2584
  %v2586 = vpop.f32.mrf.mxu0
  %v2587 = vadd.f32 %v2573, %v2586
  %2588 = vdwg.mxu0
  %v2589 = vld [vmem:[%s613 + $0x10] sm:$0xf8]
  %v2590 = vld [vmem:[%s613 + $0x18] sm:$0xf8]
  %v2591 = vld [vmem:[%s613 + $0x20] sm:$0x1f]
  %v2592 = vld [vmem:[%s613 + $0x28] sm:$0x1f]
  %v2593 = vpack.c.bf16 %v2591, %v2589
  %v2594 = vpack.c.bf16 %v2592, %v2590
  %v2596 = vshrl.u32 %v2593, 16
  %v2598 = vrot.slane %v2596, 1
  %v2599 = vshll.u32 %v2593, 16
  %v2601 = vrot.slane %v2599, 2
  %v2602 = vor.u32 %v2598, %v2601
  %v2604 = vshrl.u32 %v2594, 16
  %v2606 = vrot.slane %v2604, 1
  %v2607 = vshll.u32 %v2594, 16
  %v2609 = vrot.slane %v2607, 2
  %v2610 = vor.u32 %v2606, %v2609
  %v2613 = vsel %vm283, %v2610, 0
  %2615 = vmatpush.bf16.msra.mxu0 %v761
  %2616 = vmatpush.bf16.msra.mxu0 %v758
  %2617 = vmatpush.bf16.msra.mxu0 %v755
  %2618 = vmatpush.bf16.msra.mxu0 %v752
  %2619 = vmatpush.bf16.msra.mxu0 %v749
  %2620 = vmatpush.bf16.msra.mxu0 %v746
  %2621 = vmatpush.bf16.msra.mxu0 %v743
  %2622 = vmatpush.bf16.msra.mxu0 %v740
  %2623 = vmatmul.bf16.gmra.mxu0 %v2602
  %v2624 = vpop.f32.mrf.mxu0
  %v2625 = vadd.f32 0.0, %v2624
  %v2626 = vpop.f32.mrf.mxu0
  %v2627 = vadd.f32 0.0, %v2626
  %2628 = vdwg.mxu0
  %2629 = vmatpush.bf16.msra.mxu0 0
  %2630 = vmatpush.bf16.msra.mxu0 0
  %2631 = vmatpush.bf16.msra.mxu0 0
  %2632 = vmatpush.bf16.msra.mxu0 0
  %2633 = vmatpush.bf16.msra.mxu0 0
  %2634 = vmatpush.bf16.msra.mxu0 0
  %2635 = vmatpush.bf16.msra.mxu0 0
  %2636 = vmatpush.bf16.msra.mxu0 %v795
  %2637 = vmatmul.bf16.gmra.mxu0 %v2613
  %v2638 = vpop.f32.mrf.mxu0
  %v2639 = vadd.f32 %v2625, %v2638
  %v2640 = vpop.f32.mrf.mxu0
  %v2641 = vadd.f32 %v2627, %v2640
  %2642 = vdwg.mxu0
  %2643 = vmatpush.bf16.msra.mxu0 %v762
  %2644 = vmatpush.bf16.msra.mxu0 %v759
  %2645 = vmatpush.bf16.msra.mxu0 %v756
  %2646 = vmatpush.bf16.msra.mxu0 %v753
  %2647 = vmatpush.bf16.msra.mxu0 %v750
  %2648 = vmatpush.bf16.msra.mxu0 %v747
  %2649 = vmatpush.bf16.msra.mxu0 %v744
  %2650 = vmatpush.bf16.msra.mxu0 %v741
  %2651 = vmatmul.bf16.gmra.mxu0 %v2602
  %v2652 = vpop.f32.mrf.mxu0
  %v2653 = vadd.f32 0.0, %v2652
  %v2654 = vpop.f32.mrf.mxu0
  %v2655 = vadd.f32 0.0, %v2654
  %2656 = vdwg.mxu0
  %2657 = vmatpush.bf16.msra.mxu0 0
  %2658 = vmatpush.bf16.msra.mxu0 0
  %2659 = vmatpush.bf16.msra.mxu0 0
  %2660 = vmatpush.bf16.msra.mxu0 0
  %2661 = vmatpush.bf16.msra.mxu0 0
  %2662 = vmatpush.bf16.msra.mxu0 0
  %2663 = vmatpush.bf16.msra.mxu0 0
  %2664 = vmatpush.bf16.msra.mxu0 %v798
  %2665 = vmatmul.bf16.gmra.mxu0 %v2613
  %v2666 = vpop.f32.mrf.mxu0
  %v2667 = vadd.f32 %v2653, %v2666
  %v2668 = vpop.f32.mrf.mxu0
  %v2669 = vadd.f32 %v2655, %v2668
  %2670 = vdwg.mxu0
  %2671 = vmatpush.bf16.msra.mxu0 %v763
  %2672 = vmatpush.bf16.msra.mxu0 %v760
  %2673 = vmatpush.bf16.msra.mxu0 %v757
  %2674 = vmatpush.bf16.msra.mxu0 %v754
  %2675 = vmatpush.bf16.msra.mxu0 %v751
  %2676 = vmatpush.bf16.msra.mxu0 %v748
  %2677 = vmatpush.bf16.msra.mxu0 %v745
  %2678 = vmatpush.bf16.msra.mxu0 %v742
  %2679 = vmatmul.bf16.gmra.mxu0 %v2602
  %v2680 = vpop.f32.mrf.mxu0
  %v2681 = vadd.f32 0.0, %v2680
  %v2682 = vpop.f32.mrf.mxu0
  %v2683 = vadd.f32 0.0, %v2682
  %2684 = vdwg.mxu0
  %2685 = vmatpush.bf16.msra.mxu0 0
  %2686 = vmatpush.bf16.msra.mxu0 0
  %2687 = vmatpush.bf16.msra.mxu0 0
  %2688 = vmatpush.bf16.msra.mxu0 0
  %2689 = vmatpush.bf16.msra.mxu0 0
  %2690 = vmatpush.bf16.msra.mxu0 0
  %2691 = vmatpush.bf16.msra.mxu0 0
  %2692 = vmatpush.bf16.msra.mxu0 %v801
  %2693 = vmatmul.bf16.gmra.mxu0 %v2613
  %v2694 = vpop.f32.mrf.mxu0
  %v2695 = vadd.f32 %v2681, %v2694
  %v2696 = vpop.f32.mrf.mxu0
  %v2697 = vadd.f32 %v2683, %v2696
  %2698 = vdwg.mxu0
  %v2699 = vadd.f32 %v2529, %v2639
  %v2700 = vadd.f32 %v2557, %v2667
  %v2701 = vadd.f32 %v2585, %v2695
  %v2702 = vadd.f32 %v2531, %v2641
  %v2703 = vadd.f32 %v2559, %v2669
  %v2704 = vadd.f32 %v2587, %v2697
  %v2705 = vld [vmem:[%s893 + $0x10] sm:$0xf8]
  %v2706 = vld [vmem:[%s893 + $0x18] sm:$0xf8]
  %v2707 = vld [vmem:[%s893 + $0x20] sm:$0x1f]
  %v2708 = vld [vmem:[%s893 + $0x28] sm:$0x1f]
  %v2709 = vpack.c.bf16 %v2707, %v2705
  %v2710 = vpack.c.bf16 %v2708, %v2706
  %v2712 = vshrl.u32 %v2709, 16
  %v2714 = vrot.slane %v2712, 1
  %v2715 = vshll.u32 %v2709, 16
  %v2717 = vrot.slane %v2715, 2
  %v2718 = vor.u32 %v2714, %v2717
  %v2720 = vshrl.u32 %v2710, 16
  %v2722 = vrot.slane %v2720, 1
  %v2723 = vshll.u32 %v2710, 16
  %v2725 = vrot.slane %v2723, 2
  %v2726 = vor.u32 %v2722, %v2725
  %v2729 = vsel %vm283, %v2726, 0
  %2731 = vmatpush.bf16.msra.mxu0 %v1041
  %2732 = vmatpush.bf16.msra.mxu0 %v1038
  %2733 = vmatpush.bf16.msra.mxu0 %v1035
  %2734 = vmatpush.bf16.msra.mxu0 %v1032
  %2735 = vmatpush.bf16.msra.mxu0 %v1029
  %2736 = vmatpush.bf16.msra.mxu0 %v1026
  %2737 = vmatpush.bf16.msra.mxu0 %v1023
  %2738 = vmatpush.bf16.msra.mxu0 %v1020
  %2739 = vmatmul.bf16.gmra.mxu0 %v2718
  %v2740 = vpop.f32.mrf.mxu0
  %v2741 = vadd.f32 0.0, %v2740
  %v2742 = vpop.f32.mrf.mxu0
  %v2743 = vadd.f32 0.0, %v2742
  %2744 = vdwg.mxu0
  %2745 = vmatpush.bf16.msra.mxu0 0
  %2746 = vmatpush.bf16.msra.mxu0 0
  %2747 = vmatpush.bf16.msra.mxu0 0
  %2748 = vmatpush.bf16.msra.mxu0 0
  %2749 = vmatpush.bf16.msra.mxu0 0
  %2750 = vmatpush.bf16.msra.mxu0 0
  %2751 = vmatpush.bf16.msra.mxu0 0
  %2752 = vmatpush.bf16.msra.mxu0 %v1075
  %2753 = vmatmul.bf16.gmra.mxu0 %v2729
  %v2754 = vpop.f32.mrf.mxu0
  %v2755 = vadd.f32 %v2741, %v2754
  %v2756 = vpop.f32.mrf.mxu0
  %v2757 = vadd.f32 %v2743, %v2756
  %2758 = vdwg.mxu0
  %2759 = vmatpush.bf16.msra.mxu0 %v1042
  %2760 = vmatpush.bf16.msra.mxu0 %v1039
  %2761 = vmatpush.bf16.msra.mxu0 %v1036
  %2762 = vmatpush.bf16.msra.mxu0 %v1033
  %2763 = vmatpush.bf16.msra.mxu0 %v1030
  %2764 = vmatpush.bf16.msra.mxu0 %v1027
  %2765 = vmatpush.bf16.msra.mxu0 %v1024
  %2766 = vmatpush.bf16.msra.mxu0 %v1021
  %2767 = vmatmul.bf16.gmra.mxu0 %v2718
  %v2768 = vpop.f32.mrf.mxu0
  %v2769 = vadd.f32 0.0, %v2768
  %v2770 = vpop.f32.mrf.mxu0
  %v2771 = vadd.f32 0.0, %v2770
  %2772 = vdwg.mxu0
  %2773 = vmatpush.bf16.msra.mxu0 0
  %2774 = vmatpush.bf16.msra.mxu0 0
  %2775 = vmatpush.bf16.msra.mxu0 0
  %2776 = vmatpush.bf16.msra.mxu0 0
  %2777 = vmatpush.bf16.msra.mxu0 0
  %2778 = vmatpush.bf16.msra.mxu0 0
  %2779 = vmatpush.bf16.msra.mxu0 0
  %2780 = vmatpush.bf16.msra.mxu0 %v1078
  %2781 = vmatmul.bf16.gmra.mxu0 %v2729
  %v2782 = vpop.f32.mrf.mxu0
  %v2783 = vadd.f32 %v2769, %v2782
  %v2784 = vpop.f32.mrf.mxu0
  %v2785 = vadd.f32 %v2771, %v2784
  %2786 = vdwg.mxu0
  %2787 = vmatpush.bf16.msra.mxu0 %v1043
  %2788 = vmatpush.bf16.msra.mxu0 %v1040
  %2789 = vmatpush.bf16.msra.mxu0 %v1037
  %2790 = vmatpush.bf16.msra.mxu0 %v1034
  %2791 = vmatpush.bf16.msra.mxu0 %v1031
  %2792 = vmatpush.bf16.msra.mxu0 %v1028
  %2793 = vmatpush.bf16.msra.mxu0 %v1025
  %2794 = vmatpush.bf16.msra.mxu0 %v1022
  %2795 = vmatmul.bf16.gmra.mxu0 %v2718
  %v2796 = vpop.f32.mrf.mxu0
  %v2797 = vadd.f32 0.0, %v2796
  %v2798 = vpop.f32.mrf.mxu0
  %v2799 = vadd.f32 0.0, %v2798
  %2800 = vdwg.mxu0
  %2801 = vmatpush.bf16.msra.mxu0 0
  %2802 = vmatpush.bf16.msra.mxu0 0
  %2803 = vmatpush.bf16.msra.mxu0 0
  %2804 = vmatpush.bf16.msra.mxu0 0
  %2805 = vmatpush.bf16.msra.mxu0 0
  %2806 = vmatpush.bf16.msra.mxu0 0
  %2807 = vmatpush.bf16.msra.mxu0 0
  %2808 = vmatpush.bf16.msra.mxu0 %v1081
  %2809 = vmatmul.bf16.gmra.mxu0 %v2729
  %v2810 = vpop.f32.mrf.mxu0
  %v2811 = vadd.f32 %v2797, %v2810
  %v2812 = vpop.f32.mrf.mxu0
  %v2813 = vadd.f32 %v2799, %v2812
  %2814 = vdwg.mxu0
  %v2815 = vadd.f32 %v2699, %v2755
  %v2816 = vadd.f32 %v2700, %v2783
  %v2817 = vadd.f32 %v2701, %v2811
  %v2818 = vadd.f32 %v2702, %v2757
  %v2819 = vadd.f32 %v2703, %v2785
  %v2820 = vadd.f32 %v2704, %v2813
  %v2821 = vld [vmem:[%s0 + $0x10] sm:$0xf0]
  %v2822 = vld [vmem:[%s0 + $0x18] sm:$0xf0]
  %v2823 = vld [vmem:[%s0 + $0x20] sm:$0x3f]
  %v2824 = vld [vmem:[%s0 + $0x28] sm:$0x3f]
  %v2825 = vpack.c.bf16 %v2823, %v2821
  %v2826 = vpack.c.bf16 %v2824, %v2822
  %v2829 = vrot.slane %v2825, 2
  %v2830 = vrot.slane %v2826, 2
  %v2833 = vsel %vm283, %v2830, 0
  %2835 = vmatpush.bf16.msra.mxu0 %v1335
  %2836 = vmatpush.bf16.msra.mxu0 %v1332
  %2837 = vmatpush.bf16.msra.mxu0 %v1329
  %2838 = vmatpush.bf16.msra.mxu0 %v1326
  %2839 = vmatpush.bf16.msra.mxu0 %v1323
  %2840 = vmatpush.bf16.msra.mxu0 %v1320
  %2841 = vmatpush.bf16.msra.mxu0 %v1317
  %2842 = vmatpush.bf16.msra.mxu0 %v1314
  %2843 = vmatmul.bf16.gmra.mxu0 %v2829
  %v2844 = vpop.f32.mrf.mxu0
  %v2845 = vadd.f32 0.0, %v2844
  %v2846 = vpop.f32.mrf.mxu0
  %v2847 = vadd.f32 0.0, %v2846
  %2848 = vdwg.mxu0
  %2849 = vmatpush.bf16.msra.mxu0 0
  %2850 = vmatpush.bf16.msra.mxu0 0
  %2851 = vmatpush.bf16.msra.mxu0 0
  %2852 = vmatpush.bf16.msra.mxu0 0
  %2853 = vmatpush.bf16.msra.mxu0 0
  %2854 = vmatpush.bf16.msra.mxu0 0
  %2855 = vmatpush.bf16.msra.mxu0 0
  %2856 = vmatpush.bf16.msra.mxu0 %v1369
  %2857 = vmatmul.bf16.gmra.mxu0 %v2833
  %v2858 = vpop.f32.mrf.mxu0
  %v2859 = vadd.f32 %v2845, %v2858
  %v2860 = vpop.f32.mrf.mxu0
  %v2861 = vadd.f32 %v2847, %v2860
  %2862 = vdwg.mxu0
  %2863 = vmatpush.bf16.msra.mxu0 %v1336
  %2864 = vmatpush.bf16.msra.mxu0 %v1333
  %2865 = vmatpush.bf16.msra.mxu0 %v1330
  %2866 = vmatpush.bf16.msra.mxu0 %v1327
  %2867 = vmatpush.bf16.msra.mxu0 %v1324
  %2868 = vmatpush.bf16.msra.mxu0 %v1321
  %2869 = vmatpush.bf16.msra.mxu0 %v1318
  %2870 = vmatpush.bf16.msra.mxu0 %v1315
  %2871 = vmatmul.bf16.gmra.mxu0 %v2829
  %v2872 = vpop.f32.mrf.mxu0
  %v2873 = vadd.f32 0.0, %v2872
  %v2874 = vpop.f32.mrf.mxu0
  %v2875 = vadd.f32 0.0, %v2874
  %2876 = vdwg.mxu0
  %2877 = vmatpush.bf16.msra.mxu0 0
  %2878 = vmatpush.bf16.msra.mxu0 0
  %2879 = vmatpush.bf16.msra.mxu0 0
  %2880 = vmatpush.bf16.msra.mxu0 0
  %2881 = vmatpush.bf16.msra.mxu0 0
  %2882 = vmatpush.bf16.msra.mxu0 0
  %2883 = vmatpush.bf16.msra.mxu0 0
  %2884 = vmatpush.bf16.msra.mxu0 %v1372
  %2885 = vmatmul.bf16.gmra.mxu0 %v2833
  %v2886 = vpop.f32.mrf.mxu0
  %v2887 = vadd.f32 %v2873, %v2886
  %v2888 = vpop.f32.mrf.mxu0
  %v2889 = vadd.f32 %v2875, %v2888
  %2890 = vdwg.mxu0
  %2891 = vmatpush.bf16.msra.mxu0 %v1337
  %2892 = vmatpush.bf16.msra.mxu0 %v1334
  %2893 = vmatpush.bf16.msra.mxu0 %v1331
  %2894 = vmatpush.bf16.msra.mxu0 %v1328
  %2895 = vmatpush.bf16.msra.mxu0 %v1325
  %2896 = vmatpush.bf16.msra.mxu0 %v1322
  %2897 = vmatpush.bf16.msra.mxu0 %v1319
  %2898 = vmatpush.bf16.msra.mxu0 %v1316
  %2899 = vmatmul.bf16.gmra.mxu0 %v2829
  %v2900 = vpop.f32.mrf.mxu0
  %v2901 = vadd.f32 0.0, %v2900
  %v2902 = vpop.f32.mrf.mxu0
  %v2903 = vadd.f32 0.0, %v2902
  %2904 = vdwg.mxu0
  %2905 = vmatpush.bf16.msra.mxu0 0
  %2906 = vmatpush.bf16.msra.mxu0 0
  %2907 = vmatpush.bf16.msra.mxu0 0
  %2908 = vmatpush.bf16.msra.mxu0 0
  %2909 = vmatpush.bf16.msra.mxu0 0
  %2910 = vmatpush.bf16.msra.mxu0 0
  %2911 = vmatpush.bf16.msra.mxu0 0
  %2912 = vmatpush.bf16.msra.mxu0 %v1375
  %2913 = vmatmul.bf16.gmra.mxu0 %v2833
  %v2914 = vpop.f32.mrf.mxu0
  %v2915 = vadd.f32 %v2901, %v2914
  %v2916 = vpop.f32.mrf.mxu0
  %v2917 = vadd.f32 %v2903, %v2916
  %2918 = vdwg.mxu0
  %v2919 = vadd.f32 %v2815, %v2859
  %v2920 = vadd.f32 %v2816, %v2887
  %v2921 = vadd.f32 %v2817, %v2915
  %v2922 = vadd.f32 %v2818, %v2861
  %v2923 = vadd.f32 %v2819, %v2889
  %v2924 = vadd.f32 %v2820, %v2917
  %v2925 = vld [vmem:[%s105 + $0x10] sm:$0xf0]
  %v2926 = vld [vmem:[%s105 + $0x18] sm:$0xf0]
  %v2927 = vld [vmem:[%s105 + $0x20] sm:$0x3f]
  %v2928 = vld [vmem:[%s105 + $0x28] sm:$0x3f]
  %v2929 = vpack.c.bf16 %v2927, %v2925
  %v2930 = vpack.c.bf16 %v2928, %v2926
  %v2933 = vrot.slane %v2929, 2
  %v2934 = vrot.slane %v2930, 2
  %v2937 = vsel %vm283, %v2934, 0
  %2939 = vmatpush.bf16.msra.mxu0 %v1629
  %2940 = vmatpush.bf16.msra.mxu0 %v1626
  %2941 = vmatpush.bf16.msra.mxu0 %v1623
  %2942 = vmatpush.bf16.msra.mxu0 %v1620
  %2943 = vmatpush.bf16.msra.mxu0 %v1617
  %2944 = vmatpush.bf16.msra.mxu0 %v1614
  %2945 = vmatpush.bf16.msra.mxu0 %v1611
  %2946 = vmatpush.bf16.msra.mxu0 %v1608
  %2947 = vmatmul.bf16.gmra.mxu0 %v2933
  %v2948 = vpop.f32.mrf.mxu0
  %v2949 = vadd.f32 0.0, %v2948
  %v2950 = vpop.f32.mrf.mxu0
  %v2951 = vadd.f32 0.0, %v2950
  %2952 = vdwg.mxu0
  %2953 = vmatpush.bf16.msra.mxu0 0
  %2954 = vmatpush.bf16.msra.mxu0 0
  %2955 = vmatpush.bf16.msra.mxu0 0
  %2956 = vmatpush.bf16.msra.mxu0 0
  %2957 = vmatpush.bf16.msra.mxu0 0
  %2958 = vmatpush.bf16.msra.mxu0 0
  %2959 = vmatpush.bf16.msra.mxu0 0
  %2960 = vmatpush.bf16.msra.mxu0 %v1663
  %2961 = vmatmul.bf16.gmra.mxu0 %v2937
  %v2962 = vpop.f32.mrf.mxu0
  %v2963 = vadd.f32 %v2949, %v2962
  %v2964 = vpop.f32.mrf.mxu0
  %v2965 = vadd.f32 %v2951, %v2964
  %2966 = vdwg.mxu0
  %2967 = vmatpush.bf16.msra.mxu0 %v1630
  %2968 = vmatpush.bf16.msra.mxu0 %v1627
  %2969 = vmatpush.bf16.msra.mxu0 %v1624
  %2970 = vmatpush.bf16.msra.mxu0 %v1621
  %2971 = vmatpush.bf16.msra.mxu0 %v1618
  %2972 = vmatpush.bf16.msra.mxu0 %v1615
  %2973 = vmatpush.bf16.msra.mxu0 %v1612
  %2974 = vmatpush.bf16.msra.mxu0 %v1609
  %2975 = vmatmul.bf16.gmra.mxu0 %v2933
  %v2976 = vpop.f32.mrf.mxu0
  %v2977 = vadd.f32 0.0, %v2976
  %v2978 = vpop.f32.mrf.mxu0
  %v2979 = vadd.f32 0.0, %v2978
  %2980 = vdwg.mxu0
  %2981 = vmatpush.bf16.msra.mxu0 0
  %2982 = vmatpush.bf16.msra.mxu0 0
  %2983 = vmatpush.bf16.msra.mxu0 0
  %2984 = vmatpush.bf16.msra.mxu0 0
  %2985 = vmatpush.bf16.msra.mxu0 0
  %2986 = vmatpush.bf16.msra.mxu0 0
  %2987 = vmatpush.bf16.msra.mxu0 0
  %2988 = vmatpush.bf16.msra.mxu0 %v1666
  %2989 = vmatmul.bf16.gmra.mxu0 %v2937
  %v2990 = vpop.f32.mrf.mxu0
  %v2991 = vadd.f32 %v2977, %v2990
  %v2992 = vpop.f32.mrf.mxu0
  %v2993 = vadd.f32 %v2979, %v2992
  %2994 = vdwg.mxu0
  %2995 = vmatpush.bf16.msra.mxu0 %v1631
  %2996 = vmatpush.bf16.msra.mxu0 %v1628
  %2997 = vmatpush.bf16.msra.mxu0 %v1625
  %2998 = vmatpush.bf16.msra.mxu0 %v1622
  %2999 = vmatpush.bf16.msra.mxu0 %v1619
  %3000 = vmatpush.bf16.msra.mxu0 %v1616
  %3001 = vmatpush.bf16.msra.mxu0 %v1613
  %3002 = vmatpush.bf16.msra.mxu0 %v1610
  %3003 = vmatmul.bf16.gmra.mxu0 %v2933
  %v3004 = vpop.f32.mrf.mxu0
  %v3005 = vadd.f32 0.0, %v3004
  %v3006 = vpop.f32.mrf.mxu0
  %v3007 = vadd.f32 0.0, %v3006
  %3008 = vdwg.mxu0
  %3009 = vmatpush.bf16.msra.mxu0 0
  %3010 = vmatpush.bf16.msra.mxu0 0
  %3011 = vmatpush.bf16.msra.mxu0 0
  %3012 = vmatpush.bf16.msra.mxu0 0
  %3013 = vmatpush.bf16.msra.mxu0 0
  %3014 = vmatpush.bf16.msra.mxu0 0
  %3015 = vmatpush.bf16.msra.mxu0 0
  %3016 = vmatpush.bf16.msra.mxu0 %v1669
  %3017 = vmatmul.bf16.gmra.mxu0 %v2937
  %v3018 = vpop.f32.mrf.mxu0
  %v3019 = vadd.f32 %v3005, %v3018
  %v3020 = vpop.f32.mrf.mxu0
  %v3021 = vadd.f32 %v3007, %v3020
  %3022 = vdwg.mxu0
  %v3023 = vadd.f32 %v2919, %v2963
  %v3024 = vadd.f32 %v2920, %v2991
  %v3025 = vadd.f32 %v2921, %v3019
  %v3026 = vadd.f32 %v2922, %v2965
  %v3027 = vadd.f32 %v2923, %v2993
  %v3028 = vadd.f32 %v2924, %v3021
  %v3029 = vld [vmem:[%s613 + $0x10] sm:$0xf0]
  %v3030 = vld [vmem:[%s613 + $0x18] sm:$0xf0]
  %v3031 = vld [vmem:[%s613 + $0x20] sm:$0x3f]
  %v3032 = vld [vmem:[%s613 + $0x28] sm:$0x3f]
  %v3033 = vpack.c.bf16 %v3031, %v3029
  %v3034 = vpack.c.bf16 %v3032, %v3030
  %v3037 = vrot.slane %v3033, 2
  %v3038 = vrot.slane %v3034, 2
  %v3041 = vsel %vm283, %v3038, 0
  %3043 = vmatpush.bf16.msra.mxu0 %v1923
  %3044 = vmatpush.bf16.msra.mxu0 %v1920
  %3045 = vmatpush.bf16.msra.mxu0 %v1917
  %3046 = vmatpush.bf16.msra.mxu0 %v1914
  %3047 = vmatpush.bf16.msra.mxu0 %v1911
  %3048 = vmatpush.bf16.msra.mxu0 %v1908
  %3049 = vmatpush.bf16.msra.mxu0 %v1905
  %3050 = vmatpush.bf16.msra.mxu0 %v1902
  %3051 = vmatmul.bf16.gmra.mxu0 %v3037
  %v3052 = vpop.f32.mrf.mxu0
  %v3053 = vadd.f32 0.0, %v3052
  %v3054 = vpop.f32.mrf.mxu0
  %v3055 = vadd.f32 0.0, %v3054
  %3056 = vdwg.mxu0
  %3057 = vmatpush.bf16.msra.mxu0 0
  %3058 = vmatpush.bf16.msra.mxu0 0
  %3059 = vmatpush.bf16.msra.mxu0 0
  %3060 = vmatpush.bf16.msra.mxu0 0
  %3061 = vmatpush.bf16.msra.mxu0 0
  %3062 = vmatpush.bf16.msra.mxu0 0
  %3063 = vmatpush.bf16.msra.mxu0 0
  %3064 = vmatpush.bf16.msra.mxu0 %v1957
  %3065 = vmatmul.bf16.gmra.mxu0 %v3041
  %v3066 = vpop.f32.mrf.mxu0
  %v3067 = vadd.f32 %v3053, %v3066
  %v3068 = vpop.f32.mrf.mxu0
  %v3069 = vadd.f32 %v3055, %v3068
  %3070 = vdwg.mxu0
  %3071 = vmatpush.bf16.msra.mxu0 %v1924
  %3072 = vmatpush.bf16.msra.mxu0 %v1921
  %3073 = vmatpush.bf16.msra.mxu0 %v1918
  %3074 = vmatpush.bf16.msra.mxu0 %v1915
  %3075 = vmatpush.bf16.msra.mxu0 %v1912
  %3076 = vmatpush.bf16.msra.mxu0 %v1909
  %3077 = vmatpush.bf16.msra.mxu0 %v1906
  %3078 = vmatpush.bf16.msra.mxu0 %v1903
  %3079 = vmatmul.bf16.gmra.mxu0 %v3037
  %v3080 = vpop.f32.mrf.mxu0
  %v3081 = vadd.f32 0.0, %v3080
  %v3082 = vpop.f32.mrf.mxu0
  %v3083 = vadd.f32 0.0, %v3082
  %3084 = vdwg.mxu0
  %3085 = vmatpush.bf16.msra.mxu0 0
  %3086 = vmatpush.bf16.msra.mxu0 0
  %3087 = vmatpush.bf16.msra.mxu0 0
  %3088 = vmatpush.bf16.msra.mxu0 0
  %3089 = vmatpush.bf16.msra.mxu0 0
  %3090 = vmatpush.bf16.msra.mxu0 0
  %3091 = vmatpush.bf16.msra.mxu0 0
  %3092 = vmatpush.bf16.msra.mxu0 %v1960
  %3093 = vmatmul.bf16.gmra.mxu0 %v3041
  %v3094 = vpop.f32.mrf.mxu0
  %v3095 = vadd.f32 %v3081, %v3094
  %v3096 = vpop.f32.mrf.mxu0
  %v3097 = vadd.f32 %v3083, %v3096
  %3098 = vdwg.mxu0
  %3099 = vmatpush.bf16.msra.mxu0 %v1925
  %3100 = vmatpush.bf16.msra.mxu0 %v1922
  %3101 = vmatpush.bf16.msra.mxu0 %v1919
  %3102 = vmatpush.bf16.msra.mxu0 %v1916
  %3103 = vmatpush.bf16.msra.mxu0 %v1913
  %3104 = vmatpush.bf16.msra.mxu0 %v1910
  %3105 = vmatpush.bf16.msra.mxu0 %v1907
  %3106 = vmatpush.bf16.msra.mxu0 %v1904
  %3107 = vmatmul.bf16.gmra.mxu0 %v3037
  %v3108 = vpop.f32.mrf.mxu0
  %v3109 = vadd.f32 0.0, %v3108
  %v3110 = vpop.f32.mrf.mxu0
  %v3111 = vadd.f32 0.0, %v3110
  %3112 = vdwg.mxu0
  %3113 = vmatpush.bf16.msra.mxu0 0
  %3114 = vmatpush.bf16.msra.mxu0 0
  %3115 = vmatpush.bf16.msra.mxu0 0
  %3116 = vmatpush.bf16.msra.mxu0 0
  %3117 = vmatpush.bf16.msra.mxu0 0
  %3118 = vmatpush.bf16.msra.mxu0 0
  %3119 = vmatpush.bf16.msra.mxu0 0
  %3120 = vmatpush.bf16.msra.mxu0 %v1963
  %3121 = vmatmul.bf16.gmra.mxu0 %v3041
  %v3122 = vpop.f32.mrf.mxu0
  %v3123 = vadd.f32 %v3109, %v3122
  %v3124 = vpop.f32.mrf.mxu0
  %v3125 = vadd.f32 %v3111, %v3124
  %3126 = vdwg.mxu0
  %v3127 = vadd.f32 %v3023, %v3067
  %v3128 = vadd.f32 %v3024, %v3095
  %v3129 = vadd.f32 %v3025, %v3123
  %v3130 = vadd.f32 %v3026, %v3069
  %v3131 = vadd.f32 %v3027, %v3097
  %v3132 = vadd.f32 %v3028, %v3125
  %v3133 = vld [vmem:[%s893 + $0x10] sm:$0xf0]
  %v3134 = vld [vmem:[%s893 + $0x18] sm:$0xf0]
  %v3135 = vld [vmem:[%s893 + $0x20] sm:$0x3f]
  %v3136 = vld [vmem:[%s893 + $0x28] sm:$0x3f]
  %v3137 = vpack.c.bf16 %v3135, %v3133
  %v3138 = vpack.c.bf16 %v3136, %v3134
  %v3141 = vrot.slane %v3137, 2
  %v3142 = vrot.slane %v3138, 2
  %v3145 = vsel %vm283, %v3142, 0
  %3147 = vmatpush.bf16.msra.mxu0 %v2217
  %3148 = vmatpush.bf16.msra.mxu0 %v2214
  %3149 = vmatpush.bf16.msra.mxu0 %v2211
  %3150 = vmatpush.bf16.msra.mxu0 %v2208
  %3151 = vmatpush.bf16.msra.mxu0 %v2205
  %3152 = vmatpush.bf16.msra.mxu0 %v2202
  %3153 = vmatpush.bf16.msra.mxu0 %v2199
  %3154 = vmatpush.bf16.msra.mxu0 %v2196
  %3155 = vmatmul.bf16.gmra.mxu0 %v3141
  %v3156 = vpop.f32.mrf.mxu0
  %v3157 = vadd.f32 0.0, %v3156
  %v3158 = vpop.f32.mrf.mxu0
  %v3159 = vadd.f32 0.0, %v3158
  %3160 = vdwg.mxu0
  %3161 = vmatpush.bf16.msra.mxu0 0
  %3162 = vmatpush.bf16.msra.mxu0 0
  %3163 = vmatpush.bf16.msra.mxu0 0
  %3164 = vmatpush.bf16.msra.mxu0 0
  %3165 = vmatpush.bf16.msra.mxu0 0
  %3166 = vmatpush.bf16.msra.mxu0 0
  %3167 = vmatpush.bf16.msra.mxu0 0
  %3168 = vmatpush.bf16.msra.mxu0 %v2251
  %3169 = vmatmul.bf16.gmra.mxu0 %v3145
  %v3170 = vpop.f32.mrf.mxu0
  %v3171 = vadd.f32 %v3157, %v3170
  %v3172 = vpop.f32.mrf.mxu0
  %v3173 = vadd.f32 %v3159, %v3172
  %3174 = vdwg.mxu0
  %3175 = vmatpush.bf16.msra.mxu0 %v2218
  %3176 = vmatpush.bf16.msra.mxu0 %v2215
  %3177 = vmatpush.bf16.msra.mxu0 %v2212
  %3178 = vmatpush.bf16.msra.mxu0 %v2209
  %3179 = vmatpush.bf16.msra.mxu0 %v2206
  %3180 = vmatpush.bf16.msra.mxu0 %v2203
  %3181 = vmatpush.bf16.msra.mxu0 %v2200
  %3182 = vmatpush.bf16.msra.mxu0 %v2197
  %3183 = vmatmul.bf16.gmra.mxu0 %v3141
  %v3184 = vpop.f32.mrf.mxu0
  %v3185 = vadd.f32 0.0, %v3184
  %v3186 = vpop.f32.mrf.mxu0
  %v3187 = vadd.f32 0.0, %v3186
  %3188 = vdwg.mxu0
  %3189 = vmatpush.bf16.msra.mxu0 0
  %3190 = vmatpush.bf16.msra.mxu0 0
  %3191 = vmatpush.bf16.msra.mxu0 0
  %3192 = vmatpush.bf16.msra.mxu0 0
  %3193 = vmatpush.bf16.msra.mxu0 0
  %3194 = vmatpush.bf16.msra.mxu0 0
  %3195 = vmatpush.bf16.msra.mxu0 0
  %3196 = vmatpush.bf16.msra.mxu0 %v2254
  %3197 = vmatmul.bf16.gmra.mxu0 %v3145
  %v3198 = vpop.f32.mrf.mxu0
  %v3199 = vadd.f32 %v3185, %v3198
  %v3200 = vpop.f32.mrf.mxu0
  %v3201 = vadd.f32 %v3187, %v3200
  %3202 = vdwg.mxu0
  %3203 = vmatpush.bf16.msra.mxu0 %v2219
  %3204 = vmatpush.bf16.msra.mxu0 %v2216
  %3205 = vmatpush.bf16.msra.mxu0 %v2213
  %3206 = vmatpush.bf16.msra.mxu0 %v2210
  %3207 = vmatpush.bf16.msra.mxu0 %v2207
  %3208 = vmatpush.bf16.msra.mxu0 %v2204
  %3209 = vmatpush.bf16.msra.mxu0 %v2201
  %3210 = vmatpush.bf16.msra.mxu0 %v2198
  %3211 = vmatmul.bf16.gmra.mxu0 %v3141
  %v3212 = vpop.f32.mrf.mxu0
  %v3213 = vadd.f32 0.0, %v3212
  %v3214 = vpop.f32.mrf.mxu0
  %v3215 = vadd.f32 0.0, %v3214
  %3216 = vdwg.mxu0
  %3217 = vmatpush.bf16.msra.mxu0 0
  %3218 = vmatpush.bf16.msra.mxu0 0
  %3219 = vmatpush.bf16.msra.mxu0 0
  %3220 = vmatpush.bf16.msra.mxu0 0
  %3221 = vmatpush.bf16.msra.mxu0 0
  %3222 = vmatpush.bf16.msra.mxu0 0
  %3223 = vmatpush.bf16.msra.mxu0 0
  %3224 = vmatpush.bf16.msra.mxu0 %v2257
  %3225 = vmatmul.bf16.gmra.mxu0 %v3145
  %v3226 = vpop.f32.mrf.mxu0
  %v3227 = vadd.f32 %v3213, %v3226
  %v3228 = vpop.f32.mrf.mxu0
  %v3229 = vadd.f32 %v3215, %v3228
  %3230 = vdwg.mxu0
  %v3231 = vadd.f32 %v3127, %v3171
  %v3232 = vadd.f32 %v3128, %v3199
  %v3233 = vadd.f32 %v3129, %v3227
  %v3234 = vadd.f32 %v3130, %v3173
  %v3235 = vadd.f32 %v3131, %v3201
  %v3236 = vadd.f32 %v3132, %v3229
  %v3237 = vadd.f32 %v3231, %v2351
  %v3238 = vadd.f32 %v3232, %v2352
  %v3239 = vadd.f32 %v3233, %v2353
  %v3240 = vadd.f32 %v3234, %v2351
  %v3241 = vadd.f32 %v3235, %v2352
  %v3242 = vadd.f32 %v3236, %v2353
  %v3243 = vmax.f32 %v3237, 0.0
  %v3244 = vmax.f32 %v3238, 0.0
  %v3245 = vmax.f32 %v3239, 0.0
  %v3246 = vmax.f32 %v3240, 0.0
  %v3247 = vmax.f32 %v3241, 0.0
  %v3248 = vmax.f32 %v3242, 0.0
  %v3252 = vrot.slane %v2364, 7
  %v3253 = vrot.slane %v2365, 6
  %vm3254 = vcmask 1040384
  %v3255 = vsel %vm3254, %v2363, %v3252
  %v3256 = vsel %vm287, %v3255, %v3253
  %v3258 = vlaneseq
  %vm3259 = vcmp.ge.s32.totalorder %v3258, 0
  %vm3260 = vcmp.lt.s32.totalorder %v3258, 320
  %vm3261 = vmand %vm3259, %vm3260
  %3262 = vst.msk [vmem:[#allocation2] ss:$8 sm:$0x7] %vm3261, %v3256
  %3263 = vst.msk [vmem:[#allocation2] ss:$8 sm:$0x0] %vm3261, %v3256
  %3264 = vst [vmem:[#allocation1] sm:$0xff] %v2363
  %3265 = vst [vmem:[#allocation1 + $0x9] sm:$0xff] %v2364
  %3266 = vst [vmem:[#allocation1 + $0x12] sm:$0xff] %v2365
  %s3267 = scalar_lea.vmem [#allocation1], 1
  %v3268 = vld [vmem:[%s3267] ss:$9 sm:$0xff]
  %s3270 = scalar_lea.vmem [#allocation2], 48
  %3271 = vst.msk [vmem:[%s3270] ss:$8 sm:$0x7] %vm3261, %v3268
  %3272 = vst.msk [vmem:[%s3270] ss:$8 sm:$0x0] %vm3261, %v3268
  %3273 = vst [vmem:[#allocation1] sm:$0xff] %v2363
  %3274 = vst [vmem:[#allocation1 + $0x9] sm:$0xff] %v2364
  %3275 = vst [vmem:[#allocation1 + $0x12] sm:$0xff] %v2365
  %s3276 = scalar_lea.vmem [#allocation1], 2
  %v3277 = vld [vmem:[%s3276] ss:$9 sm:$0xff]
  %s3279 = scalar_lea.vmem [#allocation2], 1
  %3280 = vst.msk [vmem:[%s3279] ss:$8 sm:$0x7] %vm3261, %v3277
  %3281 = vst.msk [vmem:[%s3279] ss:$8 sm:$0x0] %vm3261, %v3277
  %3282 = vst [vmem:[#allocation1] sm:$0xff] %v2363
  %3283 = vst [vmem:[#allocation1 + $0x9] sm:$0xff] %v2364
  %3284 = vst [vmem:[#allocation1 + $0x12] sm:$0xff] %v2365
  %s3285 = scalar_lea.vmem [#allocation1], 3
  %v3286 = vld [vmem:[%s3285] ss:$9 sm:$0xff]
  %s3288 = scalar_lea.vmem %s3270, 1 [#allocation2]
  %3289 = vst.msk [vmem:[%s3288] ss:$8 sm:$0x7] %vm3261, %v3286
  %3290 = vst.msk [vmem:[%s3288] ss:$8 sm:$0x0] %vm3261, %v3286
  %3291 = vst [vmem:[#allocation1] sm:$0xff] %v2363
  %3292 = vst [vmem:[#allocation1 + $0x9] sm:$0xff] %v2364
  %3293 = vst [vmem:[#allocation1 + $0x12] sm:$0xff] %v2365
  %s3294 = scalar_lea.vmem [#allocation1], 4
  %v3295 = vld [vmem:[%s3294] ss:$9 sm:$0xff]
  %s3297 = scalar_lea.vmem [#allocation2], 2
  %3298 = vst.msk [vmem:[%s3297] ss:$8 sm:$0x7] %vm3261, %v3295
  %3299 = vst.msk [vmem:[%s3297] ss:$8 sm:$0x0] %vm3261, %v3295
  %3300 = vst [vmem:[#allocation1] sm:$0xff] %v2363
  %3301 = vst [vmem:[#allocation1 + $0x9] sm:$0xff] %v2364
  %3302 = vst [vmem:[#allocation1 + $0x12] sm:$0xff] %v2365
  %s3303 = scalar_lea.vmem [#allocation1], 5
  %v3304 = vld [vmem:[%s3303] ss:$9 sm:$0xff]
  %s3306 = scalar_lea.vmem %s3270, 2 [#allocation2]
  %3307 = vst.msk [vmem:[%s3306] ss:$8 sm:$0x7] %vm3261, %v3304
  %3308 = vst.msk [vmem:[%s3306] ss:$8 sm:$0x0] %vm3261, %v3304
  %3309 = vst [vmem:[#allocation1] sm:$0xff] %v2363
  %3310 = vst [vmem:[#allocation1 + $0x9] sm:$0xff] %v2364
  %3311 = vst [vmem:[#allocation1 + $0x12] sm:$0xff] %v2365
  %s3312 = scalar_lea.vmem [#allocation1], 6
  %v3313 = vld [vmem:[%s3312] ss:$9 sm:$0xff]
  %s3315 = scalar_lea.vmem [#allocation2], 3
  %3316 = vst.msk [vmem:[%s3315] ss:$8 sm:$0x7] %vm3261, %v3313
  %3317 = vst.msk [vmem:[%s3315] ss:$8 sm:$0x0] %vm3261, %v3313
  %3318 = vst [vmem:[#allocation1] sm:$0xff] %v2363
  %3319 = vst [vmem:[#allocation1 + $0x9] sm:$0xff] %v2364
  %3320 = vst [vmem:[#allocation1 + $0x12] sm:$0xff] %v2365
  %s3321 = scalar_lea.vmem [#allocation1], 7
  %v3322 = vld [vmem:[%s3321] ss:$9 sm:$0xff]
  %s3324 = scalar_lea.vmem %s3270, 3 [#allocation2]
  %3325 = vst.msk [vmem:[%s3324] ss:$8 sm:$0x7] %vm3261, %v3322
  %3326 = vst.msk [vmem:[%s3324] ss:$8 sm:$0x0] %vm3261, %v3322
  %v3330 = vrot.slane %v2367, 7
  %v3331 = vrot.slane %v2368, 6
  %v3332 = vsel %vm3254, %v2366, %v3330
  %v3333 = vsel %vm287, %v3332, %v3331
  %s3335 = scalar_lea.vmem [#allocation2], 4
  %3336 = vst.msk [vmem:[%s3335] ss:$8 sm:$0x7] %vm3261, %v3333
  %3337 = vst.msk [vmem:[%s3335] ss:$8 sm:$0x0] %vm3261, %v3333
  %3338 = vst [vmem:[#allocation1] sm:$0xff] %v2366
  %3339 = vst [vmem:[#allocation1 + $0x9] sm:$0xff] %v2367
  %3340 = vst [vmem:[#allocation1 + $0x12] sm:$0xff] %v2368
  %s3341 = scalar_lea.vmem [#allocation1], 1
  %v3342 = vld [vmem:[%s3341] ss:$9 sm:$0xff]
  %s3344 = scalar_lea.vmem %s3270, 4 [#allocation2]
  %3345 = vst.msk [vmem:[%s3344] ss:$8 sm:$0x7] %vm3261, %v3342
  %3346 = vst.msk [vmem:[%s3344] ss:$8 sm:$0x0] %vm3261, %v3342
  %v3350 = vrot.slane %v3244, 7
  %v3351 = vrot.slane %v3245, 6
  %v3352 = vsel %vm3254, %v3243, %v3350
  %v3353 = vsel %vm287, %v3352, %v3351
  %s3355 = scalar_lea.vmem [#allocation2], 5
  %3356 = vst.msk [vmem:[%s3355] ss:$8 sm:$0x7] %vm3261, %v3353
  %3357 = vst.msk [vmem:[%s3355] ss:$8 sm:$0x0] %vm3261, %v3353
  %3358 = vst [vmem:[#allocation1] sm:$0xff] %v3243
  %3359 = vst [vmem:[#allocation1 + $0x9] sm:$0xff] %v3244
  %3360 = vst [vmem:[#allocation1 + $0x12] sm:$0xff] %v3245
  %s3361 = scalar_lea.vmem [#allocation1], 1
  %v3362 = vld [vmem:[%s3361] ss:$9 sm:$0xff]
  %s3364 = scalar_lea.vmem %s3270, 5 [#allocation2]
  %3365 = vst.msk [vmem:[%s3364] ss:$8 sm:$0x7] %vm3261, %v3362
  %3366 = vst.msk [vmem:[%s3364] ss:$8 sm:$0x0] %vm3261, %v3362
  %3367 = vst [vmem:[#allocation1] sm:$0xff] %v3243
  %3368 = vst [vmem:[#allocation1 + $0x9] sm:$0xff] %v3244
  %3369 = vst [vmem:[#allocation1 + $0x12] sm:$0xff] %v3245
  %s3370 = scalar_lea.vmem [#allocation1], 2
  %v3371 = vld [vmem:[%s3370] ss:$9 sm:$0xff]
  %s3373 = scalar_lea.vmem [#allocation2], 6
  %3374 = vst.msk [vmem:[%s3373] ss:$8 sm:$0x7] %vm3261, %v3371
  %3375 = vst.msk [vmem:[%s3373] ss:$8 sm:$0x0] %vm3261, %v3371
  %3376 = vst [vmem:[#allocation1] sm:$0xff] %v3243
  %3377 = vst [vmem:[#allocation1 + $0x9] sm:$0xff] %v3244
  %3378 = vst [vmem:[#allocation1 + $0x12] sm:$0xff] %v3245
  %s3379 = scalar_lea.vmem [#allocation1], 3
  %v3380 = vld [vmem:[%s3379] ss:$9 sm:$0xff]
  %s3382 = scalar_lea.vmem %s3270, 6 [#allocation2]
  %3383 = vst.msk [vmem:[%s3382] ss:$8 sm:$0x7] %vm3261, %v3380
  %3384 = vst.msk [vmem:[%s3382] ss:$8 sm:$0x0] %vm3261, %v3380
  %3385 = vst [vmem:[#allocation1] sm:$0xff] %v3243
  %3386 = vst [vmem:[#allocation1 + $0x9] sm:$0xff] %v3244
  %3387 = vst [vmem:[#allocation1 + $0x12] sm:$0xff] %v3245
  %s3388 = scalar_lea.vmem [#allocation1], 4
  %v3389 = vld [vmem:[%s3388] ss:$9 sm:$0xff]
  %s3391 = scalar_lea.vmem [#allocation2], 7
  %3392 = vst.msk [vmem:[%s3391] ss:$8 sm:$0x7] %vm3261, %v3389
  %3393 = vst.msk [vmem:[%s3391] ss:$8 sm:$0x0] %vm3261, %v3389
  %3394 = vst [vmem:[#allocation1] sm:$0xff] %v3243
  %3395 = vst [vmem:[#allocation1 + $0x9] sm:$0xff] %v3244
  %3396 = vst [vmem:[#allocation1 + $0x12] sm:$0xff] %v3245
  %s3397 = scalar_lea.vmem [#allocation1], 5
  %v3398 = vld [vmem:[%s3397] ss:$9 sm:$0xff]
  %s3400 = scalar_lea.vmem %s3270, 7 [#allocation2]
  %3401 = vst.msk [vmem:[%s3400] ss:$8 sm:$0x7] %vm3261, %v3398
  %3402 = vst.msk [vmem:[%s3400] ss:$8 sm:$0x0] %vm3261, %v3398
  %3403 = vst [vmem:[#allocation1] sm:$0xff] %v3243
  %3404 = vst [vmem:[#allocation1 + $0x9] sm:$0xff] %v3244
  %3405 = vst [vmem:[#allocation1 + $0x12] sm:$0xff] %v3245
  %s3406 = scalar_lea.vmem [#allocation1], 6
  %v3407 = vld [vmem:[%s3406] ss:$9 sm:$0xff]
  %s3409 = scalar_lea.vmem [#allocation2], 24
  %3410 = vst.msk [vmem:[%s3409] ss:$8 sm:$0x7] %vm3261, %v3407
  %3411 = vst.msk [vmem:[%s3409] ss:$8 sm:$0x0] %vm3261, %v3407
  %3412 = vst [vmem:[#allocation1] sm:$0xff] %v3243
  %3413 = vst [vmem:[#allocation1 + $0x9] sm:$0xff] %v3244
  %3414 = vst [vmem:[#allocation1 + $0x12] sm:$0xff] %v3245
  %s3415 = scalar_lea.vmem [#allocation1], 7
  %v3416 = vld [vmem:[%s3415] ss:$9 sm:$0xff]
  %s3418 = scalar_lea.vmem %s3270, 24 [#allocation2]
  %3419 = vst.msk [vmem:[%s3418] ss:$8 sm:$0x7] %vm3261, %v3416
  %3420 = vst.msk [vmem:[%s3418] ss:$8 sm:$0x0] %vm3261, %v3416
  %v3424 = vrot.slane %v3247, 7
  %v3425 = vrot.slane %v3248, 6
  %v3426 = vsel %vm3254, %v3246, %v3424
  %v3427 = vsel %vm287, %v3426, %v3425
  %s3429 = scalar_lea.vmem [#allocation2], 25
  %3430 = vst.msk [vmem:[%s3429] ss:$8 sm:$0x7] %vm3261, %v3427
  %3431 = vst.msk [vmem:[%s3429] ss:$8 sm:$0x0] %vm3261, %v3427
  %3432 = vst [vmem:[#allocation1] sm:$0xff] %v3246
  %3433 = vst [vmem:[#allocation1 + $0x9] sm:$0xff] %v3247
  %3434 = vst [vmem:[#allocation1 + $0x12] sm:$0xff] %v3248
  %s3435 = scalar_lea.vmem [#allocation1], 1
  %v3436 = vld [vmem:[%s3435] ss:$9 sm:$0xff]
  %s3438 = scalar_lea.vmem %s3270, 25 [#allocation2]
  %3439 = vst.msk [vmem:[%s3438] ss:$8 sm:$0x7] %vm3261, %v3436
  %3440 = vst.msk [vmem:[%s3438] ss:$8 sm:$0x0] %vm3261, %v3436
  %v3441 = vld [vmem:[#allocation2] sm:$0xf]
  %v3442 = vld [vmem:[#allocation2 + $0x8] sm:$0xf]
  %v3443 = vld [vmem:[#allocation2 + $0x10] sm:$0xf]
  %v3444 = vpack.c.bf16 %v3441, %v3441
  %v3445 = vpack.c.bf16 %v3442, %v3442
  %v3446 = vpack.c.bf16 %v3443, %v3443
  %v3447 = vld [vmem:[%s3] sm:$0xff]
  %v3448 = vld [vmem:[%s3 + $0x8] sm:$0xff]
  %v3449 = vld [vmem:[%s3 + $0x10] sm:$0xff]
  %v3450 = vld [vmem:[%s3 + $0x18] sm:$0xff]
  %v3451 = vld [vmem:[%s3 + $0x20] sm:$0xff]
  %v3452 = vld [vmem:[%s3 + $0x28] sm:$0xff]
  %v3453 = vld [vmem:[%s3 + $0x30] sm:$0xff]
  %v3454 = vld [vmem:[%s3 + $0x38] sm:$0xff]
  %v3455 = vld [vmem:[%s3 + $0x40] sm:$0xff]
  %v3456 = vld [vmem:[%s3 + $0x48] sm:$0xff]
  %v3457 = vld [vmem:[%s3 + $0x50] sm:$0xff]
  %v3458 = vld [vmem:[%s3 + $0x58] sm:$0xff]
  %v3459 = vld [vmem:[%s3 + $0x60] sm:$0xff]
  %v3460 = vld [vmem:[%s3 + $0x68] sm:$0xff]
  %v3461 = vld [vmem:[%s3 + $0x70] sm:$0xff]
  %v3462 = vld [vmem:[%s3 + $0x78] sm:$0xff]
  %v3463 = vld [vmem:[%s3 + $0x80] sm:$0xff]
  %v3464 = vld [vmem:[%s3 + $0x88] sm:$0xff]
  %v3465 = vld [vmem:[%s3 + $0x90] sm:$0xff]
  %v3466 = vld [vmem:[%s3 + $0x98] sm:$0xff]
  %v3467 = vld [vmem:[%s3 + $0xa0] sm:$0xff]
  %v3468 = vld [vmem:[%s3 + $0xa8] sm:$0xff]
  %v3469 = vld [vmem:[%s3 + $0xb0] sm:$0xff]
  %v3470 = vld [vmem:[%s3 + $0xb8] sm:$0xff]
  %v3471 = vld [vmem:[%s3 + $0xc0] sm:$0xff]
  %v3472 = vld [vmem:[%s3 + $0xc8] sm:$0xff]
  %v3473 = vld [vmem:[%s3 + $0xd0] sm:$0xff]
  %v3474 = vld [vmem:[%s3 + $0xd8] sm:$0xff]
  %v3475 = vld [vmem:[%s3 + $0xe0] sm:$0xff]
  %v3476 = vld [vmem:[%s3 + $0xe8] sm:$0xff]
  %v3477 = vld [vmem:[%s3 + $0xf0] sm:$0xff]
  %v3478 = vld [vmem:[%s3 + $0xf8] sm:$0xff]
  %v3479 = vld [vmem:[%s3 + $0x100] sm:$0xff]
  %v3480 = vld [vmem:[%s3 + $0x108] sm:$0xff]
  %v3481 = vld [vmem:[%s3 + $0x110] sm:$0xff]
  %v3482 = vld [vmem:[%s3 + $0x118] sm:$0xff]
  %v3483 = vld [vmem:[%s3 + $0x120] sm:$0xff]
  %v3484 = vld [vmem:[%s3 + $0x128] sm:$0xff]
  %v3485 = vld [vmem:[%s3 + $0x130] sm:$0xff]
  %v3486 = vld [vmem:[%s3 + $0x138] sm:$0xff]
  %v3487 = vld [vmem:[%s3270] sm:$0xf]
  %v3488 = vld [vmem:[%s3270 + $0x8] sm:$0xf]
  %v3489 = vld [vmem:[%s3270 + $0x10] sm:$0xf]
  %v3490 = vpack.c.bf16 %v3487, %v3487
  %v3491 = vpack.c.bf16 %v3488, %v3488
  %v3492 = vpack.c.bf16 %v3489, %v3489
  %s3493 = scalar_lea.vmem %s3, 320
  %v3494 = vld [vmem:[%s3493] sm:$0xff]
  %v3495 = vld [vmem:[%s3493 + $0x8] sm:$0xff]
  %v3496 = vld [vmem:[%s3493 + $0x10] sm:$0xff]
  %v3497 = vld [vmem:[%s3493 + $0x18] sm:$0xff]
  %v3498 = vld [vmem:[%s3493 + $0x20] sm:$0xff]
  %v3499 = vld [vmem:[%s3493 + $0x28] sm:$0xff]
  %v3500 = vld [vmem:[%s3493 + $0x30] sm:$0xff]
  %v3501 = vld [vmem:[%s3493 + $0x38] sm:$0xff]
  %v3502 = vld [vmem:[%s3493 + $0x40] sm:$0xff]
  %v3503 = vld [vmem:[%s3493 + $0x48] sm:$0xff]
  %v3504 = vld [vmem:[%s3493 + $0x50] sm:$0xff]
  %v3505 = vld [vmem:[%s3493 + $0x58] sm:$0xff]
  %v3506 = vld [vmem:[%s3493 + $0x60] sm:$0xff]
  %v3507 = vld [vmem:[%s3493 + $0x68] sm:$0xff]
  %v3508 = vld [vmem:[%s3493 + $0x70] sm:$0xff]
  %v3509 = vld [vmem:[%s3493 + $0x78] sm:$0xff]
  %v3510 = vld [vmem:[%s3493 + $0x80] sm:$0xff]
  %v3511 = vld [vmem:[%s3493 + $0x88] sm:$0xff]
  %v3512 = vld [vmem:[%s3493 + $0x90] sm:$0xff]
  %v3513 = vld [vmem:[%s3493 + $0x98] sm:$0xff]
  %v3514 = vld [vmem:[%s3493 + $0xa0] sm:$0xff]
  %v3515 = vld [vmem:[%s3493 + $0xa8] sm:$0xff]
  %v3516 = vld [vmem:[%s3493 + $0xb0] sm:$0xff]
  %v3517 = vld [vmem:[%s3493 + $0xb8] sm:$0xff]
  %v3518 = vld [vmem:[%s3493 + $0xc0] sm:$0xff]
  %v3519 = vld [vmem:[%s3493 + $0xc8] sm:$0xff]
  %v3520 = vld [vmem:[%s3493 + $0xd0] sm:$0xff]
  %v3521 = vld [vmem:[%s3493 + $0xd8] sm:$0xff]
  %v3522 = vld [vmem:[%s3493 + $0xe0] sm:$0xff]
  %v3523 = vld [vmem:[%s3493 + $0xe8] sm:$0xff]
  %v3524 = vld [vmem:[%s3493 + $0xf0] sm:$0xff]
  %v3525 = vld [vmem:[%s3493 + $0xf8] sm:$0xff]
  %v3526 = vld [vmem:[%s3493 + $0x100] sm:$0xff]
  %v3527 = vld [vmem:[%s3493 + $0x108] sm:$0xff]
  %v3528 = vld [vmem:[%s3493 + $0x110] sm:$0xff]
  %v3529 = vld [vmem:[%s3493 + $0x118] sm:$0xff]
  %v3530 = vld [vmem:[%s3493 + $0x120] sm:$0xff]
  %v3531 = vld [vmem:[%s3493 + $0x128] sm:$0xff]
  %v3532 = vld [vmem:[%s3493 + $0x130] sm:$0xff]
  %v3533 = vld [vmem:[%s3493 + $0x138] sm:$0xff]
  %v3574 = vunpack.c.l.b16 %v3494
  %v3575 = vunpack.c.h.b16 %v3494
  %v3576 = vunpack.c.l.b16 %v3495
  %v3577 = vunpack.c.h.b16 %v3495
  %v3578 = vunpack.c.l.b16 %v3496
  %v3579 = vunpack.c.h.b16 %v3496
  %v3580 = vunpack.c.l.b16 %v3497
  %v3581 = vunpack.c.h.b16 %v3497
  %v3582 = vunpack.c.l.b16 %v3498
  %v3583 = vunpack.c.h.b16 %v3498
  %v3584 = vunpack.c.l.b16 %v3499
  %v3585 = vunpack.c.h.b16 %v3499
  %v3586 = vunpack.c.l.b16 %v3500
  %v3587 = vunpack.c.h.b16 %v3500
  %v3588 = vunpack.c.l.b16 %v3501
  %v3589 = vunpack.c.h.b16 %v3501
  %v3590 = vunpack.c.l.b16 %v3502
  %v3591 = vunpack.c.h.b16 %v3502
  %v3592 = vunpack.c.l.b16 %v3503
  %v3593 = vunpack.c.h.b16 %v3503
  %v3594 = vunpack.c.l.b16 %v3504
  %v3595 = vunpack.c.h.b16 %v3504
  %v3596 = vunpack.c.l.b16 %v3505
  %v3597 = vunpack.c.h.b16 %v3505
  %v3598 = vunpack.c.l.b16 %v3506
  %v3599 = vunpack.c.h.b16 %v3506
  %v3600 = vunpack.c.l.b16 %v3507
  %v3601 = vunpack.c.h.b16 %v3507
  %v3602 = vunpack.c.l.b16 %v3508
  %v3603 = vunpack.c.h.b16 %v3508
  %v3604 = vunpack.c.l.b16 %v3509
  %v3605 = vunpack.c.h.b16 %v3509
  %v3606 = vunpack.c.l.b16 %v3510
  %v3607 = vunpack.c.h.b16 %v3510
  %v3608 = vunpack.c.l.b16 %v3511
  %v3609 = vunpack.c.h.b16 %v3511
  %v3610 = vunpack.c.l.b16 %v3512
  %v3611 = vunpack.c.h.b16 %v3512
  %v3612 = vunpack.c.l.b16 %v3513
  %v3613 = vunpack.c.h.b16 %v3513
  %v3614 = vunpack.c.l.b16 %v3514
  %v3615 = vunpack.c.h.b16 %v3514
  %v3616 = vunpack.c.l.b16 %v3515
  %v3617 = vunpack.c.h.b16 %v3515
  %v3618 = vunpack.c.l.b16 %v3516
  %v3619 = vunpack.c.h.b16 %v3516
  %v3620 = vunpack.c.l.b16 %v3517
  %v3621 = vunpack.c.h.b16 %v3517
  %v3622 = vunpack.c.l.b16 %v3518
  %v3623 = vunpack.c.h.b16 %v3518
  %v3624 = vunpack.c.l.b16 %v3519
  %v3625 = vunpack.c.h.b16 %v3519
  %v3626 = vunpack.c.l.b16 %v3520
  %v3627 = vunpack.c.h.b16 %v3520
  %v3628 = vunpack.c.l.b16 %v3521
  %v3629 = vunpack.c.h.b16 %v3521
  %v3630 = vunpack.c.l.b16 %v3522
  %v3631 = vunpack.c.h.b16 %v3522
  %v3632 = vunpack.c.l.b16 %v3523
  %v3633 = vunpack.c.h.b16 %v3523
  %v3634 = vunpack.c.l.b16 %v3524
  %v3635 = vunpack.c.h.b16 %v3524
  %v3636 = vunpack.c.l.b16 %v3525
  %v3637 = vunpack.c.h.b16 %v3525
  %v3638 = vunpack.c.l.b16 %v3526
  %v3639 = vunpack.c.h.b16 %v3526
  %v3640 = vunpack.c.l.b16 %v3527
  %v3641 = vunpack.c.h.b16 %v3527
  %v3642 = vunpack.c.l.b16 %v3528
  %v3643 = vunpack.c.h.b16 %v3528
  %v3644 = vunpack.c.l.b16 %v3529
  %v3645 = vunpack.c.h.b16 %v3529
  %v3646 = vunpack.c.l.b16 %v3530
  %v3647 = vunpack.c.h.b16 %v3530
  %v3648 = vunpack.c.l.b16 %v3531
  %v3649 = vunpack.c.h.b16 %v3531
  %v3650 = vunpack.c.l.b16 %v3532
  %v3651 = vunpack.c.h.b16 %v3532
  %v3652 = vunpack.c.l.b16 %v3533
  %v3653 = vunpack.c.h.b16 %v3533
  %v3654 = vpack.c.b16 %v3576, %v3574
  %v3655 = vpack.c.b16 %v3577, %v3575
  %v3656 = vpack.c.b16 %v3580, %v3578
  %v3657 = vpack.c.b16 %v3581, %v3579
  %v3658 = vpack.c.b16 %v3584, %v3582
  %v3659 = vpack.c.b16 %v3585, %v3583
  %v3660 = vpack.c.b16 %v3588, %v3586
  %v3661 = vpack.c.b16 %v3589, %v3587
  %v3662 = vpack.c.b16 %v3592, %v3590
  %v3663 = vpack.c.b16 %v3593, %v3591
  %v3664 = vpack.c.b16 %v3596, %v3594
  %v3665 = vpack.c.b16 %v3597, %v3595
  %v3666 = vpack.c.b16 %v3600, %v3598
  %v3667 = vpack.c.b16 %v3601, %v3599
  %v3668 = vpack.c.b16 %v3604, %v3602
  %v3669 = vpack.c.b16 %v3605, %v3603
  %v3670 = vpack.c.b16 %v3608, %v3606
  %v3671 = vpack.c.b16 %v3609, %v3607
  %v3672 = vpack.c.b16 %v3612, %v3610
  %v3673 = vpack.c.b16 %v3613, %v3611
  %v3674 = vpack.c.b16 %v3616, %v3614
  %v3675 = vpack.c.b16 %v3617, %v3615
  %v3676 = vpack.c.b16 %v3620, %v3618
  %v3677 = vpack.c.b16 %v3621, %v3619
  %v3678 = vpack.c.b16 %v3624, %v3622
  %v3679 = vpack.c.b16 %v3625, %v3623
  %v3680 = vpack.c.b16 %v3628, %v3626
  %v3681 = vpack.c.b16 %v3629, %v3627
  %v3682 = vpack.c.b16 %v3632, %v3630
  %v3683 = vpack.c.b16 %v3633, %v3631
  %v3684 = vpack.c.b16 %v3636, %v3634
  %v3685 = vpack.c.b16 %v3637, %v3635
  %v3686 = vpack.c.b16 %v3640, %v3638
  %v3687 = vpack.c.b16 %v3641, %v3639
  %v3688 = vpack.c.b16 %v3644, %v3642
  %v3689 = vpack.c.b16 %v3645, %v3643
  %v3690 = vpack.c.b16 %v3648, %v3646
  %v3691 = vpack.c.b16 %v3649, %v3647
  %v3692 = vpack.c.b16 %v3652, %v3650
  %v3693 = vpack.c.b16 %v3653, %v3651
  %vm3734 = vcmask 523264
  %v3736 = vsel %vm3734, %v3492, 0
  %3738 = vmatpush.bf16.msra.mxu0 %v3668
  %3739 = vmatpush.bf16.msra.mxu0 %v3666
  %3740 = vmatpush.bf16.msra.mxu0 %v3664
  %3741 = vmatpush.bf16.msra.mxu0 %v3662
  %3742 = vmatpush.bf16.msra.mxu0 %v3660
  %3743 = vmatpush.bf16.msra.mxu0 %v3658
  %3744 = vmatpush.bf16.msra.mxu0 %v3656
  %3745 = vmatpush.bf16.msra.mxu0 %v3654
  %3746 = vmatmul.bf16.gmra.mxu0 %v3490
  %v3747 = vpop.f32.mrf.mxu0
  %v3748 = vadd.f32 0.0, %v3747
  %v3749 = vpop.f32.mrf.mxu0
  %3750 = vdwg.mxu0
  %3751 = vmatpush.bf16.msra.mxu0 %v3684
  %3752 = vmatpush.bf16.msra.mxu0 %v3682
  %3753 = vmatpush.bf16.msra.mxu0 %v3680
  %3754 = vmatpush.bf16.msra.mxu0 %v3678
  %3755 = vmatpush.bf16.msra.mxu0 %v3676
  %3756 = vmatpush.bf16.msra.mxu0 %v3674
  %3757 = vmatpush.bf16.msra.mxu0 %v3672
  %3758 = vmatpush.bf16.msra.mxu0 %v3670
  %3759 = vmatmul.bf16.gmra.mxu0 %v3491
  %v3760 = vpop.f32.mrf.mxu0
  %v3761 = vadd.f32 %v3748, %v3760
  %v3762 = vpop.f32.mrf.mxu0
  %3763 = vdwg.mxu0
  %3764 = vmatpush.bf16.msra.mxu0 0
  %3765 = vmatpush.bf16.msra.mxu0 0
  %3766 = vmatpush.bf16.msra.mxu0 0
  %3767 = vmatpush.bf16.msra.mxu0 0
  %3768 = vmatpush.bf16.msra.mxu0 %v3692
  %3769 = vmatpush.bf16.msra.mxu0 %v3690
  %3770 = vmatpush.bf16.msra.mxu0 %v3688
  %3771 = vmatpush.bf16.msra.mxu0 %v3686
  %3772 = vmatmul.bf16.gmra.mxu0 %v3736
  %v3773 = vpop.f32.mrf.mxu0
  %v3774 = vadd.f32 %v3761, %v3773
  %v3775 = vpop.f32.mrf.mxu0
  %3776 = vdwg.mxu0
  %3777 = vmatpush.bf16.msra.mxu0 %v3669
  %3778 = vmatpush.bf16.msra.mxu0 %v3667
  %3779 = vmatpush.bf16.msra.mxu0 %v3665
  %3780 = vmatpush.bf16.msra.mxu0 %v3663
  %3781 = vmatpush.bf16.msra.mxu0 %v3661
  %3782 = vmatpush.bf16.msra.mxu0 %v3659
  %3783 = vmatpush.bf16.msra.mxu0 %v3657
  %3784 = vmatpush.bf16.msra.mxu0 %v3655
  %3785 = vmatmul.bf16.gmra.mxu0 %v3490
  %v3786 = vpop.f32.mrf.mxu0
  %v3787 = vadd.f32 0.0, %v3786
  %v3788 = vpop.f32.mrf.mxu0
  %3789 = vdwg.mxu0
  %3790 = vmatpush.bf16.msra.mxu0 %v3685
  %3791 = vmatpush.bf16.msra.mxu0 %v3683
  %3792 = vmatpush.bf16.msra.mxu0 %v3681
  %3793 = vmatpush.bf16.msra.mxu0 %v3679
  %3794 = vmatpush.bf16.msra.mxu0 %v3677
  %3795 = vmatpush.bf16.msra.mxu0 %v3675
  %3796 = vmatpush.bf16.msra.mxu0 %v3673
  %3797 = vmatpush.bf16.msra.mxu0 %v3671
  %3798 = vmatmul.bf16.gmra.mxu0 %v3491
  %v3799 = vpop.f32.mrf.mxu0
  %v3800 = vadd.f32 %v3787, %v3799
  %v3801 = vpop.f32.mrf.mxu0
  %3802 = vdwg.mxu0
  %3803 = vmatpush.bf16.msra.mxu0 0
  %3804 = vmatpush.bf16.msra.mxu0 0
  %3805 = vmatpush.bf16.msra.mxu0 0
  %3806 = vmatpush.bf16.msra.mxu0 0
  %3807 = vmatpush.bf16.msra.mxu0 %v3693
  %3808 = vmatpush.bf16.msra.mxu0 %v3691
  %3809 = vmatpush.bf16.msra.mxu0 %v3689
  %3810 = vmatpush.bf16.msra.mxu0 %v3687
  %3811 = vmatmul.bf16.gmra.mxu0 %v3736
  %v3812 = vpop.f32.mrf.mxu0
  %v3813 = vadd.f32 %v3800, %v3812
  %v3814 = vpop.f32.mrf.mxu0
  %3815 = vdwg.mxu0
  %v3856 = vunpack.c.l.b16 %v3447
  %v3857 = vunpack.c.h.b16 %v3447
  %v3858 = vunpack.c.l.b16 %v3448
  %v3859 = vunpack.c.h.b16 %v3448
  %v3860 = vunpack.c.l.b16 %v3449
  %v3861 = vunpack.c.h.b16 %v3449
  %v3862 = vunpack.c.l.b16 %v3450
  %v3863 = vunpack.c.h.b16 %v3450
  %v3864 = vunpack.c.l.b16 %v3451
  %v3865 = vunpack.c.h.b16 %v3451
  %v3866 = vunpack.c.l.b16 %v3452
  %v3867 = vunpack.c.h.b16 %v3452
  %v3868 = vunpack.c.l.b16 %v3453
  %v3869 = vunpack.c.h.b16 %v3453
  %v3870 = vunpack.c.l.b16 %v3454
  %v3871 = vunpack.c.h.b16 %v3454
  %v3872 = vunpack.c.l.b16 %v3455
  %v3873 = vunpack.c.h.b16 %v3455
  %v3874 = vunpack.c.l.b16 %v3456
  %v3875 = vunpack.c.h.b16 %v3456
  %v3876 = vunpack.c.l.b16 %v3457
  %v3877 = vunpack.c.h.b16 %v3457
  %v3878 = vunpack.c.l.b16 %v3458
  %v3879 = vunpack.c.h.b16 %v3458
  %v3880 = vunpack.c.l.b16 %v3459
  %v3881 = vunpack.c.h.b16 %v3459
  %v3882 = vunpack.c.l.b16 %v3460
  %v3883 = vunpack.c.h.b16 %v3460
  %v3884 = vunpack.c.l.b16 %v3461
  %v3885 = vunpack.c.h.b16 %v3461
  %v3886 = vunpack.c.l.b16 %v3462
  %v3887 = vunpack.c.h.b16 %v3462
  %v3888 = vunpack.c.l.b16 %v3463
  %v3889 = vunpack.c.h.b16 %v3463
  %v3890 = vunpack.c.l.b16 %v3464
  %v3891 = vunpack.c.h.b16 %v3464
  %v3892 = vunpack.c.l.b16 %v3465
  %v3893 = vunpack.c.h.b16 %v3465
  %v3894 = vunpack.c.l.b16 %v3466
  %v3895 = vunpack.c.h.b16 %v3466
  %v3896 = vunpack.c.l.b16 %v3467
  %v3897 = vunpack.c.h.b16 %v3467
  %v3898 = vunpack.c.l.b16 %v3468
  %v3899 = vunpack.c.h.b16 %v3468
  %v3900 = vunpack.c.l.b16 %v3469
  %v3901 = vunpack.c.h.b16 %v3469
  %v3902 = vunpack.c.l.b16 %v3470
  %v3903 = vunpack.c.h.b16 %v3470
  %v3904 = vunpack.c.l.b16 %v3471
  %v3905 = vunpack.c.h.b16 %v3471
  %v3906 = vunpack.c.l.b16 %v3472
  %v3907 = vunpack.c.h.b16 %v3472
  %v3908 = vunpack.c.l.b16 %v3473
  %v3909 = vunpack.c.h.b16 %v3473
  %v3910 = vunpack.c.l.b16 %v3474
  %v3911 = vunpack.c.h.b16 %v3474
  %v3912 = vunpack.c.l.b16 %v3475
  %v3913 = vunpack.c.h.b16 %v3475
  %v3914 = vunpack.c.l.b16 %v3476
  %v3915 = vunpack.c.h.b16 %v3476
  %v3916 = vunpack.c.l.b16 %v3477
  %v3917 = vunpack.c.h.b16 %v3477
  %v3918 = vunpack.c.l.b16 %v3478
  %v3919 = vunpack.c.h.b16 %v3478
  %v3920 = vunpack.c.l.b16 %v3479
  %v3921 = vunpack.c.h.b16 %v3479
  %v3922 = vunpack.c.l.b16 %v3480
  %v3923 = vunpack.c.h.b16 %v3480
  %v3924 = vunpack.c.l.b16 %v3481
  %v3925 = vunpack.c.h.b16 %v3481
  %v3926 = vunpack.c.l.b16 %v3482
  %v3927 = vunpack.c.h.b16 %v3482
  %v3928 = vunpack.c.l.b16 %v3483
  %v3929 = vunpack.c.h.b16 %v3483
  %v3930 = vunpack.c.l.b16 %v3484
  %v3931 = vunpack.c.h.b16 %v3484
  %v3932 = vunpack.c.l.b16 %v3485
  %v3933 = vunpack.c.h.b16 %v3485
  %v3934 = vunpack.c.l.b16 %v3486
  %v3935 = vunpack.c.h.b16 %v3486
  %v3936 = vpack.c.b16 %v3858, %v3856
  %v3937 = vpack.c.b16 %v3859, %v3857
  %v3938 = vpack.c.b16 %v3862, %v3860
  %v3939 = vpack.c.b16 %v3863, %v3861
  %v3940 = vpack.c.b16 %v3866, %v3864
  %v3941 = vpack.c.b16 %v3867, %v3865
  %v3942 = vpack.c.b16 %v3870, %v3868
  %v3943 = vpack.c.b16 %v3871, %v3869
  %v3944 = vpack.c.b16 %v3874, %v3872
  %v3945 = vpack.c.b16 %v3875, %v3873
  %v3946 = vpack.c.b16 %v3878, %v3876
  %v3947 = vpack.c.b16 %v3879, %v3877
  %v3948 = vpack.c.b16 %v3882, %v3880
  %v3949 = vpack.c.b16 %v3883, %v3881
  %v3950 = vpack.c.b16 %v3886, %v3884
  %v3951 = vpack.c.b16 %v3887, %v3885
  %v3952 = vpack.c.b16 %v3890, %v3888
  %v3953 = vpack.c.b16 %v3891, %v3889
  %v3954 = vpack.c.b16 %v3894, %v3892
  %v3955 = vpack.c.b16 %v3895, %v3893
  %v3956 = vpack.c.b16 %v3898, %v3896
  %v3957 = vpack.c.b16 %v3899, %v3897
  %v3958 = vpack.c.b16 %v3902, %v3900
  %v3959 = vpack.c.b16 %v3903, %v3901
  %v3960 = vpack.c.b16 %v3906, %v3904
  %v3961 = vpack.c.b16 %v3907, %v3905
  %v3962 = vpack.c.b16 %v3910, %v3908
  %v3963 = vpack.c.b16 %v3911, %v3909
  %v3964 = vpack.c.b16 %v3914, %v3912
  %v3965 = vpack.c.b16 %v3915, %v3913
  %v3966 = vpack.c.b16 %v3918, %v3916
  %v3967 = vpack.c.b16 %v3919, %v3917
  %v3968 = vpack.c.b16 %v3922, %v3920
  %v3969 = vpack.c.b16 %v3923, %v3921
  %v3970 = vpack.c.b16 %v3926, %v3924
  %v3971 = vpack.c.b16 %v3927, %v3925
  %v3972 = vpack.c.b16 %v3930, %v3928
  %v3973 = vpack.c.b16 %v3931, %v3929
  %v3974 = vpack.c.b16 %v3934, %v3932
  %v3975 = vpack.c.b16 %v3935, %v3933
  %v4017 = vsel %vm3734, %v3446, 0
  %4019 = vmatpush.bf16.msra.mxu0 %v3950
  %4020 = vmatpush.bf16.msra.mxu0 %v3948
  %4021 = vmatpush.bf16.msra.mxu0 %v3946
  %4022 = vmatpush.bf16.msra.mxu0 %v3944
  %4023 = vmatpush.bf16.msra.mxu0 %v3942
  %4024 = vmatpush.bf16.msra.mxu0 %v3940
  %4025 = vmatpush.bf16.msra.mxu0 %v3938
  %4026 = vmatpush.bf16.msra.mxu0 %v3936
  %4027 = vmatmul.bf16.gmra.mxu0 %v3444
  %v4028 = vpop.f32.mrf.mxu0
  %v4029 = vadd.f32 %v3774, %v4028
  %v4030 = vpop.f32.mrf.mxu0
  %4031 = vdwg.mxu0
  %4032 = vmatpush.bf16.msra.mxu0 %v3966
  %4033 = vmatpush.bf16.msra.mxu0 %v3964
  %4034 = vmatpush.bf16.msra.mxu0 %v3962
  %4035 = vmatpush.bf16.msra.mxu0 %v3960
  %4036 = vmatpush.bf16.msra.mxu0 %v3958
  %4037 = vmatpush.bf16.msra.mxu0 %v3956
  %4038 = vmatpush.bf16.msra.mxu0 %v3954
  %4039 = vmatpush.bf16.msra.mxu0 %v3952
  %4040 = vmatmul.bf16.gmra.mxu0 %v3445
  %v4041 = vpop.f32.mrf.mxu0
  %v4042 = vadd.f32 %v4029, %v4041
  %v4043 = vpop.f32.mrf.mxu0
  %4044 = vdwg.mxu0
  %4045 = vmatpush.bf16.msra.mxu0 0
  %4046 = vmatpush.bf16.msra.mxu0 0
  %4047 = vmatpush.bf16.msra.mxu0 0
  %4048 = vmatpush.bf16.msra.mxu0 0
  %4049 = vmatpush.bf16.msra.mxu0 %v3974
  %4050 = vmatpush.bf16.msra.mxu0 %v3972
  %4051 = vmatpush.bf16.msra.mxu0 %v3970
  %4052 = vmatpush.bf16.msra.mxu0 %v3968
  %4053 = vmatmul.bf16.gmra.mxu0 %v4017
  %v4054 = vpop.f32.mrf.mxu0
  %v4055 = vadd.f32 %v4042, %v4054
  %v4056 = vpop.f32.mrf.mxu0
  %4057 = vdwg.mxu0
  %4058 = vmatpush.bf16.msra.mxu0 %v3951
  %4059 = vmatpush.bf16.msra.mxu0 %v3949
  %4060 = vmatpush.bf16.msra.mxu0 %v3947
  %4061 = vmatpush.bf16.msra.mxu0 %v3945
  %4062 = vmatpush.bf16.msra.mxu0 %v3943
  %4063 = vmatpush.bf16.msra.mxu0 %v3941
  %4064 = vmatpush.bf16.msra.mxu0 %v3939
  %4065 = vmatpush.bf16.msra.mxu0 %v3937
  %4066 = vmatmul.bf16.gmra.mxu0 %v3444
  %v4067 = vpop.f32.mrf.mxu0
  %v4068 = vadd.f32 %v3813, %v4067
  %v4069 = vpop.f32.mrf.mxu0
  %4070 = vdwg.mxu0
  %4071 = vmatpush.bf16.msra.mxu0 %v3967
  %4072 = vmatpush.bf16.msra.mxu0 %v3965
  %4073 = vmatpush.bf16.msra.mxu0 %v3963
  %4074 = vmatpush.bf16.msra.mxu0 %v3961
  %4075 = vmatpush.bf16.msra.mxu0 %v3959
  %4076 = vmatpush.bf16.msra.mxu0 %v3957
  %4077 = vmatpush.bf16.msra.mxu0 %v3955
  %4078 = vmatpush.bf16.msra.mxu0 %v3953
  %4079 = vmatmul.bf16.gmra.mxu0 %v3445
  %v4080 = vpop.f32.mrf.mxu0
  %v4081 = vadd.f32 %v4068, %v4080
  %v4082 = vpop.f32.mrf.mxu0
  %4083 = vdwg.mxu0
  %4084 = vmatpush.bf16.msra.mxu0 0
  %4085 = vmatpush.bf16.msra.mxu0 0
  %4086 = vmatpush.bf16.msra.mxu0 0
  %4087 = vmatpush.bf16.msra.mxu0 0
  %4088 = vmatpush.bf16.msra.mxu0 %v3975
  %4089 = vmatpush.bf16.msra.mxu0 %v3973
  %4090 = vmatpush.bf16.msra.mxu0 %v3971
  %4091 = vmatpush.bf16.msra.mxu0 %v3969
  %4092 = vmatmul.bf16.gmra.mxu0 %v4017
  %v4093 = vpop.f32.mrf.mxu0
  %v4094 = vadd.f32 %v4081, %v4093
  %v4095 = vpop.f32.mrf.mxu0
  %4096 = vdwg.mxu0
  %v4097 = vld [vmem:[#allocation2] sm:$0x1e]
  %v4098 = vld [vmem:[#allocation2 + $0x8] sm:$0x1e]
  %v4099 = vld [vmem:[#allocation2 + $0x10] sm:$0x1e]
  %v4100 = vpack.c.bf16 %v4097, %v4097
  %v4101 = vpack.c.bf16 %v4098, %v4098
  %v4102 = vpack.c.bf16 %v4099, %v4099
  %s4103 = scalar_lea.vmem %s3, 640
  %v4104 = vld [vmem:[%s4103] sm:$0xff]
  %v4105 = vld [vmem:[%s4103 + $0x8] sm:$0xff]
  %v4106 = vld [vmem:[%s4103 + $0x10] sm:$0xff]
  %v4107 = vld [vmem:[%s4103 + $0x18] sm:$0xff]
  %v4108 = vld [vmem:[%s4103 + $0x20] sm:$0xff]
  %v4109 = vld [vmem:[%s4103 + $0x28] sm:$0xff]
  %v4110 = vld [vmem:[%s4103 + $0x30] sm:$0xff]
  %v4111 = vld [vmem:[%s4103 + $0x38] sm:$0xff]
  %v4112 = vld [vmem:[%s4103 + $0x40] sm:$0xff]
  %v4113 = vld [vmem:[%s4103 + $0x48] sm:$0xff]
  %v4114 = vld [vmem:[%s4103 + $0x50] sm:$0xff]
  %v4115 = vld [vmem:[%s4103 + $0x58] sm:$0xff]
  %v4116 = vld [vmem:[%s4103 + $0x60] sm:$0xff]
  %v4117 = vld [vmem:[%s4103 + $0x68] sm:$0xff]
  %v4118 = vld [vmem:[%s4103 + $0x70] sm:$0xff]
  %v4119 = vld [vmem:[%s4103 + $0x78] sm:$0xff]
  %v4120 = vld [vmem:[%s4103 + $0x80] sm:$0xff]
  %v4121 = vld [vmem:[%s4103 + $0x88] sm:$0xff]
  %v4122 = vld [vmem:[%s4103 + $0x90] sm:$0xff]
  %v4123 = vld [vmem:[%s4103 + $0x98] sm:$0xff]
  %v4124 = vld [vmem:[%s4103 + $0xa0] sm:$0xff]
  %v4125 = vld [vmem:[%s4103 + $0xa8] sm:$0xff]
  %v4126 = vld [vmem:[%s4103 + $0xb0] sm:$0xff]
  %v4127 = vld [vmem:[%s4103 + $0xb8] sm:$0xff]
  %v4128 = vld [vmem:[%s4103 + $0xc0] sm:$0xff]
  %v4129 = vld [vmem:[%s4103 + $0xc8] sm:$0xff]
  %v4130 = vld [vmem:[%s4103 + $0xd0] sm:$0xff]
  %v4131 = vld [vmem:[%s4103 + $0xd8] sm:$0xff]
  %v4132 = vld [vmem:[%s4103 + $0xe0] sm:$0xff]
  %v4133 = vld [vmem:[%s4103 + $0xe8] sm:$0xff]
  %v4134 = vld [vmem:[%s4103 + $0xf0] sm:$0xff]
  %v4135 = vld [vmem:[%s4103 + $0xf8] sm:$0xff]
  %v4136 = vld [vmem:[%s4103 + $0x100] sm:$0xff]
  %v4137 = vld [vmem:[%s4103 + $0x108] sm:$0xff]
  %v4138 = vld [vmem:[%s4103 + $0x110] sm:$0xff]
  %v4139 = vld [vmem:[%s4103 + $0x118] sm:$0xff]
  %v4140 = vld [vmem:[%s4103 + $0x120] sm:$0xff]
  %v4141 = vld [vmem:[%s4103 + $0x128] sm:$0xff]
  %v4142 = vld [vmem:[%s4103 + $0x130] sm:$0xff]
  %v4143 = vld [vmem:[%s4103 + $0x138] sm:$0xff]
  %v4145 = vshrl.u32 %v4100, 16
  %v4147 = vshll.u32 %v4100, 16
  %v4149 = vrot.slane %v4147, 1
  %v4150 = vor.u32 %v4145, %v4149
  %v4152 = vshrl.u32 %v4101, 16
  %v4154 = vshll.u32 %v4101, 16
  %v4156 = vrot.slane %v4154, 1
  %v4157 = vor.u32 %v4152, %v4156
  %v4159 = vshrl.u32 %v4102, 16
  %v4161 = vshll.u32 %v4102, 16
  %v4163 = vrot.slane %v4161, 1
  %v4164 = vor.u32 %v4159, %v4163
  %v4207 = vunpack.c.l.b16 %v4104
  %v4208 = vunpack.c.h.b16 %v4104
  %v4209 = vunpack.c.l.b16 %v4105
  %v4210 = vunpack.c.h.b16 %v4105
  %v4211 = vunpack.c.l.b16 %v4106
  %v4212 = vunpack.c.h.b16 %v4106
  %v4213 = vunpack.c.l.b16 %v4107
  %v4214 = vunpack.c.h.b16 %v4107
  %v4215 = vunpack.c.l.b16 %v4108
  %v4216 = vunpack.c.h.b16 %v4108
  %v4217 = vunpack.c.l.b16 %v4109
  %v4218 = vunpack.c.h.b16 %v4109
  %v4219 = vunpack.c.l.b16 %v4110
  %v4220 = vunpack.c.h.b16 %v4110
  %v4221 = vunpack.c.l.b16 %v4111
  %v4222 = vunpack.c.h.b16 %v4111
  %v4223 = vunpack.c.l.b16 %v4112
  %v4224 = vunpack.c.h.b16 %v4112
  %v4225 = vunpack.c.l.b16 %v4113
  %v4226 = vunpack.c.h.b16 %v4113
  %v4227 = vunpack.c.l.b16 %v4114
  %v4228 = vunpack.c.h.b16 %v4114
  %v4229 = vunpack.c.l.b16 %v4115
  %v4230 = vunpack.c.h.b16 %v4115
  %v4231 = vunpack.c.l.b16 %v4116
  %v4232 = vunpack.c.h.b16 %v4116
  %v4233 = vunpack.c.l.b16 %v4117
  %v4234 = vunpack.c.h.b16 %v4117
  %v4235 = vunpack.c.l.b16 %v4118
  %v4236 = vunpack.c.h.b16 %v4118
  %v4237 = vunpack.c.l.b16 %v4119
  %v4238 = vunpack.c.h.b16 %v4119
  %v4239 = vunpack.c.l.b16 %v4120
  %v4240 = vunpack.c.h.b16 %v4120
  %v4241 = vunpack.c.l.b16 %v4121
  %v4242 = vunpack.c.h.b16 %v4121
  %v4243 = vunpack.c.l.b16 %v4122
  %v4244 = vunpack.c.h.b16 %v4122
  %v4245 = vunpack.c.l.b16 %v4123
  %v4246 = vunpack.c.h.b16 %v4123
  %v4247 = vunpack.c.l.b16 %v4124
  %v4248 = vunpack.c.h.b16 %v4124
  %v4249 = vunpack.c.l.b16 %v4125
  %v4250 = vunpack.c.h.b16 %v4125
  %v4251 = vunpack.c.l.b16 %v4126
  %v4252 = vunpack.c.h.b16 %v4126
  %v4253 = vunpack.c.l.b16 %v4127
  %v4254 = vunpack.c.h.b16 %v4127
  %v4255 = vunpack.c.l.b16 %v4128
  %v4256 = vunpack.c.h.b16 %v4128
  %v4257 = vunpack.c.l.b16 %v4129
  %v4258 = vunpack.c.h.b16 %v4129
  %v4259 = vunpack.c.l.b16 %v4130
  %v4260 = vunpack.c.h.b16 %v4130
  %v4261 = vunpack.c.l.b16 %v4131
  %v4262 = vunpack.c.h.b16 %v4131
  %v4263 = vunpack.c.l.b16 %v4132
  %v4264 = vunpack.c.h.b16 %v4132
  %v4265 = vunpack.c.l.b16 %v4133
  %v4266 = vunpack.c.h.b16 %v4133
  %v4267 = vunpack.c.l.b16 %v4134
  %v4268 = vunpack.c.h.b16 %v4134
  %v4269 = vunpack.c.l.b16 %v4135
  %v4270 = vunpack.c.h.b16 %v4135
  %v4271 = vunpack.c.l.b16 %v4136
  %v4272 = vunpack.c.h.b16 %v4136
  %v4273 = vunpack.c.l.b16 %v4137
  %v4274 = vunpack.c.h.b16 %v4137
  %v4275 = vunpack.c.l.b16 %v4138
  %v4276 = vunpack.c.h.b16 %v4138
  %v4277 = vunpack.c.l.b16 %v4139
  %v4278 = vunpack.c.h.b16 %v4139
  %v4279 = vunpack.c.l.b16 %v4140
  %v4280 = vunpack.c.h.b16 %v4140
  %v4281 = vunpack.c.l.b16 %v4141
  %v4282 = vunpack.c.h.b16 %v4141
  %v4283 = vunpack.c.l.b16 %v4142
  %v4284 = vunpack.c.h.b16 %v4142
  %v4285 = vunpack.c.l.b16 %v4143
  %v4286 = vunpack.c.h.b16 %v4143
  %v4287 = vpack.c.b16 %v4209, %v4207
  %v4288 = vpack.c.b16 %v4210, %v4208
  %v4289 = vpack.c.b16 %v4213, %v4211
  %v4290 = vpack.c.b16 %v4214, %v4212
  %v4291 = vpack.c.b16 %v4217, %v4215
  %v4292 = vpack.c.b16 %v4218, %v4216
  %v4293 = vpack.c.b16 %v4221, %v4219
  %v4294 = vpack.c.b16 %v4222, %v4220
  %v4295 = vpack.c.b16 %v4225, %v4223
  %v4296 = vpack.c.b16 %v4226, %v4224
  %v4297 = vpack.c.b16 %v4229, %v4227
  %v4298 = vpack.c.b16 %v4230, %v4228
  %v4299 = vpack.c.b16 %v4233, %v4231
  %v4300 = vpack.c.b16 %v4234, %v4232
  %v4301 = vpack.c.b16 %v4237, %v4235
  %v4302 = vpack.c.b16 %v4238, %v4236
  %v4303 = vpack.c.b16 %v4241, %v4239
  %v4304 = vpack.c.b16 %v4242, %v4240
  %v4305 = vpack.c.b16 %v4245, %v4243
  %v4306 = vpack.c.b16 %v4246, %v4244
  %v4307 = vpack.c.b16 %v4249, %v4247
  %v4308 = vpack.c.b16 %v4250, %v4248
  %v4309 = vpack.c.b16 %v4253, %v4251
  %v4310 = vpack.c.b16 %v4254, %v4252
  %v4311 = vpack.c.b16 %v4257, %v4255
  %v4312 = vpack.c.b16 %v4258, %v4256
  %v4313 = vpack.c.b16 %v4261, %v4259
  %v4314 = vpack.c.b16 %v4262, %v4260
  %v4315 = vpack.c.b16 %v4265, %v4263
  %v4316 = vpack.c.b16 %v4266, %v4264
  %v4317 = vpack.c.b16 %v4269, %v4267
  %v4318 = vpack.c.b16 %v4270, %v4268
  %v4319 = vpack.c.b16 %v4273, %v4271
  %v4320 = vpack.c.b16 %v4274, %v4272
  %v4321 = vpack.c.b16 %v4277, %v4275
  %v4322 = vpack.c.b16 %v4278, %v4276
  %v4323 = vpack.c.b16 %v4281, %v4279
  %v4324 = vpack.c.b16 %v4282, %v4280
  %v4325 = vpack.c.b16 %v4285, %v4283
  %v4326 = vpack.c.b16 %v4286, %v4284
  %v4368 = vsel %vm3734, %v4164, 0
  %4370 = vmatpush.bf16.msra.mxu0 %v4301
  %4371 = vmatpush.bf16.msra.mxu0 %v4299
  %4372 = vmatpush.bf16.msra.mxu0 %v4297
  %4373 = vmatpush.bf16.msra.mxu0 %v4295
  %4374 = vmatpush.bf16.msra.mxu0 %v4293
  %4375 = vmatpush.bf16.msra.mxu0 %v4291
  %4376 = vmatpush.bf16.msra.mxu0 %v4289
  %4377 = vmatpush.bf16.msra.mxu0 %v4287
  %4378 = vmatmul.bf16.gmra.mxu0 %v4150
  %v4379 = vpop.f32.mrf.mxu0
  %v4380 = vadd.f32 0.0, %v4379
  %v4381 = vpop.f32.mrf.mxu0
  %4382 = vdwg.mxu0
  %4383 = vmatpush.bf16.msra.mxu0 %v4317
  %4384 = vmatpush.bf16.msra.mxu0 %v4315
  %4385 = vmatpush.bf16.msra.mxu0 %v4313
  %4386 = vmatpush.bf16.msra.mxu0 %v4311
  %4387 = vmatpush.bf16.msra.mxu0 %v4309
  %4388 = vmatpush.bf16.msra.mxu0 %v4307
  %4389 = vmatpush.bf16.msra.mxu0 %v4305
  %4390 = vmatpush.bf16.msra.mxu0 %v4303
  %4391 = vmatmul.bf16.gmra.mxu0 %v4157
  %v4392 = vpop.f32.mrf.mxu0
  %v4393 = vadd.f32 %v4380, %v4392
  %v4394 = vpop.f32.mrf.mxu0
  %4395 = vdwg.mxu0
  %4396 = vmatpush.bf16.msra.mxu0 0
  %4397 = vmatpush.bf16.msra.mxu0 0
  %4398 = vmatpush.bf16.msra.mxu0 0
  %4399 = vmatpush.bf16.msra.mxu0 0
  %4400 = vmatpush.bf16.msra.mxu0 %v4325
  %4401 = vmatpush.bf16.msra.mxu0 %v4323
  %4402 = vmatpush.bf16.msra.mxu0 %v4321
  %4403 = vmatpush.bf16.msra.mxu0 %v4319
  %4404 = vmatmul.bf16.gmra.mxu0 %v4368
  %v4405 = vpop.f32.mrf.mxu0
  %v4406 = vadd.f32 %v4393, %v4405
  %v4407 = vpop.f32.mrf.mxu0
  %4408 = vdwg.mxu0
  %4409 = vmatpush.bf16.msra.mxu0 %v4302
  %4410 = vmatpush.bf16.msra.mxu0 %v4300
  %4411 = vmatpush.bf16.msra.mxu0 %v4298
  %4412 = vmatpush.bf16.msra.mxu0 %v4296
  %4413 = vmatpush.bf16.msra.mxu0 %v4294
  %4414 = vmatpush.bf16.msra.mxu0 %v4292
  %4415 = vmatpush.bf16.msra.mxu0 %v4290
  %4416 = vmatpush.bf16.msra.mxu0 %v4288
  %4417 = vmatmul.bf16.gmra.mxu0 %v4150
  %v4418 = vpop.f32.mrf.mxu0
  %v4419 = vadd.f32 0.0, %v4418
  %v4420 = vpop.f32.mrf.mxu0
  %4421 = vdwg.mxu0
  %4422 = vmatpush.bf16.msra.mxu0 %v4318
  %4423 = vmatpush.bf16.msra.mxu0 %v4316
  %4424 = vmatpush.bf16.msra.mxu0 %v4314
  %4425 = vmatpush.bf16.msra.mxu0 %v4312
  %4426 = vmatpush.bf16.msra.mxu0 %v4310
  %4427 = vmatpush.bf16.msra.mxu0 %v4308
  %4428 = vmatpush.bf16.msra.mxu0 %v4306
  %4429 = vmatpush.bf16.msra.mxu0 %v4304
  %4430 = vmatmul.bf16.gmra.mxu0 %v4157
  %v4431 = vpop.f32.mrf.mxu0
  %v4432 = vadd.f32 %v4419, %v4431
  %v4433 = vpop.f32.mrf.mxu0
  %4434 = vdwg.mxu0
  %4435 = vmatpush.bf16.msra.mxu0 0
  %4436 = vmatpush.bf16.msra.mxu0 0
  %4437 = vmatpush.bf16.msra.mxu0 0
  %4438 = vmatpush.bf16.msra.mxu0 0
  %4439 = vmatpush.bf16.msra.mxu0 %v4326
  %4440 = vmatpush.bf16.msra.mxu0 %v4324
  %4441 = vmatpush.bf16.msra.mxu0 %v4322
  %4442 = vmatpush.bf16.msra.mxu0 %v4320
  %4443 = vmatmul.bf16.gmra.mxu0 %v4368
  %v4444 = vpop.f32.mrf.mxu0
  %v4445 = vadd.f32 %v4432, %v4444
  %v4446 = vpop.f32.mrf.mxu0
  %4447 = vdwg.mxu0
  %v4448 = vadd.f32 %v4055, %v4406
  %v4449 = vadd.f32 %v4094, %v4445
  %v4450 = vld [vmem:[%s3270] sm:$0x1e]
  %v4451 = vld [vmem:[%s3270 + $0x8] sm:$0x1e]
  %v4452 = vld [vmem:[%s3270 + $0x10] sm:$0x1e]
  %v4453 = vpack.c.bf16 %v4450, %v4450
  %v4454 = vpack.c.bf16 %v4451, %v4451
  %v4455 = vpack.c.bf16 %v4452, %v4452
  %s4456 = scalar_lea.vmem %s3, 960
  %v4457 = vld [vmem:[%s4456] sm:$0xff]
  %v4458 = vld [vmem:[%s4456 + $0x8] sm:$0xff]
  %v4459 = vld [vmem:[%s4456 + $0x10] sm:$0xff]
  %v4460 = vld [vmem:[%s4456 + $0x18] sm:$0xff]
  %v4461 = vld [vmem:[%s4456 + $0x20] sm:$0xff]
  %v4462 = vld [vmem:[%s4456 + $0x28] sm:$0xff]
  %v4463 = vld [vmem:[%s4456 + $0x30] sm:$0xff]
  %v4464 = vld [vmem:[%s4456 + $0x38] sm:$0xff]
  %v4465 = vld [vmem:[%s4456 + $0x40] sm:$0xff]
  %v4466 = vld [vmem:[%s4456 + $0x48] sm:$0xff]
  %v4467 = vld [vmem:[%s4456 + $0x50] sm:$0xff]
  %v4468 = vld [vmem:[%s4456 + $0x58] sm:$0xff]
  %v4469 = vld [vmem:[%s4456 + $0x60] sm:$0xff]
  %v4470 = vld [vmem:[%s4456 + $0x68] sm:$0xff]
  %v4471 = vld [vmem:[%s4456 + $0x70] sm:$0xff]
  %v4472 = vld [vmem:[%s4456 + $0x78] sm:$0xff]
  %v4473 = vld [vmem:[%s4456 + $0x80] sm:$0xff]
  %v4474 = vld [vmem:[%s4456 + $0x88] sm:$0xff]
  %v4475 = vld [vmem:[%s4456 + $0x90] sm:$0xff]
  %v4476 = vld [vmem:[%s4456 + $0x98] sm:$0xff]
  %v4477 = vld [vmem:[%s4456 + $0xa0] sm:$0xff]
  %v4478 = vld [vmem:[%s4456 + $0xa8] sm:$0xff]
  %v4479 = vld [vmem:[%s4456 + $0xb0] sm:$0xff]
  %v4480 = vld [vmem:[%s4456 + $0xb8] sm:$0xff]
  %v4481 = vld [vmem:[%s4456 + $0xc0] sm:$0xff]
  %v4482 = vld [vmem:[%s4456 + $0xc8] sm:$0xff]
  %v4483 = vld [vmem:[%s4456 + $0xd0] sm:$0xff]
  %v4484 = vld [vmem:[%s4456 + $0xd8] sm:$0xff]
  %v4485 = vld [vmem:[%s4456 + $0xe0] sm:$0xff]
  %v4486 = vld [vmem:[%s4456 + $0xe8] sm:$0xff]
  %v4487 = vld [vmem:[%s4456 + $0xf0] sm:$0xff]
  %v4488 = vld [vmem:[%s4456 + $0xf8] sm:$0xff]
  %v4489 = vld [vmem:[%s4456 + $0x100] sm:$0xff]
  %v4490 = vld [vmem:[%s4456 + $0x108] sm:$0xff]
  %v4491 = vld [vmem:[%s4456 + $0x110] sm:$0xff]
  %v4492 = vld [vmem:[%s4456 + $0x118] sm:$0xff]
  %v4493 = vld [vmem:[%s4456 + $0x120] sm:$0xff]
  %v4494 = vld [vmem:[%s4456 + $0x128] sm:$0xff]
  %v4495 = vld [vmem:[%s4456 + $0x130] sm:$0xff]
  %v4496 = vld [vmem:[%s4456 + $0x138] sm:$0xff]
  %v4498 = vshrl.u32 %v4453, 16
  %v4500 = vshll.u32 %v4453, 16
  %v4502 = vrot.slane %v4500, 1
  %v4503 = vor.u32 %v4498, %v4502
  %v4505 = vshrl.u32 %v4454, 16
  %v4507 = vshll.u32 %v4454, 16
  %v4509 = vrot.slane %v4507, 1
  %v4510 = vor.u32 %v4505, %v4509
  %v4512 = vshrl.u32 %v4455, 16
  %v4514 = vshll.u32 %v4455, 16
  %v4516 = vrot.slane %v4514, 1
  %v4517 = vor.u32 %v4512, %v4516
  %v4560 = vunpack.c.l.b16 %v4457
  %v4561 = vunpack.c.h.b16 %v4457
  %v4562 = vunpack.c.l.b16 %v4458
  %v4563 = vunpack.c.h.b16 %v4458
  %v4564 = vunpack.c.l.b16 %v4459
  %v4565 = vunpack.c.h.b16 %v4459
  %v4566 = vunpack.c.l.b16 %v4460
  %v4567 = vunpack.c.h.b16 %v4460
  %v4568 = vunpack.c.l.b16 %v4461
  %v4569 = vunpack.c.h.b16 %v4461
  %v4570 = vunpack.c.l.b16 %v4462
  %v4571 = vunpack.c.h.b16 %v4462
  %v4572 = vunpack.c.l.b16 %v4463
  %v4573 = vunpack.c.h.b16 %v4463
  %v4574 = vunpack.c.l.b16 %v4464
  %v4575 = vunpack.c.h.b16 %v4464
  %v4576 = vunpack.c.l.b16 %v4465
  %v4577 = vunpack.c.h.b16 %v4465
  %v4578 = vunpack.c.l.b16 %v4466
  %v4579 = vunpack.c.h.b16 %v4466
  %v4580 = vunpack.c.l.b16 %v4467
  %v4581 = vunpack.c.h.b16 %v4467
  %v4582 = vunpack.c.l.b16 %v4468
  %v4583 = vunpack.c.h.b16 %v4468
  %v4584 = vunpack.c.l.b16 %v4469
  %v4585 = vunpack.c.h.b16 %v4469
  %v4586 = vunpack.c.l.b16 %v4470
  %v4587 = vunpack.c.h.b16 %v4470
  %v4588 = vunpack.c.l.b16 %v4471
  %v4589 = vunpack.c.h.b16 %v4471
  %v4590 = vunpack.c.l.b16 %v4472
  %v4591 = vunpack.c.h.b16 %v4472
  %v4592 = vunpack.c.l.b16 %v4473
  %v4593 = vunpack.c.h.b16 %v4473
  %v4594 = vunpack.c.l.b16 %v4474
  %v4595 = vunpack.c.h.b16 %v4474
  %v4596 = vunpack.c.l.b16 %v4475
  %v4597 = vunpack.c.h.b16 %v4475
  %v4598 = vunpack.c.l.b16 %v4476
  %v4599 = vunpack.c.h.b16 %v4476
  %v4600 = vunpack.c.l.b16 %v4477
  %v4601 = vunpack.c.h.b16 %v4477
  %v4602 = vunpack.c.l.b16 %v4478
  %v4603 = vunpack.c.h.b16 %v4478
  %v4604 = vunpack.c.l.b16 %v4479
  %v4605 = vunpack.c.h.b16 %v4479
  %v4606 = vunpack.c.l.b16 %v4480
  %v4607 = vunpack.c.h.b16 %v4480
  %v4608 = vunpack.c.l.b16 %v4481
  %v4609 = vunpack.c.h.b16 %v4481
  %v4610 = vunpack.c.l.b16 %v4482
  %v4611 = vunpack.c.h.b16 %v4482
  %v4612 = vunpack.c.l.b16 %v4483
  %v4613 = vunpack.c.h.b16 %v4483
  %v4614 = vunpack.c.l.b16 %v4484
  %v4615 = vunpack.c.h.b16 %v4484
  %v4616 = vunpack.c.l.b16 %v4485
  %v4617 = vunpack.c.h.b16 %v4485
  %v4618 = vunpack.c.l.b16 %v4486
  %v4619 = vunpack.c.h.b16 %v4486
  %v4620 = vunpack.c.l.b16 %v4487
  %v4621 = vunpack.c.h.b16 %v4487
  %v4622 = vunpack.c.l.b16 %v4488
  %v4623 = vunpack.c.h.b16 %v4488
  %v4624 = vunpack.c.l.b16 %v4489
  %v4625 = vunpack.c.h.b16 %v4489
  %v4626 = vunpack.c.l.b16 %v4490
  %v4627 = vunpack.c.h.b16 %v4490
  %v4628 = vunpack.c.l.b16 %v4491
  %v4629 = vunpack.c.h.b16 %v4491
  %v4630 = vunpack.c.l.b16 %v4492
  %v4631 = vunpack.c.h.b16 %v4492
  %v4632 = vunpack.c.l.b16 %v4493
  %v4633 = vunpack.c.h.b16 %v4493
  %v4634 = vunpack.c.l.b16 %v4494
  %v4635 = vunpack.c.h.b16 %v4494
  %v4636 = vunpack.c.l.b16 %v4495
  %v4637 = vunpack.c.h.b16 %v4495
  %v4638 = vunpack.c.l.b16 %v4496
  %v4639 = vunpack.c.h.b16 %v4496
  %v4640 = vpack.c.b16 %v4562, %v4560
  %v4641 = vpack.c.b16 %v4563, %v4561
  %v4642 = vpack.c.b16 %v4566, %v4564
  %v4643 = vpack.c.b16 %v4567, %v4565
  %v4644 = vpack.c.b16 %v4570, %v4568
  %v4645 = vpack.c.b16 %v4571, %v4569
  %v4646 = vpack.c.b16 %v4574, %v4572
  %v4647 = vpack.c.b16 %v4575, %v4573
  %v4648 = vpack.c.b16 %v4578, %v4576
  %v4649 = vpack.c.b16 %v4579, %v4577
  %v4650 = vpack.c.b16 %v4582, %v4580
  %v4651 = vpack.c.b16 %v4583, %v4581
  %v4652 = vpack.c.b16 %v4586, %v4584
  %v4653 = vpack.c.b16 %v4587, %v4585
  %v4654 = vpack.c.b16 %v4590, %v4588
  %v4655 = vpack.c.b16 %v4591, %v4589
  %v4656 = vpack.c.b16 %v4594, %v4592
  %v4657 = vpack.c.b16 %v4595, %v4593
  %v4658 = vpack.c.b16 %v4598, %v4596
  %v4659 = vpack.c.b16 %v4599, %v4597
  %v4660 = vpack.c.b16 %v4602, %v4600
  %v4661 = vpack.c.b16 %v4603, %v4601
  %v4662 = vpack.c.b16 %v4606, %v4604
  %v4663 = vpack.c.b16 %v4607, %v4605
  %v4664 = vpack.c.b16 %v4610, %v4608
  %v4665 = vpack.c.b16 %v4611, %v4609
  %v4666 = vpack.c.b16 %v4614, %v4612
  %v4667 = vpack.c.b16 %v4615, %v4613
  %v4668 = vpack.c.b16 %v4618, %v4616
  %v4669 = vpack.c.b16 %v4619, %v4617
  %v4670 = vpack.c.b16 %v4622, %v4620
  %v4671 = vpack.c.b16 %v4623, %v4621
  %v4672 = vpack.c.b16 %v4626, %v4624
  %v4673 = vpack.c.b16 %v4627, %v4625
  %v4674 = vpack.c.b16 %v4630, %v4628
  %v4675 = vpack.c.b16 %v4631, %v4629
  %v4676 = vpack.c.b16 %v4634, %v4632
  %v4677 = vpack.c.b16 %v4635, %v4633
  %v4678 = vpack.c.b16 %v4638, %v4636
  %v4679 = vpack.c.b16 %v4639, %v4637
  %v4721 = vsel %vm3734, %v4517, 0
  %4723 = vmatpush.bf16.msra.mxu0 %v4654
  %4724 = vmatpush.bf16.msra.mxu0 %v4652
  %4725 = vmatpush.bf16.msra.mxu0 %v4650
  %4726 = vmatpush.bf16.msra.mxu0 %v4648
  %4727 = vmatpush.bf16.msra.mxu0 %v4646
  %4728 = vmatpush.bf16.msra.mxu0 %v4644
  %4729 = vmatpush.bf16.msra.mxu0 %v4642
  %4730 = vmatpush.bf16.msra.mxu0 %v4640
  %4731 = vmatmul.bf16.gmra.mxu0 %v4503
  %v4732 = vpop.f32.mrf.mxu0
  %v4733 = vadd.f32 0.0, %v4732
  %v4734 = vpop.f32.mrf.mxu0
  %4735 = vdwg.mxu0
  %4736 = vmatpush.bf16.msra.mxu0 %v4670
  %4737 = vmatpush.bf16.msra.mxu0 %v4668
  %4738 = vmatpush.bf16.msra.mxu0 %v4666
  %4739 = vmatpush.bf16.msra.mxu0 %v4664
  %4740 = vmatpush.bf16.msra.mxu0 %v4662
  %4741 = vmatpush.bf16.msra.mxu0 %v4660
  %4742 = vmatpush.bf16.msra.mxu0 %v4658
  %4743 = vmatpush.bf16.msra.mxu0 %v4656
  %4744 = vmatmul.bf16.gmra.mxu0 %v4510
  %v4745 = vpop.f32.mrf.mxu0
  %v4746 = vadd.f32 %v4733, %v4745
  %v4747 = vpop.f32.mrf.mxu0
  %4748 = vdwg.mxu0
  %4749 = vmatpush.bf16.msra.mxu0 0
  %4750 = vmatpush.bf16.msra.mxu0 0
  %4751 = vmatpush.bf16.msra.mxu0 0
  %4752 = vmatpush.bf16.msra.mxu0 0
  %4753 = vmatpush.bf16.msra.mxu0 %v4678
  %4754 = vmatpush.bf16.msra.mxu0 %v4676
  %4755 = vmatpush.bf16.msra.mxu0 %v4674
  %4756 = vmatpush.bf16.msra.mxu0 %v4672
  %4757 = vmatmul.bf16.gmra.mxu0 %v4721
  %v4758 = vpop.f32.mrf.mxu0
  %v4759 = vadd.f32 %v4746, %v4758
  %v4760 = vpop.f32.mrf.mxu0
  %4761 = vdwg.mxu0
  %4762 = vmatpush.bf16.msra.mxu0 %v4655
  %4763 = vmatpush.bf16.msra.mxu0 %v4653
  %4764 = vmatpush.bf16.msra.mxu0 %v4651
  %4765 = vmatpush.bf16.msra.mxu0 %v4649
  %4766 = vmatpush.bf16.msra.mxu0 %v4647
  %4767 = vmatpush.bf16.msra.mxu0 %v4645
  %4768 = vmatpush.bf16.msra.mxu0 %v4643
  %4769 = vmatpush.bf16.msra.mxu0 %v4641
  %4770 = vmatmul.bf16.gmra.mxu0 %v4503
  %v4771 = vpop.f32.mrf.mxu0
  %v4772 = vadd.f32 0.0, %v4771
  %v4773 = vpop.f32.mrf.mxu0
  %4774 = vdwg.mxu0
  %4775 = vmatpush.bf16.msra.mxu0 %v4671
  %4776 = vmatpush.bf16.msra.mxu0 %v4669
  %4777 = vmatpush.bf16.msra.mxu0 %v4667
  %4778 = vmatpush.bf16.msra.mxu0 %v4665
  %4779 = vmatpush.bf16.msra.mxu0 %v4663
  %4780 = vmatpush.bf16.msra.mxu0 %v4661
  %4781 = vmatpush.bf16.msra.mxu0 %v4659
  %4782 = vmatpush.bf16.msra.mxu0 %v4657
  %4783 = vmatmul.bf16.gmra.mxu0 %v4510
  %v4784 = vpop.f32.mrf.mxu0
  %v4785 = vadd.f32 %v4772, %v4784
  %v4786 = vpop.f32.mrf.mxu0
  %4787 = vdwg.mxu0
  %4788 = vmatpush.bf16.msra.mxu0 0
  %4789 = vmatpush.bf16.msra.mxu0 0
  %4790 = vmatpush.bf16.msra.mxu0 0
  %4791 = vmatpush.bf16.msra.mxu0 0
  %4792 = vmatpush.bf16.msra.mxu0 %v4679
  %4793 = vmatpush.bf16.msra.mxu0 %v4677
  %4794 = vmatpush.bf16.msra.mxu0 %v4675
  %4795 = vmatpush.bf16.msra.mxu0 %v4673
  %4796 = vmatmul.bf16.gmra.mxu0 %v4721
  %v4797 = vpop.f32.mrf.mxu0
  %v4798 = vadd.f32 %v4785, %v4797
  %v4799 = vpop.f32.mrf.mxu0
  %4800 = vdwg.mxu0
  %v4801 = vadd.f32 %v4448, %v4759
  %v4802 = vadd.f32 %v4449, %v4798
  %v4803 = vld [vmem:[%s4] sm:$0x3]
  %v4805 = vperm.slane %v4803, 0
  %v4806 = vperm.slane %v4803, 1
  %v4809 = vadd.f32 %v4801, %v4805
  %v4810 = vadd.f32 %v4802, %v4806
  %v4811 = vmax.f32 %v4809, 0.0
  %v4812 = vmax.f32 %v4810, 0.0
  %v4813 = vpack.c.bf16 %v4811, %v4811
  %v4814 = vpack.c.bf16 %v4812, %v4812
  %v4815 = vld [vmem:[%s5] sm:$0xf]
  %v4816 = vld [vmem:[%s5 + $0x4] sm:$0xf]
  %v4817 = vld [vmem:[%s5 + $0x8] sm:$0xf]
  %v4818 = vld [vmem:[%s5 + $0xc] sm:$0xf]
  %v4819 = vld [vmem:[%s5 + $0x10] sm:$0xf]
  %v4820 = vld [vmem:[%s5 + $0x14] sm:$0xf]
  %v4821 = vld [vmem:[%s5 + $0x18] sm:$0xf]
  %v4822 = vld [vmem:[%s5 + $0x1c] sm:$0xf]
  %v4823 = vld [vmem:[%s5 + $0x20] sm:$0xf]
  %v4824 = vld [vmem:[%s5 + $0x24] sm:$0xf]
  %v4825 = vld [vmem:[%s5 + $0x28] sm:$0xf]
  %v4826 = vld [vmem:[%s5 + $0x2c] sm:$0xf]
  %v4827 = vld [vmem:[%s5 + $0x30] sm:$0xf]
  %v4828 = vld [vmem:[%s5 + $0x34] sm:$0xf]
  %v4829 = vld [vmem:[%s5 + $0x38] sm:$0xf]
  %v4830 = vld [vmem:[%s5 + $0x3c] sm:$0xf]
  %v4831 = vld [vmem:[%s5 + $0x40] sm:$0xf]
  %v4832 = vld [vmem:[%s5 + $0x44] sm:$0xf]
  %v4833 = vld [vmem:[%s5 + $0x48] sm:$0xf]
  %v4834 = vld [vmem:[%s5 + $0x4c] sm:$0xf]
  %v4835 = vld [vmem:[%s5 + $0x50] sm:$0xf]
  %v4836 = vld [vmem:[%s5 + $0x54] sm:$0xf]
  %v4837 = vld [vmem:[%s5 + $0x58] sm:$0xf]
  %v4838 = vld [vmem:[%s5 + $0x5c] sm:$0xf]
  %v4839 = vld [vmem:[%s5 + $0x60] sm:$0xf]
  %v4840 = vld [vmem:[%s5 + $0x64] sm:$0xf]
  %v4841 = vld [vmem:[%s5 + $0x68] sm:$0xf]
  %v4842 = vld [vmem:[%s5 + $0x6c] sm:$0xf]
  %v4843 = vld [vmem:[%s5 + $0x70] sm:$0xf]
  %v4844 = vld [vmem:[%s5 + $0x74] sm:$0xf]
  %v4845 = vld [vmem:[%s5 + $0x78] sm:$0xf]
  %v4846 = vld [vmem:[%s5 + $0x7c] sm:$0xf]
  %s4847 = scalar_lea.vmem %s5, 128
  %v4848 = vld [vmem:[%s4847] sm:$0xf]
  %v4849 = vld [vmem:[%s4847 + $0x4] sm:$0xf]
  %v4850 = vld [vmem:[%s4847 + $0x8] sm:$0xf]
  %v4851 = vld [vmem:[%s4847 + $0xc] sm:$0xf]
  %v4852 = vld [vmem:[%s4847 + $0x10] sm:$0xf]
  %v4853 = vld [vmem:[%s4847 + $0x14] sm:$0xf]
  %v4854 = vld [vmem:[%s4847 + $0x18] sm:$0xf]
  %v4855 = vld [vmem:[%s4847 + $0x1c] sm:$0xf]
  %v4856 = vld [vmem:[%s4847 + $0x20] sm:$0xf]
  %v4857 = vld [vmem:[%s4847 + $0x24] sm:$0xf]
  %v4858 = vld [vmem:[%s4847 + $0x28] sm:$0xf]
  %v4859 = vld [vmem:[%s4847 + $0x2c] sm:$0xf]
  %v4860 = vld [vmem:[%s4847 + $0x30] sm:$0xf]
  %v4861 = vld [vmem:[%s4847 + $0x34] sm:$0xf]
  %v4862 = vld [vmem:[%s4847 + $0x38] sm:$0xf]
  %v4863 = vld [vmem:[%s4847 + $0x3c] sm:$0xf]
  %v4864 = vld [vmem:[%s4847 + $0x40] sm:$0xf]
  %v4865 = vld [vmem:[%s4847 + $0x44] sm:$0xf]
  %v4866 = vld [vmem:[%s4847 + $0x48] sm:$0xf]
  %v4867 = vld [vmem:[%s4847 + $0x4c] sm:$0xf]
  %v4868 = vld [vmem:[%s4847 + $0x50] sm:$0xf]
  %v4869 = vld [vmem:[%s4847 + $0x54] sm:$0xf]
  %v4870 = vld [vmem:[%s4847 + $0x58] sm:$0xf]
  %v4871 = vld [vmem:[%s4847 + $0x5c] sm:$0xf]
  %v4872 = vld [vmem:[%s4847 + $0x60] sm:$0xf]
  %v4873 = vld [vmem:[%s4847 + $0x64] sm:$0xf]
  %v4874 = vld [vmem:[%s4847 + $0x68] sm:$0xf]
  %v4875 = vld [vmem:[%s4847 + $0x6c] sm:$0xf]
  %v4876 = vld [vmem:[%s4847 + $0x70] sm:$0xf]
  %v4877 = vld [vmem:[%s4847 + $0x74] sm:$0xf]
  %v4878 = vld [vmem:[%s4847 + $0x78] sm:$0xf]
  %v4879 = vld [vmem:[%s4847 + $0x7c] sm:$0xf]
  %v4881 = vshrl.u32 %v4813, 16
  %v4883 = vshll.u32 %v4813, 16
  %v4885 = vrot.slane %v4883, 1
  %v4886 = vor.u32 %v4881, %v4885
  %v4888 = vshrl.u32 %v4814, 16
  %v4890 = vshll.u32 %v4814, 16
  %v4892 = vrot.slane %v4890, 1
  %v4893 = vor.u32 %v4888, %v4892
  %v4928 = vunpack.c.l.b16 %v4848
  %v4929 = vunpack.c.l.b16 %v4849
  %v4930 = vunpack.c.l.b16 %v4850
  %v4931 = vunpack.c.l.b16 %v4851
  %v4932 = vunpack.c.l.b16 %v4852
  %v4933 = vunpack.c.l.b16 %v4853
  %v4934 = vunpack.c.l.b16 %v4854
  %v4935 = vunpack.c.l.b16 %v4855
  %v4936 = vunpack.c.l.b16 %v4856
  %v4937 = vunpack.c.l.b16 %v4857
  %v4938 = vunpack.c.l.b16 %v4858
  %v4939 = vunpack.c.l.b16 %v4859
  %v4940 = vunpack.c.l.b16 %v4860
  %v4941 = vunpack.c.l.b16 %v4861
  %v4942 = vunpack.c.l.b16 %v4862
  %v4943 = vunpack.c.l.b16 %v4863
  %v4944 = vunpack.c.l.b16 %v4864
  %v4945 = vunpack.c.l.b16 %v4865
  %v4946 = vunpack.c.l.b16 %v4866
  %v4947 = vunpack.c.l.b16 %v4867
  %v4948 = vunpack.c.l.b16 %v4868
  %v4949 = vunpack.c.l.b16 %v4869
  %v4950 = vunpack.c.l.b16 %v4870
  %v4951 = vunpack.c.l.b16 %v4871
  %v4952 = vunpack.c.l.b16 %v4872
  %v4953 = vunpack.c.l.b16 %v4873
  %v4954 = vunpack.c.l.b16 %v4874
  %v4955 = vunpack.c.l.b16 %v4875
  %v4956 = vunpack.c.l.b16 %v4876
  %v4957 = vunpack.c.l.b16 %v4877
  %v4958 = vunpack.c.l.b16 %v4878
  %v4959 = vunpack.c.l.b16 %v4879
  %v4960 = vpack.c.b16 %v4929, %v4928
  %v4961 = vpack.c.b16 %v4931, %v4930
  %v4962 = vpack.c.b16 %v4933, %v4932
  %v4963 = vpack.c.b16 %v4935, %v4934
  %v4964 = vpack.c.b16 %v4937, %v4936
  %v4965 = vpack.c.b16 %v4939, %v4938
  %v4966 = vpack.c.b16 %v4941, %v4940
  %v4967 = vpack.c.b16 %v4943, %v4942
  %v4968 = vpack.c.b16 %v4945, %v4944
  %v4969 = vpack.c.b16 %v4947, %v4946
  %v4970 = vpack.c.b16 %v4949, %v4948
  %v4971 = vpack.c.b16 %v4951, %v4950
  %v4972 = vpack.c.b16 %v4953, %v4952
  %v4973 = vpack.c.b16 %v4955, %v4954
  %v4974 = vpack.c.b16 %v4957, %v4956
  %v4975 = vpack.c.b16 %v4959, %v4958
  %4992 = vmatpush.bf16.msra.mxu0 %v4967
  %4993 = vmatpush.bf16.msra.mxu0 %v4966
  %4994 = vmatpush.bf16.msra.mxu0 %v4965
  %4995 = vmatpush.bf16.msra.mxu0 %v4964
  %4996 = vmatpush.bf16.msra.mxu0 %v4963
  %4997 = vmatpush.bf16.msra.mxu0 %v4962
  %4998 = vmatpush.bf16.msra.mxu0 %v4961
  %4999 = vmatpush.bf16.msra.mxu0 %v4960
  %5000 = vmatmul.bf16.gmra.mxu0 %v4886
  %v5001 = vpop.f32.mrf.mxu0
  %v5002 = vadd.f32 0.0, %v5001
  %v5003 = vpop.f32.mrf.mxu0
  %5004 = vdwg.mxu0
  %5005 = vmatpush.bf16.msra.mxu0 %v4975
  %5006 = vmatpush.bf16.msra.mxu0 %v4974
  %5007 = vmatpush.bf16.msra.mxu0 %v4973
  %5008 = vmatpush.bf16.msra.mxu0 %v4972
  %5009 = vmatpush.bf16.msra.mxu0 %v4971
  %5010 = vmatpush.bf16.msra.mxu0 %v4970
  %5011 = vmatpush.bf16.msra.mxu0 %v4969
  %5012 = vmatpush.bf16.msra.mxu0 %v4968
  %5013 = vmatmul.bf16.gmra.mxu0 %v4893
  %v5014 = vpop.f32.mrf.mxu0
  %v5015 = vadd.f32 %v5002, %v5014
  %v5016 = vpop.f32.mrf.mxu0
  %5017 = vdwg.mxu0
  %v5050 = vunpack.c.l.b16 %v4815
  %v5051 = vunpack.c.l.b16 %v4816
  %v5052 = vunpack.c.l.b16 %v4817
  %v5053 = vunpack.c.l.b16 %v4818
  %v5054 = vunpack.c.l.b16 %v4819
  %v5055 = vunpack.c.l.b16 %v4820
  %v5056 = vunpack.c.l.b16 %v4821
  %v5057 = vunpack.c.l.b16 %v4822
  %v5058 = vunpack.c.l.b16 %v4823
  %v5059 = vunpack.c.l.b16 %v4824
  %v5060 = vunpack.c.l.b16 %v4825
  %v5061 = vunpack.c.l.b16 %v4826
  %v5062 = vunpack.c.l.b16 %v4827
  %v5063 = vunpack.c.l.b16 %v4828
  %v5064 = vunpack.c.l.b16 %v4829
  %v5065 = vunpack.c.l.b16 %v4830
  %v5066 = vunpack.c.l.b16 %v4831
  %v5067 = vunpack.c.l.b16 %v4832
  %v5068 = vunpack.c.l.b16 %v4833
  %v5069 = vunpack.c.l.b16 %v4834
  %v5070 = vunpack.c.l.b16 %v4835
  %v5071 = vunpack.c.l.b16 %v4836
  %v5072 = vunpack.c.l.b16 %v4837
  %v5073 = vunpack.c.l.b16 %v4838
  %v5074 = vunpack.c.l.b16 %v4839
  %v5075 = vunpack.c.l.b16 %v4840
  %v5076 = vunpack.c.l.b16 %v4841
  %v5077 = vunpack.c.l.b16 %v4842
  %v5078 = vunpack.c.l.b16 %v4843
  %v5079 = vunpack.c.l.b16 %v4844
  %v5080 = vunpack.c.l.b16 %v4845
  %v5081 = vunpack.c.l.b16 %v4846
  %v5082 = vpack.c.b16 %v5051, %v5050
  %v5083 = vpack.c.b16 %v5053, %v5052
  %v5084 = vpack.c.b16 %v5055, %v5054
  %v5085 = vpack.c.b16 %v5057, %v5056
  %v5086 = vpack.c.b16 %v5059, %v5058
  %v5087 = vpack.c.b16 %v5061, %v5060
  %v5088 = vpack.c.b16 %v5063, %v5062
  %v5089 = vpack.c.b16 %v5065, %v5064
  %v5090 = vpack.c.b16 %v5067, %v5066
  %v5091 = vpack.c.b16 %v5069, %v5068
  %v5092 = vpack.c.b16 %v5071, %v5070
  %v5093 = vpack.c.b16 %v5073, %v5072
  %v5094 = vpack.c.b16 %v5075, %v5074
  %v5095 = vpack.c.b16 %v5077, %v5076
  %v5096 = vpack.c.b16 %v5079, %v5078
  %v5097 = vpack.c.b16 %v5081, %v5080
  %5114 = vmatpush.bf16.msra.mxu0 %v5089
  %5115 = vmatpush.bf16.msra.mxu0 %v5088
  %5116 = vmatpush.bf16.msra.mxu0 %v5087
  %5117 = vmatpush.bf16.msra.mxu0 %v5086
  %5118 = vmatpush.bf16.msra.mxu0 %v5085
  %5119 = vmatpush.bf16.msra.mxu0 %v5084
  %5120 = vmatpush.bf16.msra.mxu0 %v5083
  %5121 = vmatpush.bf16.msra.mxu0 %v5082
  %5122 = vmatmul.bf16.gmra.mxu0 %v4813
  %v5123 = vpop.f32.mrf.mxu0
  %v5124 = vadd.f32 %v5015, %v5123
  %v5125 = vpop.f32.mrf.mxu0
  %5126 = vdwg.mxu0
  %5127 = vmatpush.bf16.msra.mxu0 %v5097
  %5128 = vmatpush.bf16.msra.mxu0 %v5096
  %5129 = vmatpush.bf16.msra.mxu0 %v5095
  %5130 = vmatpush.bf16.msra.mxu0 %v5094
  %5131 = vmatpush.bf16.msra.mxu0 %v5093
  %5132 = vmatpush.bf16.msra.mxu0 %v5092
  %5133 = vmatpush.bf16.msra.mxu0 %v5091
  %5134 = vmatpush.bf16.msra.mxu0 %v5090
  %5135 = vmatmul.bf16.gmra.mxu0 %v4814
  %v5136 = vpop.f32.mrf.mxu0
  %v5137 = vadd.f32 %v5124, %v5136
  %v5138 = vpop.f32.mrf.mxu0
  %5139 = vdwg.mxu0
  %s5140 = scalar_lea.vmem %s5, 256
  %v5141 = vld [vmem:[%s5140] sm:$0xf]
  %v5142 = vld [vmem:[%s5140 + $0x4] sm:$0xf]
  %v5143 = vld [vmem:[%s5140 + $0x8] sm:$0xf]
  %v5144 = vld [vmem:[%s5140 + $0xc] sm:$0xf]
  %v5145 = vld [vmem:[%s5140 + $0x10] sm:$0xf]
  %v5146 = vld [vmem:[%s5140 + $0x14] sm:$0xf]
  %v5147 = vld [vmem:[%s5140 + $0x18] sm:$0xf]
  %v5148 = vld [vmem:[%s5140 + $0x1c] sm:$0xf]
  %v5149 = vld [vmem:[%s5140 + $0x20] sm:$0xf]
  %v5150 = vld [vmem:[%s5140 + $0x24] sm:$0xf]
  %v5151 = vld [vmem:[%s5140 + $0x28] sm:$0xf]
  %v5152 = vld [vmem:[%s5140 + $0x2c] sm:$0xf]
  %v5153 = vld [vmem:[%s5140 + $0x30] sm:$0xf]
  %v5154 = vld [vmem:[%s5140 + $0x34] sm:$0xf]
  %v5155 = vld [vmem:[%s5140 + $0x38] sm:$0xf]
  %v5156 = vld [vmem:[%s5140 + $0x3c] sm:$0xf]
  %v5157 = vld [vmem:[%s5140 + $0x40] sm:$0xf]
  %v5158 = vld [vmem:[%s5140 + $0x44] sm:$0xf]
  %v5159 = vld [vmem:[%s5140 + $0x48] sm:$0xf]
  %v5160 = vld [vmem:[%s5140 + $0x4c] sm:$0xf]
  %v5161 = vld [vmem:[%s5140 + $0x50] sm:$0xf]
  %v5162 = vld [vmem:[%s5140 + $0x54] sm:$0xf]
  %v5163 = vld [vmem:[%s5140 + $0x58] sm:$0xf]
  %v5164 = vld [vmem:[%s5140 + $0x5c] sm:$0xf]
  %v5165 = vld [vmem:[%s5140 + $0x60] sm:$0xf]
  %v5166 = vld [vmem:[%s5140 + $0x64] sm:$0xf]
  %v5167 = vld [vmem:[%s5140 + $0x68] sm:$0xf]
  %v5168 = vld [vmem:[%s5140 + $0x6c] sm:$0xf]
  %v5169 = vld [vmem:[%s5140 + $0x70] sm:$0xf]
  %v5170 = vld [vmem:[%s5140 + $0x74] sm:$0xf]
  %v5171 = vld [vmem:[%s5140 + $0x78] sm:$0xf]
  %v5172 = vld [vmem:[%s5140 + $0x7c] sm:$0xf]
  %v5175 = vrot.slane %v4813, 1
  %v5176 = vrot.slane %v4814, 1
  %v5211 = vunpack.c.l.b16 %v5141
  %v5212 = vunpack.c.l.b16 %v5142
  %v5213 = vunpack.c.l.b16 %v5143
  %v5214 = vunpack.c.l.b16 %v5144
  %v5215 = vunpack.c.l.b16 %v5145
  %v5216 = vunpack.c.l.b16 %v5146
  %v5217 = vunpack.c.l.b16 %v5147
  %v5218 = vunpack.c.l.b16 %v5148
  %v5219 = vunpack.c.l.b16 %v5149
  %v5220 = vunpack.c.l.b16 %v5150
  %v5221 = vunpack.c.l.b16 %v5151
  %v5222 = vunpack.c.l.b16 %v5152
  %v5223 = vunpack.c.l.b16 %v5153
  %v5224 = vunpack.c.l.b16 %v5154
  %v5225 = vunpack.c.l.b16 %v5155
  %v5226 = vunpack.c.l.b16 %v5156
  %v5227 = vunpack.c.l.b16 %v5157
  %v5228 = vunpack.c.l.b16 %v5158
  %v5229 = vunpack.c.l.b16 %v5159
  %v5230 = vunpack.c.l.b16 %v5160
  %v5231 = vunpack.c.l.b16 %v5161
  %v5232 = vunpack.c.l.b16 %v5162
  %v5233 = vunpack.c.l.b16 %v5163
  %v5234 = vunpack.c.l.b16 %v5164
  %v5235 = vunpack.c.l.b16 %v5165
  %v5236 = vunpack.c.l.b16 %v5166
  %v5237 = vunpack.c.l.b16 %v5167
  %v5238 = vunpack.c.l.b16 %v5168
  %v5239 = vunpack.c.l.b16 %v5169
  %v5240 = vunpack.c.l.b16 %v5170
  %v5241 = vunpack.c.l.b16 %v5171
  %v5242 = vunpack.c.l.b16 %v5172
  %v5243 = vpack.c.b16 %v5212, %v5211
  %v5244 = vpack.c.b16 %v5214, %v5213
  %v5245 = vpack.c.b16 %v5216, %v5215
  %v5246 = vpack.c.b16 %v5218, %v5217
  %v5247 = vpack.c.b16 %v5220, %v5219
  %v5248 = vpack.c.b16 %v5222, %v5221
  %v5249 = vpack.c.b16 %v5224, %v5223
  %v5250 = vpack.c.b16 %v5226, %v5225
  %v5251 = vpack.c.b16 %v5228, %v5227
  %v5252 = vpack.c.b16 %v5230, %v5229
  %v5253 = vpack.c.b16 %v5232, %v5231
  %v5254 = vpack.c.b16 %v5234, %v5233
  %v5255 = vpack.c.b16 %v5236, %v5235
  %v5256 = vpack.c.b16 %v5238, %v5237
  %v5257 = vpack.c.b16 %v5240, %v5239
  %v5258 = vpack.c.b16 %v5242, %v5241
  %5275 = vmatpush.bf16.msra.mxu0 %v5250
  %5276 = vmatpush.bf16.msra.mxu0 %v5249
  %5277 = vmatpush.bf16.msra.mxu0 %v5248
  %5278 = vmatpush.bf16.msra.mxu0 %v5247
  %5279 = vmatpush.bf16.msra.mxu0 %v5246
  %5280 = vmatpush.bf16.msra.mxu0 %v5245
  %5281 = vmatpush.bf16.msra.mxu0 %v5244
  %5282 = vmatpush.bf16.msra.mxu0 %v5243
  %5283 = vmatmul.bf16.gmra.mxu0 %v5175
  %v5284 = vpop.f32.mrf.mxu0
  %v5285 = vadd.f32 0.0, %v5284
  %v5286 = vpop.f32.mrf.mxu0
  %5287 = vdwg.mxu0
  %5288 = vmatpush.bf16.msra.mxu0 %v5258
  %5289 = vmatpush.bf16.msra.mxu0 %v5257
  %5290 = vmatpush.bf16.msra.mxu0 %v5256
  %5291 = vmatpush.bf16.msra.mxu0 %v5255
  %5292 = vmatpush.bf16.msra.mxu0 %v5254
  %5293 = vmatpush.bf16.msra.mxu0 %v5253
  %5294 = vmatpush.bf16.msra.mxu0 %v5252
  %5295 = vmatpush.bf16.msra.mxu0 %v5251
  %5296 = vmatmul.bf16.gmra.mxu0 %v5176
  %v5297 = vpop.f32.mrf.mxu0
  %v5298 = vadd.f32 %v5285, %v5297
  %v5299 = vpop.f32.mrf.mxu0
  %5300 = vdwg.mxu0
  %v5301 = vadd.f32 %v5137, %v5298
  %v5302 = vld [vmem:[%s6] sm:$0x1]
  %v5304 = vperm.slane %v5302, 0
  %v5306 = vadd.f32 %v5301, %v5304
  %v5307 = vmax.f32 %v5306, 0.0
  %v5308 = vpack.c.bf16 %v5307, %v5307
  %v5309 = vld [vmem:[%s7] sm:$0xff]
  %v5310 = vld [vmem:[%s7 + $0x8] sm:$0xff]
  %v5311 = vld [vmem:[%s7 + $0x10] sm:$0xff]
  %v5312 = vld [vmem:[%s7 + $0x18] sm:$0xff]
  %v5313 = vld [vmem:[%s7 + $0x20] sm:$0xff]
  %v5314 = vld [vmem:[%s7 + $0x28] sm:$0xff]
  %v5315 = vld [vmem:[%s7 + $0x30] sm:$0xff]
  %v5316 = vld [vmem:[%s7 + $0x38] sm:$0xff]
  %v5317 = vld [vmem:[%s7 + $0x40] sm:$0xff]
  %v5318 = vld [vmem:[%s7 + $0x48] sm:$0xff]
  %v5319 = vld [vmem:[%s7 + $0x50] sm:$0xff]
  %v5320 = vld [vmem:[%s7 + $0x58] sm:$0xff]
  %v5321 = vld [vmem:[%s7 + $0x60] sm:$0xff]
  %v5322 = vld [vmem:[%s7 + $0x68] sm:$0xff]
  %v5323 = vld [vmem:[%s7 + $0x70] sm:$0xff]
  %v5324 = vld [vmem:[%s7 + $0x78] sm:$0xff]
  %v5325 = vld [vmem:[%s7 + $0x80] sm:$0xff]
  %v5326 = vld [vmem:[%s7 + $0x88] sm:$0xff]
  %v5327 = vld [vmem:[%s7 + $0x90] sm:$0xff]
  %v5328 = vld [vmem:[%s7 + $0x98] sm:$0xff]
  %v5329 = vld [vmem:[%s7 + $0xa0] sm:$0xff]
  %v5330 = vld [vmem:[%s7 + $0xa8] sm:$0xff]
  %v5331 = vld [vmem:[%s7 + $0xb0] sm:$0xff]
  %v5332 = vld [vmem:[%s7 + $0xb8] sm:$0xff]
  %v5333 = vld [vmem:[%s7 + $0xc0] sm:$0xff]
  %v5334 = vld [vmem:[%s7 + $0xc8] sm:$0xff]
  %v5335 = vld [vmem:[%s7 + $0xd0] sm:$0xff]
  %v5336 = vld [vmem:[%s7 + $0xd8] sm:$0xff]
  %v5337 = vld [vmem:[%s7 + $0xe0] sm:$0xff]
  %v5338 = vld [vmem:[%s7 + $0xe8] sm:$0xff]
  %v5339 = vld [vmem:[%s7 + $0xf0] sm:$0xff]
  %v5340 = vld [vmem:[%s7 + $0xf8] sm:$0xff]
  %s5341 = scalar_lea.vmem %s7, 256
  %v5342 = vld [vmem:[%s5341] sm:$0xff]
  %v5343 = vld [vmem:[%s5341 + $0x8] sm:$0xff]
  %v5344 = vld [vmem:[%s5341 + $0x10] sm:$0xff]
  %v5345 = vld [vmem:[%s5341 + $0x18] sm:$0xff]
  %v5346 = vld [vmem:[%s5341 + $0x20] sm:$0xff]
  %v5347 = vld [vmem:[%s5341 + $0x28] sm:$0xff]
  %v5348 = vld [vmem:[%s5341 + $0x30] sm:$0xff]
  %v5349 = vld [vmem:[%s5341 + $0x38] sm:$0xff]
  %v5350 = vld [vmem:[%s5341 + $0x40] sm:$0xff]
  %v5351 = vld [vmem:[%s5341 + $0x48] sm:$0xff]
  %v5352 = vld [vmem:[%s5341 + $0x50] sm:$0xff]
  %v5353 = vld [vmem:[%s5341 + $0x58] sm:$0xff]
  %v5354 = vld [vmem:[%s5341 + $0x60] sm:$0xff]
  %v5355 = vld [vmem:[%s5341 + $0x68] sm:$0xff]
  %v5356 = vld [vmem:[%s5341 + $0x70] sm:$0xff]
  %v5357 = vld [vmem:[%s5341 + $0x78] sm:$0xff]
  %v5358 = vld [vmem:[%s5341 + $0x80] sm:$0xff]
  %v5359 = vld [vmem:[%s5341 + $0x88] sm:$0xff]
  %v5360 = vld [vmem:[%s5341 + $0x90] sm:$0xff]
  %v5361 = vld [vmem:[%s5341 + $0x98] sm:$0xff]
  %v5362 = vld [vmem:[%s5341 + $0xa0] sm:$0xff]
  %v5363 = vld [vmem:[%s5341 + $0xa8] sm:$0xff]
  %v5364 = vld [vmem:[%s5341 + $0xb0] sm:$0xff]
  %v5365 = vld [vmem:[%s5341 + $0xb8] sm:$0xff]
  %v5366 = vld [vmem:[%s5341 + $0xc0] sm:$0xff]
  %v5367 = vld [vmem:[%s5341 + $0xc8] sm:$0xff]
  %v5368 = vld [vmem:[%s5341 + $0xd0] sm:$0xff]
  %v5369 = vld [vmem:[%s5341 + $0xd8] sm:$0xff]
  %v5370 = vld [vmem:[%s5341 + $0xe0] sm:$0xff]
  %v5371 = vld [vmem:[%s5341 + $0xe8] sm:$0xff]
  %v5372 = vld [vmem:[%s5341 + $0xf0] sm:$0xff]
  %v5373 = vld [vmem:[%s5341 + $0xf8] sm:$0xff]
  %v5375 = vshrl.u32 %v5308, 16
  %v5410 = vunpack.c.l.b16 %v5342
  %v5411 = vunpack.c.h.b16 %v5342
  %v5412 = vunpack.c.l.b16 %v5343
  %v5413 = vunpack.c.h.b16 %v5343
  %v5414 = vunpack.c.l.b16 %v5344
  %v5415 = vunpack.c.h.b16 %v5344
  %v5416 = vunpack.c.l.b16 %v5345
  %v5417 = vunpack.c.h.b16 %v5345
  %v5418 = vunpack.c.l.b16 %v5346
  %v5419 = vunpack.c.h.b16 %v5346
  %v5420 = vunpack.c.l.b16 %v5347
  %v5421 = vunpack.c.h.b16 %v5347
  %v5422 = vunpack.c.l.b16 %v5348
  %v5423 = vunpack.c.h.b16 %v5348
  %v5424 = vunpack.c.l.b16 %v5349
  %v5425 = vunpack.c.h.b16 %v5349
  %v5426 = vunpack.c.l.b16 %v5350
  %v5427 = vunpack.c.h.b16 %v5350
  %v5428 = vunpack.c.l.b16 %v5351
  %v5429 = vunpack.c.h.b16 %v5351
  %v5430 = vunpack.c.l.b16 %v5352
  %v5431 = vunpack.c.h.b16 %v5352
  %v5432 = vunpack.c.l.b16 %v5353
  %v5433 = vunpack.c.h.b16 %v5353
  %v5434 = vunpack.c.l.b16 %v5354
  %v5435 = vunpack.c.h.b16 %v5354
  %v5436 = vunpack.c.l.b16 %v5355
  %v5437 = vunpack.c.h.b16 %v5355
  %v5438 = vunpack.c.l.b16 %v5356
  %v5439 = vunpack.c.h.b16 %v5356
  %v5440 = vunpack.c.l.b16 %v5357
  %v5441 = vunpack.c.h.b16 %v5357
  %v5442 = vunpack.c.l.b16 %v5358
  %v5443 = vunpack.c.h.b16 %v5358
  %v5444 = vunpack.c.l.b16 %v5359
  %v5445 = vunpack.c.h.b16 %v5359
  %v5446 = vunpack.c.l.b16 %v5360
  %v5447 = vunpack.c.h.b16 %v5360
  %v5448 = vunpack.c.l.b16 %v5361
  %v5449 = vunpack.c.h.b16 %v5361
  %v5450 = vunpack.c.l.b16 %v5362
  %v5451 = vunpack.c.h.b16 %v5362
  %v5452 = vunpack.c.l.b16 %v5363
  %v5453 = vunpack.c.h.b16 %v5363
  %v5454 = vunpack.c.l.b16 %v5364
  %v5455 = vunpack.c.h.b16 %v5364
  %v5456 = vunpack.c.l.b16 %v5365
  %v5457 = vunpack.c.h.b16 %v5365
  %v5458 = vunpack.c.l.b16 %v5366
  %v5459 = vunpack.c.h.b16 %v5366
  %v5460 = vunpack.c.l.b16 %v5367
  %v5461 = vunpack.c.h.b16 %v5367
  %v5462 = vunpack.c.l.b16 %v5368
  %v5463 = vunpack.c.h.b16 %v5368
  %v5464 = vunpack.c.l.b16 %v5369
  %v5465 = vunpack.c.h.b16 %v5369
  %v5466 = vunpack.c.l.b16 %v5370
  %v5467 = vunpack.c.h.b16 %v5370
  %v5468 = vunpack.c.l.b16 %v5371
  %v5469 = vunpack.c.h.b16 %v5371
  %v5470 = vunpack.c.l.b16 %v5372
  %v5471 = vunpack.c.h.b16 %v5372
  %v5472 = vunpack.c.l.b16 %v5373
  %v5473 = vunpack.c.h.b16 %v5373
  %v5474 = vpack.c.b16 %v5414, %v5410
  %v5475 = vpack.c.b16 %v5415, %v5411
  %v5476 = vpack.c.b16 %v5416, %v5412
  %v5477 = vpack.c.b16 %v5417, %v5413
  %v5478 = vpack.c.b16 %v5422, %v5418
  %v5479 = vpack.c.b16 %v5423, %v5419
  %v5480 = vpack.c.b16 %v5424, %v5420
  %v5481 = vpack.c.b16 %v5425, %v5421
  %v5482 = vpack.c.b16 %v5430, %v5426
  %v5483 = vpack.c.b16 %v5431, %v5427
  %v5484 = vpack.c.b16 %v5432, %v5428
  %v5485 = vpack.c.b16 %v5433, %v5429
  %v5486 = vpack.c.b16 %v5438, %v5434
  %v5487 = vpack.c.b16 %v5439, %v5435
  %v5488 = vpack.c.b16 %v5440, %v5436
  %v5489 = vpack.c.b16 %v5441, %v5437
  %v5490 = vpack.c.b16 %v5446, %v5442
  %v5491 = vpack.c.b16 %v5447, %v5443
  %v5492 = vpack.c.b16 %v5448, %v5444
  %v5493 = vpack.c.b16 %v5449, %v5445
  %v5494 = vpack.c.b16 %v5454, %v5450
  %v5495 = vpack.c.b16 %v5455, %v5451
  %v5496 = vpack.c.b16 %v5456, %v5452
  %v5497 = vpack.c.b16 %v5457, %v5453
  %v5498 = vpack.c.b16 %v5462, %v5458
  %v5499 = vpack.c.b16 %v5463, %v5459
  %v5500 = vpack.c.b16 %v5464, %v5460
  %v5501 = vpack.c.b16 %v5465, %v5461
  %v5502 = vpack.c.b16 %v5470, %v5466
  %v5503 = vpack.c.b16 %v5471, %v5467
  %v5504 = vpack.c.b16 %v5472, %v5468
  %v5505 = vpack.c.b16 %v5473, %v5469
  %5538 = vmatpush.bf16.msra.mxu0 %v5502
  %5539 = vmatpush.bf16.msra.mxu0 %v5498
  %5540 = vmatpush.bf16.msra.mxu0 %v5494
  %5541 = vmatpush.bf16.msra.mxu0 %v5490
  %5542 = vmatpush.bf16.msra.mxu0 %v5486
  %5543 = vmatpush.bf16.msra.mxu0 %v5482
  %5544 = vmatpush.bf16.msra.mxu0 %v5478
  %5545 = vmatpush.bf16.msra.mxu0 %v5474
  %5546 = vmatmul.bf16.gmra.mxu0 %v5375
  %v5547 = vpop.f32.mrf.mxu0
  %v5548 = vadd.f32 0.0, %v5547
  %v5549 = vpop.f32.mrf.mxu0
  %5550 = vdwg.mxu0
  %5551 = vmatpush.bf16.msra.mxu0 %v5503
  %5552 = vmatpush.bf16.msra.mxu0 %v5499
  %5553 = vmatpush.bf16.msra.mxu0 %v5495
  %5554 = vmatpush.bf16.msra.mxu0 %v5491
  %5555 = vmatpush.bf16.msra.mxu0 %v5487
  %5556 = vmatpush.bf16.msra.mxu0 %v5483
  %5557 = vmatpush.bf16.msra.mxu0 %v5479
  %5558 = vmatpush.bf16.msra.mxu0 %v5475
  %5559 = vmatmul.bf16.gmra.mxu0 %v5375
  %v5560 = vpop.f32.mrf.mxu0
  %v5561 = vadd.f32 0.0, %v5560
  %v5562 = vpop.f32.mrf.mxu0
  %5563 = vdwg.mxu0
  %5564 = vmatpush.bf16.msra.mxu0 %v5504
  %5565 = vmatpush.bf16.msra.mxu0 %v5500
  %5566 = vmatpush.bf16.msra.mxu0 %v5496
  %5567 = vmatpush.bf16.msra.mxu0 %v5492
  %5568 = vmatpush.bf16.msra.mxu0 %v5488
  %5569 = vmatpush.bf16.msra.mxu0 %v5484
  %5570 = vmatpush.bf16.msra.mxu0 %v5480
  %5571 = vmatpush.bf16.msra.mxu0 %v5476
  %5572 = vmatmul.bf16.gmra.mxu0 %v5375
  %v5573 = vpop.f32.mrf.mxu0
  %v5574 = vadd.f32 0.0, %v5573
  %v5575 = vpop.f32.mrf.mxu0
  %5576 = vdwg.mxu0
  %5577 = vmatpush.bf16.msra.mxu0 %v5505
  %5578 = vmatpush.bf16.msra.mxu0 %v5501
  %5579 = vmatpush.bf16.msra.mxu0 %v5497
  %5580 = vmatpush.bf16.msra.mxu0 %v5493
  %5581 = vmatpush.bf16.msra.mxu0 %v5489
  %5582 = vmatpush.bf16.msra.mxu0 %v5485
  %5583 = vmatpush.bf16.msra.mxu0 %v5481
  %5584 = vmatpush.bf16.msra.mxu0 %v5477
  %5585 = vmatmul.bf16.gmra.mxu0 %v5375
  %v5586 = vpop.f32.mrf.mxu0
  %v5587 = vadd.f32 0.0, %v5586
  %v5588 = vpop.f32.mrf.mxu0
  %5589 = vdwg.mxu0
  %v5622 = vunpack.c.l.b16 %v5309
  %v5623 = vunpack.c.h.b16 %v5309
  %v5624 = vunpack.c.l.b16 %v5310
  %v5625 = vunpack.c.h.b16 %v5310
  %v5626 = vunpack.c.l.b16 %v5311
  %v5627 = vunpack.c.h.b16 %v5311
  %v5628 = vunpack.c.l.b16 %v5312
  %v5629 = vunpack.c.h.b16 %v5312
  %v5630 = vunpack.c.l.b16 %v5313
  %v5631 = vunpack.c.h.b16 %v5313
  %v5632 = vunpack.c.l.b16 %v5314
  %v5633 = vunpack.c.h.b16 %v5314
  %v5634 = vunpack.c.l.b16 %v5315
  %v5635 = vunpack.c.h.b16 %v5315
  %v5636 = vunpack.c.l.b16 %v5316
  %v5637 = vunpack.c.h.b16 %v5316
  %v5638 = vunpack.c.l.b16 %v5317
  %v5639 = vunpack.c.h.b16 %v5317
  %v5640 = vunpack.c.l.b16 %v5318
  %v5641 = vunpack.c.h.b16 %v5318
  %v5642 = vunpack.c.l.b16 %v5319
  %v5643 = vunpack.c.h.b16 %v5319
  %v5644 = vunpack.c.l.b16 %v5320
  %v5645 = vunpack.c.h.b16 %v5320
  %v5646 = vunpack.c.l.b16 %v5321
  %v5647 = vunpack.c.h.b16 %v5321
  %v5648 = vunpack.c.l.b16 %v5322
  %v5649 = vunpack.c.h.b16 %v5322
  %v5650 = vunpack.c.l.b16 %v5323
  %v5651 = vunpack.c.h.b16 %v5323
  %v5652 = vunpack.c.l.b16 %v5324
  %v5653 = vunpack.c.h.b16 %v5324
  %v5654 = vunpack.c.l.b16 %v5325
  %v5655 = vunpack.c.h.b16 %v5325
  %v5656 = vunpack.c.l.b16 %v5326
  %v5657 = vunpack.c.h.b16 %v5326
  %v5658 = vunpack.c.l.b16 %v5327
  %v5659 = vunpack.c.h.b16 %v5327
  %v5660 = vunpack.c.l.b16 %v5328
  %v5661 = vunpack.c.h.b16 %v5328
  %v5662 = vunpack.c.l.b16 %v5329
  %v5663 = vunpack.c.h.b16 %v5329
  %v5664 = vunpack.c.l.b16 %v5330
  %v5665 = vunpack.c.h.b16 %v5330
  %v5666 = vunpack.c.l.b16 %v5331
  %v5667 = vunpack.c.h.b16 %v5331
  %v5668 = vunpack.c.l.b16 %v5332
  %v5669 = vunpack.c.h.b16 %v5332
  %v5670 = vunpack.c.l.b16 %v5333
  %v5671 = vunpack.c.h.b16 %v5333
  %v5672 = vunpack.c.l.b16 %v5334
  %v5673 = vunpack.c.h.b16 %v5334
  %v5674 = vunpack.c.l.b16 %v5335
  %v5675 = vunpack.c.h.b16 %v5335
  %v5676 = vunpack.c.l.b16 %v5336
  %v5677 = vunpack.c.h.b16 %v5336
  %v5678 = vunpack.c.l.b16 %v5337
  %v5679 = vunpack.c.h.b16 %v5337
  %v5680 = vunpack.c.l.b16 %v5338
  %v5681 = vunpack.c.h.b16 %v5338
  %v5682 = vunpack.c.l.b16 %v5339
  %v5683 = vunpack.c.h.b16 %v5339
  %v5684 = vunpack.c.l.b16 %v5340
  %v5685 = vunpack.c.h.b16 %v5340
  %v5686 = vpack.c.b16 %v5626, %v5622
  %v5687 = vpack.c.b16 %v5627, %v5623
  %v5688 = vpack.c.b16 %v5628, %v5624
  %v5689 = vpack.c.b16 %v5629, %v5625
  %v5690 = vpack.c.b16 %v5634, %v5630
  %v5691 = vpack.c.b16 %v5635, %v5631
  %v5692 = vpack.c.b16 %v5636, %v5632
  %v5693 = vpack.c.b16 %v5637, %v5633
  %v5694 = vpack.c.b16 %v5642, %v5638
  %v5695 = vpack.c.b16 %v5643, %v5639
  %v5696 = vpack.c.b16 %v5644, %v5640
  %v5697 = vpack.c.b16 %v5645, %v5641
  %v5698 = vpack.c.b16 %v5650, %v5646
  %v5699 = vpack.c.b16 %v5651, %v5647
  %v5700 = vpack.c.b16 %v5652, %v5648
  %v5701 = vpack.c.b16 %v5653, %v5649
  %v5702 = vpack.c.b16 %v5658, %v5654
  %v5703 = vpack.c.b16 %v5659, %v5655
  %v5704 = vpack.c.b16 %v5660, %v5656
  %v5705 = vpack.c.b16 %v5661, %v5657
  %v5706 = vpack.c.b16 %v5666, %v5662
  %v5707 = vpack.c.b16 %v5667, %v5663
  %v5708 = vpack.c.b16 %v5668, %v5664
  %v5709 = vpack.c.b16 %v5669, %v5665
  %v5710 = vpack.c.b16 %v5674, %v5670
  %v5711 = vpack.c.b16 %v5675, %v5671
  %v5712 = vpack.c.b16 %v5676, %v5672
  %v5713 = vpack.c.b16 %v5677, %v5673
  %v5714 = vpack.c.b16 %v5682, %v5678
  %v5715 = vpack.c.b16 %v5683, %v5679
  %v5716 = vpack.c.b16 %v5684, %v5680
  %v5717 = vpack.c.b16 %v5685, %v5681
  %5750 = vmatpush.bf16.msra.mxu0 %v5714
  %5751 = vmatpush.bf16.msra.mxu0 %v5710
  %5752 = vmatpush.bf16.msra.mxu0 %v5706
  %5753 = vmatpush.bf16.msra.mxu0 %v5702
  %5754 = vmatpush.bf16.msra.mxu0 %v5698
  %5755 = vmatpush.bf16.msra.mxu0 %v5694
  %5756 = vmatpush.bf16.msra.mxu0 %v5690
  %5757 = vmatpush.bf16.msra.mxu0 %v5686
  %5758 = vmatmul.bf16.gmra.mxu0 %v5308
  %v5759 = vpop.f32.mrf.mxu0
  %v5760 = vadd.f32 %v5548, %v5759
  %v5761 = vpop.f32.mrf.mxu0
  %5762 = vdwg.mxu0
  %5763 = vmatpush.bf16.msra.mxu0 %v5715
  %5764 = vmatpush.bf16.msra.mxu0 %v5711
  %5765 = vmatpush.bf16.msra.mxu0 %v5707
  %5766 = vmatpush.bf16.msra.mxu0 %v5703
  %5767 = vmatpush.bf16.msra.mxu0 %v5699
  %5768 = vmatpush.bf16.msra.mxu0 %v5695
  %5769 = vmatpush.bf16.msra.mxu0 %v5691
  %5770 = vmatpush.bf16.msra.mxu0 %v5687
  %5771 = vmatmul.bf16.gmra.mxu0 %v5308
  %v5772 = vpop.f32.mrf.mxu0
  %v5773 = vadd.f32 %v5561, %v5772
  %v5774 = vpop.f32.mrf.mxu0
  %5775 = vdwg.mxu0
  %5776 = vmatpush.bf16.msra.mxu0 %v5716
  %5777 = vmatpush.bf16.msra.mxu0 %v5712
  %5778 = vmatpush.bf16.msra.mxu0 %v5708
  %5779 = vmatpush.bf16.msra.mxu0 %v5704
  %5780 = vmatpush.bf16.msra.mxu0 %v5700
  %5781 = vmatpush.bf16.msra.mxu0 %v5696
  %5782 = vmatpush.bf16.msra.mxu0 %v5692
  %5783 = vmatpush.bf16.msra.mxu0 %v5688
  %5784 = vmatmul.bf16.gmra.mxu0 %v5308
  %v5785 = vpop.f32.mrf.mxu0
  %v5786 = vadd.f32 %v5574, %v5785
  %v5787 = vpop.f32.mrf.mxu0
  %5788 = vdwg.mxu0
  %5789 = vmatpush.bf16.msra.mxu0 %v5717
  %5790 = vmatpush.bf16.msra.mxu0 %v5713
  %5791 = vmatpush.bf16.msra.mxu0 %v5709
  %5792 = vmatpush.bf16.msra.mxu0 %v5705
  %5793 = vmatpush.bf16.msra.mxu0 %v5701
  %5794 = vmatpush.bf16.msra.mxu0 %v5697
  %5795 = vmatpush.bf16.msra.mxu0 %v5693
  %5796 = vmatpush.bf16.msra.mxu0 %v5689
  %5797 = vmatmul.bf16.gmra.mxu0 %v5308
  %v5798 = vpop.f32.mrf.mxu0
  %v5799 = vadd.f32 %v5587, %v5798
  %v5800 = vpop.f32.mrf.mxu0
  %5801 = vdwg.mxu0
  %v5802 = vld [vmem:[%s8] sm:$0xf]
  %v5804 = vperm.slane %v5802, 0
  %v5805 = vperm.slane %v5802, 1
  %v5806 = vperm.slane %v5802, 2
  %v5807 = vperm.slane %v5802, 3
  %v5812 = vadd.f32 %v5760, %v5804
  %v5813 = vadd.f32 %v5773, %v5805
  %v5814 = vadd.f32 %v5786, %v5806
  %v5815 = vadd.f32 %v5799, %v5807
  %v5816 = vmax.f32 %v5812, 0.0
  %v5817 = vmax.f32 %v5813, 0.0
  %v5818 = vmax.f32 %v5814, 0.0
  %v5819 = vmax.f32 %v5815, 0.0
  %v5824 = vrot.slane %v5817, 7
  %v5825 = vrot.slane %v5818, 6
  %v5826 = vrot.slane %v5819, 5
  %v5827 = vsel %vm3254, %v5816, %v5824
  %vm5828 = vcmask 1042434
  %v5829 = vsel %vm5828, %v5825, %v5826
  %v5830 = vsel %vm287, %v5827, %v5829
  %vm5832 = vcmp.lt.s32.totalorder %v3258, 512
  %vm5833 = vmand %vm3259, %vm5832
  %5834 = vst.msk [vmem:[#allocation3] ss:$2 sm:$0xf] %vm5833, %v5830
  %v5835 = vld [vmem:[#allocation2] sm:$0xe0]
  %v5836 = vld [vmem:[#allocation2 + $0x8] sm:$0xe0]
  %v5837 = vld [vmem:[#allocation2 + $0x10] sm:$0xe0]
  %v5838 = vld [vmem:[#allocation2 + $0x18] sm:$0x1]
  %v5839 = vld [vmem:[#allocation2 + $0x20] sm:$0x1]
  %v5840 = vld [vmem:[#allocation2 + $0x28] sm:$0x1]
  %v5841 = vpack.c.bf16 %v5838, %v5835
  %v5842 = vpack.c.bf16 %v5839, %v5836
  %v5843 = vpack.c.bf16 %v5840, %v5837
  %v5844 = vld [vmem:[%s3] sm:$0xff]
  %v5845 = vld [vmem:[%s3 + $0x8] sm:$0xff]
  %v5846 = vld [vmem:[%s3 + $0x10] sm:$0xff]
  %v5847 = vld [vmem:[%s3 + $0x18] sm:$0xff]
  %v5848 = vld [vmem:[%s3 + $0x20] sm:$0xff]
  %v5849 = vld [vmem:[%s3 + $0x28] sm:$0xff]
  %v5850 = vld [vmem:[%s3 + $0x30] sm:$0xff]
  %v5851 = vld [vmem:[%s3 + $0x38] sm:$0xff]
  %v5852 = vld [vmem:[%s3 + $0x40] sm:$0xff]
  %v5853 = vld [vmem:[%s3 + $0x48] sm:$0xff]
  %v5854 = vld [vmem:[%s3 + $0x50] sm:$0xff]
  %v5855 = vld [vmem:[%s3 + $0x58] sm:$0xff]
  %v5856 = vld [vmem:[%s3 + $0x60] sm:$0xff]
  %v5857 = vld [vmem:[%s3 + $0x68] sm:$0xff]
  %v5858 = vld [vmem:[%s3 + $0x70] sm:$0xff]
  %v5859 = vld [vmem:[%s3 + $0x78] sm:$0xff]
  %v5860 = vld [vmem:[%s3 + $0x80] sm:$0xff]
  %v5861 = vld [vmem:[%s3 + $0x88] sm:$0xff]
  %v5862 = vld [vmem:[%s3 + $0x90] sm:$0xff]
  %v5863 = vld [vmem:[%s3 + $0x98] sm:$0xff]
  %v5864 = vld [vmem:[%s3 + $0xa0] sm:$0xff]
  %v5865 = vld [vmem:[%s3 + $0xa8] sm:$0xff]
  %v5866 = vld [vmem:[%s3 + $0xb0] sm:$0xff]
  %v5867 = vld [vmem:[%s3 + $0xb8] sm:$0xff]
  %v5868 = vld [vmem:[%s3 + $0xc0] sm:$0xff]
  %v5869 = vld [vmem:[%s3 + $0xc8] sm:$0xff]
  %v5870 = vld [vmem:[%s3 + $0xd0] sm:$0xff]
  %v5871 = vld [vmem:[%s3 + $0xd8] sm:$0xff]
  %v5872 = vld [vmem:[%s3 + $0xe0] sm:$0xff]
  %v5873 = vld [vmem:[%s3 + $0xe8] sm:$0xff]
  %v5874 = vld [vmem:[%s3 + $0xf0] sm:$0xff]
  %v5875 = vld [vmem:[%s3 + $0xf8] sm:$0xff]
  %v5876 = vld [vmem:[%s3 + $0x100] sm:$0xff]
  %v5877 = vld [vmem:[%s3 + $0x108] sm:$0xff]
  %v5878 = vld [vmem:[%s3 + $0x110] sm:$0xff]
  %v5879 = vld [vmem:[%s3 + $0x118] sm:$0xff]
  %v5880 = vld [vmem:[%s3 + $0x120] sm:$0xff]
  %v5881 = vld [vmem:[%s3 + $0x128] sm:$0xff]
  %v5882 = vld [vmem:[%s3 + $0x130] sm:$0xff]
  %v5883 = vld [vmem:[%s3 + $0x138] sm:$0xff]
  %v5884 = vld [vmem:[%s3270] sm:$0xe0]
  %v5885 = vld [vmem:[%s3270 + $0x8] sm:$0xe0]
  %v5886 = vld [vmem:[%s3270 + $0x10] sm:$0xe0]
  %v5887 = vld [vmem:[%s3270 + $0x18] sm:$0x1]
  %v5888 = vld [vmem:[%s3270 + $0x20] sm:$0x1]
  %v5889 = vld [vmem:[%s3270 + $0x28] sm:$0x1]
  %v5890 = vpack.c.bf16 %v5887, %v5884
  %v5891 = vpack.c.bf16 %v5888, %v5885
  %v5892 = vpack.c.bf16 %v5889, %v5886
  %v5893 = vld [vmem:[%s3493] sm:$0xff]
  %v5894 = vld [vmem:[%s3493 + $0x8] sm:$0xff]
  %v5895 = vld [vmem:[%s3493 + $0x10] sm:$0xff]
  %v5896 = vld [vmem:[%s3493 + $0x18] sm:$0xff]
  %v5897 = vld [vmem:[%s3493 + $0x20] sm:$0xff]
  %v5898 = vld [vmem:[%s3493 + $0x28] sm:$0xff]
  %v5899 = vld [vmem:[%s3493 + $0x30] sm:$0xff]
  %v5900 = vld [vmem:[%s3493 + $0x38] sm:$0xff]
  %v5901 = vld [vmem:[%s3493 + $0x40] sm:$0xff]
  %v5902 = vld [vmem:[%s3493 + $0x48] sm:$0xff]
  %v5903 = vld [vmem:[%s3493 + $0x50] sm:$0xff]
  %v5904 = vld [vmem:[%s3493 + $0x58] sm:$0xff]
  %v5905 = vld [vmem:[%s3493 + $0x60] sm:$0xff]
  %v5906 = vld [vmem:[%s3493 + $0x68] sm:$0xff]
  %v5907 = vld [vmem:[%s3493 + $0x70] sm:$0xff]
  %v5908 = vld [vmem:[%s3493 + $0x78] sm:$0xff]
  %v5909 = vld [vmem:[%s3493 + $0x80] sm:$0xff]
  %v5910 = vld [vmem:[%s3493 + $0x88] sm:$0xff]
  %v5911 = vld [vmem:[%s3493 + $0x90] sm:$0xff]
  %v5912 = vld [vmem:[%s3493 + $0x98] sm:$0xff]
  %v5913 = vld [vmem:[%s3493 + $0xa0] sm:$0xff]
  %v5914 = vld [vmem:[%s3493 + $0xa8] sm:$0xff]
  %v5915 = vld [vmem:[%s3493 + $0xb0] sm:$0xff]
  %v5916 = vld [vmem:[%s3493 + $0xb8] sm:$0xff]
  %v5917 = vld [vmem:[%s3493 + $0xc0] sm:$0xff]
  %v5918 = vld [vmem:[%s3493 + $0xc8] sm:$0xff]
  %v5919 = vld [vmem:[%s3493 + $0xd0] sm:$0xff]
  %v5920 = vld [vmem:[%s3493 + $0xd8] sm:$0xff]
  %v5921 = vld [vmem:[%s3493 + $0xe0] sm:$0xff]
  %v5922 = vld [vmem:[%s3493 + $0xe8] sm:$0xff]
  %v5923 = vld [vmem:[%s3493 + $0xf0] sm:$0xff]
  %v5924 = vld [vmem:[%s3493 + $0xf8] sm:$0xff]
  %v5925 = vld [vmem:[%s3493 + $0x100] sm:$0xff]
  %v5926 = vld [vmem:[%s3493 + $0x108] sm:$0xff]
  %v5927 = vld [vmem:[%s3493 + $0x110] sm:$0xff]
  %v5928 = vld [vmem:[%s3493 + $0x118] sm:$0xff]
  %v5929 = vld [vmem:[%s3493 + $0x120] sm:$0xff]
  %v5930 = vld [vmem:[%s3493 + $0x128] sm:$0xff]
  %v5931 = vld [vmem:[%s3493 + $0x130] sm:$0xff]
  %v5932 = vld [vmem:[%s3493 + $0x138] sm:$0xff]
  %v5934 = vshrl.u32 %v5890, 16
  %v5936 = vrot.slane %v5934, 2
  %v5937 = vshll.u32 %v5890, 16
  %v5939 = vrot.slane %v5937, 3
  %v5940 = vor.u32 %v5936, %v5939
  %v5942 = vshrl.u32 %v5891, 16
  %v5944 = vrot.slane %v5942, 2
  %v5945 = vshll.u32 %v5891, 16
  %v5947 = vrot.slane %v5945, 3
  %v5948 = vor.u32 %v5944, %v5947
  %v5950 = vshrl.u32 %v5892, 16
  %v5952 = vrot.slane %v5950, 2
  %v5953 = vshll.u32 %v5892, 16
  %v5955 = vrot.slane %v5953, 3
  %v5956 = vor.u32 %v5952, %v5955
  %v5999 = vunpack.c.l.b16 %v5893
  %v6000 = vunpack.c.h.b16 %v5893
  %v6001 = vunpack.c.l.b16 %v5894
  %v6002 = vunpack.c.h.b16 %v5894
  %v6003 = vunpack.c.l.b16 %v5895
  %v6004 = vunpack.c.h.b16 %v5895
  %v6005 = vunpack.c.l.b16 %v5896
  %v6006 = vunpack.c.h.b16 %v5896
  %v6007 = vunpack.c.l.b16 %v5897
  %v6008 = vunpack.c.h.b16 %v5897
  %v6009 = vunpack.c.l.b16 %v5898
  %v6010 = vunpack.c.h.b16 %v5898
  %v6011 = vunpack.c.l.b16 %v5899
  %v6012 = vunpack.c.h.b16 %v5899
  %v6013 = vunpack.c.l.b16 %v5900
  %v6014 = vunpack.c.h.b16 %v5900
  %v6015 = vunpack.c.l.b16 %v5901
  %v6016 = vunpack.c.h.b16 %v5901
  %v6017 = vunpack.c.l.b16 %v5902
  %v6018 = vunpack.c.h.b16 %v5902
  %v6019 = vunpack.c.l.b16 %v5903
  %v6020 = vunpack.c.h.b16 %v5903
  %v6021 = vunpack.c.l.b16 %v5904
  %v6022 = vunpack.c.h.b16 %v5904
  %v6023 = vunpack.c.l.b16 %v5905
  %v6024 = vunpack.c.h.b16 %v5905
  %v6025 = vunpack.c.l.b16 %v5906
  %v6026 = vunpack.c.h.b16 %v5906
  %v6027 = vunpack.c.l.b16 %v5907
  %v6028 = vunpack.c.h.b16 %v5907
  %v6029 = vunpack.c.l.b16 %v5908
  %v6030 = vunpack.c.h.b16 %v5908
  %v6031 = vunpack.c.l.b16 %v5909
  %v6032 = vunpack.c.h.b16 %v5909
  %v6033 = vunpack.c.l.b16 %v5910
  %v6034 = vunpack.c.h.b16 %v5910
  %v6035 = vunpack.c.l.b16 %v5911
  %v6036 = vunpack.c.h.b16 %v5911
  %v6037 = vunpack.c.l.b16 %v5912
  %v6038 = vunpack.c.h.b16 %v5912
  %v6039 = vunpack.c.l.b16 %v5913
  %v6040 = vunpack.c.h.b16 %v5913
  %v6041 = vunpack.c.l.b16 %v5914
  %v6042 = vunpack.c.h.b16 %v5914
  %v6043 = vunpack.c.l.b16 %v5915
  %v6044 = vunpack.c.h.b16 %v5915
  %v6045 = vunpack.c.l.b16 %v5916
  %v6046 = vunpack.c.h.b16 %v5916
  %v6047 = vunpack.c.l.b16 %v5917
  %v6048 = vunpack.c.h.b16 %v5917
  %v6049 = vunpack.c.l.b16 %v5918
  %v6050 = vunpack.c.h.b16 %v5918
  %v6051 = vunpack.c.l.b16 %v5919
  %v6052 = vunpack.c.h.b16 %v5919
  %v6053 = vunpack.c.l.b16 %v5920
  %v6054 = vunpack.c.h.b16 %v5920
  %v6055 = vunpack.c.l.b16 %v5921
  %v6056 = vunpack.c.h.b16 %v5921
  %v6057 = vunpack.c.l.b16 %v5922
  %v6058 = vunpack.c.h.b16 %v5922
  %v6059 = vunpack.c.l.b16 %v5923
  %v6060 = vunpack.c.h.b16 %v5923
  %v6061 = vunpack.c.l.b16 %v5924
  %v6062 = vunpack.c.h.b16 %v5924
  %v6063 = vunpack.c.l.b16 %v5925
  %v6064 = vunpack.c.h.b16 %v5925
  %v6065 = vunpack.c.l.b16 %v5926
  %v6066 = vunpack.c.h.b16 %v5926
  %v6067 = vunpack.c.l.b16 %v5927
  %v6068 = vunpack.c.h.b16 %v5927
  %v6069 = vunpack.c.l.b16 %v5928
  %v6070 = vunpack.c.h.b16 %v5928
  %v6071 = vunpack.c.l.b16 %v5929
  %v6072 = vunpack.c.h.b16 %v5929
  %v6073 = vunpack.c.l.b16 %v5930
  %v6074 = vunpack.c.h.b16 %v5930
  %v6075 = vunpack.c.l.b16 %v5931
  %v6076 = vunpack.c.h.b16 %v5931
  %v6077 = vunpack.c.l.b16 %v5932
  %v6078 = vunpack.c.h.b16 %v5932
  %v6079 = vpack.c.b16 %v6001, %v5999
  %v6080 = vpack.c.b16 %v6002, %v6000
  %v6081 = vpack.c.b16 %v6005, %v6003
  %v6082 = vpack.c.b16 %v6006, %v6004
  %v6083 = vpack.c.b16 %v6009, %v6007
  %v6084 = vpack.c.b16 %v6010, %v6008
  %v6085 = vpack.c.b16 %v6013, %v6011
  %v6086 = vpack.c.b16 %v6014, %v6012
  %v6087 = vpack.c.b16 %v6017, %v6015
  %v6088 = vpack.c.b16 %v6018, %v6016
  %v6089 = vpack.c.b16 %v6021, %v6019
  %v6090 = vpack.c.b16 %v6022, %v6020
  %v6091 = vpack.c.b16 %v6025, %v6023
  %v6092 = vpack.c.b16 %v6026, %v6024
  %v6093 = vpack.c.b16 %v6029, %v6027
  %v6094 = vpack.c.b16 %v6030, %v6028
  %v6095 = vpack.c.b16 %v6033, %v6031
  %v6096 = vpack.c.b16 %v6034, %v6032
  %v6097 = vpack.c.b16 %v6037, %v6035
  %v6098 = vpack.c.b16 %v6038, %v6036
  %v6099 = vpack.c.b16 %v6041, %v6039
  %v6100 = vpack.c.b16 %v6042, %v6040
  %v6101 = vpack.c.b16 %v6045, %v6043
  %v6102 = vpack.c.b16 %v6046, %v6044
  %v6103 = vpack.c.b16 %v6049, %v6047
  %v6104 = vpack.c.b16 %v6050, %v6048
  %v6105 = vpack.c.b16 %v6053, %v6051
  %v6106 = vpack.c.b16 %v6054, %v6052
  %v6107 = vpack.c.b16 %v6057, %v6055
  %v6108 = vpack.c.b16 %v6058, %v6056
  %v6109 = vpack.c.b16 %v6061, %v6059
  %v6110 = vpack.c.b16 %v6062, %v6060
  %v6111 = vpack.c.b16 %v6065, %v6063
  %v6112 = vpack.c.b16 %v6066, %v6064
  %v6113 = vpack.c.b16 %v6069, %v6067
  %v6114 = vpack.c.b16 %v6070, %v6068
  %v6115 = vpack.c.b16 %v6073, %v6071
  %v6116 = vpack.c.b16 %v6074, %v6072
  %v6117 = vpack.c.b16 %v6077, %v6075
  %v6118 = vpack.c.b16 %v6078, %v6076
  %v6160 = vsel %vm3734, %v5956, 0
  %6162 = vmatpush.bf16.msra.mxu0 %v6093
  %6163 = vmatpush.bf16.msra.mxu0 %v6091
  %6164 = vmatpush.bf16.msra.mxu0 %v6089
  %6165 = vmatpush.bf16.msra.mxu0 %v6087
  %6166 = vmatpush.bf16.msra.mxu0 %v6085
  %6167 = vmatpush.bf16.msra.mxu0 %v6083
  %6168 = vmatpush.bf16.msra.mxu0 %v6081
  %6169 = vmatpush.bf16.msra.mxu0 %v6079
  %6170 = vmatmul.bf16.gmra.mxu0 %v5940
  %v6171 = vpop.f32.mrf.mxu0
  %v6172 = vadd.f32 0.0, %v6171
  %v6173 = vpop.f32.mrf.mxu0
  %6174 = vdwg.mxu0
  %6175 = vmatpush.bf16.msra.mxu0 %v6109
  %6176 = vmatpush.bf16.msra.mxu0 %v6107
  %6177 = vmatpush.bf16.msra.mxu0 %v6105
  %6178 = vmatpush.bf16.msra.mxu0 %v6103
  %6179 = vmatpush.bf16.msra.mxu0 %v6101
  %6180 = vmatpush.bf16.msra.mxu0 %v6099
  %6181 = vmatpush.bf16.msra.mxu0 %v6097
  %6182 = vmatpush.bf16.msra.mxu0 %v6095
  %6183 = vmatmul.bf16.gmra.mxu0 %v5948
  %v6184 = vpop.f32.mrf.mxu0
  %v6185 = vadd.f32 %v6172, %v6184
  %v6186 = vpop.f32.mrf.mxu0
  %6187 = vdwg.mxu0
  %6188 = vmatpush.bf16.msra.mxu0 0
  %6189 = vmatpush.bf16.msra.mxu0 0
  %6190 = vmatpush.bf16.msra.mxu0 0
  %6191 = vmatpush.bf16.msra.mxu0 0
  %6192 = vmatpush.bf16.msra.mxu0 %v6117
  %6193 = vmatpush.bf16.msra.mxu0 %v6115
  %6194 = vmatpush.bf16.msra.mxu0 %v6113
  %6195 = vmatpush.bf16.msra.mxu0 %v6111
  %6196 = vmatmul.bf16.gmra.mxu0 %v6160
  %v6197 = vpop.f32.mrf.mxu0
  %v6198 = vadd.f32 %v6185, %v6197
  %v6199 = vpop.f32.mrf.mxu0
  %6200 = vdwg.mxu0
  %6201 = vmatpush.bf16.msra.mxu0 %v6094
  %6202 = vmatpush.bf16.msra.mxu0 %v6092
  %6203 = vmatpush.bf16.msra.mxu0 %v6090
  %6204 = vmatpush.bf16.msra.mxu0 %v6088
  %6205 = vmatpush.bf16.msra.mxu0 %v6086
  %6206 = vmatpush.bf16.msra.mxu0 %v6084
  %6207 = vmatpush.bf16.msra.mxu0 %v6082
  %6208 = vmatpush.bf16.msra.mxu0 %v6080
  %6209 = vmatmul.bf16.gmra.mxu0 %v5940
  %v6210 = vpop.f32.mrf.mxu0
  %v6211 = vadd.f32 0.0, %v6210
  %v6212 = vpop.f32.mrf.mxu0
  %6213 = vdwg.mxu0
  %6214 = vmatpush.bf16.msra.mxu0 %v6110
  %6215 = vmatpush.bf16.msra.mxu0 %v6108
  %6216 = vmatpush.bf16.msra.mxu0 %v6106
  %6217 = vmatpush.bf16.msra.mxu0 %v6104
  %6218 = vmatpush.bf16.msra.mxu0 %v6102
  %6219 = vmatpush.bf16.msra.mxu0 %v6100
  %6220 = vmatpush.bf16.msra.mxu0 %v6098
  %6221 = vmatpush.bf16.msra.mxu0 %v6096
  %6222 = vmatmul.bf16.gmra.mxu0 %v5948
  %v6223 = vpop.f32.mrf.mxu0
  %v6224 = vadd.f32 %v6211, %v6223
  %v6225 = vpop.f32.mrf.mxu0
  %6226 = vdwg.mxu0
  %6227 = vmatpush.bf16.msra.mxu0 0
  %6228 = vmatpush.bf16.msra.mxu0 0
  %6229 = vmatpush.bf16.msra.mxu0 0
  %6230 = vmatpush.bf16.msra.mxu0 0
  %6231 = vmatpush.bf16.msra.mxu0 %v6118
  %6232 = vmatpush.bf16.msra.mxu0 %v6116
  %6233 = vmatpush.bf16.msra.mxu0 %v6114
  %6234 = vmatpush.bf16.msra.mxu0 %v6112
  %6235 = vmatmul.bf16.gmra.mxu0 %v6160
  %v6236 = vpop.f32.mrf.mxu0
  %v6237 = vadd.f32 %v6224, %v6236
  %v6238 = vpop.f32.mrf.mxu0
  %6239 = vdwg.mxu0
  %v6241 = vshrl.u32 %v5841, 16
  %v6243 = vrot.slane %v6241, 2
  %v6244 = vshll.u32 %v5841, 16
  %v6246 = vrot.slane %v6244, 3
  %v6247 = vor.u32 %v6243, %v6246
  %v6249 = vshrl.u32 %v5842, 16
  %v6251 = vrot.slane %v6249, 2
  %v6252 = vshll.u32 %v5842, 16
  %v6254 = vrot.slane %v6252, 3
  %v6255 = vor.u32 %v6251, %v6254
  %v6257 = vshrl.u32 %v5843, 16
  %v6259 = vrot.slane %v6257, 2
  %v6260 = vshll.u32 %v5843, 16
  %v6262 = vrot.slane %v6260, 3
  %v6263 = vor.u32 %v6259, %v6262
  %v6306 = vunpack.c.l.b16 %v5844
  %v6307 = vunpack.c.h.b16 %v5844
  %v6308 = vunpack.c.l.b16 %v5845
  %v6309 = vunpack.c.h.b16 %v5845
  %v6310 = vunpack.c.l.b16 %v5846
  %v6311 = vunpack.c.h.b16 %v5846
  %v6312 = vunpack.c.l.b16 %v5847
  %v6313 = vunpack.c.h.b16 %v5847
  %v6314 = vunpack.c.l.b16 %v5848
  %v6315 = vunpack.c.h.b16 %v5848
  %v6316 = vunpack.c.l.b16 %v5849
  %v6317 = vunpack.c.h.b16 %v5849
  %v6318 = vunpack.c.l.b16 %v5850
  %v6319 = vunpack.c.h.b16 %v5850
  %v6320 = vunpack.c.l.b16 %v5851
  %v6321 = vunpack.c.h.b16 %v5851
  %v6322 = vunpack.c.l.b16 %v5852
  %v6323 = vunpack.c.h.b16 %v5852
  %v6324 = vunpack.c.l.b16 %v5853
  %v6325 = vunpack.c.h.b16 %v5853
  %v6326 = vunpack.c.l.b16 %v5854
  %v6327 = vunpack.c.h.b16 %v5854
  %v6328 = vunpack.c.l.b16 %v5855
  %v6329 = vunpack.c.h.b16 %v5855
  %v6330 = vunpack.c.l.b16 %v5856
  %v6331 = vunpack.c.h.b16 %v5856
  %v6332 = vunpack.c.l.b16 %v5857
  %v6333 = vunpack.c.h.b16 %v5857
  %v6334 = vunpack.c.l.b16 %v5858
  %v6335 = vunpack.c.h.b16 %v5858
  %v6336 = vunpack.c.l.b16 %v5859
  %v6337 = vunpack.c.h.b16 %v5859
  %v6338 = vunpack.c.l.b16 %v5860
  %v6339 = vunpack.c.h.b16 %v5860
  %v6340 = vunpack.c.l.b16 %v5861
  %v6341 = vunpack.c.h.b16 %v5861
  %v6342 = vunpack.c.l.b16 %v5862
  %v6343 = vunpack.c.h.b16 %v5862
  %v6344 = vunpack.c.l.b16 %v5863
  %v6345 = vunpack.c.h.b16 %v5863
  %v6346 = vunpack.c.l.b16 %v5864
  %v6347 = vunpack.c.h.b16 %v5864
  %v6348 = vunpack.c.l.b16 %v5865
  %v6349 = vunpack.c.h.b16 %v5865
  %v6350 = vunpack.c.l.b16 %v5866
  %v6351 = vunpack.c.h.b16 %v5866
  %v6352 = vunpack.c.l.b16 %v5867
  %v6353 = vunpack.c.h.b16 %v5867
  %v6354 = vunpack.c.l.b16 %v5868
  %v6355 = vunpack.c.h.b16 %v5868
  %v6356 = vunpack.c.l.b16 %v5869
  %v6357 = vunpack.c.h.b16 %v5869
  %v6358 = vunpack.c.l.b16 %v5870
  %v6359 = vunpack.c.h.b16 %v5870
  %v6360 = vunpack.c.l.b16 %v5871
  %v6361 = vunpack.c.h.b16 %v5871
  %v6362 = vunpack.c.l.b16 %v5872
  %v6363 = vunpack.c.h.b16 %v5872
  %v6364 = vunpack.c.l.b16 %v5873
  %v6365 = vunpack.c.h.b16 %v5873
  %v6366 = vunpack.c.l.b16 %v5874
  %v6367 = vunpack.c.h.b16 %v5874
  %v6368 = vunpack.c.l.b16 %v5875
  %v6369 = vunpack.c.h.b16 %v5875
  %v6370 = vunpack.c.l.b16 %v5876
  %v6371 = vunpack.c.h.b16 %v5876
  %v6372 = vunpack.c.l.b16 %v5877
  %v6373 = vunpack.c.h.b16 %v5877
  %v6374 = vunpack.c.l.b16 %v5878
  %v6375 = vunpack.c.h.b16 %v5878
  %v6376 = vunpack.c.l.b16 %v5879
  %v6377 = vunpack.c.h.b16 %v5879
  %v6378 = vunpack.c.l.b16 %v5880
  %v6379 = vunpack.c.h.b16 %v5880
  %v6380 = vunpack.c.l.b16 %v5881
  %v6381 = vunpack.c.h.b16 %v5881
  %v6382 = vunpack.c.l.b16 %v5882
  %v6383 = vunpack.c.h.b16 %v5882
  %v6384 = vunpack.c.l.b16 %v5883
  %v6385 = vunpack.c.h.b16 %v5883
  %v6386 = vpack.c.b16 %v6308, %v6306
  %v6387 = vpack.c.b16 %v6309, %v6307
  %v6388 = vpack.c.b16 %v6312, %v6310
  %v6389 = vpack.c.b16 %v6313, %v6311
  %v6390 = vpack.c.b16 %v6316, %v6314
  %v6391 = vpack.c.b16 %v6317, %v6315
  %v6392 = vpack.c.b16 %v6320, %v6318
  %v6393 = vpack.c.b16 %v6321, %v6319
  %v6394 = vpack.c.b16 %v6324, %v6322
  %v6395 = vpack.c.b16 %v6325, %v6323
  %v6396 = vpack.c.b16 %v6328, %v6326
  %v6397 = vpack.c.b16 %v6329, %v6327
  %v6398 = vpack.c.b16 %v6332, %v6330
  %v6399 = vpack.c.b16 %v6333, %v6331
  %v6400 = vpack.c.b16 %v6336, %v6334
  %v6401 = vpack.c.b16 %v6337, %v6335
  %v6402 = vpack.c.b16 %v6340, %v6338
  %v6403 = vpack.c.b16 %v6341, %v6339
  %v6404 = vpack.c.b16 %v6344, %v6342
  %v6405 = vpack.c.b16 %v6345, %v6343
  %v6406 = vpack.c.b16 %v6348, %v6346
  %v6407 = vpack.c.b16 %v6349, %v6347
  %v6408 = vpack.c.b16 %v6352, %v6350
  %v6409 = vpack.c.b16 %v6353, %v6351
  %v6410 = vpack.c.b16 %v6356, %v6354
  %v6411 = vpack.c.b16 %v6357, %v6355
  %v6412 = vpack.c.b16 %v6360, %v6358
  %v6413 = vpack.c.b16 %v6361, %v6359
  %v6414 = vpack.c.b16 %v6364, %v6362
  %v6415 = vpack.c.b16 %v6365, %v6363
  %v6416 = vpack.c.b16 %v6368, %v6366
  %v6417 = vpack.c.b16 %v6369, %v6367
  %v6418 = vpack.c.b16 %v6372, %v6370
  %v6419 = vpack.c.b16 %v6373, %v6371
  %v6420 = vpack.c.b16 %v6376, %v6374
  %v6421 = vpack.c.b16 %v6377, %v6375
  %v6422 = vpack.c.b16 %v6380, %v6378
  %v6423 = vpack.c.b16 %v6381, %v6379
  %v6424 = vpack.c.b16 %v6384, %v6382
  %v6425 = vpack.c.b16 %v6385, %v6383
  %v6467 = vsel %vm3734, %v6263, 0
  %6469 = vmatpush.bf16.msra.mxu0 %v6400
  %6470 = vmatpush.bf16.msra.mxu0 %v6398
  %6471 = vmatpush.bf16.msra.mxu0 %v6396
  %6472 = vmatpush.bf16.msra.mxu0 %v6394
  %6473 = vmatpush.bf16.msra.mxu0 %v6392
  %6474 = vmatpush.bf16.msra.mxu0 %v6390
  %6475 = vmatpush.bf16.msra.mxu0 %v6388
  %6476 = vmatpush.bf16.msra.mxu0 %v6386
  %6477 = vmatmul.bf16.gmra.mxu0 %v6247
  %v6478 = vpop.f32.mrf.mxu0
  %v6479 = vadd.f32 %v6198, %v6478
  %v6480 = vpop.f32.mrf.mxu0
  %6481 = vdwg.mxu0
  %6482 = vmatpush.bf16.msra.mxu0 %v6416
  %6483 = vmatpush.bf16.msra.mxu0 %v6414
  %6484 = vmatpush.bf16.msra.mxu0 %v6412
  %6485 = vmatpush.bf16.msra.mxu0 %v6410
  %6486 = vmatpush.bf16.msra.mxu0 %v6408
  %6487 = vmatpush.bf16.msra.mxu0 %v6406
  %6488 = vmatpush.bf16.msra.mxu0 %v6404
  %6489 = vmatpush.bf16.msra.mxu0 %v6402
  %6490 = vmatmul.bf16.gmra.mxu0 %v6255
  %v6491 = vpop.f32.mrf.mxu0
  %v6492 = vadd.f32 %v6479, %v6491
  %v6493 = vpop.f32.mrf.mxu0
  %6494 = vdwg.mxu0
  %6495 = vmatpush.bf16.msra.mxu0 0
  %6496 = vmatpush.bf16.msra.mxu0 0
  %6497 = vmatpush.bf16.msra.mxu0 0
  %6498 = vmatpush.bf16.msra.mxu0 0
  %6499 = vmatpush.bf16.msra.mxu0 %v6424
  %6500 = vmatpush.bf16.msra.mxu0 %v6422
  %6501 = vmatpush.bf16.msra.mxu0 %v6420
  %6502 = vmatpush.bf16.msra.mxu0 %v6418
  %6503 = vmatmul.bf16.gmra.mxu0 %v6467
  %v6504 = vpop.f32.mrf.mxu0
  %v6505 = vadd.f32 %v6492, %v6504
  %v6506 = vpop.f32.mrf.mxu0
  %6507 = vdwg.mxu0
  %6508 = vmatpush.bf16.msra.mxu0 %v6401
  %6509 = vmatpush.bf16.msra.mxu0 %v6399
  %6510 = vmatpush.bf16.msra.mxu0 %v6397
  %6511 = vmatpush.bf16.msra.mxu0 %v6395
  %6512 = vmatpush.bf16.msra.mxu0 %v6393
  %6513 = vmatpush.bf16.msra.mxu0 %v6391
  %6514 = vmatpush.bf16.msra.mxu0 %v6389
  %6515 = vmatpush.bf16.msra.mxu0 %v6387
  %6516 = vmatmul.bf16.gmra.mxu0 %v6247
  %v6517 = vpop.f32.mrf.mxu0
  %v6518 = vadd.f32 %v6237, %v6517
  %v6519 = vpop.f32.mrf.mxu0
  %6520 = vdwg.mxu0
  %6521 = vmatpush.bf16.msra.mxu0 %v6417
  %6522 = vmatpush.bf16.msra.mxu0 %v6415
  %6523 = vmatpush.bf16.msra.mxu0 %v6413
  %6524 = vmatpush.bf16.msra.mxu0 %v6411
  %6525 = vmatpush.bf16.msra.mxu0 %v6409
  %6526 = vmatpush.bf16.msra.mxu0 %v6407
  %6527 = vmatpush.bf16.msra.mxu0 %v6405
  %6528 = vmatpush.bf16.msra.mxu0 %v6403
  %6529 = vmatmul.bf16.gmra.mxu0 %v6255
  %v6530 = vpop.f32.mrf.mxu0
  %v6531 = vadd.f32 %v6518, %v6530
  %v6532 = vpop.f32.mrf.mxu0
  %6533 = vdwg.mxu0
  %6534 = vmatpush.bf16.msra.mxu0 0
  %6535 = vmatpush.bf16.msra.mxu0 0
  %6536 = vmatpush.bf16.msra.mxu0 0
  %6537 = vmatpush.bf16.msra.mxu0 0
  %6538 = vmatpush.bf16.msra.mxu0 %v6425
  %6539 = vmatpush.bf16.msra.mxu0 %v6423
  %6540 = vmatpush.bf16.msra.mxu0 %v6421
  %6541 = vmatpush.bf16.msra.mxu0 %v6419
  %6542 = vmatmul.bf16.gmra.mxu0 %v6467
  %v6543 = vpop.f32.mrf.mxu0
  %v6544 = vadd.f32 %v6531, %v6543
  %v6545 = vpop.f32.mrf.mxu0
  %6546 = vdwg.mxu0
  %v6547 = vld [vmem:[#allocation2] sm:$0xc0]
  %v6548 = vld [vmem:[#allocation2 + $0x8] sm:$0xc0]
  %v6549 = vld [vmem:[#allocation2 + $0x10] sm:$0xc0]
  %v6550 = vld [vmem:[#allocation2 + $0x18] sm:$0x3]
  %v6551 = vld [vmem:[#allocation2 + $0x20] sm:$0x3]
  %v6552 = vld [vmem:[#allocation2 + $0x28] sm:$0x3]
  %v6553 = vpack.c.bf16 %v6550, %v6547
  %v6554 = vpack.c.bf16 %v6551, %v6548
  %v6555 = vpack.c.bf16 %v6552, %v6549
  %v6556 = vld [vmem:[%s4103] sm:$0xff]
  %v6557 = vld [vmem:[%s4103 + $0x8] sm:$0xff]
  %v6558 = vld [vmem:[%s4103 + $0x10] sm:$0xff]
  %v6559 = vld [vmem:[%s4103 + $0x18] sm:$0xff]
  %v6560 = vld [vmem:[%s4103 + $0x20] sm:$0xff]
  %v6561 = vld [vmem:[%s4103 + $0x28] sm:$0xff]
  %v6562 = vld [vmem:[%s4103 + $0x30] sm:$0xff]
  %v6563 = vld [vmem:[%s4103 + $0x38] sm:$0xff]
  %v6564 = vld [vmem:[%s4103 + $0x40] sm:$0xff]
  %v6565 = vld [vmem:[%s4103 + $0x48] sm:$0xff]
  %v6566 = vld [vmem:[%s4103 + $0x50] sm:$0xff]
  %v6567 = vld [vmem:[%s4103 + $0x58] sm:$0xff]
  %v6568 = vld [vmem:[%s4103 + $0x60] sm:$0xff]
  %v6569 = vld [vmem:[%s4103 + $0x68] sm:$0xff]
  %v6570 = vld [vmem:[%s4103 + $0x70] sm:$0xff]
  %v6571 = vld [vmem:[%s4103 + $0x78] sm:$0xff]
  %v6572 = vld [vmem:[%s4103 + $0x80] sm:$0xff]
  %v6573 = vld [vmem:[%s4103 + $0x88] sm:$0xff]
  %v6574 = vld [vmem:[%s4103 + $0x90] sm:$0xff]
  %v6575 = vld [vmem:[%s4103 + $0x98] sm:$0xff]
  %v6576 = vld [vmem:[%s4103 + $0xa0] sm:$0xff]
  %v6577 = vld [vmem:[%s4103 + $0xa8] sm:$0xff]
  %v6578 = vld [vmem:[%s4103 + $0xb0] sm:$0xff]
  %v6579 = vld [vmem:[%s4103 + $0xb8] sm:$0xff]
  %v6580 = vld [vmem:[%s4103 + $0xc0] sm:$0xff]
  %v6581 = vld [vmem:[%s4103 + $0xc8] sm:$0xff]
  %v6582 = vld [vmem:[%s4103 + $0xd0] sm:$0xff]
  %v6583 = vld [vmem:[%s4103 + $0xd8] sm:$0xff]
  %v6584 = vld [vmem:[%s4103 + $0xe0] sm:$0xff]
  %v6585 = vld [vmem:[%s4103 + $0xe8] sm:$0xff]
  %v6586 = vld [vmem:[%s4103 + $0xf0] sm:$0xff]
  %v6587 = vld [vmem:[%s4103 + $0xf8] sm:$0xff]
  %v6588 = vld [vmem:[%s4103 + $0x100] sm:$0xff]
  %v6589 = vld [vmem:[%s4103 + $0x108] sm:$0xff]
  %v6590 = vld [vmem:[%s4103 + $0x110] sm:$0xff]
  %v6591 = vld [vmem:[%s4103 + $0x118] sm:$0xff]
  %v6592 = vld [vmem:[%s4103 + $0x120] sm:$0xff]
  %v6593 = vld [vmem:[%s4103 + $0x128] sm:$0xff]
  %v6594 = vld [vmem:[%s4103 + $0x130] sm:$0xff]
  %v6595 = vld [vmem:[%s4103 + $0x138] sm:$0xff]
  %v6599 = vrot.slane %v6553, 3
  %v6600 = vrot.slane %v6554, 3
  %v6601 = vrot.slane %v6555, 3
  %v6644 = vunpack.c.l.b16 %v6556
  %v6645 = vunpack.c.h.b16 %v6556
  %v6646 = vunpack.c.l.b16 %v6557
  %v6647 = vunpack.c.h.b16 %v6557
  %v6648 = vunpack.c.l.b16 %v6558
  %v6649 = vunpack.c.h.b16 %v6558
  %v6650 = vunpack.c.l.b16 %v6559
  %v6651 = vunpack.c.h.b16 %v6559
  %v6652 = vunpack.c.l.b16 %v6560
  %v6653 = vunpack.c.h.b16 %v6560
  %v6654 = vunpack.c.l.b16 %v6561
  %v6655 = vunpack.c.h.b16 %v6561
  %v6656 = vunpack.c.l.b16 %v6562
  %v6657 = vunpack.c.h.b16 %v6562
  %v6658 = vunpack.c.l.b16 %v6563
  %v6659 = vunpack.c.h.b16 %v6563
  %v6660 = vunpack.c.l.b16 %v6564
  %v6661 = vunpack.c.h.b16 %v6564
  %v6662 = vunpack.c.l.b16 %v6565
  %v6663 = vunpack.c.h.b16 %v6565
  %v6664 = vunpack.c.l.b16 %v6566
  %v6665 = vunpack.c.h.b16 %v6566
  %v6666 = vunpack.c.l.b16 %v6567
  %v6667 = vunpack.c.h.b16 %v6567
  %v6668 = vunpack.c.l.b16 %v6568
  %v6669 = vunpack.c.h.b16 %v6568
  %v6670 = vunpack.c.l.b16 %v6569
  %v6671 = vunpack.c.h.b16 %v6569
  %v6672 = vunpack.c.l.b16 %v6570
  %v6673 = vunpack.c.h.b16 %v6570
  %v6674 = vunpack.c.l.b16 %v6571
  %v6675 = vunpack.c.h.b16 %v6571
  %v6676 = vunpack.c.l.b16 %v6572
  %v6677 = vunpack.c.h.b16 %v6572
  %v6678 = vunpack.c.l.b16 %v6573
  %v6679 = vunpack.c.h.b16 %v6573
  %v6680 = vunpack.c.l.b16 %v6574
  %v6681 = vunpack.c.h.b16 %v6574
  %v6682 = vunpack.c.l.b16 %v6575
  %v6683 = vunpack.c.h.b16 %v6575
  %v6684 = vunpack.c.l.b16 %v6576
  %v6685 = vunpack.c.h.b16 %v6576
  %v6686 = vunpack.c.l.b16 %v6577
  %v6687 = vunpack.c.h.b16 %v6577
  %v6688 = vunpack.c.l.b16 %v6578
  %v6689 = vunpack.c.h.b16 %v6578
  %v6690 = vunpack.c.l.b16 %v6579
  %v6691 = vunpack.c.h.b16 %v6579
  %v6692 = vunpack.c.l.b16 %v6580
  %v6693 = vunpack.c.h.b16 %v6580
  %v6694 = vunpack.c.l.b16 %v6581
  %v6695 = vunpack.c.h.b16 %v6581
  %v6696 = vunpack.c.l.b16 %v6582
  %v6697 = vunpack.c.h.b16 %v6582
  %v6698 = vunpack.c.l.b16 %v6583
  %v6699 = vunpack.c.h.b16 %v6583
  %v6700 = vunpack.c.l.b16 %v6584
  %v6701 = vunpack.c.h.b16 %v6584
  %v6702 = vunpack.c.l.b16 %v6585
  %v6703 = vunpack.c.h.b16 %v6585
  %v6704 = vunpack.c.l.b16 %v6586
  %v6705 = vunpack.c.h.b16 %v6586
  %v6706 = vunpack.c.l.b16 %v6587
  %v6707 = vunpack.c.h.b16 %v6587
  %v6708 = vunpack.c.l.b16 %v6588
  %v6709 = vunpack.c.h.b16 %v6588
  %v6710 = vunpack.c.l.b16 %v6589
  %v6711 = vunpack.c.h.b16 %v6589
  %v6712 = vunpack.c.l.b16 %v6590
  %v6713 = vunpack.c.h.b16 %v6590
  %v6714 = vunpack.c.l.b16 %v6591
  %v6715 = vunpack.c.h.b16 %v6591
  %v6716 = vunpack.c.l.b16 %v6592
  %v6717 = vunpack.c.h.b16 %v6592
  %v6718 = vunpack.c.l.b16 %v6593
  %v6719 = vunpack.c.h.b16 %v6593
  %v6720 = vunpack.c.l.b16 %v6594
  %v6721 = vunpack.c.h.b16 %v6594
  %v6722 = vunpack.c.l.b16 %v6595
  %v6723 = vunpack.c.h.b16 %v6595
  %v6724 = vpack.c.b16 %v6646, %v6644
  %v6725 = vpack.c.b16 %v6647, %v6645
  %v6726 = vpack.c.b16 %v6650, %v6648
  %v6727 = vpack.c.b16 %v6651, %v6649
  %v6728 = vpack.c.b16 %v6654, %v6652
  %v6729 = vpack.c.b16 %v6655, %v6653
  %v6730 = vpack.c.b16 %v6658, %v6656
  %v6731 = vpack.c.b16 %v6659, %v6657
  %v6732 = vpack.c.b16 %v6662, %v6660
  %v6733 = vpack.c.b16 %v6663, %v6661
  %v6734 = vpack.c.b16 %v6666, %v6664
  %v6735 = vpack.c.b16 %v6667, %v6665
  %v6736 = vpack.c.b16 %v6670, %v6668
  %v6737 = vpack.c.b16 %v6671, %v6669
  %v6738 = vpack.c.b16 %v6674, %v6672
  %v6739 = vpack.c.b16 %v6675, %v6673
  %v6740 = vpack.c.b16 %v6678, %v6676
  %v6741 = vpack.c.b16 %v6679, %v6677
  %v6742 = vpack.c.b16 %v6682, %v6680
  %v6743 = vpack.c.b16 %v6683, %v6681
  %v6744 = vpack.c.b16 %v6686, %v6684
  %v6745 = vpack.c.b16 %v6687, %v6685
  %v6746 = vpack.c.b16 %v6690, %v6688
  %v6747 = vpack.c.b16 %v6691, %v6689
  %v6748 = vpack.c.b16 %v6694, %v6692
  %v6749 = vpack.c.b16 %v6695, %v6693
  %v6750 = vpack.c.b16 %v6698, %v6696
  %v6751 = vpack.c.b16 %v6699, %v6697
  %v6752 = vpack.c.b16 %v6702, %v6700
  %v6753 = vpack.c.b16 %v6703, %v6701
  %v6754 = vpack.c.b16 %v6706, %v6704
  %v6755 = vpack.c.b16 %v6707, %v6705
  %v6756 = vpack.c.b16 %v6710, %v6708
  %v6757 = vpack.c.b16 %v6711, %v6709
  %v6758 = vpack.c.b16 %v6714, %v6712
  %v6759 = vpack.c.b16 %v6715, %v6713
  %v6760 = vpack.c.b16 %v6718, %v6716
  %v6761 = vpack.c.b16 %v6719, %v6717
  %v6762 = vpack.c.b16 %v6722, %v6720
  %v6763 = vpack.c.b16 %v6723, %v6721
  %v6805 = vsel %vm3734, %v6601, 0
  %6807 = vmatpush.bf16.msra.mxu0 %v6738
  %6808 = vmatpush.bf16.msra.mxu0 %v6736
  %6809 = vmatpush.bf16.msra.mxu0 %v6734
  %6810 = vmatpush.bf16.msra.mxu0 %v6732
  %6811 = vmatpush.bf16.msra.mxu0 %v6730
  %6812 = vmatpush.bf16.msra.mxu0 %v6728
  %6813 = vmatpush.bf16.msra.mxu0 %v6726
  %6814 = vmatpush.bf16.msra.mxu0 %v6724
  %6815 = vmatmul.bf16.gmra.mxu0 %v6599
  %v6816 = vpop.f32.mrf.mxu0
  %v6817 = vadd.f32 0.0, %v6816
  %v6818 = vpop.f32.mrf.mxu0
  %6819 = vdwg.mxu0
  %6820 = vmatpush.bf16.msra.mxu0 %v6754
  %6821 = vmatpush.bf16.msra.mxu0 %v6752
  %6822 = vmatpush.bf16.msra.mxu0 %v6750
  %6823 = vmatpush.bf16.msra.mxu0 %v6748
  %6824 = vmatpush.bf16.msra.mxu0 %v6746
  %6825 = vmatpush.bf16.msra.mxu0 %v6744
  %6826 = vmatpush.bf16.msra.mxu0 %v6742
  %6827 = vmatpush.bf16.msra.mxu0 %v6740
  %6828 = vmatmul.bf16.gmra.mxu0 %v6600
  %v6829 = vpop.f32.mrf.mxu0
  %v6830 = vadd.f32 %v6817, %v6829
  %v6831 = vpop.f32.mrf.mxu0
  %6832 = vdwg.mxu0
  %6833 = vmatpush.bf16.msra.mxu0 0
  %6834 = vmatpush.bf16.msra.mxu0 0
  %6835 = vmatpush.bf16.msra.mxu0 0
  %6836 = vmatpush.bf16.msra.mxu0 0
  %6837 = vmatpush.bf16.msra.mxu0 %v6762
  %6838 = vmatpush.bf16.msra.mxu0 %v6760
  %6839 = vmatpush.bf16.msra.mxu0 %v6758
  %6840 = vmatpush.bf16.msra.mxu0 %v6756
  %6841 = vmatmul.bf16.gmra.mxu0 %v6805
  %v6842 = vpop.f32.mrf.mxu0
  %v6843 = vadd.f32 %v6830, %v6842
  %v6844 = vpop.f32.mrf.mxu0
  %6845 = vdwg.mxu0
  %6846 = vmatpush.bf16.msra.mxu0 %v6739
  %6847 = vmatpush.bf16.msra.mxu0 %v6737
  %6848 = vmatpush.bf16.msra.mxu0 %v6735
  %6849 = vmatpush.bf16.msra.mxu0 %v6733
  %6850 = vmatpush.bf16.msra.mxu0 %v6731
  %6851 = vmatpush.bf16.msra.mxu0 %v6729
  %6852 = vmatpush.bf16.msra.mxu0 %v6727
  %6853 = vmatpush.bf16.msra.mxu0 %v6725
  %6854 = vmatmul.bf16.gmra.mxu0 %v6599
  %v6855 = vpop.f32.mrf.mxu0
  %v6856 = vadd.f32 0.0, %v6855
  %v6857 = vpop.f32.mrf.mxu0
  %6858 = vdwg.mxu0
  %6859 = vmatpush.bf16.msra.mxu0 %v6755
  %6860 = vmatpush.bf16.msra.mxu0 %v6753
  %6861 = vmatpush.bf16.msra.mxu0 %v6751
  %6862 = vmatpush.bf16.msra.mxu0 %v6749
  %6863 = vmatpush.bf16.msra.mxu0 %v6747
  %6864 = vmatpush.bf16.msra.mxu0 %v6745
  %6865 = vmatpush.bf16.msra.mxu0 %v6743
  %6866 = vmatpush.bf16.msra.mxu0 %v6741
  %6867 = vmatmul.bf16.gmra.mxu0 %v6600
  %v6868 = vpop.f32.mrf.mxu0
  %v6869 = vadd.f32 %v6856, %v6868
  %v6870 = vpop.f32.mrf.mxu0
  %6871 = vdwg.mxu0
  %6872 = vmatpush.bf16.msra.mxu0 0
  %6873 = vmatpush.bf16.msra.mxu0 0
  %6874 = vmatpush.bf16.msra.mxu0 0
  %6875 = vmatpush.bf16.msra.mxu0 0
  %6876 = vmatpush.bf16.msra.mxu0 %v6763
  %6877 = vmatpush.bf16.msra.mxu0 %v6761
  %6878 = vmatpush.bf16.msra.mxu0 %v6759
  %6879 = vmatpush.bf16.msra.mxu0 %v6757
  %6880 = vmatmul.bf16.gmra.mxu0 %v6805
  %v6881 = vpop.f32.mrf.mxu0
  %v6882 = vadd.f32 %v6869, %v6881
  %v6883 = vpop.f32.mrf.mxu0
  %6884 = vdwg.mxu0
  %v6885 = vadd.f32 %v6505, %v6843
  %v6886 = vadd.f32 %v6544, %v6882
  %v6887 = vld [vmem:[%s3270] sm:$0xc0]
  %v6888 = vld [vmem:[%s3270 + $0x8] sm:$0xc0]
  %v6889 = vld [vmem:[%s3270 + $0x10] sm:$0xc0]
  %v6890 = vld [vmem:[%s3270 + $0x18] sm:$0x3]
  %v6891 = vld [vmem:[%s3270 + $0x20] sm:$0x3]
  %v6892 = vld [vmem:[%s3270 + $0x28] sm:$0x3]
  %v6893 = vpack.c.bf16 %v6890, %v6887
  %v6894 = vpack.c.bf16 %v6891, %v6888
  %v6895 = vpack.c.bf16 %v6892, %v6889
  %v6896 = vld [vmem:[%s4456] sm:$0xff]
  %v6897 = vld [vmem:[%s4456 + $0x8] sm:$0xff]
  %v6898 = vld [vmem:[%s4456 + $0x10] sm:$0xff]
  %v6899 = vld [vmem:[%s4456 + $0x18] sm:$0xff]
  %v6900 = vld [vmem:[%s4456 + $0x20] sm:$0xff]
  %v6901 = vld [vmem:[%s4456 + $0x28] sm:$0xff]
  %v6902 = vld [vmem:[%s4456 + $0x30] sm:$0xff]
  %v6903 = vld [vmem:[%s4456 + $0x38] sm:$0xff]
  %v6904 = vld [vmem:[%s4456 + $0x40] sm:$0xff]
  %v6905 = vld [vmem:[%s4456 + $0x48] sm:$0xff]
  %v6906 = vld [vmem:[%s4456 + $0x50] sm:$0xff]
  %v6907 = vld [vmem:[%s4456 + $0x58] sm:$0xff]
  %v6908 = vld [vmem:[%s4456 + $0x60] sm:$0xff]
  %v6909 = vld [vmem:[%s4456 + $0x68] sm:$0xff]
  %v6910 = vld [vmem:[%s4456 + $0x70] sm:$0xff]
  %v6911 = vld [vmem:[%s4456 + $0x78] sm:$0xff]
  %v6912 = vld [vmem:[%s4456 + $0x80] sm:$0xff]
  %v6913 = vld [vmem:[%s4456 + $0x88] sm:$0xff]
  %v6914 = vld [vmem:[%s4456 + $0x90] sm:$0xff]
  %v6915 = vld [vmem:[%s4456 + $0x98] sm:$0xff]
  %v6916 = vld [vmem:[%s4456 + $0xa0] sm:$0xff]
  %v6917 = vld [vmem:[%s4456 + $0xa8] sm:$0xff]
  %v6918 = vld [vmem:[%s4456 + $0xb0] sm:$0xff]
  %v6919 = vld [vmem:[%s4456 + $0xb8] sm:$0xff]
  %v6920 = vld [vmem:[%s4456 + $0xc0] sm:$0xff]
  %v6921 = vld [vmem:[%s4456 + $0xc8] sm:$0xff]
  %v6922 = vld [vmem:[%s4456 + $0xd0] sm:$0xff]
  %v6923 = vld [vmem:[%s4456 + $0xd8] sm:$0xff]
  %v6924 = vld [vmem:[%s4456 + $0xe0] sm:$0xff]
  %v6925 = vld [vmem:[%s4456 + $0xe8] sm:$0xff]
  %v6926 = vld [vmem:[%s4456 + $0xf0] sm:$0xff]
  %v6927 = vld [vmem:[%s4456 + $0xf8] sm:$0xff]
  %v6928 = vld [vmem:[%s4456 + $0x100] sm:$0xff]
  %v6929 = vld [vmem:[%s4456 + $0x108] sm:$0xff]
  %v6930 = vld [vmem:[%s4456 + $0x110] sm:$0xff]
  %v6931 = vld [vmem:[%s4456 + $0x118] sm:$0xff]
  %v6932 = vld [vmem:[%s4456 + $0x120] sm:$0xff]
  %v6933 = vld [vmem:[%s4456 + $0x128] sm:$0xff]
  %v6934 = vld [vmem:[%s4456 + $0x130] sm:$0xff]
  %v6935 = vld [vmem:[%s4456 + $0x138] sm:$0xff]
  %v6939 = vrot.slane %v6893, 3
  %v6940 = vrot.slane %v6894, 3
  %v6941 = vrot.slane %v6895, 3
  %v6984 = vunpack.c.l.b16 %v6896
  %v6985 = vunpack.c.h.b16 %v6896
  %v6986 = vunpack.c.l.b16 %v6897
  %v6987 = vunpack.c.h.b16 %v6897
  %v6988 = vunpack.c.l.b16 %v6898
  %v6989 = vunpack.c.h.b16 %v6898
  %v6990 = vunpack.c.l.b16 %v6899
  %v6991 = vunpack.c.h.b16 %v6899
  %v6992 = vunpack.c.l.b16 %v6900
  %v6993 = vunpack.c.h.b16 %v6900
  %v6994 = vunpack.c.l.b16 %v6901
  %v6995 = vunpack.c.h.b16 %v6901
  %v6996 = vunpack.c.l.b16 %v6902
  %v6997 = vunpack.c.h.b16 %v6902
  %v6998 = vunpack.c.l.b16 %v6903
  %v6999 = vunpack.c.h.b16 %v6903
  %v7000 = vunpack.c.l.b16 %v6904
  %v7001 = vunpack.c.h.b16 %v6904
  %v7002 = vunpack.c.l.b16 %v6905
  %v7003 = vunpack.c.h.b16 %v6905
  %v7004 = vunpack.c.l.b16 %v6906
  %v7005 = vunpack.c.h.b16 %v6906
  %v7006 = vunpack.c.l.b16 %v6907
  %v7007 = vunpack.c.h.b16 %v6907
  %v7008 = vunpack.c.l.b16 %v6908
  %v7009 = vunpack.c.h.b16 %v6908
  %v7010 = vunpack.c.l.b16 %v6909
  %v7011 = vunpack.c.h.b16 %v6909
  %v7012 = vunpack.c.l.b16 %v6910
  %v7013 = vunpack.c.h.b16 %v6910
  %v7014 = vunpack.c.l.b16 %v6911
  %v7015 = vunpack.c.h.b16 %v6911
  %v7016 = vunpack.c.l.b16 %v6912
  %v7017 = vunpack.c.h.b16 %v6912
  %v7018 = vunpack.c.l.b16 %v6913
  %v7019 = vunpack.c.h.b16 %v6913
  %v7020 = vunpack.c.l.b16 %v6914
  %v7021 = vunpack.c.h.b16 %v6914
  %v7022 = vunpack.c.l.b16 %v6915
  %v7023 = vunpack.c.h.b16 %v6915
  %v7024 = vunpack.c.l.b16 %v6916
  %v7025 = vunpack.c.h.b16 %v6916
  %v7026 = vunpack.c.l.b16 %v6917
  %v7027 = vunpack.c.h.b16 %v6917
  %v7028 = vunpack.c.l.b16 %v6918
  %v7029 = vunpack.c.h.b16 %v6918
  %v7030 = vunpack.c.l.b16 %v6919
  %v7031 = vunpack.c.h.b16 %v6919
  %v7032 = vunpack.c.l.b16 %v6920
  %v7033 = vunpack.c.h.b16 %v6920
  %v7034 = vunpack.c.l.b16 %v6921
  %v7035 = vunpack.c.h.b16 %v6921
  %v7036 = vunpack.c.l.b16 %v6922
  %v7037 = vunpack.c.h.b16 %v6922
  %v7038 = vunpack.c.l.b16 %v6923
  %v7039 = vunpack.c.h.b16 %v6923
  %v7040 = vunpack.c.l.b16 %v6924
  %v7041 = vunpack.c.h.b16 %v6924
  %v7042 = vunpack.c.l.b16 %v6925
  %v7043 = vunpack.c.h.b16 %v6925
  %v7044 = vunpack.c.l.b16 %v6926
  %v7045 = vunpack.c.h.b16 %v6926
  %v7046 = vunpack.c.l.b16 %v6927
  %v7047 = vunpack.c.h.b16 %v6927
  %v7048 = vunpack.c.l.b16 %v6928
  %v7049 = vunpack.c.h.b16 %v6928
  %v7050 = vunpack.c.l.b16 %v6929
  %v7051 = vunpack.c.h.b16 %v6929
  %v7052 = vunpack.c.l.b16 %v6930
  %v7053 = vunpack.c.h.b16 %v6930
  %v7054 = vunpack.c.l.b16 %v6931
  %v7055 = vunpack.c.h.b16 %v6931
  %v7056 = vunpack.c.l.b16 %v6932
  %v7057 = vunpack.c.h.b16 %v6932
  %v7058 = vunpack.c.l.b16 %v6933
  %v7059 = vunpack.c.h.b16 %v6933
  %v7060 = vunpack.c.l.b16 %v6934
  %v7061 = vunpack.c.h.b16 %v6934
  %v7062 = vunpack.c.l.b16 %v6935
  %v7063 = vunpack.c.h.b16 %v6935
  %v7064 = vpack.c.b16 %v6986, %v6984
  %v7065 = vpack.c.b16 %v6987, %v6985
  %v7066 = vpack.c.b16 %v6990, %v6988
  %v7067 = vpack.c.b16 %v6991, %v6989
  %v7068 = vpack.c.b16 %v6994, %v6992
  %v7069 = vpack.c.b16 %v6995, %v6993
  %v7070 = vpack.c.b16 %v6998, %v6996
  %v7071 = vpack.c.b16 %v6999, %v6997
  %v7072 = vpack.c.b16 %v7002, %v7000
  %v7073 = vpack.c.b16 %v7003, %v7001
  %v7074 = vpack.c.b16 %v7006, %v7004
  %v7075 = vpack.c.b16 %v7007, %v7005
  %v7076 = vpack.c.b16 %v7010, %v7008
  %v7077 = vpack.c.b16 %v7011, %v7009
  %v7078 = vpack.c.b16 %v7014, %v7012
  %v7079 = vpack.c.b16 %v7015, %v7013
  %v7080 = vpack.c.b16 %v7018, %v7016
  %v7081 = vpack.c.b16 %v7019, %v7017
  %v7082 = vpack.c.b16 %v7022, %v7020
  %v7083 = vpack.c.b16 %v7023, %v7021
  %v7084 = vpack.c.b16 %v7026, %v7024
  %v7085 = vpack.c.b16 %v7027, %v7025
  %v7086 = vpack.c.b16 %v7030, %v7028
  %v7087 = vpack.c.b16 %v7031, %v7029
  %v7088 = vpack.c.b16 %v7034, %v7032
  %v7089 = vpack.c.b16 %v7035, %v7033
  %v7090 = vpack.c.b16 %v7038, %v7036
  %v7091 = vpack.c.b16 %v7039, %v7037
  %v7092 = vpack.c.b16 %v7042, %v7040
  %v7093 = vpack.c.b16 %v7043, %v7041
  %v7094 = vpack.c.b16 %v7046, %v7044
  %v7095 = vpack.c.b16 %v7047, %v7045
  %v7096 = vpack.c.b16 %v7050, %v7048
  %v7097 = vpack.c.b16 %v7051, %v7049
  %v7098 = vpack.c.b16 %v7054, %v7052
  %v7099 = vpack.c.b16 %v7055, %v7053
  %v7100 = vpack.c.b16 %v7058, %v7056
  %v7101 = vpack.c.b16 %v7059, %v7057
  %v7102 = vpack.c.b16 %v7062, %v7060
  %v7103 = vpack.c.b16 %v7063, %v7061
  %v7145 = vsel %vm3734, %v6941, 0
  %7147 = vmatpush.bf16.msra.mxu0 %v7078
  %7148 = vmatpush.bf16.msra.mxu0 %v7076
  %7149 = vmatpush.bf16.msra.mxu0 %v7074
  %7150 = vmatpush.bf16.msra.mxu0 %v7072
  %7151 = vmatpush.bf16.msra.mxu0 %v7070
  %7152 = vmatpush.bf16.msra.mxu0 %v7068
  %7153 = vmatpush.bf16.msra.mxu0 %v7066
  %7154 = vmatpush.bf16.msra.mxu0 %v7064
  %7155 = vmatmul.bf16.gmra.mxu0 %v6939
  %v7156 = vpop.f32.mrf.mxu0
  %v7157 = vadd.f32 0.0, %v7156
  %v7158 = vpop.f32.mrf.mxu0
  %7159 = vdwg.mxu0
  %7160 = vmatpush.bf16.msra.mxu0 %v7094
  %7161 = vmatpush.bf16.msra.mxu0 %v7092
  %7162 = vmatpush.bf16.msra.mxu0 %v7090
  %7163 = vmatpush.bf16.msra.mxu0 %v7088
  %7164 = vmatpush.bf16.msra.mxu0 %v7086
  %7165 = vmatpush.bf16.msra.mxu0 %v7084
  %7166 = vmatpush.bf16.msra.mxu0 %v7082
  %7167 = vmatpush.bf16.msra.mxu0 %v7080
  %7168 = vmatmul.bf16.gmra.mxu0 %v6940
  %v7169 = vpop.f32.mrf.mxu0
  %v7170 = vadd.f32 %v7157, %v7169
  %v7171 = vpop.f32.mrf.mxu0
  %7172 = vdwg.mxu0
  %7173 = vmatpush.bf16.msra.mxu0 0
  %7174 = vmatpush.bf16.msra.mxu0 0
  %7175 = vmatpush.bf16.msra.mxu0 0
  %7176 = vmatpush.bf16.msra.mxu0 0
  %7177 = vmatpush.bf16.msra.mxu0 %v7102
  %7178 = vmatpush.bf16.msra.mxu0 %v7100
  %7179 = vmatpush.bf16.msra.mxu0 %v7098
  %7180 = vmatpush.bf16.msra.mxu0 %v7096
  %7181 = vmatmul.bf16.gmra.mxu0 %v7145
  %v7182 = vpop.f32.mrf.mxu0
  %v7183 = vadd.f32 %v7170, %v7182
  %v7184 = vpop.f32.mrf.mxu0
  %7185 = vdwg.mxu0
  %7186 = vmatpush.bf16.msra.mxu0 %v7079
  %7187 = vmatpush.bf16.msra.mxu0 %v7077
  %7188 = vmatpush.bf16.msra.mxu0 %v7075
  %7189 = vmatpush.bf16.msra.mxu0 %v7073
  %7190 = vmatpush.bf16.msra.mxu0 %v7071
  %7191 = vmatpush.bf16.msra.mxu0 %v7069
  %7192 = vmatpush.bf16.msra.mxu0 %v7067
  %7193 = vmatpush.bf16.msra.mxu0 %v7065
  %7194 = vmatmul.bf16.gmra.mxu0 %v6939
  %v7195 = vpop.f32.mrf.mxu0
  %v7196 = vadd.f32 0.0, %v7195
  %v7197 = vpop.f32.mrf.mxu0
  %7198 = vdwg.mxu0
  %7199 = vmatpush.bf16.msra.mxu0 %v7095
  %7200 = vmatpush.bf16.msra.mxu0 %v7093
  %7201 = vmatpush.bf16.msra.mxu0 %v7091
  %7202 = vmatpush.bf16.msra.mxu0 %v7089
  %7203 = vmatpush.bf16.msra.mxu0 %v7087
  %7204 = vmatpush.bf16.msra.mxu0 %v7085
  %7205 = vmatpush.bf16.msra.mxu0 %v7083
  %7206 = vmatpush.bf16.msra.mxu0 %v7081
  %7207 = vmatmul.bf16.gmra.mxu0 %v6940
  %v7208 = vpop.f32.mrf.mxu0
  %v7209 = vadd.f32 %v7196, %v7208
  %v7210 = vpop.f32.mrf.mxu0
  %7211 = vdwg.mxu0
  %7212 = vmatpush.bf16.msra.mxu0 0
  %7213 = vmatpush.bf16.msra.mxu0 0
  %7214 = vmatpush.bf16.msra.mxu0 0
  %7215 = vmatpush.bf16.msra.mxu0 0
  %7216 = vmatpush.bf16.msra.mxu0 %v7103
  %7217 = vmatpush.bf16.msra.mxu0 %v7101
  %7218 = vmatpush.bf16.msra.mxu0 %v7099
  %7219 = vmatpush.bf16.msra.mxu0 %v7097
  %7220 = vmatmul.bf16.gmra.mxu0 %v7145
  %v7221 = vpop.f32.mrf.mxu0
  %v7222 = vadd.f32 %v7209, %v7221
  %v7223 = vpop.f32.mrf.mxu0
  %7224 = vdwg.mxu0
  %v7225 = vadd.f32 %v6885, %v7183
  %v7226 = vadd.f32 %v6886, %v7222
  %v7227 = vld [vmem:[%s4] sm:$0x3]
  %v7229 = vperm.slane %v7227, 0
  %v7230 = vperm.slane %v7227, 1
  %v7233 = vadd.f32 %v7225, %v7229
  %v7234 = vadd.f32 %v7226, %v7230
  %v7235 = vmax.f32 %v7233, 0.0
  %v7236 = vmax.f32 %v7234, 0.0
  %v7237 = vpack.c.bf16 %v7235, %v7235
  %v7238 = vpack.c.bf16 %v7236, %v7236
  %v7239 = vld [vmem:[%s5] sm:$0xf]
  %v7240 = vld [vmem:[%s5 + $0x4] sm:$0xf]
  %v7241 = vld [vmem:[%s5 + $0x8] sm:$0xf]
  %v7242 = vld [vmem:[%s5 + $0xc] sm:$0xf]
  %v7243 = vld [vmem:[%s5 + $0x10] sm:$0xf]
  %v7244 = vld [vmem:[%s5 + $0x14] sm:$0xf]
  %v7245 = vld [vmem:[%s5 + $0x18] sm:$0xf]
  %v7246 = vld [vmem:[%s5 + $0x1c] sm:$0xf]
  %v7247 = vld [vmem:[%s5 + $0x20] sm:$0xf]
  %v7248 = vld [vmem:[%s5 + $0x24] sm:$0xf]
  %v7249 = vld [vmem:[%s5 + $0x28] sm:$0xf]
  %v7250 = vld [vmem:[%s5 + $0x2c] sm:$0xf]
  %v7251 = vld [vmem:[%s5 + $0x30] sm:$0xf]
  %v7252 = vld [vmem:[%s5 + $0x34] sm:$0xf]
  %v7253 = vld [vmem:[%s5 + $0x38] sm:$0xf]
  %v7254 = vld [vmem:[%s5 + $0x3c] sm:$0xf]
  %v7255 = vld [vmem:[%s5 + $0x40] sm:$0xf]
  %v7256 = vld [vmem:[%s5 + $0x44] sm:$0xf]
  %v7257 = vld [vmem:[%s5 + $0x48] sm:$0xf]
  %v7258 = vld [vmem:[%s5 + $0x4c] sm:$0xf]
  %v7259 = vld [vmem:[%s5 + $0x50] sm:$0xf]
  %v7260 = vld [vmem:[%s5 + $0x54] sm:$0xf]
  %v7261 = vld [vmem:[%s5 + $0x58] sm:$0xf]
  %v7262 = vld [vmem:[%s5 + $0x5c] sm:$0xf]
  %v7263 = vld [vmem:[%s5 + $0x60] sm:$0xf]
  %v7264 = vld [vmem:[%s5 + $0x64] sm:$0xf]
  %v7265 = vld [vmem:[%s5 + $0x68] sm:$0xf]
  %v7266 = vld [vmem:[%s5 + $0x6c] sm:$0xf]
  %v7267 = vld [vmem:[%s5 + $0x70] sm:$0xf]
  %v7268 = vld [vmem:[%s5 + $0x74] sm:$0xf]
  %v7269 = vld [vmem:[%s5 + $0x78] sm:$0xf]
  %v7270 = vld [vmem:[%s5 + $0x7c] sm:$0xf]
  %v7271 = vld [vmem:[%s4847] sm:$0xf]
  %v7272 = vld [vmem:[%s4847 + $0x4] sm:$0xf]
  %v7273 = vld [vmem:[%s4847 + $0x8] sm:$0xf]
  %v7274 = vld [vmem:[%s4847 + $0xc] sm:$0xf]
  %v7275 = vld [vmem:[%s4847 + $0x10] sm:$0xf]
  %v7276 = vld [vmem:[%s4847 + $0x14] sm:$0xf]
  %v7277 = vld [vmem:[%s4847 + $0x18] sm:$0xf]
  %v7278 = vld [vmem:[%s4847 + $0x1c] sm:$0xf]
  %v7279 = vld [vmem:[%s4847 + $0x20] sm:$0xf]
  %v7280 = vld [vmem:[%s4847 + $0x24] sm:$0xf]
  %v7281 = vld [vmem:[%s4847 + $0x28] sm:$0xf]
  %v7282 = vld [vmem:[%s4847 + $0x2c] sm:$0xf]
  %v7283 = vld [vmem:[%s4847 + $0x30] sm:$0xf]
  %v7284 = vld [vmem:[%s4847 + $0x34] sm:$0xf]
  %v7285 = vld [vmem:[%s4847 + $0x38] sm:$0xf]
  %v7286 = vld [vmem:[%s4847 + $0x3c] sm:$0xf]
  %v7287 = vld [vmem:[%s4847 + $0x40] sm:$0xf]
  %v7288 = vld [vmem:[%s4847 + $0x44] sm:$0xf]
  %v7289 = vld [vmem:[%s4847 + $0x48] sm:$0xf]
  %v7290 = vld [vmem:[%s4847 + $0x4c] sm:$0xf]
  %v7291 = vld [vmem:[%s4847 + $0x50] sm:$0xf]
  %v7292 = vld [vmem:[%s4847 + $0x54] sm:$0xf]
  %v7293 = vld [vmem:[%s4847 + $0x58] sm:$0xf]
  %v7294 = vld [vmem:[%s4847 + $0x5c] sm:$0xf]
  %v7295 = vld [vmem:[%s4847 + $0x60] sm:$0xf]
  %v7296 = vld [vmem:[%s4847 + $0x64] sm:$0xf]
  %v7297 = vld [vmem:[%s4847 + $0x68] sm:$0xf]
  %v7298 = vld [vmem:[%s4847 + $0x6c] sm:$0xf]
  %v7299 = vld [vmem:[%s4847 + $0x70] sm:$0xf]
  %v7300 = vld [vmem:[%s4847 + $0x74] sm:$0xf]
  %v7301 = vld [vmem:[%s4847 + $0x78] sm:$0xf]
  %v7302 = vld [vmem:[%s4847 + $0x7c] sm:$0xf]
  %v7304 = vshrl.u32 %v7237, 16
  %v7306 = vshll.u32 %v7237, 16
  %v7308 = vrot.slane %v7306, 1
  %v7309 = vor.u32 %v7304, %v7308
  %v7311 = vshrl.u32 %v7238, 16
  %v7313 = vshll.u32 %v7238, 16
  %v7315 = vrot.slane %v7313, 1
  %v7316 = vor.u32 %v7311, %v7315
  %v7351 = vunpack.c.l.b16 %v7271
  %v7352 = vunpack.c.l.b16 %v7272
  %v7353 = vunpack.c.l.b16 %v7273
  %v7354 = vunpack.c.l.b16 %v7274
  %v7355 = vunpack.c.l.b16 %v7275
  %v7356 = vunpack.c.l.b16 %v7276
  %v7357 = vunpack.c.l.b16 %v7277
  %v7358 = vunpack.c.l.b16 %v7278
  %v7359 = vunpack.c.l.b16 %v7279
  %v7360 = vunpack.c.l.b16 %v7280
  %v7361 = vunpack.c.l.b16 %v7281
  %v7362 = vunpack.c.l.b16 %v7282
  %v7363 = vunpack.c.l.b16 %v7283
  %v7364 = vunpack.c.l.b16 %v7284
  %v7365 = vunpack.c.l.b16 %v7285
  %v7366 = vunpack.c.l.b16 %v7286
  %v7367 = vunpack.c.l.b16 %v7287
  %v7368 = vunpack.c.l.b16 %v7288
  %v7369 = vunpack.c.l.b16 %v7289
  %v7370 = vunpack.c.l.b16 %v7290
  %v7371 = vunpack.c.l.b16 %v7291
  %v7372 = vunpack.c.l.b16 %v7292
  %v7373 = vunpack.c.l.b16 %v7293
  %v7374 = vunpack.c.l.b16 %v7294
  %v7375 = vunpack.c.l.b16 %v7295
  %v7376 = vunpack.c.l.b16 %v7296
  %v7377 = vunpack.c.l.b16 %v7297
  %v7378 = vunpack.c.l.b16 %v7298
  %v7379 = vunpack.c.l.b16 %v7299
  %v7380 = vunpack.c.l.b16 %v7300
  %v7381 = vunpack.c.l.b16 %v7301
  %v7382 = vunpack.c.l.b16 %v7302
  %v7383 = vpack.c.b16 %v7352, %v7351
  %v7384 = vpack.c.b16 %v7354, %v7353
  %v7385 = vpack.c.b16 %v7356, %v7355
  %v7386 = vpack.c.b16 %v7358, %v7357
  %v7387 = vpack.c.b16 %v7360, %v7359
  %v7388 = vpack.c.b16 %v7362, %v7361
  %v7389 = vpack.c.b16 %v7364, %v7363
  %v7390 = vpack.c.b16 %v7366, %v7365
  %v7391 = vpack.c.b16 %v7368, %v7367
  %v7392 = vpack.c.b16 %v7370, %v7369
  %v7393 = vpack.c.b16 %v7372, %v7371
  %v7394 = vpack.c.b16 %v7374, %v7373
  %v7395 = vpack.c.b16 %v7376, %v7375
  %v7396 = vpack.c.b16 %v7378, %v7377
  %v7397 = vpack.c.b16 %v7380, %v7379
  %v7398 = vpack.c.b16 %v7382, %v7381
  %7415 = vmatpush.bf16.msra.mxu0 %v7390
  %7416 = vmatpush.bf16.msra.mxu0 %v7389
  %7417 = vmatpush.bf16.msra.mxu0 %v7388
  %7418 = vmatpush.bf16.msra.mxu0 %v7387
  %7419 = vmatpush.bf16.msra.mxu0 %v7386
  %7420 = vmatpush.bf16.msra.mxu0 %v7385
  %7421 = vmatpush.bf16.msra.mxu0 %v7384
  %7422 = vmatpush.bf16.msra.mxu0 %v7383
  %7423 = vmatmul.bf16.gmra.mxu0 %v7309
  %v7424 = vpop.f32.mrf.mxu0
  %v7425 = vadd.f32 0.0, %v7424
  %v7426 = vpop.f32.mrf.mxu0
  %7427 = vdwg.mxu0
  %7428 = vmatpush.bf16.msra.mxu0 %v7398
  %7429 = vmatpush.bf16.msra.mxu0 %v7397
  %7430 = vmatpush.bf16.msra.mxu0 %v7396
  %7431 = vmatpush.bf16.msra.mxu0 %v7395
  %7432 = vmatpush.bf16.msra.mxu0 %v7394
  %7433 = vmatpush.bf16.msra.mxu0 %v7393
  %7434 = vmatpush.bf16.msra.mxu0 %v7392
  %7435 = vmatpush.bf16.msra.mxu0 %v7391
  %7436 = vmatmul.bf16.gmra.mxu0 %v7316
  %v7437 = vpop.f32.mrf.mxu0
  %v7438 = vadd.f32 %v7425, %v7437
  %v7439 = vpop.f32.mrf.mxu0
  %7440 = vdwg.mxu0
  %v7473 = vunpack.c.l.b16 %v7239
  %v7474 = vunpack.c.l.b16 %v7240
  %v7475 = vunpack.c.l.b16 %v7241
  %v7476 = vunpack.c.l.b16 %v7242
  %v7477 = vunpack.c.l.b16 %v7243
  %v7478 = vunpack.c.l.b16 %v7244
  %v7479 = vunpack.c.l.b16 %v7245
  %v7480 = vunpack.c.l.b16 %v7246
  %v7481 = vunpack.c.l.b16 %v7247
  %v7482 = vunpack.c.l.b16 %v7248
  %v7483 = vunpack.c.l.b16 %v7249
  %v7484 = vunpack.c.l.b16 %v7250
  %v7485 = vunpack.c.l.b16 %v7251
  %v7486 = vunpack.c.l.b16 %v7252
  %v7487 = vunpack.c.l.b16 %v7253
  %v7488 = vunpack.c.l.b16 %v7254
  %v7489 = vunpack.c.l.b16 %v7255
  %v7490 = vunpack.c.l.b16 %v7256
  %v7491 = vunpack.c.l.b16 %v7257
  %v7492 = vunpack.c.l.b16 %v7258
  %v7493 = vunpack.c.l.b16 %v7259
  %v7494 = vunpack.c.l.b16 %v7260
  %v7495 = vunpack.c.l.b16 %v7261
  %v7496 = vunpack.c.l.b16 %v7262
  %v7497 = vunpack.c.l.b16 %v7263
  %v7498 = vunpack.c.l.b16 %v7264
  %v7499 = vunpack.c.l.b16 %v7265
  %v7500 = vunpack.c.l.b16 %v7266
  %v7501 = vunpack.c.l.b16 %v7267
  %v7502 = vunpack.c.l.b16 %v7268
  %v7503 = vunpack.c.l.b16 %v7269
  %v7504 = vunpack.c.l.b16 %v7270
  %v7505 = vpack.c.b16 %v7474, %v7473
  %v7506 = vpack.c.b16 %v7476, %v7475
  %v7507 = vpack.c.b16 %v7478, %v7477
  %v7508 = vpack.c.b16 %v7480, %v7479
  %v7509 = vpack.c.b16 %v7482, %v7481
  %v7510 = vpack.c.b16 %v7484, %v7483
  %v7511 = vpack.c.b16 %v7486, %v7485
  %v7512 = vpack.c.b16 %v7488, %v7487
  %v7513 = vpack.c.b16 %v7490, %v7489
  %v7514 = vpack.c.b16 %v7492, %v7491
  %v7515 = vpack.c.b16 %v7494, %v7493
  %v7516 = vpack.c.b16 %v7496, %v7495
  %v7517 = vpack.c.b16 %v7498, %v7497
  %v7518 = vpack.c.b16 %v7500, %v7499
  %v7519 = vpack.c.b16 %v7502, %v7501
  %v7520 = vpack.c.b16 %v7504, %v7503
  %7537 = vmatpush.bf16.msra.mxu0 %v7512
  %7538 = vmatpush.bf16.msra.mxu0 %v7511
  %7539 = vmatpush.bf16.msra.mxu0 %v7510
  %7540 = vmatpush.bf16.msra.mxu0 %v7509
  %7541 = vmatpush.bf16.msra.mxu0 %v7508
  %7542 = vmatpush.bf16.msra.mxu0 %v7507
  %7543 = vmatpush.bf16.msra.mxu0 %v7506
  %7544 = vmatpush.bf16.msra.mxu0 %v7505
  %7545 = vmatmul.bf16.gmra.mxu0 %v7237
  %v7546 = vpop.f32.mrf.mxu0
  %v7547 = vadd.f32 %v7438, %v7546
  %v7548 = vpop.f32.mrf.mxu0
  %7549 = vdwg.mxu0
  %7550 = vmatpush.bf16.msra.mxu0 %v7520
  %7551 = vmatpush.bf16.msra.mxu0 %v7519
  %7552 = vmatpush.bf16.msra.mxu0 %v7518
  %7553 = vmatpush.bf16.msra.mxu0 %v7517
  %7554 = vmatpush.bf16.msra.mxu0 %v7516
  %7555 = vmatpush.bf16.msra.mxu0 %v7515
  %7556 = vmatpush.bf16.msra.mxu0 %v7514
  %7557 = vmatpush.bf16.msra.mxu0 %v7513
  %7558 = vmatmul.bf16.gmra.mxu0 %v7238
  %v7559 = vpop.f32.mrf.mxu0
  %v7560 = vadd.f32 %v7547, %v7559
  %v7561 = vpop.f32.mrf.mxu0
  %7562 = vdwg.mxu0
  %v7563 = vld [vmem:[%s5140] sm:$0xf]
  %v7564 = vld [vmem:[%s5140 + $0x4] sm:$0xf]
  %v7565 = vld [vmem:[%s5140 + $0x8] sm:$0xf]
  %v7566 = vld [vmem:[%s5140 + $0xc] sm:$0xf]
  %v7567 = vld [vmem:[%s5140 + $0x10] sm:$0xf]
  %v7568 = vld [vmem:[%s5140 + $0x14] sm:$0xf]
  %v7569 = vld [vmem:[%s5140 + $0x18] sm:$0xf]
  %v7570 = vld [vmem:[%s5140 + $0x1c] sm:$0xf]
  %v7571 = vld [vmem:[%s5140 + $0x20] sm:$0xf]
  %v7572 = vld [vmem:[%s5140 + $0x24] sm:$0xf]
  %v7573 = vld [vmem:[%s5140 + $0x28] sm:$0xf]
  %v7574 = vld [vmem:[%s5140 + $0x2c] sm:$0xf]
  %v7575 = vld [vmem:[%s5140 + $0x30] sm:$0xf]
  %v7576 = vld [vmem:[%s5140 + $0x34] sm:$0xf]
  %v7577 = vld [vmem:[%s5140 + $0x38] sm:$0xf]
  %v7578 = vld [vmem:[%s5140 + $0x3c] sm:$0xf]
  %v7579 = vld [vmem:[%s5140 + $0x40] sm:$0xf]
  %v7580 = vld [vmem:[%s5140 + $0x44] sm:$0xf]
  %v7581 = vld [vmem:[%s5140 + $0x48] sm:$0xf]
  %v7582 = vld [vmem:[%s5140 + $0x4c] sm:$0xf]
  %v7583 = vld [vmem:[%s5140 + $0x50] sm:$0xf]
  %v7584 = vld [vmem:[%s5140 + $0x54] sm:$0xf]
  %v7585 = vld [vmem:[%s5140 + $0x58] sm:$0xf]
  %v7586 = vld [vmem:[%s5140 + $0x5c] sm:$0xf]
  %v7587 = vld [vmem:[%s5140 + $0x60] sm:$0xf]
  %v7588 = vld [vmem:[%s5140 + $0x64] sm:$0xf]
  %v7589 = vld [vmem:[%s5140 + $0x68] sm:$0xf]
  %v7590 = vld [vmem:[%s5140 + $0x6c] sm:$0xf]
  %v7591 = vld [vmem:[%s5140 + $0x70] sm:$0xf]
  %v7592 = vld [vmem:[%s5140 + $0x74] sm:$0xf]
  %v7593 = vld [vmem:[%s5140 + $0x78] sm:$0xf]
  %v7594 = vld [vmem:[%s5140 + $0x7c] sm:$0xf]
  %v7597 = vrot.slane %v7237, 1
  %v7598 = vrot.slane %v7238, 1
  %v7633 = vunpack.c.l.b16 %v7563
  %v7634 = vunpack.c.l.b16 %v7564
  %v7635 = vunpack.c.l.b16 %v7565
  %v7636 = vunpack.c.l.b16 %v7566
  %v7637 = vunpack.c.l.b16 %v7567
  %v7638 = vunpack.c.l.b16 %v7568
  %v7639 = vunpack.c.l.b16 %v7569
  %v7640 = vunpack.c.l.b16 %v7570
  %v7641 = vunpack.c.l.b16 %v7571
  %v7642 = vunpack.c.l.b16 %v7572
  %v7643 = vunpack.c.l.b16 %v7573
  %v7644 = vunpack.c.l.b16 %v7574
  %v7645 = vunpack.c.l.b16 %v7575
  %v7646 = vunpack.c.l.b16 %v7576
  %v7647 = vunpack.c.l.b16 %v7577
  %v7648 = vunpack.c.l.b16 %v7578
  %v7649 = vunpack.c.l.b16 %v7579
  %v7650 = vunpack.c.l.b16 %v7580
  %v7651 = vunpack.c.l.b16 %v7581
  %v7652 = vunpack.c.l.b16 %v7582
  %v7653 = vunpack.c.l.b16 %v7583
  %v7654 = vunpack.c.l.b16 %v7584
  %v7655 = vunpack.c.l.b16 %v7585
  %v7656 = vunpack.c.l.b16 %v7586
  %v7657 = vunpack.c.l.b16 %v7587
  %v7658 = vunpack.c.l.b16 %v7588
  %v7659 = vunpack.c.l.b16 %v7589
  %v7660 = vunpack.c.l.b16 %v7590
  %v7661 = vunpack.c.l.b16 %v7591
  %v7662 = vunpack.c.l.b16 %v7592
  %v7663 = vunpack.c.l.b16 %v7593
  %v7664 = vunpack.c.l.b16 %v7594
  %v7665 = vpack.c.b16 %v7634, %v7633
  %v7666 = vpack.c.b16 %v7636, %v7635
  %v7667 = vpack.c.b16 %v7638, %v7637
  %v7668 = vpack.c.b16 %v7640, %v7639
  %v7669 = vpack.c.b16 %v7642, %v7641
  %v7670 = vpack.c.b16 %v7644, %v7643
  %v7671 = vpack.c.b16 %v7646, %v7645
  %v7672 = vpack.c.b16 %v7648, %v7647
  %v7673 = vpack.c.b16 %v7650, %v7649
  %v7674 = vpack.c.b16 %v7652, %v7651
  %v7675 = vpack.c.b16 %v7654, %v7653
  %v7676 = vpack.c.b16 %v7656, %v7655
  %v7677 = vpack.c.b16 %v7658, %v7657
  %v7678 = vpack.c.b16 %v7660, %v7659
  %v7679 = vpack.c.b16 %v7662, %v7661
  %v7680 = vpack.c.b16 %v7664, %v7663
  %7697 = vmatpush.bf16.msra.mxu0 %v7672
  %7698 = vmatpush.bf16.msra.mxu0 %v7671
  %7699 = vmatpush.bf16.msra.mxu0 %v7670
  %7700 = vmatpush.bf16.msra.mxu0 %v7669
  %7701 = vmatpush.bf16.msra.mxu0 %v7668
  %7702 = vmatpush.bf16.msra.mxu0 %v7667
  %7703 = vmatpush.bf16.msra.mxu0 %v7666
  %7704 = vmatpush.bf16.msra.mxu0 %v7665
  %7705 = vmatmul.bf16.gmra.mxu0 %v7597
  %v7706 = vpop.f32.mrf.mxu0
  %v7707 = vadd.f32 0.0, %v7706
  %v7708 = vpop.f32.mrf.mxu0
  %7709 = vdwg.mxu0
  %7710 = vmatpush.bf16.msra.mxu0 %v7680
  %7711 = vmatpush.bf16.msra.mxu0 %v7679
  %7712 = vmatpush.bf16.msra.mxu0 %v7678
  %7713 = vmatpush.bf16.msra.mxu0 %v7677
  %7714 = vmatpush.bf16.msra.mxu0 %v7676
  %7715 = vmatpush.bf16.msra.mxu0 %v7675
  %7716 = vmatpush.bf16.msra.mxu0 %v7674
  %7717 = vmatpush.bf16.msra.mxu0 %v7673
  %7718 = vmatmul.bf16.gmra.mxu0 %v7598
  %v7719 = vpop.f32.mrf.mxu0
  %v7720 = vadd.f32 %v7707, %v7719
  %v7721 = vpop.f32.mrf.mxu0
  %7722 = vdwg.mxu0
  %v7723 = vadd.f32 %v7560, %v7720
  %v7724 = vld [vmem:[%s6] sm:$0x1]
  %v7726 = vperm.slane %v7724, 0
  %v7728 = vadd.f32 %v7723, %v7726
  %v7729 = vmax.f32 %v7728, 0.0
  %v7730 = vpack.c.bf16 %v7729, %v7729
  %v7731 = vld [vmem:[%s7] sm:$0xff]
  %v7732 = vld [vmem:[%s7 + $0x8] sm:$0xff]
  %v7733 = vld [vmem:[%s7 + $0x10] sm:$0xff]
  %v7734 = vld [vmem:[%s7 + $0x18] sm:$0xff]
  %v7735 = vld [vmem:[%s7 + $0x20] sm:$0xff]
  %v7736 = vld [vmem:[%s7 + $0x28] sm:$0xff]
  %v7737 = vld [vmem:[%s7 + $0x30] sm:$0xff]
  %v7738 = vld [vmem:[%s7 + $0x38] sm:$0xff]
  %v7739 = vld [vmem:[%s7 + $0x40] sm:$0xff]
  %v7740 = vld [vmem:[%s7 + $0x48] sm:$0xff]
  %v7741 = vld [vmem:[%s7 + $0x50] sm:$0xff]
  %v7742 = vld [vmem:[%s7 + $0x58] sm:$0xff]
  %v7743 = vld [vmem:[%s7 + $0x60] sm:$0xff]
  %v7744 = vld [vmem:[%s7 + $0x68] sm:$0xff]
  %v7745 = vld [vmem:[%s7 + $0x70] sm:$0xff]
  %v7746 = vld [vmem:[%s7 + $0x78] sm:$0xff]
  %v7747 = vld [vmem:[%s7 + $0x80] sm:$0xff]
  %v7748 = vld [vmem:[%s7 + $0x88] sm:$0xff]
  %v7749 = vld [vmem:[%s7 + $0x90] sm:$0xff]
  %v7750 = vld [vmem:[%s7 + $0x98] sm:$0xff]
  %v7751 = vld [vmem:[%s7 + $0xa0] sm:$0xff]
  %v7752 = vld [vmem:[%s7 + $0xa8] sm:$0xff]
  %v7753 = vld [vmem:[%s7 + $0xb0] sm:$0xff]
  %v7754 = vld [vmem:[%s7 + $0xb8] sm:$0xff]
  %v7755 = vld [vmem:[%s7 + $0xc0] sm:$0xff]
  %v7756 = vld [vmem:[%s7 + $0xc8] sm:$0xff]
  %v7757 = vld [vmem:[%s7 + $0xd0] sm:$0xff]
  %v7758 = vld [vmem:[%s7 + $0xd8] sm:$0xff]
  %v7759 = vld [vmem:[%s7 + $0xe0] sm:$0xff]
  %v7760 = vld [vmem:[%s7 + $0xe8] sm:$0xff]
  %v7761 = vld [vmem:[%s7 + $0xf0] sm:$0xff]
  %v7762 = vld [vmem:[%s7 + $0xf8] sm:$0xff]
  %v7763 = vld [vmem:[%s5341] sm:$0xff]
  %v7764 = vld [vmem:[%s5341 + $0x8] sm:$0xff]
  %v7765 = vld [vmem:[%s5341 + $0x10] sm:$0xff]
  %v7766 = vld [vmem:[%s5341 + $0x18] sm:$0xff]
  %v7767 = vld [vmem:[%s5341 + $0x20] sm:$0xff]
  %v7768 = vld [vmem:[%s5341 + $0x28] sm:$0xff]
  %v7769 = vld [vmem:[%s5341 + $0x30] sm:$0xff]
  %v7770 = vld [vmem:[%s5341 + $0x38] sm:$0xff]
  %v7771 = vld [vmem:[%s5341 + $0x40] sm:$0xff]
  %v7772 = vld [vmem:[%s5341 + $0x48] sm:$0xff]
  %v7773 = vld [vmem:[%s5341 + $0x50] sm:$0xff]
  %v7774 = vld [vmem:[%s5341 + $0x58] sm:$0xff]
  %v7775 = vld [vmem:[%s5341 + $0x60] sm:$0xff]
  %v7776 = vld [vmem:[%s5341 + $0x68] sm:$0xff]
  %v7777 = vld [vmem:[%s5341 + $0x70] sm:$0xff]
  %v7778 = vld [vmem:[%s5341 + $0x78] sm:$0xff]
  %v7779 = vld [vmem:[%s5341 + $0x80] sm:$0xff]
  %v7780 = vld [vmem:[%s5341 + $0x88] sm:$0xff]
  %v7781 = vld [vmem:[%s5341 + $0x90] sm:$0xff]
  %v7782 = vld [vmem:[%s5341 + $0x98] sm:$0xff]
  %v7783 = vld [vmem:[%s5341 + $0xa0] sm:$0xff]
  %v7784 = vld [vmem:[%s5341 + $0xa8] sm:$0xff]
  %v7785 = vld [vmem:[%s5341 + $0xb0] sm:$0xff]
  %v7786 = vld [vmem:[%s5341 + $0xb8] sm:$0xff]
  %v7787 = vld [vmem:[%s5341 + $0xc0] sm:$0xff]
  %v7788 = vld [vmem:[%s5341 + $0xc8] sm:$0xff]
  %v7789 = vld [vmem:[%s5341 + $0xd0] sm:$0xff]
  %v7790 = vld [vmem:[%s5341 + $0xd8] sm:$0xff]
  %v7791 = vld [vmem:[%s5341 + $0xe0] sm:$0xff]
  %v7792 = vld [vmem:[%s5341 + $0xe8] sm:$0xff]
  %v7793 = vld [vmem:[%s5341 + $0xf0] sm:$0xff]
  %v7794 = vld [vmem:[%s5341 + $0xf8] sm:$0xff]
  %v7796 = vshrl.u32 %v7730, 16
  %v7831 = vunpack.c.l.b16 %v7763
  %v7832 = vunpack.c.h.b16 %v7763
  %v7833 = vunpack.c.l.b16 %v7764
  %v7834 = vunpack.c.h.b16 %v7764
  %v7835 = vunpack.c.l.b16 %v7765
  %v7836 = vunpack.c.h.b16 %v7765
  %v7837 = vunpack.c.l.b16 %v7766
  %v7838 = vunpack.c.h.b16 %v7766
  %v7839 = vunpack.c.l.b16 %v7767
  %v7840 = vunpack.c.h.b16 %v7767
  %v7841 = vunpack.c.l.b16 %v7768
  %v7842 = vunpack.c.h.b16 %v7768
  %v7843 = vunpack.c.l.b16 %v7769
  %v7844 = vunpack.c.h.b16 %v7769
  %v7845 = vunpack.c.l.b16 %v7770
  %v7846 = vunpack.c.h.b16 %v7770
  %v7847 = vunpack.c.l.b16 %v7771
  %v7848 = vunpack.c.h.b16 %v7771
  %v7849 = vunpack.c.l.b16 %v7772
  %v7850 = vunpack.c.h.b16 %v7772
  %v7851 = vunpack.c.l.b16 %v7773
  %v7852 = vunpack.c.h.b16 %v7773
  %v7853 = vunpack.c.l.b16 %v7774
  %v7854 = vunpack.c.h.b16 %v7774
  %v7855 = vunpack.c.l.b16 %v7775
  %v7856 = vunpack.c.h.b16 %v7775
  %v7857 = vunpack.c.l.b16 %v7776
  %v7858 = vunpack.c.h.b16 %v7776
  %v7859 = vunpack.c.l.b16 %v7777
  %v7860 = vunpack.c.h.b16 %v7777
  %v7861 = vunpack.c.l.b16 %v7778
  %v7862 = vunpack.c.h.b16 %v7778
  %v7863 = vunpack.c.l.b16 %v7779
  %v7864 = vunpack.c.h.b16 %v7779
  %v7865 = vunpack.c.l.b16 %v7780
  %v7866 = vunpack.c.h.b16 %v7780
  %v7867 = vunpack.c.l.b16 %v7781
  %v7868 = vunpack.c.h.b16 %v7781
  %v7869 = vunpack.c.l.b16 %v7782
  %v7870 = vunpack.c.h.b16 %v7782
  %v7871 = vunpack.c.l.b16 %v7783
  %v7872 = vunpack.c.h.b16 %v7783
  %v7873 = vunpack.c.l.b16 %v7784
  %v7874 = vunpack.c.h.b16 %v7784
  %v7875 = vunpack.c.l.b16 %v7785
  %v7876 = vunpack.c.h.b16 %v7785
  %v7877 = vunpack.c.l.b16 %v7786
  %v7878 = vunpack.c.h.b16 %v7786
  %v7879 = vunpack.c.l.b16 %v7787
  %v7880 = vunpack.c.h.b16 %v7787
  %v7881 = vunpack.c.l.b16 %v7788
  %v7882 = vunpack.c.h.b16 %v7788
  %v7883 = vunpack.c.l.b16 %v7789
  %v7884 = vunpack.c.h.b16 %v7789
  %v7885 = vunpack.c.l.b16 %v7790
  %v7886 = vunpack.c.h.b16 %v7790
  %v7887 = vunpack.c.l.b16 %v7791
  %v7888 = vunpack.c.h.b16 %v7791
  %v7889 = vunpack.c.l.b16 %v7792
  %v7890 = vunpack.c.h.b16 %v7792
  %v7891 = vunpack.c.l.b16 %v7793
  %v7892 = vunpack.c.h.b16 %v7793
  %v7893 = vunpack.c.l.b16 %v7794
  %v7894 = vunpack.c.h.b16 %v7794
  %v7895 = vpack.c.b16 %v7835, %v7831
  %v7896 = vpack.c.b16 %v7836, %v7832
  %v7897 = vpack.c.b16 %v7837, %v7833
  %v7898 = vpack.c.b16 %v7838, %v7834
  %v7899 = vpack.c.b16 %v7843, %v7839
  %v7900 = vpack.c.b16 %v7844, %v7840
  %v7901 = vpack.c.b16 %v7845, %v7841
  %v7902 = vpack.c.b16 %v7846, %v7842
  %v7903 = vpack.c.b16 %v7851, %v7847
  %v7904 = vpack.c.b16 %v7852, %v7848
  %v7905 = vpack.c.b16 %v7853, %v7849
  %v7906 = vpack.c.b16 %v7854, %v7850
  %v7907 = vpack.c.b16 %v7859, %v7855
  %v7908 = vpack.c.b16 %v7860, %v7856
  %v7909 = vpack.c.b16 %v7861, %v7857
  %v7910 = vpack.c.b16 %v7862, %v7858
  %v7911 = vpack.c.b16 %v7867, %v7863
  %v7912 = vpack.c.b16 %v7868, %v7864
  %v7913 = vpack.c.b16 %v7869, %v7865
  %v7914 = vpack.c.b16 %v7870, %v7866
  %v7915 = vpack.c.b16 %v7875, %v7871
  %v7916 = vpack.c.b16 %v7876, %v7872
  %v7917 = vpack.c.b16 %v7877, %v7873
  %v7918 = vpack.c.b16 %v7878, %v7874
  %v7919 = vpack.c.b16 %v7883, %v7879
  %v7920 = vpack.c.b16 %v7884, %v7880
  %v7921 = vpack.c.b16 %v7885, %v7881
  %v7922 = vpack.c.b16 %v7886, %v7882
  %v7923 = vpack.c.b16 %v7891, %v7887
  %v7924 = vpack.c.b16 %v7892, %v7888
  %v7925 = vpack.c.b16 %v7893, %v7889
  %v7926 = vpack.c.b16 %v7894, %v7890
  %7959 = vmatpush.bf16.msra.mxu0 %v7923
  %7960 = vmatpush.bf16.msra.mxu0 %v7919
  %7961 = vmatpush.bf16.msra.mxu0 %v7915
  %7962 = vmatpush.bf16.msra.mxu0 %v7911
  %7963 = vmatpush.bf16.msra.mxu0 %v7907
  %7964 = vmatpush.bf16.msra.mxu0 %v7903
  %7965 = vmatpush.bf16.msra.mxu0 %v7899
  %7966 = vmatpush.bf16.msra.mxu0 %v7895
  %7967 = vmatmul.bf16.gmra.mxu0 %v7796
  %v7968 = vpop.f32.mrf.mxu0
  %v7969 = vadd.f32 0.0, %v7968
  %v7970 = vpop.f32.mrf.mxu0
  %7971 = vdwg.mxu0
  %7972 = vmatpush.bf16.msra.mxu0 %v7924
  %7973 = vmatpush.bf16.msra.mxu0 %v7920
  %7974 = vmatpush.bf16.msra.mxu0 %v7916
  %7975 = vmatpush.bf16.msra.mxu0 %v7912
  %7976 = vmatpush.bf16.msra.mxu0 %v7908
  %7977 = vmatpush.bf16.msra.mxu0 %v7904
  %7978 = vmatpush.bf16.msra.mxu0 %v7900
  %7979 = vmatpush.bf16.msra.mxu0 %v7896
  %7980 = vmatmul.bf16.gmra.mxu0 %v7796
  %v7981 = vpop.f32.mrf.mxu0
  %v7982 = vadd.f32 0.0, %v7981
  %v7983 = vpop.f32.mrf.mxu0
  %7984 = vdwg.mxu0
  %7985 = vmatpush.bf16.msra.mxu0 %v7925
  %7986 = vmatpush.bf16.msra.mxu0 %v7921
  %7987 = vmatpush.bf16.msra.mxu0 %v7917
  %7988 = vmatpush.bf16.msra.mxu0 %v7913
  %7989 = vmatpush.bf16.msra.mxu0 %v7909
  %7990 = vmatpush.bf16.msra.mxu0 %v7905
  %7991 = vmatpush.bf16.msra.mxu0 %v7901
  %7992 = vmatpush.bf16.msra.mxu0 %v7897
  %7993 = vmatmul.bf16.gmra.mxu0 %v7796
  %v7994 = vpop.f32.mrf.mxu0
  %v7995 = vadd.f32 0.0, %v7994
  %v7996 = vpop.f32.mrf.mxu0
  %7997 = vdwg.mxu0
  %7998 = vmatpush.bf16.msra.mxu0 %v7926
  %7999 = vmatpush.bf16.msra.mxu0 %v7922
  %8000 = vmatpush.bf16.msra.mxu0 %v7918
  %8001 = vmatpush.bf16.msra.mxu0 %v7914
  %8002 = vmatpush.bf16.msra.mxu0 %v7910
  %8003 = vmatpush.bf16.msra.mxu0 %v7906
  %8004 = vmatpush.bf16.msra.mxu0 %v7902
  %8005 = vmatpush.bf16.msra.mxu0 %v7898
  %8006 = vmatmul.bf16.gmra.mxu0 %v7796
  %v8007 = vpop.f32.mrf.mxu0
  %v8008 = vadd.f32 0.0, %v8007
  %v8009 = vpop.f32.mrf.mxu0
  %8010 = vdwg.mxu0
  %v8043 = vunpack.c.l.b16 %v7731
  %v8044 = vunpack.c.h.b16 %v7731
  %v8045 = vunpack.c.l.b16 %v7732
  %v8046 = vunpack.c.h.b16 %v7732
  %v8047 = vunpack.c.l.b16 %v7733
  %v8048 = vunpack.c.h.b16 %v7733
  %v8049 = vunpack.c.l.b16 %v7734
  %v8050 = vunpack.c.h.b16 %v7734
  %v8051 = vunpack.c.l.b16 %v7735
  %v8052 = vunpack.c.h.b16 %v7735
  %v8053 = vunpack.c.l.b16 %v7736
  %v8054 = vunpack.c.h.b16 %v7736
  %v8055 = vunpack.c.l.b16 %v7737
  %v8056 = vunpack.c.h.b16 %v7737
  %v8057 = vunpack.c.l.b16 %v7738
  %v8058 = vunpack.c.h.b16 %v7738
  %v8059 = vunpack.c.l.b16 %v7739
  %v8060 = vunpack.c.h.b16 %v7739
  %v8061 = vunpack.c.l.b16 %v7740
  %v8062 = vunpack.c.h.b16 %v7740
  %v8063 = vunpack.c.l.b16 %v7741
  %v8064 = vunpack.c.h.b16 %v7741
  %v8065 = vunpack.c.l.b16 %v7742
  %v8066 = vunpack.c.h.b16 %v7742
  %v8067 = vunpack.c.l.b16 %v7743
  %v8068 = vunpack.c.h.b16 %v7743
  %v8069 = vunpack.c.l.b16 %v7744
  %v8070 = vunpack.c.h.b16 %v7744
  %v8071 = vunpack.c.l.b16 %v7745
  %v8072 = vunpack.c.h.b16 %v7745
  %v8073 = vunpack.c.l.b16 %v7746
  %v8074 = vunpack.c.h.b16 %v7746
  %v8075 = vunpack.c.l.b16 %v7747
  %v8076 = vunpack.c.h.b16 %v7747
  %v8077 = vunpack.c.l.b16 %v7748
  %v8078 = vunpack.c.h.b16 %v7748
  %v8079 = vunpack.c.l.b16 %v7749
  %v8080 = vunpack.c.h.b16 %v7749
  %v8081 = vunpack.c.l.b16 %v7750
  %v8082 = vunpack.c.h.b16 %v7750
  %v8083 = vunpack.c.l.b16 %v7751
  %v8084 = vunpack.c.h.b16 %v7751
  %v8085 = vunpack.c.l.b16 %v7752
  %v8086 = vunpack.c.h.b16 %v7752
  %v8087 = vunpack.c.l.b16 %v7753
  %v8088 = vunpack.c.h.b16 %v7753
  %v8089 = vunpack.c.l.b16 %v7754
  %v8090 = vunpack.c.h.b16 %v7754
  %v8091 = vunpack.c.l.b16 %v7755
  %v8092 = vunpack.c.h.b16 %v7755
  %v8093 = vunpack.c.l.b16 %v7756
  %v8094 = vunpack.c.h.b16 %v7756
  %v8095 = vunpack.c.l.b16 %v7757
  %v8096 = vunpack.c.h.b16 %v7757
  %v8097 = vunpack.c.l.b16 %v7758
  %v8098 = vunpack.c.h.b16 %v7758
  %v8099 = vunpack.c.l.b16 %v7759
  %v8100 = vunpack.c.h.b16 %v7759
  %v8101 = vunpack.c.l.b16 %v7760
  %v8102 = vunpack.c.h.b16 %v7760
  %v8103 = vunpack.c.l.b16 %v7761
  %v8104 = vunpack.c.h.b16 %v7761
  %v8105 = vunpack.c.l.b16 %v7762
  %v8106 = vunpack.c.h.b16 %v7762
  %v8107 = vpack.c.b16 %v8047, %v8043
  %v8108 = vpack.c.b16 %v8048, %v8044
  %v8109 = vpack.c.b16 %v8049, %v8045
  %v8110 = vpack.c.b16 %v8050, %v8046
  %v8111 = vpack.c.b16 %v8055, %v8051
  %v8112 = vpack.c.b16 %v8056, %v8052
  %v8113 = vpack.c.b16 %v8057, %v8053
  %v8114 = vpack.c.b16 %v8058, %v8054
  %v8115 = vpack.c.b16 %v8063, %v8059
  %v8116 = vpack.c.b16 %v8064, %v8060
  %v8117 = vpack.c.b16 %v8065, %v8061
  %v8118 = vpack.c.b16 %v8066, %v8062
  %v8119 = vpack.c.b16 %v8071, %v8067
  %v8120 = vpack.c.b16 %v8072, %v8068
  %v8121 = vpack.c.b16 %v8073, %v8069
  %v8122 = vpack.c.b16 %v8074, %v8070
  %v8123 = vpack.c.b16 %v8079, %v8075
  %v8124 = vpack.c.b16 %v8080, %v8076
  %v8125 = vpack.c.b16 %v8081, %v8077
  %v8126 = vpack.c.b16 %v8082, %v8078
  %v8127 = vpack.c.b16 %v8087, %v8083
  %v8128 = vpack.c.b16 %v8088, %v8084
  %v8129 = vpack.c.b16 %v8089, %v8085
  %v8130 = vpack.c.b16 %v8090, %v8086
  %v8131 = vpack.c.b16 %v8095, %v8091
  %v8132 = vpack.c.b16 %v8096, %v8092
  %v8133 = vpack.c.b16 %v8097, %v8093
  %v8134 = vpack.c.b16 %v8098, %v8094
  %v8135 = vpack.c.b16 %v8103, %v8099
  %v8136 = vpack.c.b16 %v8104, %v8100
  %v8137 = vpack.c.b16 %v8105, %v8101
  %v8138 = vpack.c.b16 %v8106, %v8102
  %8171 = vmatpush.bf16.msra.mxu0 %v8135
  %8172 = vmatpush.bf16.msra.mxu0 %v8131
  %8173 = vmatpush.bf16.msra.mxu0 %v8127
  %8174 = vmatpush.bf16.msra.mxu0 %v8123
  %8175 = vmatpush.bf16.msra.mxu0 %v8119
  %8176 = vmatpush.bf16.msra.mxu0 %v8115
  %8177 = vmatpush.bf16.msra.mxu0 %v8111
  %8178 = vmatpush.bf16.msra.mxu0 %v8107
  %8179 = vmatmul.bf16.gmra.mxu0 %v7730
  %v8180 = vpop.f32.mrf.mxu0
  %v8181 = vadd.f32 %v7969, %v8180
  %v8182 = vpop.f32.mrf.mxu0
  %8183 = vdwg.mxu0
  %8184 = vmatpush.bf16.msra.mxu0 %v8136
  %8185 = vmatpush.bf16.msra.mxu0 %v8132
  %8186 = vmatpush.bf16.msra.mxu0 %v8128
  %8187 = vmatpush.bf16.msra.mxu0 %v8124
  %8188 = vmatpush.bf16.msra.mxu0 %v8120
  %8189 = vmatpush.bf16.msra.mxu0 %v8116
  %8190 = vmatpush.bf16.msra.mxu0 %v8112
  %8191 = vmatpush.bf16.msra.mxu0 %v8108
  %8192 = vmatmul.bf16.gmra.mxu0 %v7730
  %v8193 = vpop.f32.mrf.mxu0
  %v8194 = vadd.f32 %v7982, %v8193
  %v8195 = vpop.f32.mrf.mxu0
  %8196 = vdwg.mxu0
  %8197 = vmatpush.bf16.msra.mxu0 %v8137
  %8198 = vmatpush.bf16.msra.mxu0 %v8133
  %8199 = vmatpush.bf16.msra.mxu0 %v8129
  %8200 = vmatpush.bf16.msra.mxu0 %v8125
  %8201 = vmatpush.bf16.msra.mxu0 %v8121
  %8202 = vmatpush.bf16.msra.mxu0 %v8117
  %8203 = vmatpush.bf16.msra.mxu0 %v8113
  %8204 = vmatpush.bf16.msra.mxu0 %v8109
  %8205 = vmatmul.bf16.gmra.mxu0 %v7730
  %v8206 = vpop.f32.mrf.mxu0
  %v8207 = vadd.f32 %v7995, %v8206
  %v8208 = vpop.f32.mrf.mxu0
  %8209 = vdwg.mxu0
  %8210 = vmatpush.bf16.msra.mxu0 %v8138
  %8211 = vmatpush.bf16.msra.mxu0 %v8134
  %8212 = vmatpush.bf16.msra.mxu0 %v8130
  %8213 = vmatpush.bf16.msra.mxu0 %v8126
  %8214 = vmatpush.bf16.msra.mxu0 %v8122
  %8215 = vmatpush.bf16.msra.mxu0 %v8118
  %8216 = vmatpush.bf16.msra.mxu0 %v8114
  %8217 = vmatpush.bf16.msra.mxu0 %v8110
  %8218 = vmatmul.bf16.gmra.mxu0 %v7730
  %v8219 = vpop.f32.mrf.mxu0
  %v8220 = vadd.f32 %v8008, %v8219
  %v8221 = vpop.f32.mrf.mxu0
  %8222 = vdwg.mxu0
  %v8223 = vld [vmem:[%s8] sm:$0xf]
  %v8225 = vperm.slane %v8223, 0
  %v8226 = vperm.slane %v8223, 1
  %v8227 = vperm.slane %v8223, 2
  %v8228 = vperm.slane %v8223, 3
  %v8233 = vadd.f32 %v8181, %v8225
  %v8234 = vadd.f32 %v8194, %v8226
  %v8235 = vadd.f32 %v8207, %v8227
  %v8236 = vadd.f32 %v8220, %v8228
  %v8237 = vmax.f32 %v8233, 0.0
  %v8238 = vmax.f32 %v8234, 0.0
  %v8239 = vmax.f32 %v8235, 0.0
  %v8240 = vmax.f32 %v8236, 0.0
  %v8245 = vrot.slane %v8238, 7
  %v8246 = vrot.slane %v8239, 6
  %v8247 = vrot.slane %v8240, 5
  %v8248 = vsel %vm3254, %v8237, %v8245
  %v8249 = vsel %vm5828, %v8246, %v8247
  %v8250 = vsel %vm287, %v8248, %v8249
  %s8252 = scalar_lea.vmem [#allocation3], 1
  %8253 = vst.msk [vmem:[%s8252] ss:$2 sm:$0xf] %vm5833, %v8250
  %v8254 = vld [vmem:[#allocation3] sm:$0xff]
  %8256 = vst [vmem:[#allocation1] ss:$4 sm:$0xff] %v8254
  %v8257 = vld.sshfl [vmem:[#allocation1] sm:$0xff pattern:$0x73625140]
  %v8258 = vld.sshfl [vmem:[#allocation1 + $0x8] sm:$0xff pattern:$0x73625140]
  %v8259 = vld.sshfl [vmem:[#allocation1 + $0x10] sm:$0xff pattern:$0x73625140]
  %v8260 = vld.sshfl [vmem:[#allocation1 + $0x18] sm:$0xff pattern:$0x73625140]
  %v8265 = vpack.c.bf16 %v8257, %v8257
  %v8266 = vpack.c.bf16 %v8258, %v8258
  %v8267 = vpack.c.bf16 %v8259, %v8259
  %v8268 = vpack.c.bf16 %v8260, %v8260
  %v8269 = vld [vmem:[%s9] sm:$0xff]
  %v8270 = vld [vmem:[%s9 + $0x8] sm:$0xff]
  %v8271 = vld [vmem:[%s9 + $0x10] sm:$0xff]
  %v8272 = vld [vmem:[%s9 + $0x18] sm:$0xff]
  %v8273 = vld [vmem:[%s9 + $0x20] sm:$0xff]
  %v8274 = vld [vmem:[%s9 + $0x28] sm:$0xff]
  %v8275 = vld [vmem:[%s9 + $0x30] sm:$0xff]
  %v8276 = vld [vmem:[%s9 + $0x38] sm:$0xff]
  %v8277 = vld [vmem:[%s9 + $0x40] sm:$0xff]
  %v8278 = vld [vmem:[%s9 + $0x48] sm:$0xff]
  %v8279 = vld [vmem:[%s9 + $0x50] sm:$0xff]
  %v8280 = vld [vmem:[%s9 + $0x58] sm:$0xff]
  %v8281 = vld [vmem:[%s9 + $0x60] sm:$0xff]
  %v8282 = vld [vmem:[%s9 + $0x68] sm:$0xff]
  %v8283 = vld [vmem:[%s9 + $0x70] sm:$0xff]
  %v8284 = vld [vmem:[%s9 + $0x78] sm:$0xff]
  %v8285 = vld [vmem:[%s9 + $0x80] sm:$0xff]
  %v8286 = vld [vmem:[%s9 + $0x88] sm:$0xff]
  %v8287 = vld [vmem:[%s9 + $0x90] sm:$0xff]
  %v8288 = vld [vmem:[%s9 + $0x98] sm:$0xff]
  %v8289 = vld [vmem:[%s9 + $0xa0] sm:$0xff]
  %v8290 = vld [vmem:[%s9 + $0xa8] sm:$0xff]
  %v8291 = vld [vmem:[%s9 + $0xb0] sm:$0xff]
  %v8292 = vld [vmem:[%s9 + $0xb8] sm:$0xff]
  %v8293 = vld [vmem:[%s9 + $0xc0] sm:$0xff]
  %v8294 = vld [vmem:[%s9 + $0xc8] sm:$0xff]
  %v8295 = vld [vmem:[%s9 + $0xd0] sm:$0xff]
  %v8296 = vld [vmem:[%s9 + $0xd8] sm:$0xff]
  %v8297 = vld [vmem:[%s9 + $0xe0] sm:$0xff]
  %v8298 = vld [vmem:[%s9 + $0xe8] sm:$0xff]
  %v8299 = vld [vmem:[%s9 + $0xf0] sm:$0xff]
  %v8300 = vld [vmem:[%s9 + $0xf8] sm:$0xff]
  %v8301 = vld [vmem:[%s9 + $0x100] sm:$0xff]
  %v8302 = vld [vmem:[%s9 + $0x108] sm:$0xff]
  %v8303 = vld [vmem:[%s9 + $0x110] sm:$0xff]
  %v8304 = vld [vmem:[%s9 + $0x118] sm:$0xff]
  %v8305 = vld [vmem:[%s9 + $0x120] sm:$0xff]
  %v8306 = vld [vmem:[%s9 + $0x128] sm:$0xff]
  %v8307 = vld [vmem:[%s9 + $0x130] sm:$0xff]
  %v8308 = vld [vmem:[%s9 + $0x138] sm:$0xff]
  %v8309 = vld [vmem:[%s9 + $0x140] sm:$0xff]
  %v8310 = vld [vmem:[%s9 + $0x148] sm:$0xff]
  %v8311 = vld [vmem:[%s9 + $0x150] sm:$0xff]
  %v8312 = vld [vmem:[%s9 + $0x158] sm:$0xff]
  %v8313 = vld [vmem:[%s9 + $0x160] sm:$0xff]
  %v8314 = vld [vmem:[%s9 + $0x168] sm:$0xff]
  %v8315 = vld [vmem:[%s9 + $0x170] sm:$0xff]
  %v8316 = vld [vmem:[%s9 + $0x178] sm:$0xff]
  %v8317 = vld [vmem:[%s9 + $0x180] sm:$0xff]
  %v8318 = vld [vmem:[%s9 + $0x188] sm:$0xff]
  %v8319 = vld [vmem:[%s9 + $0x190] sm:$0xff]
  %v8320 = vld [vmem:[%s9 + $0x198] sm:$0xff]
  %v8321 = vld [vmem:[%s9 + $0x1a0] sm:$0xff]
  %v8322 = vld [vmem:[%s9 + $0x1a8] sm:$0xff]
  %v8323 = vld [vmem:[%s9 + $0x1b0] sm:$0xff]
  %v8324 = vld [vmem:[%s9 + $0x1b8] sm:$0xff]
  %v8325 = vld [vmem:[%s9 + $0x1c0] sm:$0xff]
  %v8326 = vld [vmem:[%s9 + $0x1c8] sm:$0xff]
  %v8327 = vld [vmem:[%s9 + $0x1d0] sm:$0xff]
  %v8328 = vld [vmem:[%s9 + $0x1d8] sm:$0xff]
  %v8329 = vld [vmem:[%s9 + $0x1e0] sm:$0xff]
  %v8330 = vld [vmem:[%s9 + $0x1e8] sm:$0xff]
  %v8331 = vld [vmem:[%s9 + $0x1f0] sm:$0xff]
  %v8332 = vld [vmem:[%s9 + $0x1f8] sm:$0xff]
  %v8333 = vld [vmem:[%s9 + $0x200] sm:$0xff]
  %v8334 = vld [vmem:[%s9 + $0x208] sm:$0xff]
  %v8335 = vld [vmem:[%s9 + $0x210] sm:$0xff]
  %v8336 = vld [vmem:[%s9 + $0x218] sm:$0xff]
  %v8337 = vld [vmem:[%s9 + $0x220] sm:$0xff]
  %v8338 = vld [vmem:[%s9 + $0x228] sm:$0xff]
  %v8339 = vld [vmem:[%s9 + $0x230] sm:$0xff]
  %v8340 = vld [vmem:[%s9 + $0x238] sm:$0xff]
  %v8341 = vld [vmem:[%s9 + $0x240] sm:$0xff]
  %v8342 = vld [vmem:[%s9 + $0x248] sm:$0xff]
  %v8343 = vld [vmem:[%s9 + $0x250] sm:$0xff]
  %v8344 = vld [vmem:[%s9 + $0x258] sm:$0xff]
  %v8345 = vld [vmem:[%s9 + $0x260] sm:$0xff]
  %v8346 = vld [vmem:[%s9 + $0x268] sm:$0xff]
  %v8347 = vld [vmem:[%s9 + $0x270] sm:$0xff]
  %v8348 = vld [vmem:[%s9 + $0x278] sm:$0xff]
  %v8349 = vld [vmem:[%s9 + $0x280] sm:$0xff]
  %v8350 = vld [vmem:[%s9 + $0x288] sm:$0xff]
  %v8351 = vld [vmem:[%s9 + $0x290] sm:$0xff]
  %v8352 = vld [vmem:[%s9 + $0x298] sm:$0xff]
  %v8353 = vld [vmem:[%s9 + $0x2a0] sm:$0xff]
  %v8354 = vld [vmem:[%s9 + $0x2a8] sm:$0xff]
  %v8355 = vld [vmem:[%s9 + $0x2b0] sm:$0xff]
  %v8356 = vld [vmem:[%s9 + $0x2b8] sm:$0xff]
  %v8357 = vld [vmem:[%s9 + $0x2c0] sm:$0xff]
  %v8358 = vld [vmem:[%s9 + $0x2c8] sm:$0xff]
  %v8359 = vld [vmem:[%s9 + $0x2d0] sm:$0xff]
  %v8360 = vld [vmem:[%s9 + $0x2d8] sm:$0xff]
  %v8361 = vld [vmem:[%s9 + $0x2e0] sm:$0xff]
  %v8362 = vld [vmem:[%s9 + $0x2e8] sm:$0xff]
  %v8363 = vld [vmem:[%s9 + $0x2f0] sm:$0xff]
  %v8364 = vld [vmem:[%s9 + $0x2f8] sm:$0xff]
  %v8365 = vld [vmem:[%s9 + $0x300] sm:$0xff]
  %v8366 = vld [vmem:[%s9 + $0x308] sm:$0xff]
  %v8367 = vld [vmem:[%s9 + $0x310] sm:$0xff]
  %v8368 = vld [vmem:[%s9 + $0x318] sm:$0xff]
  %v8369 = vld [vmem:[%s9 + $0x320] sm:$0xff]
  %v8370 = vld [vmem:[%s9 + $0x328] sm:$0xff]
  %v8371 = vld [vmem:[%s9 + $0x330] sm:$0xff]
  %v8372 = vld [vmem:[%s9 + $0x338] sm:$0xff]
  %v8373 = vld [vmem:[%s9 + $0x340] sm:$0xff]
  %v8374 = vld [vmem:[%s9 + $0x348] sm:$0xff]
  %v8375 = vld [vmem:[%s9 + $0x350] sm:$0xff]
  %v8376 = vld [vmem:[%s9 + $0x358] sm:$0xff]
  %v8377 = vld [vmem:[%s9 + $0x360] sm:$0xff]
  %v8378 = vld [vmem:[%s9 + $0x368] sm:$0xff]
  %v8379 = vld [vmem:[%s9 + $0x370] sm:$0xff]
  %v8380 = vld [vmem:[%s9 + $0x378] sm:$0xff]
  %v8381 = vld [vmem:[%s9 + $0x380] sm:$0xff]
  %v8382 = vld [vmem:[%s9 + $0x388] sm:$0xff]
  %v8383 = vld [vmem:[%s9 + $0x390] sm:$0xff]
  %v8384 = vld [vmem:[%s9 + $0x398] sm:$0xff]
  %v8385 = vld [vmem:[%s9 + $0x3a0] sm:$0xff]
  %v8386 = vld [vmem:[%s9 + $0x3a8] sm:$0xff]
  %v8387 = vld [vmem:[%s9 + $0x3b0] sm:$0xff]
  %v8388 = vld [vmem:[%s9 + $0x3b8] sm:$0xff]
  %v8389 = vld [vmem:[%s9 + $0x3c0] sm:$0xff]
  %v8390 = vld [vmem:[%s9 + $0x3c8] sm:$0xff]
  %v8391 = vld [vmem:[%s9 + $0x3d0] sm:$0xff]
  %v8392 = vld [vmem:[%s9 + $0x3d8] sm:$0xff]
  %v8393 = vld [vmem:[%s9 + $0x3e0] sm:$0xff]
  %v8394 = vld [vmem:[%s9 + $0x3e8] sm:$0xff]
  %v8395 = vld [vmem:[%s9 + $0x3f0] sm:$0xff]
  %v8396 = vld [vmem:[%s9 + $0x3f8] sm:$0xff]
  %v8397 = vld [vmem:[%s9 + $0x400] sm:$0xff]
  %v8398 = vld [vmem:[%s9 + $0x408] sm:$0xff]
  %v8399 = vld [vmem:[%s9 + $0x410] sm:$0xff]
  %v8400 = vld [vmem:[%s9 + $0x418] sm:$0xff]
  %v8401 = vld [vmem:[%s9 + $0x420] sm:$0xff]
  %v8402 = vld [vmem:[%s9 + $0x428] sm:$0xff]
  %v8403 = vld [vmem:[%s9 + $0x430] sm:$0xff]
  %v8404 = vld [vmem:[%s9 + $0x438] sm:$0xff]
  %v8405 = vld [vmem:[%s9 + $0x440] sm:$0xff]
  %v8406 = vld [vmem:[%s9 + $0x448] sm:$0xff]
  %v8407 = vld [vmem:[%s9 + $0x450] sm:$0xff]
  %v8408 = vld [vmem:[%s9 + $0x458] sm:$0xff]
  %v8409 = vld [vmem:[%s9 + $0x460] sm:$0xff]
  %v8410 = vld [vmem:[%s9 + $0x468] sm:$0xff]
  %v8411 = vld [vmem:[%s9 + $0x470] sm:$0xff]
  %v8412 = vld [vmem:[%s9 + $0x478] sm:$0xff]
  %v8413 = vld [vmem:[%s9 + $0x480] sm:$0xff]
  %v8414 = vld [vmem:[%s9 + $0x488] sm:$0xff]
  %v8415 = vld [vmem:[%s9 + $0x490] sm:$0xff]
  %v8416 = vld [vmem:[%s9 + $0x498] sm:$0xff]
  %v8417 = vld [vmem:[%s9 + $0x4a0] sm:$0xff]
  %v8418 = vld [vmem:[%s9 + $0x4a8] sm:$0xff]
  %v8419 = vld [vmem:[%s9 + $0x4b0] sm:$0xff]
  %v8420 = vld [vmem:[%s9 + $0x4b8] sm:$0xff]
  %v8421 = vld [vmem:[%s9 + $0x4c0] sm:$0xff]
  %v8422 = vld [vmem:[%s9 + $0x4c8] sm:$0xff]
  %v8423 = vld [vmem:[%s9 + $0x4d0] sm:$0xff]
  %v8424 = vld [vmem:[%s9 + $0x4d8] sm:$0xff]
  %v8425 = vld [vmem:[%s9 + $0x4e0] sm:$0xff]
  %v8426 = vld [vmem:[%s9 + $0x4e8] sm:$0xff]
  %v8427 = vld [vmem:[%s9 + $0x4f0] sm:$0xff]
  %v8428 = vld [vmem:[%s9 + $0x4f8] sm:$0xff]
  %v8429 = vld [vmem:[%s9 + $0x500] sm:$0xff]
  %v8430 = vld [vmem:[%s9 + $0x508] sm:$0xff]
  %v8431 = vld [vmem:[%s9 + $0x510] sm:$0xff]
  %v8432 = vld [vmem:[%s9 + $0x518] sm:$0xff]
  %v8433 = vld [vmem:[%s9 + $0x520] sm:$0xff]
  %v8434 = vld [vmem:[%s9 + $0x528] sm:$0xff]
  %v8435 = vld [vmem:[%s9 + $0x530] sm:$0xff]
  %v8436 = vld [vmem:[%s9 + $0x538] sm:$0xff]
  %v8437 = vld [vmem:[%s9 + $0x540] sm:$0xff]
  %v8438 = vld [vmem:[%s9 + $0x548] sm:$0xff]
  %v8439 = vld [vmem:[%s9 + $0x550] sm:$0xff]
  %v8440 = vld [vmem:[%s9 + $0x558] sm:$0xff]
  %v8441 = vld [vmem:[%s9 + $0x560] sm:$0xff]
  %v8442 = vld [vmem:[%s9 + $0x568] sm:$0xff]
  %v8443 = vld [vmem:[%s9 + $0x570] sm:$0xff]
  %v8444 = vld [vmem:[%s9 + $0x578] sm:$0xff]
  %v8445 = vld [vmem:[%s9 + $0x580] sm:$0xff]
  %v8446 = vld [vmem:[%s9 + $0x588] sm:$0xff]
  %v8447 = vld [vmem:[%s9 + $0x590] sm:$0xff]
  %v8448 = vld [vmem:[%s9 + $0x598] sm:$0xff]
  %v8449 = vld [vmem:[%s9 + $0x5a0] sm:$0xff]
  %v8450 = vld [vmem:[%s9 + $0x5a8] sm:$0xff]
  %v8451 = vld [vmem:[%s9 + $0x5b0] sm:$0xff]
  %v8452 = vld [vmem:[%s9 + $0x5b8] sm:$0xff]
  %v8453 = vld [vmem:[%s9 + $0x5c0] sm:$0xff]
  %v8454 = vld [vmem:[%s9 + $0x5c8] sm:$0xff]
  %v8455 = vld [vmem:[%s9 + $0x5d0] sm:$0xff]
  %v8456 = vld [vmem:[%s9 + $0x5d8] sm:$0xff]
  %v8457 = vld [vmem:[%s9 + $0x5e0] sm:$0xff]
  %v8458 = vld [vmem:[%s9 + $0x5e8] sm:$0xff]
  %v8459 = vld [vmem:[%s9 + $0x5f0] sm:$0xff]
  %v8460 = vld [vmem:[%s9 + $0x5f8] sm:$0xff]
  %v8461 = vld [vmem:[%s9 + $0x600] sm:$0xff]
  %v8462 = vld [vmem:[%s9 + $0x608] sm:$0xff]
  %v8463 = vld [vmem:[%s9 + $0x610] sm:$0xff]
  %v8464 = vld [vmem:[%s9 + $0x618] sm:$0xff]
  %v8465 = vld [vmem:[%s9 + $0x620] sm:$0xff]
  %v8466 = vld [vmem:[%s9 + $0x628] sm:$0xff]
  %v8467 = vld [vmem:[%s9 + $0x630] sm:$0xff]
  %v8468 = vld [vmem:[%s9 + $0x638] sm:$0xff]
  %v8469 = vld [vmem:[%s9 + $0x640] sm:$0xff]
  %v8470 = vld [vmem:[%s9 + $0x648] sm:$0xff]
  %v8471 = vld [vmem:[%s9 + $0x650] sm:$0xff]
  %v8472 = vld [vmem:[%s9 + $0x658] sm:$0xff]
  %v8473 = vld [vmem:[%s9 + $0x660] sm:$0xff]
  %v8474 = vld [vmem:[%s9 + $0x668] sm:$0xff]
  %v8475 = vld [vmem:[%s9 + $0x670] sm:$0xff]
  %v8476 = vld [vmem:[%s9 + $0x678] sm:$0xff]
  %v8477 = vld [vmem:[%s9 + $0x680] sm:$0xff]
  %v8478 = vld [vmem:[%s9 + $0x688] sm:$0xff]
  %v8479 = vld [vmem:[%s9 + $0x690] sm:$0xff]
  %v8480 = vld [vmem:[%s9 + $0x698] sm:$0xff]
  %v8481 = vld [vmem:[%s9 + $0x6a0] sm:$0xff]
  %v8482 = vld [vmem:[%s9 + $0x6a8] sm:$0xff]
  %v8483 = vld [vmem:[%s9 + $0x6b0] sm:$0xff]
  %v8484 = vld [vmem:[%s9 + $0x6b8] sm:$0xff]
  %v8485 = vld [vmem:[%s9 + $0x6c0] sm:$0xff]
  %v8486 = vld [vmem:[%s9 + $0x6c8] sm:$0xff]
  %v8487 = vld [vmem:[%s9 + $0x6d0] sm:$0xff]
  %v8488 = vld [vmem:[%s9 + $0x6d8] sm:$0xff]
  %v8489 = vld [vmem:[%s9 + $0x6e0] sm:$0xff]
  %v8490 = vld [vmem:[%s9 + $0x6e8] sm:$0xff]
  %v8491 = vld [vmem:[%s9 + $0x6f0] sm:$0xff]
  %v8492 = vld [vmem:[%s9 + $0x6f8] sm:$0xff]
  %v8493 = vld [vmem:[%s9 + $0x700] sm:$0xff]
  %v8494 = vld [vmem:[%s9 + $0x708] sm:$0xff]
  %v8495 = vld [vmem:[%s9 + $0x710] sm:$0xff]
  %v8496 = vld [vmem:[%s9 + $0x718] sm:$0xff]
  %v8497 = vld [vmem:[%s9 + $0x720] sm:$0xff]
  %v8498 = vld [vmem:[%s9 + $0x728] sm:$0xff]
  %v8499 = vld [vmem:[%s9 + $0x730] sm:$0xff]
  %v8500 = vld [vmem:[%s9 + $0x738] sm:$0xff]
  %v8501 = vld [vmem:[%s9 + $0x740] sm:$0xff]
  %v8502 = vld [vmem:[%s9 + $0x748] sm:$0xff]
  %v8503 = vld [vmem:[%s9 + $0x750] sm:$0xff]
  %v8504 = vld [vmem:[%s9 + $0x758] sm:$0xff]
  %v8505 = vld [vmem:[%s9 + $0x760] sm:$0xff]
  %v8506 = vld [vmem:[%s9 + $0x768] sm:$0xff]
  %v8507 = vld [vmem:[%s9 + $0x770] sm:$0xff]
  %v8508 = vld [vmem:[%s9 + $0x778] sm:$0xff]
  %v8509 = vld [vmem:[%s9 + $0x780] sm:$0xff]
  %v8510 = vld [vmem:[%s9 + $0x788] sm:$0xff]
  %v8511 = vld [vmem:[%s9 + $0x790] sm:$0xff]
  %v8512 = vld [vmem:[%s9 + $0x798] sm:$0xff]
  %v8513 = vld [vmem:[%s9 + $0x7a0] sm:$0xff]
  %v8514 = vld [vmem:[%s9 + $0x7a8] sm:$0xff]
  %v8515 = vld [vmem:[%s9 + $0x7b0] sm:$0xff]
  %v8516 = vld [vmem:[%s9 + $0x7b8] sm:$0xff]
  %v8517 = vld [vmem:[%s9 + $0x7c0] sm:$0xff]
  %v8518 = vld [vmem:[%s9 + $0x7c8] sm:$0xff]
  %v8519 = vld [vmem:[%s9 + $0x7d0] sm:$0xff]
  %v8520 = vld [vmem:[%s9 + $0x7d8] sm:$0xff]
  %v8521 = vld [vmem:[%s9 + $0x7e0] sm:$0xff]
  %v8522 = vld [vmem:[%s9 + $0x7e8] sm:$0xff]
  %v8523 = vld [vmem:[%s9 + $0x7f0] sm:$0xff]
  %v8524 = vld [vmem:[%s9 + $0x7f8] sm:$0xff]
  %v8525 = vld [vmem:[%s10] sm:$0xff]
  %v8527 = vperm.slane %v8525, 0
  %v8528 = vperm.slane %v8525, 1
  %v8529 = vperm.slane %v8525, 2
  %v8530 = vperm.slane %v8525, 3
  %v8531 = vperm.slane %v8525, 4
  %v8532 = vperm.slane %v8525, 5
  %v8533 = vperm.slane %v8525, 6
  %v8534 = vperm.slane %v8525, 7
  %v8799 = vunpack.c.l.b16 %v8269
  %v8800 = vunpack.c.h.b16 %v8269
  %v8801 = vunpack.c.l.b16 %v8270
  %v8802 = vunpack.c.h.b16 %v8270
  %v8803 = vunpack.c.l.b16 %v8271
  %v8804 = vunpack.c.h.b16 %v8271
  %v8805 = vunpack.c.l.b16 %v8272
  %v8806 = vunpack.c.h.b16 %v8272
  %v8807 = vunpack.c.l.b16 %v8273
  %v8808 = vunpack.c.h.b16 %v8273
  %v8809 = vunpack.c.l.b16 %v8274
  %v8810 = vunpack.c.h.b16 %v8274
  %v8811 = vunpack.c.l.b16 %v8275
  %v8812 = vunpack.c.h.b16 %v8275
  %v8813 = vunpack.c.l.b16 %v8276
  %v8814 = vunpack.c.h.b16 %v8276
  %v8815 = vunpack.c.l.b16 %v8277
  %v8816 = vunpack.c.h.b16 %v8277
  %v8817 = vunpack.c.l.b16 %v8278
  %v8818 = vunpack.c.h.b16 %v8278
  %v8819 = vunpack.c.l.b16 %v8279
  %v8820 = vunpack.c.h.b16 %v8279
  %v8821 = vunpack.c.l.b16 %v8280
  %v8822 = vunpack.c.h.b16 %v8280
  %v8823 = vunpack.c.l.b16 %v8281
  %v8824 = vunpack.c.h.b16 %v8281
  %v8825 = vunpack.c.l.b16 %v8282
  %v8826 = vunpack.c.h.b16 %v8282
  %v8827 = vunpack.c.l.b16 %v8283
  %v8828 = vunpack.c.h.b16 %v8283
  %v8829 = vunpack.c.l.b16 %v8284
  %v8830 = vunpack.c.h.b16 %v8284
  %v8831 = vunpack.c.l.b16 %v8285
  %v8832 = vunpack.c.h.b16 %v8285
  %v8833 = vunpack.c.l.b16 %v8286
  %v8834 = vunpack.c.h.b16 %v8286
  %v8835 = vunpack.c.l.b16 %v8287
  %v8836 = vunpack.c.h.b16 %v8287
  %v8837 = vunpack.c.l.b16 %v8288
  %v8838 = vunpack.c.h.b16 %v8288
  %v8839 = vunpack.c.l.b16 %v8289
  %v8840 = vunpack.c.h.b16 %v8289
  %v8841 = vunpack.c.l.b16 %v8290
  %v8842 = vunpack.c.h.b16 %v8290
  %v8843 = vunpack.c.l.b16 %v8291
  %v8844 = vunpack.c.h.b16 %v8291
  %v8845 = vunpack.c.l.b16 %v8292
  %v8846 = vunpack.c.h.b16 %v8292
  %v8847 = vunpack.c.l.b16 %v8293
  %v8848 = vunpack.c.h.b16 %v8293
  %v8849 = vunpack.c.l.b16 %v8294
  %v8850 = vunpack.c.h.b16 %v8294
  %v8851 = vunpack.c.l.b16 %v8295
  %v8852 = vunpack.c.h.b16 %v8295
  %v8853 = vunpack.c.l.b16 %v8296
  %v8854 = vunpack.c.h.b16 %v8296
  %v8855 = vunpack.c.l.b16 %v8297
  %v8856 = vunpack.c.h.b16 %v8297
  %v8857 = vunpack.c.l.b16 %v8298
  %v8858 = vunpack.c.h.b16 %v8298
  %v8859 = vunpack.c.l.b16 %v8299
  %v8860 = vunpack.c.h.b16 %v8299
  %v8861 = vunpack.c.l.b16 %v8300
  %v8862 = vunpack.c.h.b16 %v8300
  %v8863 = vunpack.c.l.b16 %v8301
  %v8864 = vunpack.c.h.b16 %v8301
  %v8865 = vunpack.c.l.b16 %v8302
  %v8866 = vunpack.c.h.b16 %v8302
  %v8867 = vunpack.c.l.b16 %v8303
  %v8868 = vunpack.c.h.b16 %v8303
  %v8869 = vunpack.c.l.b16 %v8304
  %v8870 = vunpack.c.h.b16 %v8304
  %v8871 = vunpack.c.l.b16 %v8305
  %v8872 = vunpack.c.h.b16 %v8305
  %v8873 = vunpack.c.l.b16 %v8306
  %v8874 = vunpack.c.h.b16 %v8306
  %v8875 = vunpack.c.l.b16 %v8307
  %v8876 = vunpack.c.h.b16 %v8307
  %v8877 = vunpack.c.l.b16 %v8308
  %v8878 = vunpack.c.h.b16 %v8308
  %v8879 = vunpack.c.l.b16 %v8309
  %v8880 = vunpack.c.h.b16 %v8309
  %v8881 = vunpack.c.l.b16 %v8310
  %v8882 = vunpack.c.h.b16 %v8310
  %v8883 = vunpack.c.l.b16 %v8311
  %v8884 = vunpack.c.h.b16 %v8311
  %v8885 = vunpack.c.l.b16 %v8312
  %v8886 = vunpack.c.h.b16 %v8312
  %v8887 = vunpack.c.l.b16 %v8313
  %v8888 = vunpack.c.h.b16 %v8313
  %v8889 = vunpack.c.l.b16 %v8314
  %v8890 = vunpack.c.h.b16 %v8314
  %v8891 = vunpack.c.l.b16 %v8315
  %v8892 = vunpack.c.h.b16 %v8315
  %v8893 = vunpack.c.l.b16 %v8316
  %v8894 = vunpack.c.h.b16 %v8316
  %v8895 = vunpack.c.l.b16 %v8317
  %v8896 = vunpack.c.h.b16 %v8317
  %v8897 = vunpack.c.l.b16 %v8318
  %v8898 = vunpack.c.h.b16 %v8318
  %v8899 = vunpack.c.l.b16 %v8319
  %v8900 = vunpack.c.h.b16 %v8319
  %v8901 = vunpack.c.l.b16 %v8320
  %v8902 = vunpack.c.h.b16 %v8320
  %v8903 = vunpack.c.l.b16 %v8321
  %v8904 = vunpack.c.h.b16 %v8321
  %v8905 = vunpack.c.l.b16 %v8322
  %v8906 = vunpack.c.h.b16 %v8322
  %v8907 = vunpack.c.l.b16 %v8323
  %v8908 = vunpack.c.h.b16 %v8323
  %v8909 = vunpack.c.l.b16 %v8324
  %v8910 = vunpack.c.h.b16 %v8324
  %v8911 = vunpack.c.l.b16 %v8325
  %v8912 = vunpack.c.h.b16 %v8325
  %v8913 = vunpack.c.l.b16 %v8326
  %v8914 = vunpack.c.h.b16 %v8326
  %v8915 = vunpack.c.l.b16 %v8327
  %v8916 = vunpack.c.h.b16 %v8327
  %v8917 = vunpack.c.l.b16 %v8328
  %v8918 = vunpack.c.h.b16 %v8328
  %v8919 = vunpack.c.l.b16 %v8329
  %v8920 = vunpack.c.h.b16 %v8329
  %v8921 = vunpack.c.l.b16 %v8330
  %v8922 = vunpack.c.h.b16 %v8330
  %v8923 = vunpack.c.l.b16 %v8331
  %v8924 = vunpack.c.h.b16 %v8331
  %v8925 = vunpack.c.l.b16 %v8332
  %v8926 = vunpack.c.h.b16 %v8332
  %v8927 = vunpack.c.l.b16 %v8333
  %v8928 = vunpack.c.h.b16 %v8333
  %v8929 = vunpack.c.l.b16 %v8334
  %v8930 = vunpack.c.h.b16 %v8334
  %v8931 = vunpack.c.l.b16 %v8335
  %v8932 = vunpack.c.h.b16 %v8335
  %v8933 = vunpack.c.l.b16 %v8336
  %v8934 = vunpack.c.h.b16 %v8336
  %v8935 = vunpack.c.l.b16 %v8337
  %v8936 = vunpack.c.h.b16 %v8337
  %v8937 = vunpack.c.l.b16 %v8338
  %v8938 = vunpack.c.h.b16 %v8338
  %v8939 = vunpack.c.l.b16 %v8339
  %v8940 = vunpack.c.h.b16 %v8339
  %v8941 = vunpack.c.l.b16 %v8340
  %v8942 = vunpack.c.h.b16 %v8340
  %v8943 = vunpack.c.l.b16 %v8341
  %v8944 = vunpack.c.h.b16 %v8341
  %v8945 = vunpack.c.l.b16 %v8342
  %v8946 = vunpack.c.h.b16 %v8342
  %v8947 = vunpack.c.l.b16 %v8343
  %v8948 = vunpack.c.h.b16 %v8343
  %v8949 = vunpack.c.l.b16 %v8344
  %v8950 = vunpack.c.h.b16 %v8344
  %v8951 = vunpack.c.l.b16 %v8345
  %v8952 = vunpack.c.h.b16 %v8345
  %v8953 = vunpack.c.l.b16 %v8346
  %v8954 = vunpack.c.h.b16 %v8346
  %v8955 = vunpack.c.l.b16 %v8347
  %v8956 = vunpack.c.h.b16 %v8347
  %v8957 = vunpack.c.l.b16 %v8348
  %v8958 = vunpack.c.h.b16 %v8348
  %v8959 = vunpack.c.l.b16 %v8349
  %v8960 = vunpack.c.h.b16 %v8349
  %v8961 = vunpack.c.l.b16 %v8350
  %v8962 = vunpack.c.h.b16 %v8350
  %v8963 = vunpack.c.l.b16 %v8351
  %v8964 = vunpack.c.h.b16 %v8351
  %v8965 = vunpack.c.l.b16 %v8352
  %v8966 = vunpack.c.h.b16 %v8352
  %v8967 = vunpack.c.l.b16 %v8353
  %v8968 = vunpack.c.h.b16 %v8353
  %v8969 = vunpack.c.l.b16 %v8354
  %v8970 = vunpack.c.h.b16 %v8354
  %v8971 = vunpack.c.l.b16 %v8355
  %v8972 = vunpack.c.h.b16 %v8355
  %v8973 = vunpack.c.l.b16 %v8356
  %v8974 = vunpack.c.h.b16 %v8356
  %v8975 = vunpack.c.l.b16 %v8357
  %v8976 = vunpack.c.h.b16 %v8357
  %v8977 = vunpack.c.l.b16 %v8358
  %v8978 = vunpack.c.h.b16 %v8358
  %v8979 = vunpack.c.l.b16 %v8359
  %v8980 = vunpack.c.h.b16 %v8359
  %v8981 = vunpack.c.l.b16 %v8360
  %v8982 = vunpack.c.h.b16 %v8360
  %v8983 = vunpack.c.l.b16 %v8361
  %v8984 = vunpack.c.h.b16 %v8361
  %v8985 = vunpack.c.l.b16 %v8362
  %v8986 = vunpack.c.h.b16 %v8362
  %v8987 = vunpack.c.l.b16 %v8363
  %v8988 = vunpack.c.h.b16 %v8363
  %v8989 = vunpack.c.l.b16 %v8364
  %v8990 = vunpack.c.h.b16 %v8364
  %v8991 = vunpack.c.l.b16 %v8365
  %v8992 = vunpack.c.h.b16 %v8365
  %v8993 = vunpack.c.l.b16 %v8366
  %v8994 = vunpack.c.h.b16 %v8366
  %v8995 = vunpack.c.l.b16 %v8367
  %v8996 = vunpack.c.h.b16 %v8367
  %v8997 = vunpack.c.l.b16 %v8368
  %v8998 = vunpack.c.h.b16 %v8368
  %v8999 = vunpack.c.l.b16 %v8369
  %v9000 = vunpack.c.h.b16 %v8369
  %v9001 = vunpack.c.l.b16 %v8370
  %v9002 = vunpack.c.h.b16 %v8370
  %v9003 = vunpack.c.l.b16 %v8371
  %v9004 = vunpack.c.h.b16 %v8371
  %v9005 = vunpack.c.l.b16 %v8372
  %v9006 = vunpack.c.h.b16 %v8372
  %v9007 = vunpack.c.l.b16 %v8373
  %v9008 = vunpack.c.h.b16 %v8373
  %v9009 = vunpack.c.l.b16 %v8374
  %v9010 = vunpack.c.h.b16 %v8374
  %v9011 = vunpack.c.l.b16 %v8375
  %v9012 = vunpack.c.h.b16 %v8375
  %v9013 = vunpack.c.l.b16 %v8376
  %v9014 = vunpack.c.h.b16 %v8376
  %v9015 = vunpack.c.l.b16 %v8377
  %v9016 = vunpack.c.h.b16 %v8377
  %v9017 = vunpack.c.l.b16 %v8378
  %v9018 = vunpack.c.h.b16 %v8378
  %v9019 = vunpack.c.l.b16 %v8379
  %v9020 = vunpack.c.h.b16 %v8379
  %v9021 = vunpack.c.l.b16 %v8380
  %v9022 = vunpack.c.h.b16 %v8380
  %v9023 = vunpack.c.l.b16 %v8381
  %v9024 = vunpack.c.h.b16 %v8381
  %v9025 = vunpack.c.l.b16 %v8382
  %v9026 = vunpack.c.h.b16 %v8382
  %v9027 = vunpack.c.l.b16 %v8383
  %v9028 = vunpack.c.h.b16 %v8383
  %v9029 = vunpack.c.l.b16 %v8384
  %v9030 = vunpack.c.h.b16 %v8384
  %v9031 = vunpack.c.l.b16 %v8385
  %v9032 = vunpack.c.h.b16 %v8385
  %v9033 = vunpack.c.l.b16 %v8386
  %v9034 = vunpack.c.h.b16 %v8386
  %v9035 = vunpack.c.l.b16 %v8387
  %v9036 = vunpack.c.h.b16 %v8387
  %v9037 = vunpack.c.l.b16 %v8388
  %v9038 = vunpack.c.h.b16 %v8388
  %v9039 = vunpack.c.l.b16 %v8389
  %v9040 = vunpack.c.h.b16 %v8389
  %v9041 = vunpack.c.l.b16 %v8390
  %v9042 = vunpack.c.h.b16 %v8390
  %v9043 = vunpack.c.l.b16 %v8391
  %v9044 = vunpack.c.h.b16 %v8391
  %v9045 = vunpack.c.l.b16 %v8392
  %v9046 = vunpack.c.h.b16 %v8392
  %v9047 = vunpack.c.l.b16 %v8393
  %v9048 = vunpack.c.h.b16 %v8393
  %v9049 = vunpack.c.l.b16 %v8394
  %v9050 = vunpack.c.h.b16 %v8394
  %v9051 = vunpack.c.l.b16 %v8395
  %v9052 = vunpack.c.h.b16 %v8395
  %v9053 = vunpack.c.l.b16 %v8396
  %v9054 = vunpack.c.h.b16 %v8396
  %v9055 = vunpack.c.l.b16 %v8397
  %v9056 = vunpack.c.h.b16 %v8397
  %v9057 = vunpack.c.l.b16 %v8398
  %v9058 = vunpack.c.h.b16 %v8398
  %v9059 = vunpack.c.l.b16 %v8399
  %v9060 = vunpack.c.h.b16 %v8399
  %v9061 = vunpack.c.l.b16 %v8400
  %v9062 = vunpack.c.h.b16 %v8400
  %v9063 = vunpack.c.l.b16 %v8401
  %v9064 = vunpack.c.h.b16 %v8401
  %v9065 = vunpack.c.l.b16 %v8402
  %v9066 = vunpack.c.h.b16 %v8402
  %v9067 = vunpack.c.l.b16 %v8403
  %v9068 = vunpack.c.h.b16 %v8403
  %v9069 = vunpack.c.l.b16 %v8404
  %v9070 = vunpack.c.h.b16 %v8404
  %v9071 = vunpack.c.l.b16 %v8405
  %v9072 = vunpack.c.h.b16 %v8405
  %v9073 = vunpack.c.l.b16 %v8406
  %v9074 = vunpack.c.h.b16 %v8406
  %v9075 = vunpack.c.l.b16 %v8407
  %v9076 = vunpack.c.h.b16 %v8407
  %v9077 = vunpack.c.l.b16 %v8408
  %v9078 = vunpack.c.h.b16 %v8408
  %v9079 = vunpack.c.l.b16 %v8409
  %v9080 = vunpack.c.h.b16 %v8409
  %v9081 = vunpack.c.l.b16 %v8410
  %v9082 = vunpack.c.h.b16 %v8410
  %v9083 = vunpack.c.l.b16 %v8411
  %v9084 = vunpack.c.h.b16 %v8411
  %v9085 = vunpack.c.l.b16 %v8412
  %v9086 = vunpack.c.h.b16 %v8412
  %v9087 = vunpack.c.l.b16 %v8413
  %v9088 = vunpack.c.h.b16 %v8413
  %v9089 = vunpack.c.l.b16 %v8414
  %v9090 = vunpack.c.h.b16 %v8414
  %v9091 = vunpack.c.l.b16 %v8415
  %v9092 = vunpack.c.h.b16 %v8415
  %v9093 = vunpack.c.l.b16 %v8416
  %v9094 = vunpack.c.h.b16 %v8416
  %v9095 = vunpack.c.l.b16 %v8417
  %v9096 = vunpack.c.h.b16 %v8417
  %v9097 = vunpack.c.l.b16 %v8418
  %v9098 = vunpack.c.h.b16 %v8418
  %v9099 = vunpack.c.l.b16 %v8419
  %v9100 = vunpack.c.h.b16 %v8419
  %v9101 = vunpack.c.l.b16 %v8420
  %v9102 = vunpack.c.h.b16 %v8420
  %v9103 = vunpack.c.l.b16 %v8421
  %v9104 = vunpack.c.h.b16 %v8421
  %v9105 = vunpack.c.l.b16 %v8422
  %v9106 = vunpack.c.h.b16 %v8422
  %v9107 = vunpack.c.l.b16 %v8423
  %v9108 = vunpack.c.h.b16 %v8423
  %v9109 = vunpack.c.l.b16 %v8424
  %v9110 = vunpack.c.h.b16 %v8424
  %v9111 = vunpack.c.l.b16 %v8425
  %v9112 = vunpack.c.h.b16 %v8425
  %v9113 = vunpack.c.l.b16 %v8426
  %v9114 = vunpack.c.h.b16 %v8426
  %v9115 = vunpack.c.l.b16 %v8427
  %v9116 = vunpack.c.h.b16 %v8427
  %v9117 = vunpack.c.l.b16 %v8428
  %v9118 = vunpack.c.h.b16 %v8428
  %v9119 = vunpack.c.l.b16 %v8429
  %v9120 = vunpack.c.h.b16 %v8429
  %v9121 = vunpack.c.l.b16 %v8430
  %v9122 = vunpack.c.h.b16 %v8430
  %v9123 = vunpack.c.l.b16 %v8431
  %v9124 = vunpack.c.h.b16 %v8431
  %v9125 = vunpack.c.l.b16 %v8432
  %v9126 = vunpack.c.h.b16 %v8432
  %v9127 = vunpack.c.l.b16 %v8433
  %v9128 = vunpack.c.h.b16 %v8433
  %v9129 = vunpack.c.l.b16 %v8434
  %v9130 = vunpack.c.h.b16 %v8434
  %v9131 = vunpack.c.l.b16 %v8435
  %v9132 = vunpack.c.h.b16 %v8435
  %v9133 = vunpack.c.l.b16 %v8436
  %v9134 = vunpack.c.h.b16 %v8436
  %v9135 = vunpack.c.l.b16 %v8437
  %v9136 = vunpack.c.h.b16 %v8437
  %v9137 = vunpack.c.l.b16 %v8438
  %v9138 = vunpack.c.h.b16 %v8438
  %v9139 = vunpack.c.l.b16 %v8439
  %v9140 = vunpack.c.h.b16 %v8439
  %v9141 = vunpack.c.l.b16 %v8440
  %v9142 = vunpack.c.h.b16 %v8440
  %v9143 = vunpack.c.l.b16 %v8441
  %v9144 = vunpack.c.h.b16 %v8441
  %v9145 = vunpack.c.l.b16 %v8442
  %v9146 = vunpack.c.h.b16 %v8442
  %v9147 = vunpack.c.l.b16 %v8443
  %v9148 = vunpack.c.h.b16 %v8443
  %v9149 = vunpack.c.l.b16 %v8444
  %v9150 = vunpack.c.h.b16 %v8444
  %v9151 = vunpack.c.l.b16 %v8445
  %v9152 = vunpack.c.h.b16 %v8445
  %v9153 = vunpack.c.l.b16 %v8446
  %v9154 = vunpack.c.h.b16 %v8446
  %v9155 = vunpack.c.l.b16 %v8447
  %v9156 = vunpack.c.h.b16 %v8447
  %v9157 = vunpack.c.l.b16 %v8448
  %v9158 = vunpack.c.h.b16 %v8448
  %v9159 = vunpack.c.l.b16 %v8449
  %v9160 = vunpack.c.h.b16 %v8449
  %v9161 = vunpack.c.l.b16 %v8450
  %v9162 = vunpack.c.h.b16 %v8450
  %v9163 = vunpack.c.l.b16 %v8451
  %v9164 = vunpack.c.h.b16 %v8451
  %v9165 = vunpack.c.l.b16 %v8452
  %v9166 = vunpack.c.h.b16 %v8452
  %v9167 = vunpack.c.l.b16 %v8453
  %v9168 = vunpack.c.h.b16 %v8453
  %v9169 = vunpack.c.l.b16 %v8454
  %v9170 = vunpack.c.h.b16 %v8454
  %v9171 = vunpack.c.l.b16 %v8455
  %v9172 = vunpack.c.h.b16 %v8455
  %v9173 = vunpack.c.l.b16 %v8456
  %v9174 = vunpack.c.h.b16 %v8456
  %v9175 = vunpack.c.l.b16 %v8457
  %v9176 = vunpack.c.h.b16 %v8457
  %v9177 = vunpack.c.l.b16 %v8458
  %v9178 = vunpack.c.h.b16 %v8458
  %v9179 = vunpack.c.l.b16 %v8459
  %v9180 = vunpack.c.h.b16 %v8459
  %v9181 = vunpack.c.l.b16 %v8460
  %v9182 = vunpack.c.h.b16 %v8460
  %v9183 = vunpack.c.l.b16 %v8461
  %v9184 = vunpack.c.h.b16 %v8461
  %v9185 = vunpack.c.l.b16 %v8462
  %v9186 = vunpack.c.h.b16 %v8462
  %v9187 = vunpack.c.l.b16 %v8463
  %v9188 = vunpack.c.h.b16 %v8463
  %v9189 = vunpack.c.l.b16 %v8464
  %v9190 = vunpack.c.h.b16 %v8464
  %v9191 = vunpack.c.l.b16 %v8465
  %v9192 = vunpack.c.h.b16 %v8465
  %v9193 = vunpack.c.l.b16 %v8466
  %v9194 = vunpack.c.h.b16 %v8466
  %v9195 = vunpack.c.l.b16 %v8467
  %v9196 = vunpack.c.h.b16 %v8467
  %v9197 = vunpack.c.l.b16 %v8468
  %v9198 = vunpack.c.h.b16 %v8468
  %v9199 = vunpack.c.l.b16 %v8469
  %v9200 = vunpack.c.h.b16 %v8469
  %v9201 = vunpack.c.l.b16 %v8470
  %v9202 = vunpack.c.h.b16 %v8470
  %v9203 = vunpack.c.l.b16 %v8471
  %v9204 = vunpack.c.h.b16 %v8471
  %v9205 = vunpack.c.l.b16 %v8472
  %v9206 = vunpack.c.h.b16 %v8472
  %v9207 = vunpack.c.l.b16 %v8473
  %v9208 = vunpack.c.h.b16 %v8473
  %v9209 = vunpack.c.l.b16 %v8474
  %v9210 = vunpack.c.h.b16 %v8474
  %v9211 = vunpack.c.l.b16 %v8475
  %v9212 = vunpack.c.h.b16 %v8475
  %v9213 = vunpack.c.l.b16 %v8476
  %v9214 = vunpack.c.h.b16 %v8476
  %v9215 = vunpack.c.l.b16 %v8477
  %v9216 = vunpack.c.h.b16 %v8477
  %v9217 = vunpack.c.l.b16 %v8478
  %v9218 = vunpack.c.h.b16 %v8478
  %v9219 = vunpack.c.l.b16 %v8479
  %v9220 = vunpack.c.h.b16 %v8479
  %v9221 = vunpack.c.l.b16 %v8480
  %v9222 = vunpack.c.h.b16 %v8480
  %v9223 = vunpack.c.l.b16 %v8481
  %v9224 = vunpack.c.h.b16 %v8481
  %v9225 = vunpack.c.l.b16 %v8482
  %v9226 = vunpack.c.h.b16 %v8482
  %v9227 = vunpack.c.l.b16 %v8483
  %v9228 = vunpack.c.h.b16 %v8483
  %v9229 = vunpack.c.l.b16 %v8484
  %v9230 = vunpack.c.h.b16 %v8484
  %v9231 = vunpack.c.l.b16 %v8485
  %v9232 = vunpack.c.h.b16 %v8485
  %v9233 = vunpack.c.l.b16 %v8486
  %v9234 = vunpack.c.h.b16 %v8486
  %v9235 = vunpack.c.l.b16 %v8487
  %v9236 = vunpack.c.h.b16 %v8487
  %v9237 = vunpack.c.l.b16 %v8488
  %v9238 = vunpack.c.h.b16 %v8488
  %v9239 = vunpack.c.l.b16 %v8489
  %v9240 = vunpack.c.h.b16 %v8489
  %v9241 = vunpack.c.l.b16 %v8490
  %v9242 = vunpack.c.h.b16 %v8490
  %v9243 = vunpack.c.l.b16 %v8491
  %v9244 = vunpack.c.h.b16 %v8491
  %v9245 = vunpack.c.l.b16 %v8492
  %v9246 = vunpack.c.h.b16 %v8492
  %v9247 = vunpack.c.l.b16 %v8493
  %v9248 = vunpack.c.h.b16 %v8493
  %v9249 = vunpack.c.l.b16 %v8494
  %v9250 = vunpack.c.h.b16 %v8494
  %v9251 = vunpack.c.l.b16 %v8495
  %v9252 = vunpack.c.h.b16 %v8495
  %v9253 = vunpack.c.l.b16 %v8496
  %v9254 = vunpack.c.h.b16 %v8496
  %v9255 = vunpack.c.l.b16 %v8497
  %v9256 = vunpack.c.h.b16 %v8497
  %v9257 = vunpack.c.l.b16 %v8498
  %v9258 = vunpack.c.h.b16 %v8498
  %v9259 = vunpack.c.l.b16 %v8499
  %v9260 = vunpack.c.h.b16 %v8499
  %v9261 = vunpack.c.l.b16 %v8500
  %v9262 = vunpack.c.h.b16 %v8500
  %v9263 = vunpack.c.l.b16 %v8501
  %v9264 = vunpack.c.h.b16 %v8501
  %v9265 = vunpack.c.l.b16 %v8502
  %v9266 = vunpack.c.h.b16 %v8502
  %v9267 = vunpack.c.l.b16 %v8503
  %v9268 = vunpack.c.h.b16 %v8503
  %v9269 = vunpack.c.l.b16 %v8504
  %v9270 = vunpack.c.h.b16 %v8504
  %v9271 = vunpack.c.l.b16 %v8505
  %v9272 = vunpack.c.h.b16 %v8505
  %v9273 = vunpack.c.l.b16 %v8506
  %v9274 = vunpack.c.h.b16 %v8506
  %v9275 = vunpack.c.l.b16 %v8507
  %v9276 = vunpack.c.h.b16 %v8507
  %v9277 = vunpack.c.l.b16 %v8508
  %v9278 = vunpack.c.h.b16 %v8508
  %v9279 = vunpack.c.l.b16 %v8509
  %v9280 = vunpack.c.h.b16 %v8509
  %v9281 = vunpack.c.l.b16 %v8510
  %v9282 = vunpack.c.h.b16 %v8510
  %v9283 = vunpack.c.l.b16 %v8511
  %v9284 = vunpack.c.h.b16 %v8511
  %v9285 = vunpack.c.l.b16 %v8512
  %v9286 = vunpack.c.h.b16 %v8512
  %v9287 = vunpack.c.l.b16 %v8513
  %v9288 = vunpack.c.h.b16 %v8513
  %v9289 = vunpack.c.l.b16 %v8514
  %v9290 = vunpack.c.h.b16 %v8514
  %v9291 = vunpack.c.l.b16 %v8515
  %v9292 = vunpack.c.h.b16 %v8515
  %v9293 = vunpack.c.l.b16 %v8516
  %v9294 = vunpack.c.h.b16 %v8516
  %v9295 = vunpack.c.l.b16 %v8517
  %v9296 = vunpack.c.h.b16 %v8517
  %v9297 = vunpack.c.l.b16 %v8518
  %v9298 = vunpack.c.h.b16 %v8518
  %v9299 = vunpack.c.l.b16 %v8519
  %v9300 = vunpack.c.h.b16 %v8519
  %v9301 = vunpack.c.l.b16 %v8520
  %v9302 = vunpack.c.h.b16 %v8520
  %v9303 = vunpack.c.l.b16 %v8521
  %v9304 = vunpack.c.h.b16 %v8521
  %v9305 = vunpack.c.l.b16 %v8522
  %v9306 = vunpack.c.h.b16 %v8522
  %v9307 = vunpack.c.l.b16 %v8523
  %v9308 = vunpack.c.h.b16 %v8523
  %v9309 = vunpack.c.l.b16 %v8524
  %v9310 = vunpack.c.h.b16 %v8524
  %v9311 = vpack.c.b16 %v8807, %v8799
  %v9312 = vpack.c.b16 %v8808, %v8800
  %v9313 = vpack.c.b16 %v8809, %v8801
  %v9314 = vpack.c.b16 %v8810, %v8802
  %v9315 = vpack.c.b16 %v8811, %v8803
  %v9316 = vpack.c.b16 %v8812, %v8804
  %v9317 = vpack.c.b16 %v8813, %v8805
  %v9318 = vpack.c.b16 %v8814, %v8806
  %v9319 = vpack.c.b16 %v8823, %v8815
  %v9320 = vpack.c.b16 %v8824, %v8816
  %v9321 = vpack.c.b16 %v8825, %v8817
  %v9322 = vpack.c.b16 %v8826, %v8818
  %v9323 = vpack.c.b16 %v8827, %v8819
  %v9324 = vpack.c.b16 %v8828, %v8820
  %v9325 = vpack.c.b16 %v8829, %v8821
  %v9326 = vpack.c.b16 %v8830, %v8822
  %v9327 = vpack.c.b16 %v8839, %v8831
  %v9328 = vpack.c.b16 %v8840, %v8832
  %v9329 = vpack.c.b16 %v8841, %v8833
  %v9330 = vpack.c.b16 %v8842, %v8834
  %v9331 = vpack.c.b16 %v8843, %v8835
  %v9332 = vpack.c.b16 %v8844, %v8836
  %v9333 = vpack.c.b16 %v8845, %v8837
  %v9334 = vpack.c.b16 %v8846, %v8838
  %v9335 = vpack.c.b16 %v8855, %v8847
  %v9336 = vpack.c.b16 %v8856, %v8848
  %v9337 = vpack.c.b16 %v8857, %v8849
  %v9338 = vpack.c.b16 %v8858, %v8850
  %v9339 = vpack.c.b16 %v8859, %v8851
  %v9340 = vpack.c.b16 %v8860, %v8852
  %v9341 = vpack.c.b16 %v8861, %v8853
  %v9342 = vpack.c.b16 %v8862, %v8854
  %v9343 = vpack.c.b16 %v8871, %v8863
  %v9344 = vpack.c.b16 %v8872, %v8864
  %v9345 = vpack.c.b16 %v8873, %v8865
  %v9346 = vpack.c.b16 %v8874, %v8866
  %v9347 = vpack.c.b16 %v8875, %v8867
  %v9348 = vpack.c.b16 %v8876, %v8868
  %v9349 = vpack.c.b16 %v8877, %v8869
  %v9350 = vpack.c.b16 %v8878, %v8870
  %v9351 = vpack.c.b16 %v8887, %v8879
  %v9352 = vpack.c.b16 %v8888, %v8880
  %v9353 = vpack.c.b16 %v8889, %v8881
  %v9354 = vpack.c.b16 %v8890, %v8882
  %v9355 = vpack.c.b16 %v8891, %v8883
  %v9356 = vpack.c.b16 %v8892, %v8884
  %v9357 = vpack.c.b16 %v8893, %v8885
  %v9358 = vpack.c.b16 %v8894, %v8886
  %v9359 = vpack.c.b16 %v8903, %v8895
  %v9360 = vpack.c.b16 %v8904, %v8896
  %v9361 = vpack.c.b16 %v8905, %v8897
  %v9362 = vpack.c.b16 %v8906, %v8898
  %v9363 = vpack.c.b16 %v8907, %v8899
  %v9364 = vpack.c.b16 %v8908, %v8900
  %v9365 = vpack.c.b16 %v8909, %v8901
  %v9366 = vpack.c.b16 %v8910, %v8902
  %v9367 = vpack.c.b16 %v8919, %v8911
  %v9368 = vpack.c.b16 %v8920, %v8912
  %v9369 = vpack.c.b16 %v8921, %v8913
  %v9370 = vpack.c.b16 %v8922, %v8914
  %v9371 = vpack.c.b16 %v8923, %v8915
  %v9372 = vpack.c.b16 %v8924, %v8916
  %v9373 = vpack.c.b16 %v8925, %v8917
  %v9374 = vpack.c.b16 %v8926, %v8918
  %v9375 = vpack.c.b16 %v8935, %v8927
  %v9376 = vpack.c.b16 %v8936, %v8928
  %v9377 = vpack.c.b16 %v8937, %v8929
  %v9378 = vpack.c.b16 %v8938, %v8930
  %v9379 = vpack.c.b16 %v8939, %v8931
  %v9380 = vpack.c.b16 %v8940, %v8932
  %v9381 = vpack.c.b16 %v8941, %v8933
  %v9382 = vpack.c.b16 %v8942, %v8934
  %v9383 = vpack.c.b16 %v8951, %v8943
  %v9384 = vpack.c.b16 %v8952, %v8944
  %v9385 = vpack.c.b16 %v8953, %v8945
  %v9386 = vpack.c.b16 %v8954, %v8946
  %v9387 = vpack.c.b16 %v8955, %v8947
  %v9388 = vpack.c.b16 %v8956, %v8948
  %v9389 = vpack.c.b16 %v8957, %v8949
  %v9390 = vpack.c.b16 %v8958, %v8950
  %v9391 = vpack.c.b16 %v8967, %v8959
  %v9392 = vpack.c.b16 %v8968, %v8960
  %v9393 = vpack.c.b16 %v8969, %v8961
  %v9394 = vpack.c.b16 %v8970, %v8962
  %v9395 = vpack.c.b16 %v8971, %v8963
  %v9396 = vpack.c.b16 %v8972, %v8964
  %v9397 = vpack.c.b16 %v8973, %v8965
  %v9398 = vpack.c.b16 %v8974, %v8966
  %v9399 = vpack.c.b16 %v8983, %v8975
  %v9400 = vpack.c.b16 %v8984, %v8976
  %v9401 = vpack.c.b16 %v8985, %v8977
  %v9402 = vpack.c.b16 %v8986, %v8978
  %v9403 = vpack.c.b16 %v8987, %v8979
  %v9404 = vpack.c.b16 %v8988, %v8980
  %v9405 = vpack.c.b16 %v8989, %v8981
  %v9406 = vpack.c.b16 %v8990, %v8982
  %v9407 = vpack.c.b16 %v8999, %v8991
  %v9408 = vpack.c.b16 %v9000, %v8992
  %v9409 = vpack.c.b16 %v9001, %v8993
  %v9410 = vpack.c.b16 %v9002, %v8994
  %v9411 = vpack.c.b16 %v9003, %v8995
  %v9412 = vpack.c.b16 %v9004, %v8996
  %v9413 = vpack.c.b16 %v9005, %v8997
  %v9414 = vpack.c.b16 %v9006, %v8998
  %v9415 = vpack.c.b16 %v9015, %v9007
  %v9416 = vpack.c.b16 %v9016, %v9008
  %v9417 = vpack.c.b16 %v9017, %v9009
  %v9418 = vpack.c.b16 %v9018, %v9010
  %v9419 = vpack.c.b16 %v9019, %v9011
  %v9420 = vpack.c.b16 %v9020, %v9012
  %v9421 = vpack.c.b16 %v9021, %v9013
  %v9422 = vpack.c.b16 %v9022, %v9014
  %v9423 = vpack.c.b16 %v9031, %v9023
  %v9424 = vpack.c.b16 %v9032, %v9024
  %v9425 = vpack.c.b16 %v9033, %v9025
  %v9426 = vpack.c.b16 %v9034, %v9026
  %v9427 = vpack.c.b16 %v9035, %v9027
  %v9428 = vpack.c.b16 %v9036, %v9028
  %v9429 = vpack.c.b16 %v9037, %v9029
  %v9430 = vpack.c.b16 %v9038, %v9030
  %v9431 = vpack.c.b16 %v9047, %v9039
  %v9432 = vpack.c.b16 %v9048, %v9040
  %v9433 = vpack.c.b16 %v9049, %v9041
  %v9434 = vpack.c.b16 %v9050, %v9042
  %v9435 = vpack.c.b16 %v9051, %v9043
  %v9436 = vpack.c.b16 %v9052, %v9044
  %v9437 = vpack.c.b16 %v9053, %v9045
  %v9438 = vpack.c.b16 %v9054, %v9046
  %v9439 = vpack.c.b16 %v9063, %v9055
  %v9440 = vpack.c.b16 %v9064, %v9056
  %v9441 = vpack.c.b16 %v9065, %v9057
  %v9442 = vpack.c.b16 %v9066, %v9058
  %v9443 = vpack.c.b16 %v9067, %v9059
  %v9444 = vpack.c.b16 %v9068, %v9060
  %v9445 = vpack.c.b16 %v9069, %v9061
  %v9446 = vpack.c.b16 %v9070, %v9062
  %v9447 = vpack.c.b16 %v9079, %v9071
  %v9448 = vpack.c.b16 %v9080, %v9072
  %v9449 = vpack.c.b16 %v9081, %v9073
  %v9450 = vpack.c.b16 %v9082, %v9074
  %v9451 = vpack.c.b16 %v9083, %v9075
  %v9452 = vpack.c.b16 %v9084, %v9076
  %v9453 = vpack.c.b16 %v9085, %v9077
  %v9454 = vpack.c.b16 %v9086, %v9078
  %v9455 = vpack.c.b16 %v9095, %v9087
  %v9456 = vpack.c.b16 %v9096, %v9088
  %v9457 = vpack.c.b16 %v9097, %v9089
  %v9458 = vpack.c.b16 %v9098, %v9090
  %v9459 = vpack.c.b16 %v9099, %v9091
  %v9460 = vpack.c.b16 %v9100, %v9092
  %v9461 = vpack.c.b16 %v9101, %v9093
  %v9462 = vpack.c.b16 %v9102, %v9094
  %v9463 = vpack.c.b16 %v9111, %v9103
  %v9464 = vpack.c.b16 %v9112, %v9104
  %v9465 = vpack.c.b16 %v9113, %v9105
  %v9466 = vpack.c.b16 %v9114, %v9106
  %v9467 = vpack.c.b16 %v9115, %v9107
  %v9468 = vpack.c.b16 %v9116, %v9108
  %v9469 = vpack.c.b16 %v9117, %v9109
  %v9470 = vpack.c.b16 %v9118, %v9110
  %v9471 = vpack.c.b16 %v9127, %v9119
  %v9472 = vpack.c.b16 %v9128, %v9120
  %v9473 = vpack.c.b16 %v9129, %v9121
  %v9474 = vpack.c.b16 %v9130, %v9122
  %v9475 = vpack.c.b16 %v9131, %v9123
  %v9476 = vpack.c.b16 %v9132, %v9124
  %v9477 = vpack.c.b16 %v9133, %v9125
  %v9478 = vpack.c.b16 %v9134, %v9126
  %v9479 = vpack.c.b16 %v9143, %v9135
  %v9480 = vpack.c.b16 %v9144, %v9136
  %v9481 = vpack.c.b16 %v9145, %v9137
  %v9482 = vpack.c.b16 %v9146, %v9138
  %v9483 = vpack.c.b16 %v9147, %v9139
  %v9484 = vpack.c.b16 %v9148, %v9140
  %v9485 = vpack.c.b16 %v9149, %v9141
  %v9486 = vpack.c.b16 %v9150, %v9142
  %v9487 = vpack.c.b16 %v9159, %v9151
  %v9488 = vpack.c.b16 %v9160, %v9152
  %v9489 = vpack.c.b16 %v9161, %v9153
  %v9490 = vpack.c.b16 %v9162, %v9154
  %v9491 = vpack.c.b16 %v9163, %v9155
  %v9492 = vpack.c.b16 %v9164, %v9156
  %v9493 = vpack.c.b16 %v9165, %v9157
  %v9494 = vpack.c.b16 %v9166, %v9158
  %v9495 = vpack.c.b16 %v9175, %v9167
  %v9496 = vpack.c.b16 %v9176, %v9168
  %v9497 = vpack.c.b16 %v9177, %v9169
  %v9498 = vpack.c.b16 %v9178, %v9170
  %v9499 = vpack.c.b16 %v9179, %v9171
  %v9500 = vpack.c.b16 %v9180, %v9172
  %v9501 = vpack.c.b16 %v9181, %v9173
  %v9502 = vpack.c.b16 %v9182, %v9174
  %v9503 = vpack.c.b16 %v9191, %v9183
  %v9504 = vpack.c.b16 %v9192, %v9184
  %v9505 = vpack.c.b16 %v9193, %v9185
  %v9506 = vpack.c.b16 %v9194, %v9186
  %v9507 = vpack.c.b16 %v9195, %v9187
  %v9508 = vpack.c.b16 %v9196, %v9188
  %v9509 = vpack.c.b16 %v9197, %v9189
  %v9510 = vpack.c.b16 %v9198, %v9190
  %v9511 = vpack.c.b16 %v9207, %v9199
  %v9512 = vpack.c.b16 %v9208, %v9200
  %v9513 = vpack.c.b16 %v9209, %v9201
  %v9514 = vpack.c.b16 %v9210, %v9202
  %v9515 = vpack.c.b16 %v9211, %v9203
  %v9516 = vpack.c.b16 %v9212, %v9204
  %v9517 = vpack.c.b16 %v9213, %v9205
  %v9518 = vpack.c.b16 %v9214, %v9206
  %v9519 = vpack.c.b16 %v9223, %v9215
  %v9520 = vpack.c.b16 %v9224, %v9216
  %v9521 = vpack.c.b16 %v9225, %v9217
  %v9522 = vpack.c.b16 %v9226, %v9218
  %v9523 = vpack.c.b16 %v9227, %v9219
  %v9524 = vpack.c.b16 %v9228, %v9220
  %v9525 = vpack.c.b16 %v9229, %v9221
  %v9526 = vpack.c.b16 %v9230, %v9222
  %v9527 = vpack.c.b16 %v9239, %v9231
  %v9528 = vpack.c.b16 %v9240, %v9232
  %v9529 = vpack.c.b16 %v9241, %v9233
  %v9530 = vpack.c.b16 %v9242, %v9234
  %v9531 = vpack.c.b16 %v9243, %v9235
  %v9532 = vpack.c.b16 %v9244, %v9236
  %v9533 = vpack.c.b16 %v9245, %v9237
  %v9534 = vpack.c.b16 %v9246, %v9238
  %v9535 = vpack.c.b16 %v9255, %v9247
  %v9536 = vpack.c.b16 %v9256, %v9248
  %v9537 = vpack.c.b16 %v9257, %v9249
  %v9538 = vpack.c.b16 %v9258, %v9250
  %v9539 = vpack.c.b16 %v9259, %v9251
  %v9540 = vpack.c.b16 %v9260, %v9252
  %v9541 = vpack.c.b16 %v9261, %v9253
  %v9542 = vpack.c.b16 %v9262, %v9254
  %v9543 = vpack.c.b16 %v9271, %v9263
  %v9544 = vpack.c.b16 %v9272, %v9264
  %v9545 = vpack.c.b16 %v9273, %v9265
  %v9546 = vpack.c.b16 %v9274, %v9266
  %v9547 = vpack.c.b16 %v9275, %v9267
  %v9548 = vpack.c.b16 %v9276, %v9268
  %v9549 = vpack.c.b16 %v9277, %v9269
  %v9550 = vpack.c.b16 %v9278, %v9270
  %v9551 = vpack.c.b16 %v9287, %v9279
  %v9552 = vpack.c.b16 %v9288, %v9280
  %v9553 = vpack.c.b16 %v9289, %v9281
  %v9554 = vpack.c.b16 %v9290, %v9282
  %v9555 = vpack.c.b16 %v9291, %v9283
  %v9556 = vpack.c.b16 %v9292, %v9284
  %v9557 = vpack.c.b16 %v9293, %v9285
  %v9558 = vpack.c.b16 %v9294, %v9286
  %v9559 = vpack.c.b16 %v9303, %v9295
  %v9560 = vpack.c.b16 %v9304, %v9296
  %v9561 = vpack.c.b16 %v9305, %v9297
  %v9562 = vpack.c.b16 %v9306, %v9298
  %v9563 = vpack.c.b16 %v9307, %v9299
  %v9564 = vpack.c.b16 %v9308, %v9300
  %v9565 = vpack.c.b16 %v9309, %v9301
  %v9566 = vpack.c.b16 %v9310, %v9302
  %9823 = vmatpush.bf16.msra.mxu0 %v9367
  %9824 = vmatpush.bf16.msra.mxu0 %v9359
  %9825 = vmatpush.bf16.msra.mxu0 %v9351
  %9826 = vmatpush.bf16.msra.mxu0 %v9343
  %9827 = vmatpush.bf16.msra.mxu0 %v9335
  %9828 = vmatpush.bf16.msra.mxu0 %v9327
  %9829 = vmatpush.bf16.msra.mxu0 %v9319
  %9830 = vmatpush.bf16.msra.mxu0 %v9311
  %9831 = vmatmul.bf16.gmra.mxu0 %v8265
  %v9832 = vpop.f32.mrf.mxu0
  %v9833 = vadd.f32 %v8527, %v9832
  %v9834 = vpop.f32.mrf.mxu0
  %9835 = vdwg.mxu0
  %9836 = vmatpush.bf16.msra.mxu0 %v9431
  %9837 = vmatpush.bf16.msra.mxu0 %v9423
  %9838 = vmatpush.bf16.msra.mxu0 %v9415
  %9839 = vmatpush.bf16.msra.mxu0 %v9407
  %9840 = vmatpush.bf16.msra.mxu0 %v9399
  %9841 = vmatpush.bf16.msra.mxu0 %v9391
  %9842 = vmatpush.bf16.msra.mxu0 %v9383
  %9843 = vmatpush.bf16.msra.mxu0 %v9375
  %9844 = vmatmul.bf16.gmra.mxu0 %v8266
  %v9845 = vpop.f32.mrf.mxu0
  %v9846 = vadd.f32 %v9833, %v9845
  %v9847 = vpop.f32.mrf.mxu0
  %9848 = vdwg.mxu0
  %9849 = vmatpush.bf16.msra.mxu0 %v9495
  %9850 = vmatpush.bf16.msra.mxu0 %v9487
  %9851 = vmatpush.bf16.msra.mxu0 %v9479
  %9852 = vmatpush.bf16.msra.mxu0 %v9471
  %9853 = vmatpush.bf16.msra.mxu0 %v9463
  %9854 = vmatpush.bf16.msra.mxu0 %v9455
  %9855 = vmatpush.bf16.msra.mxu0 %v9447
  %9856 = vmatpush.bf16.msra.mxu0 %v9439
  %9857 = vmatmul.bf16.gmra.mxu0 %v8267
  %v9858 = vpop.f32.mrf.mxu0
  %v9859 = vadd.f32 %v9846, %v9858
  %v9860 = vpop.f32.mrf.mxu0
  %9861 = vdwg.mxu0
  %9862 = vmatpush.bf16.msra.mxu0 %v9559
  %9863 = vmatpush.bf16.msra.mxu0 %v9551
  %9864 = vmatpush.bf16.msra.mxu0 %v9543
  %9865 = vmatpush.bf16.msra.mxu0 %v9535
  %9866 = vmatpush.bf16.msra.mxu0 %v9527
  %9867 = vmatpush.bf16.msra.mxu0 %v9519
  %9868 = vmatpush.bf16.msra.mxu0 %v9511
  %9869 = vmatpush.bf16.msra.mxu0 %v9503
  %9870 = vmatmul.bf16.gmra.mxu0 %v8268
  %v9871 = vpop.f32.mrf.mxu0
  %v9872 = vadd.f32 %v9859, %v9871
  %v9873 = vpop.f32.mrf.mxu0
  %9874 = vdwg.mxu0
  %9875 = vmatpush.bf16.msra.mxu0 %v9368
  %9876 = vmatpush.bf16.msra.mxu0 %v9360
  %9877 = vmatpush.bf16.msra.mxu0 %v9352
  %9878 = vmatpush.bf16.msra.mxu0 %v9344
  %9879 = vmatpush.bf16.msra.mxu0 %v9336
  %9880 = vmatpush.bf16.msra.mxu0 %v9328
  %9881 = vmatpush.bf16.msra.mxu0 %v9320
  %9882 = vmatpush.bf16.msra.mxu0 %v9312
  %9883 = vmatmul.bf16.gmra.mxu0 %v8265
  %v9884 = vpop.f32.mrf.mxu0
  %v9885 = vadd.f32 %v8528, %v9884
  %v9886 = vpop.f32.mrf.mxu0
  %9887 = vdwg.mxu0
  %9888 = vmatpush.bf16.msra.mxu0 %v9432
  %9889 = vmatpush.bf16.msra.mxu0 %v9424
  %9890 = vmatpush.bf16.msra.mxu0 %v9416
  %9891 = vmatpush.bf16.msra.mxu0 %v9408
  %9892 = vmatpush.bf16.msra.mxu0 %v9400
  %9893 = vmatpush.bf16.msra.mxu0 %v9392
  %9894 = vmatpush.bf16.msra.mxu0 %v9384
  %9895 = vmatpush.bf16.msra.mxu0 %v9376
  %9896 = vmatmul.bf16.gmra.mxu0 %v8266
  %v9897 = vpop.f32.mrf.mxu0
  %v9898 = vadd.f32 %v9885, %v9897
  %v9899 = vpop.f32.mrf.mxu0
  %9900 = vdwg.mxu0
  %9901 = vmatpush.bf16.msra.mxu0 %v9496
  %9902 = vmatpush.bf16.msra.mxu0 %v9488
  %9903 = vmatpush.bf16.msra.mxu0 %v9480
  %9904 = vmatpush.bf16.msra.mxu0 %v9472
  %9905 = vmatpush.bf16.msra.mxu0 %v9464
  %9906 = vmatpush.bf16.msra.mxu0 %v9456
  %9907 = vmatpush.bf16.msra.mxu0 %v9448
  %9908 = vmatpush.bf16.msra.mxu0 %v9440
  %9909 = vmatmul.bf16.gmra.mxu0 %v8267
  %v9910 = vpop.f32.mrf.mxu0
  %v9911 = vadd.f32 %v9898, %v9910
  %v9912 = vpop.f32.mrf.mxu0
  %9913 = vdwg.mxu0
  %9914 = vmatpush.bf16.msra.mxu0 %v9560
  %9915 = vmatpush.bf16.msra.mxu0 %v9552
  %9916 = vmatpush.bf16.msra.mxu0 %v9544
  %9917 = vmatpush.bf16.msra.mxu0 %v9536
  %9918 = vmatpush.bf16.msra.mxu0 %v9528
  %9919 = vmatpush.bf16.msra.mxu0 %v9520
  %9920 = vmatpush.bf16.msra.mxu0 %v9512
  %9921 = vmatpush.bf16.msra.mxu0 %v9504
  %9922 = vmatmul.bf16.gmra.mxu0 %v8268
  %v9923 = vpop.f32.mrf.mxu0
  %v9924 = vadd.f32 %v9911, %v9923
  %v9925 = vpop.f32.mrf.mxu0
  %9926 = vdwg.mxu0
  %9927 = vmatpush.bf16.msra.mxu0 %v9369
  %9928 = vmatpush.bf16.msra.mxu0 %v9361
  %9929 = vmatpush.bf16.msra.mxu0 %v9353
  %9930 = vmatpush.bf16.msra.mxu0 %v9345
  %9931 = vmatpush.bf16.msra.mxu0 %v9337
  %9932 = vmatpush.bf16.msra.mxu0 %v9329
  %9933 = vmatpush.bf16.msra.mxu0 %v9321
  %9934 = vmatpush.bf16.msra.mxu0 %v9313
  %9935 = vmatmul.bf16.gmra.mxu0 %v8265
  %v9936 = vpop.f32.mrf.mxu0
  %v9937 = vadd.f32 %v8529, %v9936
  %v9938 = vpop.f32.mrf.mxu0
  %9939 = vdwg.mxu0
  %9940 = vmatpush.bf16.msra.mxu0 %v9433
  %9941 = vmatpush.bf16.msra.mxu0 %v9425
  %9942 = vmatpush.bf16.msra.mxu0 %v9417
  %9943 = vmatpush.bf16.msra.mxu0 %v9409
  %9944 = vmatpush.bf16.msra.mxu0 %v9401
  %9945 = vmatpush.bf16.msra.mxu0 %v9393
  %9946 = vmatpush.bf16.msra.mxu0 %v9385
  %9947 = vmatpush.bf16.msra.mxu0 %v9377
  %9948 = vmatmul.bf16.gmra.mxu0 %v8266
  %v9949 = vpop.f32.mrf.mxu0
  %v9950 = vadd.f32 %v9937, %v9949
  %v9951 = vpop.f32.mrf.mxu0
  %9952 = vdwg.mxu0
  %9953 = vmatpush.bf16.msra.mxu0 %v9497
  %9954 = vmatpush.bf16.msra.mxu0 %v9489
  %9955 = vmatpush.bf16.msra.mxu0 %v9481
  %9956 = vmatpush.bf16.msra.mxu0 %v9473
  %9957 = vmatpush.bf16.msra.mxu0 %v9465
  %9958 = vmatpush.bf16.msra.mxu0 %v9457
  %9959 = vmatpush.bf16.msra.mxu0 %v9449
  %9960 = vmatpush.bf16.msra.mxu0 %v9441
  %9961 = vmatmul.bf16.gmra.mxu0 %v8267
  %v9962 = vpop.f32.mrf.mxu0
  %v9963 = vadd.f32 %v9950, %v9962
  %v9964 = vpop.f32.mrf.mxu0
  %9965 = vdwg.mxu0
  %9966 = vmatpush.bf16.msra.mxu0 %v9561
  %9967 = vmatpush.bf16.msra.mxu0 %v9553
  %9968 = vmatpush.bf16.msra.mxu0 %v9545
  %9969 = vmatpush.bf16.msra.mxu0 %v9537
  %9970 = vmatpush.bf16.msra.mxu0 %v9529
  %9971 = vmatpush.bf16.msra.mxu0 %v9521
  %9972 = vmatpush.bf16.msra.mxu0 %v9513
  %9973 = vmatpush.bf16.msra.mxu0 %v9505
  %9974 = vmatmul.bf16.gmra.mxu0 %v8268
  %v9975 = vpop.f32.mrf.mxu0
  %v9976 = vadd.f32 %v9963, %v9975
  %v9977 = vpop.f32.mrf.mxu0
  %9978 = vdwg.mxu0
  %9979 = vmatpush.bf16.msra.mxu0 %v9370
  %9980 = vmatpush.bf16.msra.mxu0 %v9362
  %9981 = vmatpush.bf16.msra.mxu0 %v9354
  %9982 = vmatpush.bf16.msra.mxu0 %v9346
  %9983 = vmatpush.bf16.msra.mxu0 %v9338
  %9984 = vmatpush.bf16.msra.mxu0 %v9330
  %9985 = vmatpush.bf16.msra.mxu0 %v9322
  %9986 = vmatpush.bf16.msra.mxu0 %v9314
  %9987 = vmatmul.bf16.gmra.mxu0 %v8265
  %v9988 = vpop.f32.mrf.mxu0
  %v9989 = vadd.f32 %v8530, %v9988
  %v9990 = vpop.f32.mrf.mxu0
  %9991 = vdwg.mxu0
  %9992 = vmatpush.bf16.msra.mxu0 %v9434
  %9993 = vmatpush.bf16.msra.mxu0 %v9426
  %9994 = vmatpush.bf16.msra.mxu0 %v9418
  %9995 = vmatpush.bf16.msra.mxu0 %v9410
  %9996 = vmatpush.bf16.msra.mxu0 %v9402
  %9997 = vmatpush.bf16.msra.mxu0 %v9394
  %9998 = vmatpush.bf16.msra.mxu0 %v9386
  %9999 = vmatpush.bf16.msra.mxu0 %v9378
  %10000 = vmatmul.bf16.gmra.mxu0 %v8266
  %v10001 = vpop.f32.mrf.mxu0
  %v10002 = vadd.f32 %v9989, %v10001
  %v10003 = vpop.f32.mrf.mxu0
  %10004 = vdwg.mxu0
  %10005 = vmatpush.bf16.msra.mxu0 %v9498
  %10006 = vmatpush.bf16.msra.mxu0 %v9490
  %10007 = vmatpush.bf16.msra.mxu0 %v9482
  %10008 = vmatpush.bf16.msra.mxu0 %v9474
  %10009 = vmatpush.bf16.msra.mxu0 %v9466
  %10010 = vmatpush.bf16.msra.mxu0 %v9458
  %10011 = vmatpush.bf16.msra.mxu0 %v9450
  %10012 = vmatpush.bf16.msra.mxu0 %v9442
  %10013 = vmatmul.bf16.gmra.mxu0 %v8267
  %v10014 = vpop.f32.mrf.mxu0
  %v10015 = vadd.f32 %v10002, %v10014
  %v10016 = vpop.f32.mrf.mxu0
  %10017 = vdwg.mxu0
  %10018 = vmatpush.bf16.msra.mxu0 %v9562
  %10019 = vmatpush.bf16.msra.mxu0 %v9554
  %10020 = vmatpush.bf16.msra.mxu0 %v9546
  %10021 = vmatpush.bf16.msra.mxu0 %v9538
  %10022 = vmatpush.bf16.msra.mxu0 %v9530
  %10023 = vmatpush.bf16.msra.mxu0 %v9522
  %10024 = vmatpush.bf16.msra.mxu0 %v9514
  %10025 = vmatpush.bf16.msra.mxu0 %v9506
  %10026 = vmatmul.bf16.gmra.mxu0 %v8268
  %v10027 = vpop.f32.mrf.mxu0
  %v10028 = vadd.f32 %v10015, %v10027
  %v10029 = vpop.f32.mrf.mxu0
  %10030 = vdwg.mxu0
  %10031 = vmatpush.bf16.msra.mxu0 %v9371
  %10032 = vmatpush.bf16.msra.mxu0 %v9363
  %10033 = vmatpush.bf16.msra.mxu0 %v9355
  %10034 = vmatpush.bf16.msra.mxu0 %v9347
  %10035 = vmatpush.bf16.msra.mxu0 %v9339
  %10036 = vmatpush.bf16.msra.mxu0 %v9331
  %10037 = vmatpush.bf16.msra.mxu0 %v9323
  %10038 = vmatpush.bf16.msra.mxu0 %v9315
  %10039 = vmatmul.bf16.gmra.mxu0 %v8265
  %v10040 = vpop.f32.mrf.mxu0
  %v10041 = vadd.f32 %v8531, %v10040
  %v10042 = vpop.f32.mrf.mxu0
  %10043 = vdwg.mxu0
  %10044 = vmatpush.bf16.msra.mxu0 %v9435
  %10045 = vmatpush.bf16.msra.mxu0 %v9427
  %10046 = vmatpush.bf16.msra.mxu0 %v9419
  %10047 = vmatpush.bf16.msra.mxu0 %v9411
  %10048 = vmatpush.bf16.msra.mxu0 %v9403
  %10049 = vmatpush.bf16.msra.mxu0 %v9395
  %10050 = vmatpush.bf16.msra.mxu0 %v9387
  %10051 = vmatpush.bf16.msra.mxu0 %v9379
  %10052 = vmatmul.bf16.gmra.mxu0 %v8266
  %v10053 = vpop.f32.mrf.mxu0
  %v10054 = vadd.f32 %v10041, %v10053
  %v10055 = vpop.f32.mrf.mxu0
  %10056 = vdwg.mxu0
  %10057 = vmatpush.bf16.msra.mxu0 %v9499
  %10058 = vmatpush.bf16.msra.mxu0 %v9491
  %10059 = vmatpush.bf16.msra.mxu0 %v9483
  %10060 = vmatpush.bf16.msra.mxu0 %v9475
  %10061 = vmatpush.bf16.msra.mxu0 %v9467
  %10062 = vmatpush.bf16.msra.mxu0 %v9459
  %10063 = vmatpush.bf16.msra.mxu0 %v9451
  %10064 = vmatpush.bf16.msra.mxu0 %v9443
  %10065 = vmatmul.bf16.gmra.mxu0 %v8267
  %v10066 = vpop.f32.mrf.mxu0
  %v10067 = vadd.f32 %v10054, %v10066
  %v10068 = vpop.f32.mrf.mxu0
  %10069 = vdwg.mxu0
  %10070 = vmatpush.bf16.msra.mxu0 %v9563
  %10071 = vmatpush.bf16.msra.mxu0 %v9555
  %10072 = vmatpush.bf16.msra.mxu0 %v9547
  %10073 = vmatpush.bf16.msra.mxu0 %v9539
  %10074 = vmatpush.bf16.msra.mxu0 %v9531
  %10075 = vmatpush.bf16.msra.mxu0 %v9523
  %10076 = vmatpush.bf16.msra.mxu0 %v9515
  %10077 = vmatpush.bf16.msra.mxu0 %v9507
  %10078 = vmatmul.bf16.gmra.mxu0 %v8268
  %v10079 = vpop.f32.mrf.mxu0
  %v10080 = vadd.f32 %v10067, %v10079
  %v10081 = vpop.f32.mrf.mxu0
  %10082 = vdwg.mxu0
  %10083 = vmatpush.bf16.msra.mxu0 %v9372
  %10084 = vmatpush.bf16.msra.mxu0 %v9364
  %10085 = vmatpush.bf16.msra.mxu0 %v9356
  %10086 = vmatpush.bf16.msra.mxu0 %v9348
  %10087 = vmatpush.bf16.msra.mxu0 %v9340
  %10088 = vmatpush.bf16.msra.mxu0 %v9332
  %10089 = vmatpush.bf16.msra.mxu0 %v9324
  %10090 = vmatpush.bf16.msra.mxu0 %v9316
  %10091 = vmatmul.bf16.gmra.mxu0 %v8265
  %v10092 = vpop.f32.mrf.mxu0
  %v10093 = vadd.f32 %v8532, %v10092
  %v10094 = vpop.f32.mrf.mxu0
  %10095 = vdwg.mxu0
  %10096 = vmatpush.bf16.msra.mxu0 %v9436
  %10097 = vmatpush.bf16.msra.mxu0 %v9428
  %10098 = vmatpush.bf16.msra.mxu0 %v9420
  %10099 = vmatpush.bf16.msra.mxu0 %v9412
  %10100 = vmatpush.bf16.msra.mxu0 %v9404
  %10101 = vmatpush.bf16.msra.mxu0 %v9396
  %10102 = vmatpush.bf16.msra.mxu0 %v9388
  %10103 = vmatpush.bf16.msra.mxu0 %v9380
  %10104 = vmatmul.bf16.gmra.mxu0 %v8266
  %v10105 = vpop.f32.mrf.mxu0
  %v10106 = vadd.f32 %v10093, %v10105
  %v10107 = vpop.f32.mrf.mxu0
  %10108 = vdwg.mxu0
  %10109 = vmatpush.bf16.msra.mxu0 %v9500
  %10110 = vmatpush.bf16.msra.mxu0 %v9492
  %10111 = vmatpush.bf16.msra.mxu0 %v9484
  %10112 = vmatpush.bf16.msra.mxu0 %v9476
  %10113 = vmatpush.bf16.msra.mxu0 %v9468
  %10114 = vmatpush.bf16.msra.mxu0 %v9460
  %10115 = vmatpush.bf16.msra.mxu0 %v9452
  %10116 = vmatpush.bf16.msra.mxu0 %v9444
  %10117 = vmatmul.bf16.gmra.mxu0 %v8267
  %v10118 = vpop.f32.mrf.mxu0
  %v10119 = vadd.f32 %v10106, %v10118
  %v10120 = vpop.f32.mrf.mxu0
  %10121 = vdwg.mxu0
  %10122 = vmatpush.bf16.msra.mxu0 %v9564
  %10123 = vmatpush.bf16.msra.mxu0 %v9556
  %10124 = vmatpush.bf16.msra.mxu0 %v9548
  %10125 = vmatpush.bf16.msra.mxu0 %v9540
  %10126 = vmatpush.bf16.msra.mxu0 %v9532
  %10127 = vmatpush.bf16.msra.mxu0 %v9524
  %10128 = vmatpush.bf16.msra.mxu0 %v9516
  %10129 = vmatpush.bf16.msra.mxu0 %v9508
  %10130 = vmatmul.bf16.gmra.mxu0 %v8268
  %v10131 = vpop.f32.mrf.mxu0
  %v10132 = vadd.f32 %v10119, %v10131
  %v10133 = vpop.f32.mrf.mxu0
  %10134 = vdwg.mxu0
  %10135 = vmatpush.bf16.msra.mxu0 %v9373
  %10136 = vmatpush.bf16.msra.mxu0 %v9365
  %10137 = vmatpush.bf16.msra.mxu0 %v9357
  %10138 = vmatpush.bf16.msra.mxu0 %v9349
  %10139 = vmatpush.bf16.msra.mxu0 %v9341
  %10140 = vmatpush.bf16.msra.mxu0 %v9333
  %10141 = vmatpush.bf16.msra.mxu0 %v9325
  %10142 = vmatpush.bf16.msra.mxu0 %v9317
  %10143 = vmatmul.bf16.gmra.mxu0 %v8265
  %v10144 = vpop.f32.mrf.mxu0
  %v10145 = vadd.f32 %v8533, %v10144
  %v10146 = vpop.f32.mrf.mxu0
  %10147 = vdwg.mxu0
  %10148 = vmatpush.bf16.msra.mxu0 %v9437
  %10149 = vmatpush.bf16.msra.mxu0 %v9429
  %10150 = vmatpush.bf16.msra.mxu0 %v9421
  %10151 = vmatpush.bf16.msra.mxu0 %v9413
  %10152 = vmatpush.bf16.msra.mxu0 %v9405
  %10153 = vmatpush.bf16.msra.mxu0 %v9397
  %10154 = vmatpush.bf16.msra.mxu0 %v9389
  %10155 = vmatpush.bf16.msra.mxu0 %v9381
  %10156 = vmatmul.bf16.gmra.mxu0 %v8266
  %v10157 = vpop.f32.mrf.mxu0
  %v10158 = vadd.f32 %v10145, %v10157
  %v10159 = vpop.f32.mrf.mxu0
  %10160 = vdwg.mxu0
  %10161 = vmatpush.bf16.msra.mxu0 %v9501
  %10162 = vmatpush.bf16.msra.mxu0 %v9493
  %10163 = vmatpush.bf16.msra.mxu0 %v9485
  %10164 = vmatpush.bf16.msra.mxu0 %v9477
  %10165 = vmatpush.bf16.msra.mxu0 %v9469
  %10166 = vmatpush.bf16.msra.mxu0 %v9461
  %10167 = vmatpush.bf16.msra.mxu0 %v9453
  %10168 = vmatpush.bf16.msra.mxu0 %v9445
  %10169 = vmatmul.bf16.gmra.mxu0 %v8267
  %v10170 = vpop.f32.mrf.mxu0
  %v10171 = vadd.f32 %v10158, %v10170
  %v10172 = vpop.f32.mrf.mxu0
  %10173 = vdwg.mxu0
  %10174 = vmatpush.bf16.msra.mxu0 %v9565
  %10175 = vmatpush.bf16.msra.mxu0 %v9557
  %10176 = vmatpush.bf16.msra.mxu0 %v9549
  %10177 = vmatpush.bf16.msra.mxu0 %v9541
  %10178 = vmatpush.bf16.msra.mxu0 %v9533
  %10179 = vmatpush.bf16.msra.mxu0 %v9525
  %10180 = vmatpush.bf16.msra.mxu0 %v9517
  %10181 = vmatpush.bf16.msra.mxu0 %v9509
  %10182 = vmatmul.bf16.gmra.mxu0 %v8268
  %v10183 = vpop.f32.mrf.mxu0
  %v10184 = vadd.f32 %v10171, %v10183
  %v10185 = vpop.f32.mrf.mxu0
  %10186 = vdwg.mxu0
  %10187 = vmatpush.bf16.msra.mxu0 %v9374
  %10188 = vmatpush.bf16.msra.mxu0 %v9366
  %10189 = vmatpush.bf16.msra.mxu0 %v9358
  %10190 = vmatpush.bf16.msra.mxu0 %v9350
  %10191 = vmatpush.bf16.msra.mxu0 %v9342
  %10192 = vmatpush.bf16.msra.mxu0 %v9334
  %10193 = vmatpush.bf16.msra.mxu0 %v9326
  %10194 = vmatpush.bf16.msra.mxu0 %v9318
  %10195 = vmatmul.bf16.gmra.mxu0 %v8265
  %v10196 = vpop.f32.mrf.mxu0
  %v10197 = vadd.f32 %v8534, %v10196
  %v10198 = vpop.f32.mrf.mxu0
  %10199 = vdwg.mxu0
  %10200 = vmatpush.bf16.msra.mxu0 %v9438
  %10201 = vmatpush.bf16.msra.mxu0 %v9430
  %10202 = vmatpush.bf16.msra.mxu0 %v9422
  %10203 = vmatpush.bf16.msra.mxu0 %v9414
  %10204 = vmatpush.bf16.msra.mxu0 %v9406
  %10205 = vmatpush.bf16.msra.mxu0 %v9398
  %10206 = vmatpush.bf16.msra.mxu0 %v9390
  %10207 = vmatpush.bf16.msra.mxu0 %v9382
  %10208 = vmatmul.bf16.gmra.mxu0 %v8266
  %v10209 = vpop.f32.mrf.mxu0
  %v10210 = vadd.f32 %v10197, %v10209
  %v10211 = vpop.f32.mrf.mxu0
  %10212 = vdwg.mxu0
  %10213 = vmatpush.bf16.msra.mxu0 %v9502
  %10214 = vmatpush.bf16.msra.mxu0 %v9494
  %10215 = vmatpush.bf16.msra.mxu0 %v9486
  %10216 = vmatpush.bf16.msra.mxu0 %v9478
  %10217 = vmatpush.bf16.msra.mxu0 %v9470
  %10218 = vmatpush.bf16.msra.mxu0 %v9462
  %10219 = vmatpush.bf16.msra.mxu0 %v9454
  %10220 = vmatpush.bf16.msra.mxu0 %v9446
  %10221 = vmatmul.bf16.gmra.mxu0 %v8267
  %v10222 = vpop.f32.mrf.mxu0
  %v10223 = vadd.f32 %v10210, %v10222
  %v10224 = vpop.f32.mrf.mxu0
  %10225 = vdwg.mxu0
  %10226 = vmatpush.bf16.msra.mxu0 %v9566
  %10227 = vmatpush.bf16.msra.mxu0 %v9558
  %10228 = vmatpush.bf16.msra.mxu0 %v9550
  %10229 = vmatpush.bf16.msra.mxu0 %v9542
  %10230 = vmatpush.bf16.msra.mxu0 %v9534
  %10231 = vmatpush.bf16.msra.mxu0 %v9526
  %10232 = vmatpush.bf16.msra.mxu0 %v9518
  %10233 = vmatpush.bf16.msra.mxu0 %v9510
  %10234 = vmatmul.bf16.gmra.mxu0 %v8268
  %v10235 = vpop.f32.mrf.mxu0
  %v10236 = vadd.f32 %v10223, %v10235
  %v10237 = vpop.f32.mrf.mxu0
  %10238 = vdwg.mxu0
  %v10239 = vmax.f32 %v9872, 0.0
  %v10240 = vmax.f32 %v9924, 0.0
  %v10241 = vmax.f32 %v9976, 0.0
  %v10242 = vmax.f32 %v10028, 0.0
  %v10243 = vmax.f32 %v10080, 0.0
  %v10244 = vmax.f32 %v10132, 0.0
  %v10245 = vmax.f32 %v10184, 0.0
  %v10246 = vmax.f32 %v10236, 0.0
  %v10247 = vpack.c.bf16 %v10239, %v10239
  %v10248 = vpack.c.bf16 %v10240, %v10240
  %v10249 = vpack.c.bf16 %v10241, %v10241
  %v10250 = vpack.c.bf16 %v10242, %v10242
  %v10251 = vld [vmem:[%s11] sm:$0xff]
  %v10252 = vld [vmem:[%s11 + $0x8] sm:$0xff]
  %v10253 = vld [vmem:[%s11 + $0x10] sm:$0xff]
  %v10254 = vld [vmem:[%s11 + $0x18] sm:$0xff]
  %v10255 = vld [vmem:[%s11 + $0x20] sm:$0xff]
  %v10256 = vld [vmem:[%s11 + $0x28] sm:$0xff]
  %v10257 = vld [vmem:[%s11 + $0x30] sm:$0xff]
  %v10258 = vld [vmem:[%s11 + $0x38] sm:$0xff]
  %v10259 = vld [vmem:[%s11 + $0x40] sm:$0xff]
  %v10260 = vld [vmem:[%s11 + $0x48] sm:$0xff]
  %v10261 = vld [vmem:[%s11 + $0x50] sm:$0xff]
  %v10262 = vld [vmem:[%s11 + $0x58] sm:$0xff]
  %v10263 = vld [vmem:[%s11 + $0x60] sm:$0xff]
  %v10264 = vld [vmem:[%s11 + $0x68] sm:$0xff]
  %v10265 = vld [vmem:[%s11 + $0x70] sm:$0xff]
  %v10266 = vld [vmem:[%s11 + $0x78] sm:$0xff]
  %v10267 = vld [vmem:[%s11 + $0x80] sm:$0xff]
  %v10268 = vld [vmem:[%s11 + $0x88] sm:$0xff]
  %v10269 = vld [vmem:[%s11 + $0x90] sm:$0xff]
  %v10270 = vld [vmem:[%s11 + $0x98] sm:$0xff]
  %v10271 = vld [vmem:[%s11 + $0xa0] sm:$0xff]
  %v10272 = vld [vmem:[%s11 + $0xa8] sm:$0xff]
  %v10273 = vld [vmem:[%s11 + $0xb0] sm:$0xff]
  %v10274 = vld [vmem:[%s11 + $0xb8] sm:$0xff]
  %v10275 = vld [vmem:[%s11 + $0xc0] sm:$0xff]
  %v10276 = vld [vmem:[%s11 + $0xc8] sm:$0xff]
  %v10277 = vld [vmem:[%s11 + $0xd0] sm:$0xff]
  %v10278 = vld [vmem:[%s11 + $0xd8] sm:$0xff]
  %v10279 = vld [vmem:[%s11 + $0xe0] sm:$0xff]
  %v10280 = vld [vmem:[%s11 + $0xe8] sm:$0xff]
  %v10281 = vld [vmem:[%s11 + $0xf0] sm:$0xff]
  %v10282 = vld [vmem:[%s11 + $0xf8] sm:$0xff]
  %v10283 = vld [vmem:[%s11 + $0x100] sm:$0xff]
  %v10284 = vld [vmem:[%s11 + $0x108] sm:$0xff]
  %v10285 = vld [vmem:[%s11 + $0x110] sm:$0xff]
  %v10286 = vld [vmem:[%s11 + $0x118] sm:$0xff]
  %v10287 = vld [vmem:[%s11 + $0x120] sm:$0xff]
  %v10288 = vld [vmem:[%s11 + $0x128] sm:$0xff]
  %v10289 = vld [vmem:[%s11 + $0x130] sm:$0xff]
  %v10290 = vld [vmem:[%s11 + $0x138] sm:$0xff]
  %v10291 = vld [vmem:[%s11 + $0x140] sm:$0xff]
  %v10292 = vld [vmem:[%s11 + $0x148] sm:$0xff]
  %v10293 = vld [vmem:[%s11 + $0x150] sm:$0xff]
  %v10294 = vld [vmem:[%s11 + $0x158] sm:$0xff]
  %v10295 = vld [vmem:[%s11 + $0x160] sm:$0xff]
  %v10296 = vld [vmem:[%s11 + $0x168] sm:$0xff]
  %v10297 = vld [vmem:[%s11 + $0x170] sm:$0xff]
  %v10298 = vld [vmem:[%s11 + $0x178] sm:$0xff]
  %v10299 = vld [vmem:[%s11 + $0x180] sm:$0xff]
  %v10300 = vld [vmem:[%s11 + $0x188] sm:$0xff]
  %v10301 = vld [vmem:[%s11 + $0x190] sm:$0xff]
  %v10302 = vld [vmem:[%s11 + $0x198] sm:$0xff]
  %v10303 = vld [vmem:[%s11 + $0x1a0] sm:$0xff]
  %v10304 = vld [vmem:[%s11 + $0x1a8] sm:$0xff]
  %v10305 = vld [vmem:[%s11 + $0x1b0] sm:$0xff]
  %v10306 = vld [vmem:[%s11 + $0x1b8] sm:$0xff]
  %v10307 = vld [vmem:[%s11 + $0x1c0] sm:$0xff]
  %v10308 = vld [vmem:[%s11 + $0x1c8] sm:$0xff]
  %v10309 = vld [vmem:[%s11 + $0x1d0] sm:$0xff]
  %v10310 = vld [vmem:[%s11 + $0x1d8] sm:$0xff]
  %v10311 = vld [vmem:[%s11 + $0x1e0] sm:$0xff]
  %v10312 = vld [vmem:[%s11 + $0x1e8] sm:$0xff]
  %v10313 = vld [vmem:[%s11 + $0x1f0] sm:$0xff]
  %v10314 = vld [vmem:[%s11 + $0x1f8] sm:$0xff]
  %v10315 = vld [vmem:[%s11 + $0x200] sm:$0xff]
  %v10316 = vld [vmem:[%s11 + $0x208] sm:$0xff]
  %v10317 = vld [vmem:[%s11 + $0x210] sm:$0xff]
  %v10318 = vld [vmem:[%s11 + $0x218] sm:$0xff]
  %v10319 = vld [vmem:[%s11 + $0x220] sm:$0xff]
  %v10320 = vld [vmem:[%s11 + $0x228] sm:$0xff]
  %v10321 = vld [vmem:[%s11 + $0x230] sm:$0xff]
  %v10322 = vld [vmem:[%s11 + $0x238] sm:$0xff]
  %v10323 = vld [vmem:[%s11 + $0x240] sm:$0xff]
  %v10324 = vld [vmem:[%s11 + $0x248] sm:$0xff]
  %v10325 = vld [vmem:[%s11 + $0x250] sm:$0xff]
  %v10326 = vld [vmem:[%s11 + $0x258] sm:$0xff]
  %v10327 = vld [vmem:[%s11 + $0x260] sm:$0xff]
  %v10328 = vld [vmem:[%s11 + $0x268] sm:$0xff]
  %v10329 = vld [vmem:[%s11 + $0x270] sm:$0xff]
  %v10330 = vld [vmem:[%s11 + $0x278] sm:$0xff]
  %v10331 = vld [vmem:[%s11 + $0x280] sm:$0xff]
  %v10332 = vld [vmem:[%s11 + $0x288] sm:$0xff]
  %v10333 = vld [vmem:[%s11 + $0x290] sm:$0xff]
  %v10334 = vld [vmem:[%s11 + $0x298] sm:$0xff]
  %v10335 = vld [vmem:[%s11 + $0x2a0] sm:$0xff]
  %v10336 = vld [vmem:[%s11 + $0x2a8] sm:$0xff]
  %v10337 = vld [vmem:[%s11 + $0x2b0] sm:$0xff]
  %v10338 = vld [vmem:[%s11 + $0x2b8] sm:$0xff]
  %v10339 = vld [vmem:[%s11 + $0x2c0] sm:$0xff]
  %v10340 = vld [vmem:[%s11 + $0x2c8] sm:$0xff]
  %v10341 = vld [vmem:[%s11 + $0x2d0] sm:$0xff]
  %v10342 = vld [vmem:[%s11 + $0x2d8] sm:$0xff]
  %v10343 = vld [vmem:[%s11 + $0x2e0] sm:$0xff]
  %v10344 = vld [vmem:[%s11 + $0x2e8] sm:$0xff]
  %v10345 = vld [vmem:[%s11 + $0x2f0] sm:$0xff]
  %v10346 = vld [vmem:[%s11 + $0x2f8] sm:$0xff]
  %v10347 = vld [vmem:[%s11 + $0x300] sm:$0xff]
  %v10348 = vld [vmem:[%s11 + $0x308] sm:$0xff]
  %v10349 = vld [vmem:[%s11 + $0x310] sm:$0xff]
  %v10350 = vld [vmem:[%s11 + $0x318] sm:$0xff]
  %v10351 = vld [vmem:[%s11 + $0x320] sm:$0xff]
  %v10352 = vld [vmem:[%s11 + $0x328] sm:$0xff]
  %v10353 = vld [vmem:[%s11 + $0x330] sm:$0xff]
  %v10354 = vld [vmem:[%s11 + $0x338] sm:$0xff]
  %v10355 = vld [vmem:[%s11 + $0x340] sm:$0xff]
  %v10356 = vld [vmem:[%s11 + $0x348] sm:$0xff]
  %v10357 = vld [vmem:[%s11 + $0x350] sm:$0xff]
  %v10358 = vld [vmem:[%s11 + $0x358] sm:$0xff]
  %v10359 = vld [vmem:[%s11 + $0x360] sm:$0xff]
  %v10360 = vld [vmem:[%s11 + $0x368] sm:$0xff]
  %v10361 = vld [vmem:[%s11 + $0x370] sm:$0xff]
  %v10362 = vld [vmem:[%s11 + $0x378] sm:$0xff]
  %v10363 = vld [vmem:[%s11 + $0x380] sm:$0xff]
  %v10364 = vld [vmem:[%s11 + $0x388] sm:$0xff]
  %v10365 = vld [vmem:[%s11 + $0x390] sm:$0xff]
  %v10366 = vld [vmem:[%s11 + $0x398] sm:$0xff]
  %v10367 = vld [vmem:[%s11 + $0x3a0] sm:$0xff]
  %v10368 = vld [vmem:[%s11 + $0x3a8] sm:$0xff]
  %v10369 = vld [vmem:[%s11 + $0x3b0] sm:$0xff]
  %v10370 = vld [vmem:[%s11 + $0x3b8] sm:$0xff]
  %v10371 = vld [vmem:[%s11 + $0x3c0] sm:$0xff]
  %v10372 = vld [vmem:[%s11 + $0x3c8] sm:$0xff]
  %v10373 = vld [vmem:[%s11 + $0x3d0] sm:$0xff]
  %v10374 = vld [vmem:[%s11 + $0x3d8] sm:$0xff]
  %v10375 = vld [vmem:[%s11 + $0x3e0] sm:$0xff]
  %v10376 = vld [vmem:[%s11 + $0x3e8] sm:$0xff]
  %v10377 = vld [vmem:[%s11 + $0x3f0] sm:$0xff]
  %v10378 = vld [vmem:[%s11 + $0x3f8] sm:$0xff]
  %v10379 = vld [vmem:[%s12] sm:$0xf]
  %v10381 = vperm.slane %v10379, 0
  %v10382 = vperm.slane %v10379, 1
  %v10383 = vperm.slane %v10379, 2
  %v10384 = vperm.slane %v10379, 3
  %v10517 = vunpack.c.l.b16 %v10251
  %v10518 = vunpack.c.h.b16 %v10251
  %v10519 = vunpack.c.l.b16 %v10252
  %v10520 = vunpack.c.h.b16 %v10252
  %v10521 = vunpack.c.l.b16 %v10253
  %v10522 = vunpack.c.h.b16 %v10253
  %v10523 = vunpack.c.l.b16 %v10254
  %v10524 = vunpack.c.h.b16 %v10254
  %v10525 = vunpack.c.l.b16 %v10255
  %v10526 = vunpack.c.h.b16 %v10255
  %v10527 = vunpack.c.l.b16 %v10256
  %v10528 = vunpack.c.h.b16 %v10256
  %v10529 = vunpack.c.l.b16 %v10257
  %v10530 = vunpack.c.h.b16 %v10257
  %v10531 = vunpack.c.l.b16 %v10258
  %v10532 = vunpack.c.h.b16 %v10258
  %v10533 = vunpack.c.l.b16 %v10259
  %v10534 = vunpack.c.h.b16 %v10259
  %v10535 = vunpack.c.l.b16 %v10260
  %v10536 = vunpack.c.h.b16 %v10260
  %v10537 = vunpack.c.l.b16 %v10261
  %v10538 = vunpack.c.h.b16 %v10261
  %v10539 = vunpack.c.l.b16 %v10262
  %v10540 = vunpack.c.h.b16 %v10262
  %v10541 = vunpack.c.l.b16 %v10263
  %v10542 = vunpack.c.h.b16 %v10263
  %v10543 = vunpack.c.l.b16 %v10264
  %v10544 = vunpack.c.h.b16 %v10264
  %v10545 = vunpack.c.l.b16 %v10265
  %v10546 = vunpack.c.h.b16 %v10265
  %v10547 = vunpack.c.l.b16 %v10266
  %v10548 = vunpack.c.h.b16 %v10266
  %v10549 = vunpack.c.l.b16 %v10267
  %v10550 = vunpack.c.h.b16 %v10267
  %v10551 = vunpack.c.l.b16 %v10268
  %v10552 = vunpack.c.h.b16 %v10268
  %v10553 = vunpack.c.l.b16 %v10269
  %v10554 = vunpack.c.h.b16 %v10269
  %v10555 = vunpack.c.l.b16 %v10270
  %v10556 = vunpack.c.h.b16 %v10270
  %v10557 = vunpack.c.l.b16 %v10271
  %v10558 = vunpack.c.h.b16 %v10271
  %v10559 = vunpack.c.l.b16 %v10272
  %v10560 = vunpack.c.h.b16 %v10272
  %v10561 = vunpack.c.l.b16 %v10273
  %v10562 = vunpack.c.h.b16 %v10273
  %v10563 = vunpack.c.l.b16 %v10274
  %v10564 = vunpack.c.h.b16 %v10274
  %v10565 = vunpack.c.l.b16 %v10275
  %v10566 = vunpack.c.h.b16 %v10275
  %v10567 = vunpack.c.l.b16 %v10276
  %v10568 = vunpack.c.h.b16 %v10276
  %v10569 = vunpack.c.l.b16 %v10277
  %v10570 = vunpack.c.h.b16 %v10277
  %v10571 = vunpack.c.l.b16 %v10278
  %v10572 = vunpack.c.h.b16 %v10278
  %v10573 = vunpack.c.l.b16 %v10279
  %v10574 = vunpack.c.h.b16 %v10279
  %v10575 = vunpack.c.l.b16 %v10280
  %v10576 = vunpack.c.h.b16 %v10280
  %v10577 = vunpack.c.l.b16 %v10281
  %v10578 = vunpack.c.h.b16 %v10281
  %v10579 = vunpack.c.l.b16 %v10282
  %v10580 = vunpack.c.h.b16 %v10282
  %v10581 = vunpack.c.l.b16 %v10283
  %v10582 = vunpack.c.h.b16 %v10283
  %v10583 = vunpack.c.l.b16 %v10284
  %v10584 = vunpack.c.h.b16 %v10284
  %v10585 = vunpack.c.l.b16 %v10285
  %v10586 = vunpack.c.h.b16 %v10285
  %v10587 = vunpack.c.l.b16 %v10286
  %v10588 = vunpack.c.h.b16 %v10286
  %v10589 = vunpack.c.l.b16 %v10287
  %v10590 = vunpack.c.h.b16 %v10287
  %v10591 = vunpack.c.l.b16 %v10288
  %v10592 = vunpack.c.h.b16 %v10288
  %v10593 = vunpack.c.l.b16 %v10289
  %v10594 = vunpack.c.h.b16 %v10289
  %v10595 = vunpack.c.l.b16 %v10290
  %v10596 = vunpack.c.h.b16 %v10290
  %v10597 = vunpack.c.l.b16 %v10291
  %v10598 = vunpack.c.h.b16 %v10291
  %v10599 = vunpack.c.l.b16 %v10292
  %v10600 = vunpack.c.h.b16 %v10292
  %v10601 = vunpack.c.l.b16 %v10293
  %v10602 = vunpack.c.h.b16 %v10293
  %v10603 = vunpack.c.l.b16 %v10294
  %v10604 = vunpack.c.h.b16 %v10294
  %v10605 = vunpack.c.l.b16 %v10295
  %v10606 = vunpack.c.h.b16 %v10295
  %v10607 = vunpack.c.l.b16 %v10296
  %v10608 = vunpack.c.h.b16 %v10296
  %v10609 = vunpack.c.l.b16 %v10297
  %v10610 = vunpack.c.h.b16 %v10297
  %v10611 = vunpack.c.l.b16 %v10298
  %v10612 = vunpack.c.h.b16 %v10298
  %v10613 = vunpack.c.l.b16 %v10299
  %v10614 = vunpack.c.h.b16 %v10299
  %v10615 = vunpack.c.l.b16 %v10300
  %v10616 = vunpack.c.h.b16 %v10300
  %v10617 = vunpack.c.l.b16 %v10301
  %v10618 = vunpack.c.h.b16 %v10301
  %v10619 = vunpack.c.l.b16 %v10302
  %v10620 = vunpack.c.h.b16 %v10302
  %v10621 = vunpack.c.l.b16 %v10303
  %v10622 = vunpack.c.h.b16 %v10303
  %v10623 = vunpack.c.l.b16 %v10304
  %v10624 = vunpack.c.h.b16 %v10304
  %v10625 = vunpack.c.l.b16 %v10305
  %v10626 = vunpack.c.h.b16 %v10305
  %v10627 = vunpack.c.l.b16 %v10306
  %v10628 = vunpack.c.h.b16 %v10306
  %v10629 = vunpack.c.l.b16 %v10307
  %v10630 = vunpack.c.h.b16 %v10307
  %v10631 = vunpack.c.l.b16 %v10308
  %v10632 = vunpack.c.h.b16 %v10308
  %v10633 = vunpack.c.l.b16 %v10309
  %v10634 = vunpack.c.h.b16 %v10309
  %v10635 = vunpack.c.l.b16 %v10310
  %v10636 = vunpack.c.h.b16 %v10310
  %v10637 = vunpack.c.l.b16 %v10311
  %v10638 = vunpack.c.h.b16 %v10311
  %v10639 = vunpack.c.l.b16 %v10312
  %v10640 = vunpack.c.h.b16 %v10312
  %v10641 = vunpack.c.l.b16 %v10313
  %v10642 = vunpack.c.h.b16 %v10313
  %v10643 = vunpack.c.l.b16 %v10314
  %v10644 = vunpack.c.h.b16 %v10314
  %v10645 = vunpack.c.l.b16 %v10315
  %v10646 = vunpack.c.h.b16 %v10315
  %v10647 = vunpack.c.l.b16 %v10316
  %v10648 = vunpack.c.h.b16 %v10316
  %v10649 = vunpack.c.l.b16 %v10317
  %v10650 = vunpack.c.h.b16 %v10317
  %v10651 = vunpack.c.l.b16 %v10318
  %v10652 = vunpack.c.h.b16 %v10318
  %v10653 = vunpack.c.l.b16 %v10319
  %v10654 = vunpack.c.h.b16 %v10319
  %v10655 = vunpack.c.l.b16 %v10320
  %v10656 = vunpack.c.h.b16 %v10320
  %v10657 = vunpack.c.l.b16 %v10321
  %v10658 = vunpack.c.h.b16 %v10321
  %v10659 = vunpack.c.l.b16 %v10322
  %v10660 = vunpack.c.h.b16 %v10322
  %v10661 = vunpack.c.l.b16 %v10323
  %v10662 = vunpack.c.h.b16 %v10323
  %v10663 = vunpack.c.l.b16 %v10324
  %v10664 = vunpack.c.h.b16 %v10324
  %v10665 = vunpack.c.l.b16 %v10325
  %v10666 = vunpack.c.h.b16 %v10325
  %v10667 = vunpack.c.l.b16 %v10326
  %v10668 = vunpack.c.h.b16 %v10326
  %v10669 = vunpack.c.l.b16 %v10327
  %v10670 = vunpack.c.h.b16 %v10327
  %v10671 = vunpack.c.l.b16 %v10328
  %v10672 = vunpack.c.h.b16 %v10328
  %v10673 = vunpack.c.l.b16 %v10329
  %v10674 = vunpack.c.h.b16 %v10329
  %v10675 = vunpack.c.l.b16 %v10330
  %v10676 = vunpack.c.h.b16 %v10330
  %v10677 = vunpack.c.l.b16 %v10331
  %v10678 = vunpack.c.h.b16 %v10331
  %v10679 = vunpack.c.l.b16 %v10332
  %v10680 = vunpack.c.h.b16 %v10332
  %v10681 = vunpack.c.l.b16 %v10333
  %v10682 = vunpack.c.h.b16 %v10333
  %v10683 = vunpack.c.l.b16 %v10334
  %v10684 = vunpack.c.h.b16 %v10334
  %v10685 = vunpack.c.l.b16 %v10335
  %v10686 = vunpack.c.h.b16 %v10335
  %v10687 = vunpack.c.l.b16 %v10336
  %v10688 = vunpack.c.h.b16 %v10336
  %v10689 = vunpack.c.l.b16 %v10337
  %v10690 = vunpack.c.h.b16 %v10337
  %v10691 = vunpack.c.l.b16 %v10338
  %v10692 = vunpack.c.h.b16 %v10338
  %v10693 = vunpack.c.l.b16 %v10339
  %v10694 = vunpack.c.h.b16 %v10339
  %v10695 = vunpack.c.l.b16 %v10340
  %v10696 = vunpack.c.h.b16 %v10340
  %v10697 = vunpack.c.l.b16 %v10341
  %v10698 = vunpack.c.h.b16 %v10341
  %v10699 = vunpack.c.l.b16 %v10342
  %v10700 = vunpack.c.h.b16 %v10342
  %v10701 = vunpack.c.l.b16 %v10343
  %v10702 = vunpack.c.h.b16 %v10343
  %v10703 = vunpack.c.l.b16 %v10344
  %v10704 = vunpack.c.h.b16 %v10344
  %v10705 = vunpack.c.l.b16 %v10345
  %v10706 = vunpack.c.h.b16 %v10345
  %v10707 = vunpack.c.l.b16 %v10346
  %v10708 = vunpack.c.h.b16 %v10346
  %v10709 = vunpack.c.l.b16 %v10347
  %v10710 = vunpack.c.h.b16 %v10347
  %v10711 = vunpack.c.l.b16 %v10348
  %v10712 = vunpack.c.h.b16 %v10348
  %v10713 = vunpack.c.l.b16 %v10349
  %v10714 = vunpack.c.h.b16 %v10349
  %v10715 = vunpack.c.l.b16 %v10350
  %v10716 = vunpack.c.h.b16 %v10350
  %v10717 = vunpack.c.l.b16 %v10351
  %v10718 = vunpack.c.h.b16 %v10351
  %v10719 = vunpack.c.l.b16 %v10352
  %v10720 = vunpack.c.h.b16 %v10352
  %v10721 = vunpack.c.l.b16 %v10353
  %v10722 = vunpack.c.h.b16 %v10353
  %v10723 = vunpack.c.l.b16 %v10354
  %v10724 = vunpack.c.h.b16 %v10354
  %v10725 = vunpack.c.l.b16 %v10355
  %v10726 = vunpack.c.h.b16 %v10355
  %v10727 = vunpack.c.l.b16 %v10356
  %v10728 = vunpack.c.h.b16 %v10356
  %v10729 = vunpack.c.l.b16 %v10357
  %v10730 = vunpack.c.h.b16 %v10357
  %v10731 = vunpack.c.l.b16 %v10358
  %v10732 = vunpack.c.h.b16 %v10358
  %v10733 = vunpack.c.l.b16 %v10359
  %v10734 = vunpack.c.h.b16 %v10359
  %v10735 = vunpack.c.l.b16 %v10360
  %v10736 = vunpack.c.h.b16 %v10360
  %v10737 = vunpack.c.l.b16 %v10361
  %v10738 = vunpack.c.h.b16 %v10361
  %v10739 = vunpack.c.l.b16 %v10362
  %v10740 = vunpack.c.h.b16 %v10362
  %v10741 = vunpack.c.l.b16 %v10363
  %v10742 = vunpack.c.h.b16 %v10363
  %v10743 = vunpack.c.l.b16 %v10364
  %v10744 = vunpack.c.h.b16 %v10364
  %v10745 = vunpack.c.l.b16 %v10365
  %v10746 = vunpack.c.h.b16 %v10365
  %v10747 = vunpack.c.l.b16 %v10366
  %v10748 = vunpack.c.h.b16 %v10366
  %v10749 = vunpack.c.l.b16 %v10367
  %v10750 = vunpack.c.h.b16 %v10367
  %v10751 = vunpack.c.l.b16 %v10368
  %v10752 = vunpack.c.h.b16 %v10368
  %v10753 = vunpack.c.l.b16 %v10369
  %v10754 = vunpack.c.h.b16 %v10369
  %v10755 = vunpack.c.l.b16 %v10370
  %v10756 = vunpack.c.h.b16 %v10370
  %v10757 = vunpack.c.l.b16 %v10371
  %v10758 = vunpack.c.h.b16 %v10371
  %v10759 = vunpack.c.l.b16 %v10372
  %v10760 = vunpack.c.h.b16 %v10372
  %v10761 = vunpack.c.l.b16 %v10373
  %v10762 = vunpack.c.h.b16 %v10373
  %v10763 = vunpack.c.l.b16 %v10374
  %v10764 = vunpack.c.h.b16 %v10374
  %v10765 = vunpack.c.l.b16 %v10375
  %v10766 = vunpack.c.h.b16 %v10375
  %v10767 = vunpack.c.l.b16 %v10376
  %v10768 = vunpack.c.h.b16 %v10376
  %v10769 = vunpack.c.l.b16 %v10377
  %v10770 = vunpack.c.h.b16 %v10377
  %v10771 = vunpack.c.l.b16 %v10378
  %v10772 = vunpack.c.h.b16 %v10378
  %v10773 = vpack.c.b16 %v10521, %v10517
  %v10774 = vpack.c.b16 %v10522, %v10518
  %v10775 = vpack.c.b16 %v10523, %v10519
  %v10776 = vpack.c.b16 %v10524, %v10520
  %v10777 = vpack.c.b16 %v10529, %v10525
  %v10778 = vpack.c.b16 %v10530, %v10526
  %v10779 = vpack.c.b16 %v10531, %v10527
  %v10780 = vpack.c.b16 %v10532, %v10528
  %v10781 = vpack.c.b16 %v10537, %v10533
  %v10782 = vpack.c.b16 %v10538, %v10534
  %v10783 = vpack.c.b16 %v10539, %v10535
  %v10784 = vpack.c.b16 %v10540, %v10536
  %v10785 = vpack.c.b16 %v10545, %v10541
  %v10786 = vpack.c.b16 %v10546, %v10542
  %v10787 = vpack.c.b16 %v10547, %v10543
  %v10788 = vpack.c.b16 %v10548, %v10544
  %v10789 = vpack.c.b16 %v10553, %v10549
  %v10790 = vpack.c.b16 %v10554, %v10550
  %v10791 = vpack.c.b16 %v10555, %v10551
  %v10792 = vpack.c.b16 %v10556, %v10552
  %v10793 = vpack.c.b16 %v10561, %v10557
  %v10794 = vpack.c.b16 %v10562, %v10558
  %v10795 = vpack.c.b16 %v10563, %v10559
  %v10796 = vpack.c.b16 %v10564, %v10560
  %v10797 = vpack.c.b16 %v10569, %v10565
  %v10798 = vpack.c.b16 %v10570, %v10566
  %v10799 = vpack.c.b16 %v10571, %v10567
  %v10800 = vpack.c.b16 %v10572, %v10568
  %v10801 = vpack.c.b16 %v10577, %v10573
  %v10802 = vpack.c.b16 %v10578, %v10574
  %v10803 = vpack.c.b16 %v10579, %v10575
  %v10804 = vpack.c.b16 %v10580, %v10576
  %v10805 = vpack.c.b16 %v10585, %v10581
  %v10806 = vpack.c.b16 %v10586, %v10582
  %v10807 = vpack.c.b16 %v10587, %v10583
  %v10808 = vpack.c.b16 %v10588, %v10584
  %v10809 = vpack.c.b16 %v10593, %v10589
  %v10810 = vpack.c.b16 %v10594, %v10590
  %v10811 = vpack.c.b16 %v10595, %v10591
  %v10812 = vpack.c.b16 %v10596, %v10592
  %v10813 = vpack.c.b16 %v10601, %v10597
  %v10814 = vpack.c.b16 %v10602, %v10598
  %v10815 = vpack.c.b16 %v10603, %v10599
  %v10816 = vpack.c.b16 %v10604, %v10600
  %v10817 = vpack.c.b16 %v10609, %v10605
  %v10818 = vpack.c.b16 %v10610, %v10606
  %v10819 = vpack.c.b16 %v10611, %v10607
  %v10820 = vpack.c.b16 %v10612, %v10608
  %v10821 = vpack.c.b16 %v10617, %v10613
  %v10822 = vpack.c.b16 %v10618, %v10614
  %v10823 = vpack.c.b16 %v10619, %v10615
  %v10824 = vpack.c.b16 %v10620, %v10616
  %v10825 = vpack.c.b16 %v10625, %v10621
  %v10826 = vpack.c.b16 %v10626, %v10622
  %v10827 = vpack.c.b16 %v10627, %v10623
  %v10828 = vpack.c.b16 %v10628, %v10624
  %v10829 = vpack.c.b16 %v10633, %v10629
  %v10830 = vpack.c.b16 %v10634, %v10630
  %v10831 = vpack.c.b16 %v10635, %v10631
  %v10832 = vpack.c.b16 %v10636, %v10632
  %v10833 = vpack.c.b16 %v10641, %v10637
  %v10834 = vpack.c.b16 %v10642, %v10638
  %v10835 = vpack.c.b16 %v10643, %v10639
  %v10836 = vpack.c.b16 %v10644, %v10640
  %v10837 = vpack.c.b16 %v10649, %v10645
  %v10838 = vpack.c.b16 %v10650, %v10646
  %v10839 = vpack.c.b16 %v10651, %v10647
  %v10840 = vpack.c.b16 %v10652, %v10648
  %v10841 = vpack.c.b16 %v10657, %v10653
  %v10842 = vpack.c.b16 %v10658, %v10654
  %v10843 = vpack.c.b16 %v10659, %v10655
  %v10844 = vpack.c.b16 %v10660, %v10656
  %v10845 = vpack.c.b16 %v10665, %v10661
  %v10846 = vpack.c.b16 %v10666, %v10662
  %v10847 = vpack.c.b16 %v10667, %v10663
  %v10848 = vpack.c.b16 %v10668, %v10664
  %v10849 = vpack.c.b16 %v10673, %v10669
  %v10850 = vpack.c.b16 %v10674, %v10670
  %v10851 = vpack.c.b16 %v10675, %v10671
  %v10852 = vpack.c.b16 %v10676, %v10672
  %v10853 = vpack.c.b16 %v10681, %v10677
  %v10854 = vpack.c.b16 %v10682, %v10678
  %v10855 = vpack.c.b16 %v10683, %v10679
  %v10856 = vpack.c.b16 %v10684, %v10680
  %v10857 = vpack.c.b16 %v10689, %v10685
  %v10858 = vpack.c.b16 %v10690, %v10686
  %v10859 = vpack.c.b16 %v10691, %v10687
  %v10860 = vpack.c.b16 %v10692, %v10688
  %v10861 = vpack.c.b16 %v10697, %v10693
  %v10862 = vpack.c.b16 %v10698, %v10694
  %v10863 = vpack.c.b16 %v10699, %v10695
  %v10864 = vpack.c.b16 %v10700, %v10696
  %v10865 = vpack.c.b16 %v10705, %v10701
  %v10866 = vpack.c.b16 %v10706, %v10702
  %v10867 = vpack.c.b16 %v10707, %v10703
  %v10868 = vpack.c.b16 %v10708, %v10704
  %v10869 = vpack.c.b16 %v10713, %v10709
  %v10870 = vpack.c.b16 %v10714, %v10710
  %v10871 = vpack.c.b16 %v10715, %v10711
  %v10872 = vpack.c.b16 %v10716, %v10712
  %v10873 = vpack.c.b16 %v10721, %v10717
  %v10874 = vpack.c.b16 %v10722, %v10718
  %v10875 = vpack.c.b16 %v10723, %v10719
  %v10876 = vpack.c.b16 %v10724, %v10720
  %v10877 = vpack.c.b16 %v10729, %v10725
  %v10878 = vpack.c.b16 %v10730, %v10726
  %v10879 = vpack.c.b16 %v10731, %v10727
  %v10880 = vpack.c.b16 %v10732, %v10728
  %v10881 = vpack.c.b16 %v10737, %v10733
  %v10882 = vpack.c.b16 %v10738, %v10734
  %v10883 = vpack.c.b16 %v10739, %v10735
  %v10884 = vpack.c.b16 %v10740, %v10736
  %v10885 = vpack.c.b16 %v10745, %v10741
  %v10886 = vpack.c.b16 %v10746, %v10742
  %v10887 = vpack.c.b16 %v10747, %v10743
  %v10888 = vpack.c.b16 %v10748, %v10744
  %v10889 = vpack.c.b16 %v10753, %v10749
  %v10890 = vpack.c.b16 %v10754, %v10750
  %v10891 = vpack.c.b16 %v10755, %v10751
  %v10892 = vpack.c.b16 %v10756, %v10752
  %v10893 = vpack.c.b16 %v10761, %v10757
  %v10894 = vpack.c.b16 %v10762, %v10758
  %v10895 = vpack.c.b16 %v10763, %v10759
  %v10896 = vpack.c.b16 %v10764, %v10760
  %v10897 = vpack.c.b16 %v10769, %v10765
  %v10898 = vpack.c.b16 %v10770, %v10766
  %v10899 = vpack.c.b16 %v10771, %v10767
  %v10900 = vpack.c.b16 %v10772, %v10768
  %11029 = vmatpush.bf16.msra.mxu0 %v10801
  %11030 = vmatpush.bf16.msra.mxu0 %v10797
  %11031 = vmatpush.bf16.msra.mxu0 %v10793
  %11032 = vmatpush.bf16.msra.mxu0 %v10789
  %11033 = vmatpush.bf16.msra.mxu0 %v10785
  %11034 = vmatpush.bf16.msra.mxu0 %v10781
  %11035 = vmatpush.bf16.msra.mxu0 %v10777
  %11036 = vmatpush.bf16.msra.mxu0 %v10773
  %11037 = vmatmul.bf16.gmra.mxu0 %v10247
  %v11038 = vpop.f32.mrf.mxu0
  %v11039 = vadd.f32 %v10381, %v11038
  %v11040 = vpop.f32.mrf.mxu0
  %11041 = vdwg.mxu0
  %11042 = vmatpush.bf16.msra.mxu0 %v10833
  %11043 = vmatpush.bf16.msra.mxu0 %v10829
  %11044 = vmatpush.bf16.msra.mxu0 %v10825
  %11045 = vmatpush.bf16.msra.mxu0 %v10821
  %11046 = vmatpush.bf16.msra.mxu0 %v10817
  %11047 = vmatpush.bf16.msra.mxu0 %v10813
  %11048 = vmatpush.bf16.msra.mxu0 %v10809
  %11049 = vmatpush.bf16.msra.mxu0 %v10805
  %11050 = vmatmul.bf16.gmra.mxu0 %v10248
  %v11051 = vpop.f32.mrf.mxu0
  %v11052 = vadd.f32 %v11039, %v11051
  %v11053 = vpop.f32.mrf.mxu0
  %11054 = vdwg.mxu0
  %11055 = vmatpush.bf16.msra.mxu0 %v10865
  %11056 = vmatpush.bf16.msra.mxu0 %v10861
  %11057 = vmatpush.bf16.msra.mxu0 %v10857
  %11058 = vmatpush.bf16.msra.mxu0 %v10853
  %11059 = vmatpush.bf16.msra.mxu0 %v10849
  %11060 = vmatpush.bf16.msra.mxu0 %v10845
  %11061 = vmatpush.bf16.msra.mxu0 %v10841
  %11062 = vmatpush.bf16.msra.mxu0 %v10837
  %11063 = vmatmul.bf16.gmra.mxu0 %v10249
  %v11064 = vpop.f32.mrf.mxu0
  %v11065 = vadd.f32 %v11052, %v11064
  %v11066 = vpop.f32.mrf.mxu0
  %11067 = vdwg.mxu0
  %11068 = vmatpush.bf16.msra.mxu0 %v10897
  %11069 = vmatpush.bf16.msra.mxu0 %v10893
  %11070 = vmatpush.bf16.msra.mxu0 %v10889
  %11071 = vmatpush.bf16.msra.mxu0 %v10885
  %11072 = vmatpush.bf16.msra.mxu0 %v10881
  %11073 = vmatpush.bf16.msra.mxu0 %v10877
  %11074 = vmatpush.bf16.msra.mxu0 %v10873
  %11075 = vmatpush.bf16.msra.mxu0 %v10869
  %11076 = vmatmul.bf16.gmra.mxu0 %v10250
  %v11077 = vpop.f32.mrf.mxu0
  %v11078 = vadd.f32 %v11065, %v11077
  %v11079 = vpop.f32.mrf.mxu0
  %11080 = vdwg.mxu0
  %11081 = vmatpush.bf16.msra.mxu0 %v10802
  %11082 = vmatpush.bf16.msra.mxu0 %v10798
  %11083 = vmatpush.bf16.msra.mxu0 %v10794
  %11084 = vmatpush.bf16.msra.mxu0 %v10790
  %11085 = vmatpush.bf16.msra.mxu0 %v10786
  %11086 = vmatpush.bf16.msra.mxu0 %v10782
  %11087 = vmatpush.bf16.msra.mxu0 %v10778
  %11088 = vmatpush.bf16.msra.mxu0 %v10774
  %11089 = vmatmul.bf16.gmra.mxu0 %v10247
  %v11090 = vpop.f32.mrf.mxu0
  %v11091 = vadd.f32 %v10382, %v11090
  %v11092 = vpop.f32.mrf.mxu0
  %11093 = vdwg.mxu0
  %11094 = vmatpush.bf16.msra.mxu0 %v10834
  %11095 = vmatpush.bf16.msra.mxu0 %v10830
  %11096 = vmatpush.bf16.msra.mxu0 %v10826
  %11097 = vmatpush.bf16.msra.mxu0 %v10822
  %11098 = vmatpush.bf16.msra.mxu0 %v10818
  %11099 = vmatpush.bf16.msra.mxu0 %v10814
  %11100 = vmatpush.bf16.msra.mxu0 %v10810
  %11101 = vmatpush.bf16.msra.mxu0 %v10806
  %11102 = vmatmul.bf16.gmra.mxu0 %v10248
  %v11103 = vpop.f32.mrf.mxu0
  %v11104 = vadd.f32 %v11091, %v11103
  %v11105 = vpop.f32.mrf.mxu0
  %11106 = vdwg.mxu0
  %11107 = vmatpush.bf16.msra.mxu0 %v10866
  %11108 = vmatpush.bf16.msra.mxu0 %v10862
  %11109 = vmatpush.bf16.msra.mxu0 %v10858
  %11110 = vmatpush.bf16.msra.mxu0 %v10854
  %11111 = vmatpush.bf16.msra.mxu0 %v10850
  %11112 = vmatpush.bf16.msra.mxu0 %v10846
  %11113 = vmatpush.bf16.msra.mxu0 %v10842
  %11114 = vmatpush.bf16.msra.mxu0 %v10838
  %11115 = vmatmul.bf16.gmra.mxu0 %v10249
  %v11116 = vpop.f32.mrf.mxu0
  %v11117 = vadd.f32 %v11104, %v11116
  %v11118 = vpop.f32.mrf.mxu0
  %11119 = vdwg.mxu0
  %11120 = vmatpush.bf16.msra.mxu0 %v10898
  %11121 = vmatpush.bf16.msra.mxu0 %v10894
  %11122 = vmatpush.bf16.msra.mxu0 %v10890
  %11123 = vmatpush.bf16.msra.mxu0 %v10886
  %11124 = vmatpush.bf16.msra.mxu0 %v10882
  %11125 = vmatpush.bf16.msra.mxu0 %v10878
  %11126 = vmatpush.bf16.msra.mxu0 %v10874
  %11127 = vmatpush.bf16.msra.mxu0 %v10870
  %11128 = vmatmul.bf16.gmra.mxu0 %v10250
  %v11129 = vpop.f32.mrf.mxu0
  %v11130 = vadd.f32 %v11117, %v11129
  %v11131 = vpop.f32.mrf.mxu0
  %11132 = vdwg.mxu0
  %11133 = vmatpush.bf16.msra.mxu0 %v10803
  %11134 = vmatpush.bf16.msra.mxu0 %v10799
  %11135 = vmatpush.bf16.msra.mxu0 %v10795
  %11136 = vmatpush.bf16.msra.mxu0 %v10791
  %11137 = vmatpush.bf16.msra.mxu0 %v10787
  %11138 = vmatpush.bf16.msra.mxu0 %v10783
  %11139 = vmatpush.bf16.msra.mxu0 %v10779
  %11140 = vmatpush.bf16.msra.mxu0 %v10775
  %11141 = vmatmul.bf16.gmra.mxu0 %v10247
  %v11142 = vpop.f32.mrf.mxu0
  %v11143 = vadd.f32 %v10383, %v11142
  %v11144 = vpop.f32.mrf.mxu0
  %11145 = vdwg.mxu0
  %11146 = vmatpush.bf16.msra.mxu0 %v10835
  %11147 = vmatpush.bf16.msra.mxu0 %v10831
  %11148 = vmatpush.bf16.msra.mxu0 %v10827
  %11149 = vmatpush.bf16.msra.mxu0 %v10823
  %11150 = vmatpush.bf16.msra.mxu0 %v10819
  %11151 = vmatpush.bf16.msra.mxu0 %v10815
  %11152 = vmatpush.bf16.msra.mxu0 %v10811
  %11153 = vmatpush.bf16.msra.mxu0 %v10807
  %11154 = vmatmul.bf16.gmra.mxu0 %v10248
  %v11155 = vpop.f32.mrf.mxu0
  %v11156 = vadd.f32 %v11143, %v11155
  %v11157 = vpop.f32.mrf.mxu0
  %11158 = vdwg.mxu0
  %11159 = vmatpush.bf16.msra.mxu0 %v10867
  %11160 = vmatpush.bf16.msra.mxu0 %v10863
  %11161 = vmatpush.bf16.msra.mxu0 %v10859
  %11162 = vmatpush.bf16.msra.mxu0 %v10855
  %11163 = vmatpush.bf16.msra.mxu0 %v10851
  %11164 = vmatpush.bf16.msra.mxu0 %v10847
  %11165 = vmatpush.bf16.msra.mxu0 %v10843
  %11166 = vmatpush.bf16.msra.mxu0 %v10839
  %11167 = vmatmul.bf16.gmra.mxu0 %v10249
  %v11168 = vpop.f32.mrf.mxu0
  %v11169 = vadd.f32 %v11156, %v11168
  %v11170 = vpop.f32.mrf.mxu0
  %11171 = vdwg.mxu0
  %11172 = vmatpush.bf16.msra.mxu0 %v10899
  %11173 = vmatpush.bf16.msra.mxu0 %v10895
  %11174 = vmatpush.bf16.msra.mxu0 %v10891
  %11175 = vmatpush.bf16.msra.mxu0 %v10887
  %11176 = vmatpush.bf16.msra.mxu0 %v10883
  %11177 = vmatpush.bf16.msra.mxu0 %v10879
  %11178 = vmatpush.bf16.msra.mxu0 %v10875
  %11179 = vmatpush.bf16.msra.mxu0 %v10871
  %11180 = vmatmul.bf16.gmra.mxu0 %v10250
  %v11181 = vpop.f32.mrf.mxu0
  %v11182 = vadd.f32 %v11169, %v11181
  %v11183 = vpop.f32.mrf.mxu0
  %11184 = vdwg.mxu0
  %11185 = vmatpush.bf16.msra.mxu0 %v10804
  %11186 = vmatpush.bf16.msra.mxu0 %v10800
  %11187 = vmatpush.bf16.msra.mxu0 %v10796
  %11188 = vmatpush.bf16.msra.mxu0 %v10792
  %11189 = vmatpush.bf16.msra.mxu0 %v10788
  %11190 = vmatpush.bf16.msra.mxu0 %v10784
  %11191 = vmatpush.bf16.msra.mxu0 %v10780
  %11192 = vmatpush.bf16.msra.mxu0 %v10776
  %11193 = vmatmul.bf16.gmra.mxu0 %v10247
  %v11194 = vpop.f32.mrf.mxu0
  %v11195 = vadd.f32 %v10384, %v11194
  %v11196 = vpop.f32.mrf.mxu0
  %11197 = vdwg.mxu0
  %11198 = vmatpush.bf16.msra.mxu0 %v10836
  %11199 = vmatpush.bf16.msra.mxu0 %v10832
  %11200 = vmatpush.bf16.msra.mxu0 %v10828
  %11201 = vmatpush.bf16.msra.mxu0 %v10824
  %11202 = vmatpush.bf16.msra.mxu0 %v10820
  %11203 = vmatpush.bf16.msra.mxu0 %v10816
  %11204 = vmatpush.bf16.msra.mxu0 %v10812
  %11205 = vmatpush.bf16.msra.mxu0 %v10808
  %11206 = vmatmul.bf16.gmra.mxu0 %v10248
  %v11207 = vpop.f32.mrf.mxu0
  %v11208 = vadd.f32 %v11195, %v11207
  %v11209 = vpop.f32.mrf.mxu0
  %11210 = vdwg.mxu0
  %11211 = vmatpush.bf16.msra.mxu0 %v10868
  %11212 = vmatpush.bf16.msra.mxu0 %v10864
  %11213 = vmatpush.bf16.msra.mxu0 %v10860
  %11214 = vmatpush.bf16.msra.mxu0 %v10856
  %11215 = vmatpush.bf16.msra.mxu0 %v10852
  %11216 = vmatpush.bf16.msra.mxu0 %v10848
  %11217 = vmatpush.bf16.msra.mxu0 %v10844
  %11218 = vmatpush.bf16.msra.mxu0 %v10840
  %11219 = vmatmul.bf16.gmra.mxu0 %v10249
  %v11220 = vpop.f32.mrf.mxu0
  %v11221 = vadd.f32 %v11208, %v11220
  %v11222 = vpop.f32.mrf.mxu0
  %11223 = vdwg.mxu0
  %11224 = vmatpush.bf16.msra.mxu0 %v10900
  %11225 = vmatpush.bf16.msra.mxu0 %v10896
  %11226 = vmatpush.bf16.msra.mxu0 %v10892
  %11227 = vmatpush.bf16.msra.mxu0 %v10888
  %11228 = vmatpush.bf16.msra.mxu0 %v10884
  %11229 = vmatpush.bf16.msra.mxu0 %v10880
  %11230 = vmatpush.bf16.msra.mxu0 %v10876
  %11231 = vmatpush.bf16.msra.mxu0 %v10872
  %11232 = vmatmul.bf16.gmra.mxu0 %v10250
  %v11233 = vpop.f32.mrf.mxu0
  %v11234 = vadd.f32 %v11221, %v11233
  %v11235 = vpop.f32.mrf.mxu0
  %11236 = vdwg.mxu0
  %v11237 = vmax.f32 %v11078, 0.0
  %v11238 = vmax.f32 %v11130, 0.0
  %v11239 = vmax.f32 %v11182, 0.0
  %v11240 = vmax.f32 %v11234, 0.0
  %v11241 = vpack.c.bf16 %v10243, %v10243
  %v11242 = vpack.c.bf16 %v10244, %v10244
  %v11243 = vpack.c.bf16 %v10245, %v10245
  %v11244 = vpack.c.bf16 %v10246, %v10246
  %v11245 = vld [vmem:[%s13] sm:$0xff]
  %v11246 = vld [vmem:[%s13 + $0x8] sm:$0xff]
  %v11247 = vld [vmem:[%s13 + $0x10] sm:$0xff]
  %v11248 = vld [vmem:[%s13 + $0x18] sm:$0xff]
  %v11249 = vld [vmem:[%s13 + $0x20] sm:$0xff]
  %v11250 = vld [vmem:[%s13 + $0x28] sm:$0xff]
  %v11251 = vld [vmem:[%s13 + $0x30] sm:$0xff]
  %v11252 = vld [vmem:[%s13 + $0x38] sm:$0xff]
  %v11253 = vld [vmem:[%s13 + $0x40] sm:$0xff]
  %v11254 = vld [vmem:[%s13 + $0x48] sm:$0xff]
  %v11255 = vld [vmem:[%s13 + $0x50] sm:$0xff]
  %v11256 = vld [vmem:[%s13 + $0x58] sm:$0xff]
  %v11257 = vld [vmem:[%s13 + $0x60] sm:$0xff]
  %v11258 = vld [vmem:[%s13 + $0x68] sm:$0xff]
  %v11259 = vld [vmem:[%s13 + $0x70] sm:$0xff]
  %v11260 = vld [vmem:[%s13 + $0x78] sm:$0xff]
  %v11261 = vld [vmem:[%s13 + $0x80] sm:$0xff]
  %v11262 = vld [vmem:[%s13 + $0x88] sm:$0xff]
  %v11263 = vld [vmem:[%s13 + $0x90] sm:$0xff]
  %v11264 = vld [vmem:[%s13 + $0x98] sm:$0xff]
  %v11265 = vld [vmem:[%s13 + $0xa0] sm:$0xff]
  %v11266 = vld [vmem:[%s13 + $0xa8] sm:$0xff]
  %v11267 = vld [vmem:[%s13 + $0xb0] sm:$0xff]
  %v11268 = vld [vmem:[%s13 + $0xb8] sm:$0xff]
  %v11269 = vld [vmem:[%s13 + $0xc0] sm:$0xff]
  %v11270 = vld [vmem:[%s13 + $0xc8] sm:$0xff]
  %v11271 = vld [vmem:[%s13 + $0xd0] sm:$0xff]
  %v11272 = vld [vmem:[%s13 + $0xd8] sm:$0xff]
  %v11273 = vld [vmem:[%s13 + $0xe0] sm:$0xff]
  %v11274 = vld [vmem:[%s13 + $0xe8] sm:$0xff]
  %v11275 = vld [vmem:[%s13 + $0xf0] sm:$0xff]
  %v11276 = vld [vmem:[%s13 + $0xf8] sm:$0xff]
  %v11277 = vld [vmem:[%s13 + $0x100] sm:$0xff]
  %v11278 = vld [vmem:[%s13 + $0x108] sm:$0xff]
  %v11279 = vld [vmem:[%s13 + $0x110] sm:$0xff]
  %v11280 = vld [vmem:[%s13 + $0x118] sm:$0xff]
  %v11281 = vld [vmem:[%s13 + $0x120] sm:$0xff]
  %v11282 = vld [vmem:[%s13 + $0x128] sm:$0xff]
  %v11283 = vld [vmem:[%s13 + $0x130] sm:$0xff]
  %v11284 = vld [vmem:[%s13 + $0x138] sm:$0xff]
  %v11285 = vld [vmem:[%s13 + $0x140] sm:$0xff]
  %v11286 = vld [vmem:[%s13 + $0x148] sm:$0xff]
  %v11287 = vld [vmem:[%s13 + $0x150] sm:$0xff]
  %v11288 = vld [vmem:[%s13 + $0x158] sm:$0xff]
  %v11289 = vld [vmem:[%s13 + $0x160] sm:$0xff]
  %v11290 = vld [vmem:[%s13 + $0x168] sm:$0xff]
  %v11291 = vld [vmem:[%s13 + $0x170] sm:$0xff]
  %v11292 = vld [vmem:[%s13 + $0x178] sm:$0xff]
  %v11293 = vld [vmem:[%s13 + $0x180] sm:$0xff]
  %v11294 = vld [vmem:[%s13 + $0x188] sm:$0xff]
  %v11295 = vld [vmem:[%s13 + $0x190] sm:$0xff]
  %v11296 = vld [vmem:[%s13 + $0x198] sm:$0xff]
  %v11297 = vld [vmem:[%s13 + $0x1a0] sm:$0xff]
  %v11298 = vld [vmem:[%s13 + $0x1a8] sm:$0xff]
  %v11299 = vld [vmem:[%s13 + $0x1b0] sm:$0xff]
  %v11300 = vld [vmem:[%s13 + $0x1b8] sm:$0xff]
  %v11301 = vld [vmem:[%s13 + $0x1c0] sm:$0xff]
  %v11302 = vld [vmem:[%s13 + $0x1c8] sm:$0xff]
  %v11303 = vld [vmem:[%s13 + $0x1d0] sm:$0xff]
  %v11304 = vld [vmem:[%s13 + $0x1d8] sm:$0xff]
  %v11305 = vld [vmem:[%s13 + $0x1e0] sm:$0xff]
  %v11306 = vld [vmem:[%s13 + $0x1e8] sm:$0xff]
  %v11307 = vld [vmem:[%s13 + $0x1f0] sm:$0xff]
  %v11308 = vld [vmem:[%s13 + $0x1f8] sm:$0xff]
  %v11309 = vld [vmem:[%s13 + $0x200] sm:$0xff]
  %v11310 = vld [vmem:[%s13 + $0x208] sm:$0xff]
  %v11311 = vld [vmem:[%s13 + $0x210] sm:$0xff]
  %v11312 = vld [vmem:[%s13 + $0x218] sm:$0xff]
  %v11313 = vld [vmem:[%s13 + $0x220] sm:$0xff]
  %v11314 = vld [vmem:[%s13 + $0x228] sm:$0xff]
  %v11315 = vld [vmem:[%s13 + $0x230] sm:$0xff]
  %v11316 = vld [vmem:[%s13 + $0x238] sm:$0xff]
  %v11317 = vld [vmem:[%s13 + $0x240] sm:$0xff]
  %v11318 = vld [vmem:[%s13 + $0x248] sm:$0xff]
  %v11319 = vld [vmem:[%s13 + $0x250] sm:$0xff]
  %v11320 = vld [vmem:[%s13 + $0x258] sm:$0xff]
  %v11321 = vld [vmem:[%s13 + $0x260] sm:$0xff]
  %v11322 = vld [vmem:[%s13 + $0x268] sm:$0xff]
  %v11323 = vld [vmem:[%s13 + $0x270] sm:$0xff]
  %v11324 = vld [vmem:[%s13 + $0x278] sm:$0xff]
  %v11325 = vld [vmem:[%s13 + $0x280] sm:$0xff]
  %v11326 = vld [vmem:[%s13 + $0x288] sm:$0xff]
  %v11327 = vld [vmem:[%s13 + $0x290] sm:$0xff]
  %v11328 = vld [vmem:[%s13 + $0x298] sm:$0xff]
  %v11329 = vld [vmem:[%s13 + $0x2a0] sm:$0xff]
  %v11330 = vld [vmem:[%s13 + $0x2a8] sm:$0xff]
  %v11331 = vld [vmem:[%s13 + $0x2b0] sm:$0xff]
  %v11332 = vld [vmem:[%s13 + $0x2b8] sm:$0xff]
  %v11333 = vld [vmem:[%s13 + $0x2c0] sm:$0xff]
  %v11334 = vld [vmem:[%s13 + $0x2c8] sm:$0xff]
  %v11335 = vld [vmem:[%s13 + $0x2d0] sm:$0xff]
  %v11336 = vld [vmem:[%s13 + $0x2d8] sm:$0xff]
  %v11337 = vld [vmem:[%s13 + $0x2e0] sm:$0xff]
  %v11338 = vld [vmem:[%s13 + $0x2e8] sm:$0xff]
  %v11339 = vld [vmem:[%s13 + $0x2f0] sm:$0xff]
  %v11340 = vld [vmem:[%s13 + $0x2f8] sm:$0xff]
  %v11341 = vld [vmem:[%s13 + $0x300] sm:$0xff]
  %v11342 = vld [vmem:[%s13 + $0x308] sm:$0xff]
  %v11343 = vld [vmem:[%s13 + $0x310] sm:$0xff]
  %v11344 = vld [vmem:[%s13 + $0x318] sm:$0xff]
  %v11345 = vld [vmem:[%s13 + $0x320] sm:$0xff]
  %v11346 = vld [vmem:[%s13 + $0x328] sm:$0xff]
  %v11347 = vld [vmem:[%s13 + $0x330] sm:$0xff]
  %v11348 = vld [vmem:[%s13 + $0x338] sm:$0xff]
  %v11349 = vld [vmem:[%s13 + $0x340] sm:$0xff]
  %v11350 = vld [vmem:[%s13 + $0x348] sm:$0xff]
  %v11351 = vld [vmem:[%s13 + $0x350] sm:$0xff]
  %v11352 = vld [vmem:[%s13 + $0x358] sm:$0xff]
  %v11353 = vld [vmem:[%s13 + $0x360] sm:$0xff]
  %v11354 = vld [vmem:[%s13 + $0x368] sm:$0xff]
  %v11355 = vld [vmem:[%s13 + $0x370] sm:$0xff]
  %v11356 = vld [vmem:[%s13 + $0x378] sm:$0xff]
  %v11357 = vld [vmem:[%s13 + $0x380] sm:$0xff]
  %v11358 = vld [vmem:[%s13 + $0x388] sm:$0xff]
  %v11359 = vld [vmem:[%s13 + $0x390] sm:$0xff]
  %v11360 = vld [vmem:[%s13 + $0x398] sm:$0xff]
  %v11361 = vld [vmem:[%s13 + $0x3a0] sm:$0xff]
  %v11362 = vld [vmem:[%s13 + $0x3a8] sm:$0xff]
  %v11363 = vld [vmem:[%s13 + $0x3b0] sm:$0xff]
  %v11364 = vld [vmem:[%s13 + $0x3b8] sm:$0xff]
  %v11365 = vld [vmem:[%s13 + $0x3c0] sm:$0xff]
  %v11366 = vld [vmem:[%s13 + $0x3c8] sm:$0xff]
  %v11367 = vld [vmem:[%s13 + $0x3d0] sm:$0xff]
  %v11368 = vld [vmem:[%s13 + $0x3d8] sm:$0xff]
  %v11369 = vld [vmem:[%s13 + $0x3e0] sm:$0xff]
  %v11370 = vld [vmem:[%s13 + $0x3e8] sm:$0xff]
  %v11371 = vld [vmem:[%s13 + $0x3f0] sm:$0xff]
  %v11372 = vld [vmem:[%s13 + $0x3f8] sm:$0xff]
  %v11373 = vld [vmem:[%s14] sm:$0xf]
  %v11375 = vperm.slane %v11373, 0
  %v11376 = vperm.slane %v11373, 1
  %v11377 = vperm.slane %v11373, 2
  %v11378 = vperm.slane %v11373, 3
  %v11511 = vunpack.c.l.b16 %v11245
  %v11512 = vunpack.c.h.b16 %v11245
  %v11513 = vunpack.c.l.b16 %v11246
  %v11514 = vunpack.c.h.b16 %v11246
  %v11515 = vunpack.c.l.b16 %v11247
  %v11516 = vunpack.c.h.b16 %v11247
  %v11517 = vunpack.c.l.b16 %v11248
  %v11518 = vunpack.c.h.b16 %v11248
  %v11519 = vunpack.c.l.b16 %v11249
  %v11520 = vunpack.c.h.b16 %v11249
  %v11521 = vunpack.c.l.b16 %v11250
  %v11522 = vunpack.c.h.b16 %v11250
  %v11523 = vunpack.c.l.b16 %v11251
  %v11524 = vunpack.c.h.b16 %v11251
  %v11525 = vunpack.c.l.b16 %v11252
  %v11526 = vunpack.c.h.b16 %v11252
  %v11527 = vunpack.c.l.b16 %v11253
  %v11528 = vunpack.c.h.b16 %v11253
  %v11529 = vunpack.c.l.b16 %v11254
  %v11530 = vunpack.c.h.b16 %v11254
  %v11531 = vunpack.c.l.b16 %v11255
  %v11532 = vunpack.c.h.b16 %v11255
  %v11533 = vunpack.c.l.b16 %v11256
  %v11534 = vunpack.c.h.b16 %v11256
  %v11535 = vunpack.c.l.b16 %v11257
  %v11536 = vunpack.c.h.b16 %v11257
  %v11537 = vunpack.c.l.b16 %v11258
  %v11538 = vunpack.c.h.b16 %v11258
  %v11539 = vunpack.c.l.b16 %v11259
  %v11540 = vunpack.c.h.b16 %v11259
  %v11541 = vunpack.c.l.b16 %v11260
  %v11542 = vunpack.c.h.b16 %v11260
  %v11543 = vunpack.c.l.b16 %v11261
  %v11544 = vunpack.c.h.b16 %v11261
  %v11545 = vunpack.c.l.b16 %v11262
  %v11546 = vunpack.c.h.b16 %v11262
  %v11547 = vunpack.c.l.b16 %v11263
  %v11548 = vunpack.c.h.b16 %v11263
  %v11549 = vunpack.c.l.b16 %v11264
  %v11550 = vunpack.c.h.b16 %v11264
  %v11551 = vunpack.c.l.b16 %v11265
  %v11552 = vunpack.c.h.b16 %v11265
  %v11553 = vunpack.c.l.b16 %v11266
  %v11554 = vunpack.c.h.b16 %v11266
  %v11555 = vunpack.c.l.b16 %v11267
  %v11556 = vunpack.c.h.b16 %v11267
  %v11557 = vunpack.c.l.b16 %v11268
  %v11558 = vunpack.c.h.b16 %v11268
  %v11559 = vunpack.c.l.b16 %v11269
  %v11560 = vunpack.c.h.b16 %v11269
  %v11561 = vunpack.c.l.b16 %v11270
  %v11562 = vunpack.c.h.b16 %v11270
  %v11563 = vunpack.c.l.b16 %v11271
  %v11564 = vunpack.c.h.b16 %v11271
  %v11565 = vunpack.c.l.b16 %v11272
  %v11566 = vunpack.c.h.b16 %v11272
  %v11567 = vunpack.c.l.b16 %v11273
  %v11568 = vunpack.c.h.b16 %v11273
  %v11569 = vunpack.c.l.b16 %v11274
  %v11570 = vunpack.c.h.b16 %v11274
  %v11571 = vunpack.c.l.b16 %v11275
  %v11572 = vunpack.c.h.b16 %v11275
  %v11573 = vunpack.c.l.b16 %v11276
  %v11574 = vunpack.c.h.b16 %v11276
  %v11575 = vunpack.c.l.b16 %v11277
  %v11576 = vunpack.c.h.b16 %v11277
  %v11577 = vunpack.c.l.b16 %v11278
  %v11578 = vunpack.c.h.b16 %v11278
  %v11579 = vunpack.c.l.b16 %v11279
  %v11580 = vunpack.c.h.b16 %v11279
  %v11581 = vunpack.c.l.b16 %v11280
  %v11582 = vunpack.c.h.b16 %v11280
  %v11583 = vunpack.c.l.b16 %v11281
  %v11584 = vunpack.c.h.b16 %v11281
  %v11585 = vunpack.c.l.b16 %v11282
  %v11586 = vunpack.c.h.b16 %v11282
  %v11587 = vunpack.c.l.b16 %v11283
  %v11588 = vunpack.c.h.b16 %v11283
  %v11589 = vunpack.c.l.b16 %v11284
  %v11590 = vunpack.c.h.b16 %v11284
  %v11591 = vunpack.c.l.b16 %v11285
  %v11592 = vunpack.c.h.b16 %v11285
  %v11593 = vunpack.c.l.b16 %v11286
  %v11594 = vunpack.c.h.b16 %v11286
  %v11595 = vunpack.c.l.b16 %v11287
  %v11596 = vunpack.c.h.b16 %v11287
  %v11597 = vunpack.c.l.b16 %v11288
  %v11598 = vunpack.c.h.b16 %v11288
  %v11599 = vunpack.c.l.b16 %v11289
  %v11600 = vunpack.c.h.b16 %v11289
  %v11601 = vunpack.c.l.b16 %v11290
  %v11602 = vunpack.c.h.b16 %v11290
  %v11603 = vunpack.c.l.b16 %v11291
  %v11604 = vunpack.c.h.b16 %v11291
  %v11605 = vunpack.c.l.b16 %v11292
  %v11606 = vunpack.c.h.b16 %v11292
  %v11607 = vunpack.c.l.b16 %v11293
  %v11608 = vunpack.c.h.b16 %v11293
  %v11609 = vunpack.c.l.b16 %v11294
  %v11610 = vunpack.c.h.b16 %v11294
  %v11611 = vunpack.c.l.b16 %v11295
  %v11612 = vunpack.c.h.b16 %v11295
  %v11613 = vunpack.c.l.b16 %v11296
  %v11614 = vunpack.c.h.b16 %v11296
  %v11615 = vunpack.c.l.b16 %v11297
  %v11616 = vunpack.c.h.b16 %v11297
  %v11617 = vunpack.c.l.b16 %v11298
  %v11618 = vunpack.c.h.b16 %v11298
  %v11619 = vunpack.c.l.b16 %v11299
  %v11620 = vunpack.c.h.b16 %v11299
  %v11621 = vunpack.c.l.b16 %v11300
  %v11622 = vunpack.c.h.b16 %v11300
  %v11623 = vunpack.c.l.b16 %v11301
  %v11624 = vunpack.c.h.b16 %v11301
  %v11625 = vunpack.c.l.b16 %v11302
  %v11626 = vunpack.c.h.b16 %v11302
  %v11627 = vunpack.c.l.b16 %v11303
  %v11628 = vunpack.c.h.b16 %v11303
  %v11629 = vunpack.c.l.b16 %v11304
  %v11630 = vunpack.c.h.b16 %v11304
  %v11631 = vunpack.c.l.b16 %v11305
  %v11632 = vunpack.c.h.b16 %v11305
  %v11633 = vunpack.c.l.b16 %v11306
  %v11634 = vunpack.c.h.b16 %v11306
  %v11635 = vunpack.c.l.b16 %v11307
  %v11636 = vunpack.c.h.b16 %v11307
  %v11637 = vunpack.c.l.b16 %v11308
  %v11638 = vunpack.c.h.b16 %v11308
  %v11639 = vunpack.c.l.b16 %v11309
  %v11640 = vunpack.c.h.b16 %v11309
  %v11641 = vunpack.c.l.b16 %v11310
  %v11642 = vunpack.c.h.b16 %v11310
  %v11643 = vunpack.c.l.b16 %v11311
  %v11644 = vunpack.c.h.b16 %v11311
  %v11645 = vunpack.c.l.b16 %v11312
  %v11646 = vunpack.c.h.b16 %v11312
  %v11647 = vunpack.c.l.b16 %v11313
  %v11648 = vunpack.c.h.b16 %v11313
  %v11649 = vunpack.c.l.b16 %v11314
  %v11650 = vunpack.c.h.b16 %v11314
  %v11651 = vunpack.c.l.b16 %v11315
  %v11652 = vunpack.c.h.b16 %v11315
  %v11653 = vunpack.c.l.b16 %v11316
  %v11654 = vunpack.c.h.b16 %v11316
  %v11655 = vunpack.c.l.b16 %v11317
  %v11656 = vunpack.c.h.b16 %v11317
  %v11657 = vunpack.c.l.b16 %v11318
  %v11658 = vunpack.c.h.b16 %v11318
  %v11659 = vunpack.c.l.b16 %v11319
  %v11660 = vunpack.c.h.b16 %v11319
  %v11661 = vunpack.c.l.b16 %v11320
  %v11662 = vunpack.c.h.b16 %v11320
  %v11663 = vunpack.c.l.b16 %v11321
  %v11664 = vunpack.c.h.b16 %v11321
  %v11665 = vunpack.c.l.b16 %v11322
  %v11666 = vunpack.c.h.b16 %v11322
  %v11667 = vunpack.c.l.b16 %v11323
  %v11668 = vunpack.c.h.b16 %v11323
  %v11669 = vunpack.c.l.b16 %v11324
  %v11670 = vunpack.c.h.b16 %v11324
  %v11671 = vunpack.c.l.b16 %v11325
  %v11672 = vunpack.c.h.b16 %v11325
  %v11673 = vunpack.c.l.b16 %v11326
  %v11674 = vunpack.c.h.b16 %v11326
  %v11675 = vunpack.c.l.b16 %v11327
  %v11676 = vunpack.c.h.b16 %v11327
  %v11677 = vunpack.c.l.b16 %v11328
  %v11678 = vunpack.c.h.b16 %v11328
  %v11679 = vunpack.c.l.b16 %v11329
  %v11680 = vunpack.c.h.b16 %v11329
  %v11681 = vunpack.c.l.b16 %v11330
  %v11682 = vunpack.c.h.b16 %v11330
  %v11683 = vunpack.c.l.b16 %v11331
  %v11684 = vunpack.c.h.b16 %v11331
  %v11685 = vunpack.c.l.b16 %v11332
  %v11686 = vunpack.c.h.b16 %v11332
  %v11687 = vunpack.c.l.b16 %v11333
  %v11688 = vunpack.c.h.b16 %v11333
  %v11689 = vunpack.c.l.b16 %v11334
  %v11690 = vunpack.c.h.b16 %v11334
  %v11691 = vunpack.c.l.b16 %v11335
  %v11692 = vunpack.c.h.b16 %v11335
  %v11693 = vunpack.c.l.b16 %v11336
  %v11694 = vunpack.c.h.b16 %v11336
  %v11695 = vunpack.c.l.b16 %v11337
  %v11696 = vunpack.c.h.b16 %v11337
  %v11697 = vunpack.c.l.b16 %v11338
  %v11698 = vunpack.c.h.b16 %v11338
  %v11699 = vunpack.c.l.b16 %v11339
  %v11700 = vunpack.c.h.b16 %v11339
  %v11701 = vunpack.c.l.b16 %v11340
  %v11702 = vunpack.c.h.b16 %v11340
  %v11703 = vunpack.c.l.b16 %v11341
  %v11704 = vunpack.c.h.b16 %v11341
  %v11705 = vunpack.c.l.b16 %v11342
  %v11706 = vunpack.c.h.b16 %v11342
  %v11707 = vunpack.c.l.b16 %v11343
  %v11708 = vunpack.c.h.b16 %v11343
  %v11709 = vunpack.c.l.b16 %v11344
  %v11710 = vunpack.c.h.b16 %v11344
  %v11711 = vunpack.c.l.b16 %v11345
  %v11712 = vunpack.c.h.b16 %v11345
  %v11713 = vunpack.c.l.b16 %v11346
  %v11714 = vunpack.c.h.b16 %v11346
  %v11715 = vunpack.c.l.b16 %v11347
  %v11716 = vunpack.c.h.b16 %v11347
  %v11717 = vunpack.c.l.b16 %v11348
  %v11718 = vunpack.c.h.b16 %v11348
  %v11719 = vunpack.c.l.b16 %v11349
  %v11720 = vunpack.c.h.b16 %v11349
  %v11721 = vunpack.c.l.b16 %v11350
  %v11722 = vunpack.c.h.b16 %v11350
  %v11723 = vunpack.c.l.b16 %v11351
  %v11724 = vunpack.c.h.b16 %v11351
  %v11725 = vunpack.c.l.b16 %v11352
  %v11726 = vunpack.c.h.b16 %v11352
  %v11727 = vunpack.c.l.b16 %v11353
  %v11728 = vunpack.c.h.b16 %v11353
  %v11729 = vunpack.c.l.b16 %v11354
  %v11730 = vunpack.c.h.b16 %v11354
  %v11731 = vunpack.c.l.b16 %v11355
  %v11732 = vunpack.c.h.b16 %v11355
  %v11733 = vunpack.c.l.b16 %v11356
  %v11734 = vunpack.c.h.b16 %v11356
  %v11735 = vunpack.c.l.b16 %v11357
  %v11736 = vunpack.c.h.b16 %v11357
  %v11737 = vunpack.c.l.b16 %v11358
  %v11738 = vunpack.c.h.b16 %v11358
  %v11739 = vunpack.c.l.b16 %v11359
  %v11740 = vunpack.c.h.b16 %v11359
  %v11741 = vunpack.c.l.b16 %v11360
  %v11742 = vunpack.c.h.b16 %v11360
  %v11743 = vunpack.c.l.b16 %v11361
  %v11744 = vunpack.c.h.b16 %v11361
  %v11745 = vunpack.c.l.b16 %v11362
  %v11746 = vunpack.c.h.b16 %v11362
  %v11747 = vunpack.c.l.b16 %v11363
  %v11748 = vunpack.c.h.b16 %v11363
  %v11749 = vunpack.c.l.b16 %v11364
  %v11750 = vunpack.c.h.b16 %v11364
  %v11751 = vunpack.c.l.b16 %v11365
  %v11752 = vunpack.c.h.b16 %v11365
  %v11753 = vunpack.c.l.b16 %v11366
  %v11754 = vunpack.c.h.b16 %v11366
  %v11755 = vunpack.c.l.b16 %v11367
  %v11756 = vunpack.c.h.b16 %v11367
  %v11757 = vunpack.c.l.b16 %v11368
  %v11758 = vunpack.c.h.b16 %v11368
  %v11759 = vunpack.c.l.b16 %v11369
  %v11760 = vunpack.c.h.b16 %v11369
  %v11761 = vunpack.c.l.b16 %v11370
  %v11762 = vunpack.c.h.b16 %v11370
  %v11763 = vunpack.c.l.b16 %v11371
  %v11764 = vunpack.c.h.b16 %v11371
  %v11765 = vunpack.c.l.b16 %v11372
  %v11766 = vunpack.c.h.b16 %v11372
  %v11767 = vpack.c.b16 %v11515, %v11511
  %v11768 = vpack.c.b16 %v11516, %v11512
  %v11769 = vpack.c.b16 %v11517, %v11513
  %v11770 = vpack.c.b16 %v11518, %v11514
  %v11771 = vpack.c.b16 %v11523, %v11519
  %v11772 = vpack.c.b16 %v11524, %v11520
  %v11773 = vpack.c.b16 %v11525, %v11521
  %v11774 = vpack.c.b16 %v11526, %v11522
  %v11775 = vpack.c.b16 %v11531, %v11527
  %v11776 = vpack.c.b16 %v11532, %v11528
  %v11777 = vpack.c.b16 %v11533, %v11529
  %v11778 = vpack.c.b16 %v11534, %v11530
  %v11779 = vpack.c.b16 %v11539, %v11535
  %v11780 = vpack.c.b16 %v11540, %v11536
  %v11781 = vpack.c.b16 %v11541, %v11537
  %v11782 = vpack.c.b16 %v11542, %v11538
  %v11783 = vpack.c.b16 %v11547, %v11543
  %v11784 = vpack.c.b16 %v11548, %v11544
  %v11785 = vpack.c.b16 %v11549, %v11545
  %v11786 = vpack.c.b16 %v11550, %v11546
  %v11787 = vpack.c.b16 %v11555, %v11551
  %v11788 = vpack.c.b16 %v11556, %v11552
  %v11789 = vpack.c.b16 %v11557, %v11553
  %v11790 = vpack.c.b16 %v11558, %v11554
  %v11791 = vpack.c.b16 %v11563, %v11559
  %v11792 = vpack.c.b16 %v11564, %v11560
  %v11793 = vpack.c.b16 %v11565, %v11561
  %v11794 = vpack.c.b16 %v11566, %v11562
  %v11795 = vpack.c.b16 %v11571, %v11567
  %v11796 = vpack.c.b16 %v11572, %v11568
  %v11797 = vpack.c.b16 %v11573, %v11569
  %v11798 = vpack.c.b16 %v11574, %v11570
  %v11799 = vpack.c.b16 %v11579, %v11575
  %v11800 = vpack.c.b16 %v11580, %v11576
  %v11801 = vpack.c.b16 %v11581, %v11577
  %v11802 = vpack.c.b16 %v11582, %v11578
  %v11803 = vpack.c.b16 %v11587, %v11583
  %v11804 = vpack.c.b16 %v11588, %v11584
  %v11805 = vpack.c.b16 %v11589, %v11585
  %v11806 = vpack.c.b16 %v11590, %v11586
  %v11807 = vpack.c.b16 %v11595, %v11591
  %v11808 = vpack.c.b16 %v11596, %v11592
  %v11809 = vpack.c.b16 %v11597, %v11593
  %v11810 = vpack.c.b16 %v11598, %v11594
  %v11811 = vpack.c.b16 %v11603, %v11599
  %v11812 = vpack.c.b16 %v11604, %v11600
  %v11813 = vpack.c.b16 %v11605, %v11601
  %v11814 = vpack.c.b16 %v11606, %v11602
  %v11815 = vpack.c.b16 %v11611, %v11607
  %v11816 = vpack.c.b16 %v11612, %v11608
  %v11817 = vpack.c.b16 %v11613, %v11609
  %v11818 = vpack.c.b16 %v11614, %v11610
  %v11819 = vpack.c.b16 %v11619, %v11615
  %v11820 = vpack.c.b16 %v11620, %v11616
  %v11821 = vpack.c.b16 %v11621, %v11617
  %v11822 = vpack.c.b16 %v11622, %v11618
  %v11823 = vpack.c.b16 %v11627, %v11623
  %v11824 = vpack.c.b16 %v11628, %v11624
  %v11825 = vpack.c.b16 %v11629, %v11625
  %v11826 = vpack.c.b16 %v11630, %v11626
  %v11827 = vpack.c.b16 %v11635, %v11631
  %v11828 = vpack.c.b16 %v11636, %v11632
  %v11829 = vpack.c.b16 %v11637, %v11633
  %v11830 = vpack.c.b16 %v11638, %v11634
  %v11831 = vpack.c.b16 %v11643, %v11639
  %v11832 = vpack.c.b16 %v11644, %v11640
  %v11833 = vpack.c.b16 %v11645, %v11641
  %v11834 = vpack.c.b16 %v11646, %v11642
  %v11835 = vpack.c.b16 %v11651, %v11647
  %v11836 = vpack.c.b16 %v11652, %v11648
  %v11837 = vpack.c.b16 %v11653, %v11649
  %v11838 = vpack.c.b16 %v11654, %v11650
  %v11839 = vpack.c.b16 %v11659, %v11655
  %v11840 = vpack.c.b16 %v11660, %v11656
  %v11841 = vpack.c.b16 %v11661, %v11657
  %v11842 = vpack.c.b16 %v11662, %v11658
  %v11843 = vpack.c.b16 %v11667, %v11663
  %v11844 = vpack.c.b16 %v11668, %v11664
  %v11845 = vpack.c.b16 %v11669, %v11665
  %v11846 = vpack.c.b16 %v11670, %v11666
  %v11847 = vpack.c.b16 %v11675, %v11671
  %v11848 = vpack.c.b16 %v11676, %v11672
  %v11849 = vpack.c.b16 %v11677, %v11673
  %v11850 = vpack.c.b16 %v11678, %v11674
  %v11851 = vpack.c.b16 %v11683, %v11679
  %v11852 = vpack.c.b16 %v11684, %v11680
  %v11853 = vpack.c.b16 %v11685, %v11681
  %v11854 = vpack.c.b16 %v11686, %v11682
  %v11855 = vpack.c.b16 %v11691, %v11687
  %v11856 = vpack.c.b16 %v11692, %v11688
  %v11857 = vpack.c.b16 %v11693, %v11689
  %v11858 = vpack.c.b16 %v11694, %v11690
  %v11859 = vpack.c.b16 %v11699, %v11695
  %v11860 = vpack.c.b16 %v11700, %v11696
  %v11861 = vpack.c.b16 %v11701, %v11697
  %v11862 = vpack.c.b16 %v11702, %v11698
  %v11863 = vpack.c.b16 %v11707, %v11703
  %v11864 = vpack.c.b16 %v11708, %v11704
  %v11865 = vpack.c.b16 %v11709, %v11705
  %v11866 = vpack.c.b16 %v11710, %v11706
  %v11867 = vpack.c.b16 %v11715, %v11711
  %v11868 = vpack.c.b16 %v11716, %v11712
  %v11869 = vpack.c.b16 %v11717, %v11713
  %v11870 = vpack.c.b16 %v11718, %v11714
  %v11871 = vpack.c.b16 %v11723, %v11719
  %v11872 = vpack.c.b16 %v11724, %v11720
  %v11873 = vpack.c.b16 %v11725, %v11721
  %v11874 = vpack.c.b16 %v11726, %v11722
  %v11875 = vpack.c.b16 %v11731, %v11727
  %v11876 = vpack.c.b16 %v11732, %v11728
  %v11877 = vpack.c.b16 %v11733, %v11729
  %v11878 = vpack.c.b16 %v11734, %v11730
  %v11879 = vpack.c.b16 %v11739, %v11735
  %v11880 = vpack.c.b16 %v11740, %v11736
  %v11881 = vpack.c.b16 %v11741, %v11737
  %v11882 = vpack.c.b16 %v11742, %v11738
  %v11883 = vpack.c.b16 %v11747, %v11743
  %v11884 = vpack.c.b16 %v11748, %v11744
  %v11885 = vpack.c.b16 %v11749, %v11745
  %v11886 = vpack.c.b16 %v11750, %v11746
  %v11887 = vpack.c.b16 %v11755, %v11751
  %v11888 = vpack.c.b16 %v11756, %v11752
  %v11889 = vpack.c.b16 %v11757, %v11753
  %v11890 = vpack.c.b16 %v11758, %v11754
  %v11891 = vpack.c.b16 %v11763, %v11759
  %v11892 = vpack.c.b16 %v11764, %v11760
  %v11893 = vpack.c.b16 %v11765, %v11761
  %v11894 = vpack.c.b16 %v11766, %v11762
  %12023 = vmatpush.bf16.msra.mxu0 %v11795
  %12024 = vmatpush.bf16.msra.mxu0 %v11791
  %12025 = vmatpush.bf16.msra.mxu0 %v11787
  %12026 = vmatpush.bf16.msra.mxu0 %v11783
  %12027 = vmatpush.bf16.msra.mxu0 %v11779
  %12028 = vmatpush.bf16.msra.mxu0 %v11775
  %12029 = vmatpush.bf16.msra.mxu0 %v11771
  %12030 = vmatpush.bf16.msra.mxu0 %v11767
  %12031 = vmatmul.bf16.gmra.mxu0 %v11241
  %v12032 = vpop.f32.mrf.mxu0
  %v12033 = vadd.f32 %v11375, %v12032
  %v12034 = vpop.f32.mrf.mxu0
  %12035 = vdwg.mxu0
  %12036 = vmatpush.bf16.msra.mxu0 %v11827
  %12037 = vmatpush.bf16.msra.mxu0 %v11823
  %12038 = vmatpush.bf16.msra.mxu0 %v11819
  %12039 = vmatpush.bf16.msra.mxu0 %v11815
  %12040 = vmatpush.bf16.msra.mxu0 %v11811
  %12041 = vmatpush.bf16.msra.mxu0 %v11807
  %12042 = vmatpush.bf16.msra.mxu0 %v11803
  %12043 = vmatpush.bf16.msra.mxu0 %v11799
  %12044 = vmatmul.bf16.gmra.mxu0 %v11242
  %v12045 = vpop.f32.mrf.mxu0
  %v12046 = vadd.f32 %v12033, %v12045
  %v12047 = vpop.f32.mrf.mxu0
  %12048 = vdwg.mxu0
  %12049 = vmatpush.bf16.msra.mxu0 %v11859
  %12050 = vmatpush.bf16.msra.mxu0 %v11855
  %12051 = vmatpush.bf16.msra.mxu0 %v11851
  %12052 = vmatpush.bf16.msra.mxu0 %v11847
  %12053 = vmatpush.bf16.msra.mxu0 %v11843
  %12054 = vmatpush.bf16.msra.mxu0 %v11839
  %12055 = vmatpush.bf16.msra.mxu0 %v11835
  %12056 = vmatpush.bf16.msra.mxu0 %v11831
  %12057 = vmatmul.bf16.gmra.mxu0 %v11243
  %v12058 = vpop.f32.mrf.mxu0
  %v12059 = vadd.f32 %v12046, %v12058
  %v12060 = vpop.f32.mrf.mxu0
  %12061 = vdwg.mxu0
  %12062 = vmatpush.bf16.msra.mxu0 %v11891
  %12063 = vmatpush.bf16.msra.mxu0 %v11887
  %12064 = vmatpush.bf16.msra.mxu0 %v11883
  %12065 = vmatpush.bf16.msra.mxu0 %v11879
  %12066 = vmatpush.bf16.msra.mxu0 %v11875
  %12067 = vmatpush.bf16.msra.mxu0 %v11871
  %12068 = vmatpush.bf16.msra.mxu0 %v11867
  %12069 = vmatpush.bf16.msra.mxu0 %v11863
  %12070 = vmatmul.bf16.gmra.mxu0 %v11244
  %v12071 = vpop.f32.mrf.mxu0
  %v12072 = vadd.f32 %v12059, %v12071
  %v12073 = vpop.f32.mrf.mxu0
  %12074 = vdwg.mxu0
  %12075 = vmatpush.bf16.msra.mxu0 %v11796
  %12076 = vmatpush.bf16.msra.mxu0 %v11792
  %12077 = vmatpush.bf16.msra.mxu0 %v11788
  %12078 = vmatpush.bf16.msra.mxu0 %v11784
  %12079 = vmatpush.bf16.msra.mxu0 %v11780
  %12080 = vmatpush.bf16.msra.mxu0 %v11776
  %12081 = vmatpush.bf16.msra.mxu0 %v11772
  %12082 = vmatpush.bf16.msra.mxu0 %v11768
  %12083 = vmatmul.bf16.gmra.mxu0 %v11241
  %v12084 = vpop.f32.mrf.mxu0
  %v12085 = vadd.f32 %v11376, %v12084
  %v12086 = vpop.f32.mrf.mxu0
  %12087 = vdwg.mxu0
  %12088 = vmatpush.bf16.msra.mxu0 %v11828
  %12089 = vmatpush.bf16.msra.mxu0 %v11824
  %12090 = vmatpush.bf16.msra.mxu0 %v11820
  %12091 = vmatpush.bf16.msra.mxu0 %v11816
  %12092 = vmatpush.bf16.msra.mxu0 %v11812
  %12093 = vmatpush.bf16.msra.mxu0 %v11808
  %12094 = vmatpush.bf16.msra.mxu0 %v11804
  %12095 = vmatpush.bf16.msra.mxu0 %v11800
  %12096 = vmatmul.bf16.gmra.mxu0 %v11242
  %v12097 = vpop.f32.mrf.mxu0
  %v12098 = vadd.f32 %v12085, %v12097
  %v12099 = vpop.f32.mrf.mxu0
  %12100 = vdwg.mxu0
  %12101 = vmatpush.bf16.msra.mxu0 %v11860
  %12102 = vmatpush.bf16.msra.mxu0 %v11856
  %12103 = vmatpush.bf16.msra.mxu0 %v11852
  %12104 = vmatpush.bf16.msra.mxu0 %v11848
  %12105 = vmatpush.bf16.msra.mxu0 %v11844
  %12106 = vmatpush.bf16.msra.mxu0 %v11840
  %12107 = vmatpush.bf16.msra.mxu0 %v11836
  %12108 = vmatpush.bf16.msra.mxu0 %v11832
  %12109 = vmatmul.bf16.gmra.mxu0 %v11243
  %v12110 = vpop.f32.mrf.mxu0
  %v12111 = vadd.f32 %v12098, %v12110
  %v12112 = vpop.f32.mrf.mxu0
  %12113 = vdwg.mxu0
  %12114 = vmatpush.bf16.msra.mxu0 %v11892
  %12115 = vmatpush.bf16.msra.mxu0 %v11888
  %12116 = vmatpush.bf16.msra.mxu0 %v11884
  %12117 = vmatpush.bf16.msra.mxu0 %v11880
  %12118 = vmatpush.bf16.msra.mxu0 %v11876
  %12119 = vmatpush.bf16.msra.mxu0 %v11872
  %12120 = vmatpush.bf16.msra.mxu0 %v11868
  %12121 = vmatpush.bf16.msra.mxu0 %v11864
  %12122 = vmatmul.bf16.gmra.mxu0 %v11244
  %v12123 = vpop.f32.mrf.mxu0
  %v12124 = vadd.f32 %v12111, %v12123
  %v12125 = vpop.f32.mrf.mxu0
  %12126 = vdwg.mxu0
  %12127 = vmatpush.bf16.msra.mxu0 %v11797
  %12128 = vmatpush.bf16.msra.mxu0 %v11793
  %12129 = vmatpush.bf16.msra.mxu0 %v11789
  %12130 = vmatpush.bf16.msra.mxu0 %v11785
  %12131 = vmatpush.bf16.msra.mxu0 %v11781
  %12132 = vmatpush.bf16.msra.mxu0 %v11777
  %12133 = vmatpush.bf16.msra.mxu0 %v11773
  %12134 = vmatpush.bf16.msra.mxu0 %v11769
  %12135 = vmatmul.bf16.gmra.mxu0 %v11241
  %v12136 = vpop.f32.mrf.mxu0
  %v12137 = vadd.f32 %v11377, %v12136
  %v12138 = vpop.f32.mrf.mxu0
  %12139 = vdwg.mxu0
  %12140 = vmatpush.bf16.msra.mxu0 %v11829
  %12141 = vmatpush.bf16.msra.mxu0 %v11825
  %12142 = vmatpush.bf16.msra.mxu0 %v11821
  %12143 = vmatpush.bf16.msra.mxu0 %v11817
  %12144 = vmatpush.bf16.msra.mxu0 %v11813
  %12145 = vmatpush.bf16.msra.mxu0 %v11809
  %12146 = vmatpush.bf16.msra.mxu0 %v11805
  %12147 = vmatpush.bf16.msra.mxu0 %v11801
  %12148 = vmatmul.bf16.gmra.mxu0 %v11242
  %v12149 = vpop.f32.mrf.mxu0
  %v12150 = vadd.f32 %v12137, %v12149
  %v12151 = vpop.f32.mrf.mxu0
  %12152 = vdwg.mxu0
  %12153 = vmatpush.bf16.msra.mxu0 %v11861
  %12154 = vmatpush.bf16.msra.mxu0 %v11857
  %12155 = vmatpush.bf16.msra.mxu0 %v11853
  %12156 = vmatpush.bf16.msra.mxu0 %v11849
  %12157 = vmatpush.bf16.msra.mxu0 %v11845
  %12158 = vmatpush.bf16.msra.mxu0 %v11841
  %12159 = vmatpush.bf16.msra.mxu0 %v11837
  %12160 = vmatpush.bf16.msra.mxu0 %v11833
  %12161 = vmatmul.bf16.gmra.mxu0 %v11243
  %v12162 = vpop.f32.mrf.mxu0
  %v12163 = vadd.f32 %v12150, %v12162
  %v12164 = vpop.f32.mrf.mxu0
  %12165 = vdwg.mxu0
  %12166 = vmatpush.bf16.msra.mxu0 %v11893
  %12167 = vmatpush.bf16.msra.mxu0 %v11889
  %12168 = vmatpush.bf16.msra.mxu0 %v11885
  %12169 = vmatpush.bf16.msra.mxu0 %v11881
  %12170 = vmatpush.bf16.msra.mxu0 %v11877
  %12171 = vmatpush.bf16.msra.mxu0 %v11873
  %12172 = vmatpush.bf16.msra.mxu0 %v11869
  %12173 = vmatpush.bf16.msra.mxu0 %v11865
  %12174 = vmatmul.bf16.gmra.mxu0 %v11244
  %v12175 = vpop.f32.mrf.mxu0
  %v12176 = vadd.f32 %v12163, %v12175
  %v12177 = vpop.f32.mrf.mxu0
  %12178 = vdwg.mxu0
  %12179 = vmatpush.bf16.msra.mxu0 %v11798
  %12180 = vmatpush.bf16.msra.mxu0 %v11794
  %12181 = vmatpush.bf16.msra.mxu0 %v11790
  %12182 = vmatpush.bf16.msra.mxu0 %v11786
  %12183 = vmatpush.bf16.msra.mxu0 %v11782
  %12184 = vmatpush.bf16.msra.mxu0 %v11778
  %12185 = vmatpush.bf16.msra.mxu0 %v11774
  %12186 = vmatpush.bf16.msra.mxu0 %v11770
  %12187 = vmatmul.bf16.gmra.mxu0 %v11241
  %v12188 = vpop.f32.mrf.mxu0
  %v12189 = vadd.f32 %v11378, %v12188
  %v12190 = vpop.f32.mrf.mxu0
  %12191 = vdwg.mxu0
  %12192 = vmatpush.bf16.msra.mxu0 %v11830
  %12193 = vmatpush.bf16.msra.mxu0 %v11826
  %12194 = vmatpush.bf16.msra.mxu0 %v11822
  %12195 = vmatpush.bf16.msra.mxu0 %v11818
  %12196 = vmatpush.bf16.msra.mxu0 %v11814
  %12197 = vmatpush.bf16.msra.mxu0 %v11810
  %12198 = vmatpush.bf16.msra.mxu0 %v11806
  %12199 = vmatpush.bf16.msra.mxu0 %v11802
  %12200 = vmatmul.bf16.gmra.mxu0 %v11242
  %v12201 = vpop.f32.mrf.mxu0
  %v12202 = vadd.f32 %v12189, %v12201
  %v12203 = vpop.f32.mrf.mxu0
  %12204 = vdwg.mxu0
  %12205 = vmatpush.bf16.msra.mxu0 %v11862
  %12206 = vmatpush.bf16.msra.mxu0 %v11858
  %12207 = vmatpush.bf16.msra.mxu0 %v11854
  %12208 = vmatpush.bf16.msra.mxu0 %v11850
  %12209 = vmatpush.bf16.msra.mxu0 %v11846
  %12210 = vmatpush.bf16.msra.mxu0 %v11842
  %12211 = vmatpush.bf16.msra.mxu0 %v11838
  %12212 = vmatpush.bf16.msra.mxu0 %v11834
  %12213 = vmatmul.bf16.gmra.mxu0 %v11243
  %v12214 = vpop.f32.mrf.mxu0
  %v12215 = vadd.f32 %v12202, %v12214
  %v12216 = vpop.f32.mrf.mxu0
  %12217 = vdwg.mxu0
  %12218 = vmatpush.bf16.msra.mxu0 %v11894
  %12219 = vmatpush.bf16.msra.mxu0 %v11890
  %12220 = vmatpush.bf16.msra.mxu0 %v11886
  %12221 = vmatpush.bf16.msra.mxu0 %v11882
  %12222 = vmatpush.bf16.msra.mxu0 %v11878
  %12223 = vmatpush.bf16.msra.mxu0 %v11874
  %12224 = vmatpush.bf16.msra.mxu0 %v11870
  %12225 = vmatpush.bf16.msra.mxu0 %v11866
  %12226 = vmatmul.bf16.gmra.mxu0 %v11244
  %v12227 = vpop.f32.mrf.mxu0
  %v12228 = vadd.f32 %v12215, %v12227
  %v12229 = vpop.f32.mrf.mxu0
  %12230 = vdwg.mxu0
  %v12231 = vmax.f32 %v12072, 0.0
  %v12232 = vmax.f32 %v12124, 0.0
  %v12233 = vmax.f32 %v12176, 0.0
  %v12234 = vmax.f32 %v12228, 0.0
  %v12235 = vpack.c.bf16 %v11237, %v11237
  %v12236 = vpack.c.bf16 %v11238, %v11238
  %v12237 = vpack.c.bf16 %v11239, %v11239
  %v12238 = vpack.c.bf16 %v11240, %v11240
  %v12239 = vld [vmem:[%s15] sm:$0xf]
  %v12240 = vld [vmem:[%s15 + $0x4] sm:$0xf]
  %v12241 = vld [vmem:[%s15 + $0x8] sm:$0xf]
  %v12242 = vld [vmem:[%s15 + $0xc] sm:$0xf]
  %v12243 = vld [vmem:[%s15 + $0x10] sm:$0xf]
  %v12244 = vld [vmem:[%s15 + $0x14] sm:$0xf]
  %v12245 = vld [vmem:[%s15 + $0x18] sm:$0xf]
  %v12246 = vld [vmem:[%s15 + $0x1c] sm:$0xf]
  %v12247 = vld [vmem:[%s15 + $0x20] sm:$0xf]
  %v12248 = vld [vmem:[%s15 + $0x24] sm:$0xf]
  %v12249 = vld [vmem:[%s15 + $0x28] sm:$0xf]
  %v12250 = vld [vmem:[%s15 + $0x2c] sm:$0xf]
  %v12251 = vld [vmem:[%s15 + $0x30] sm:$0xf]
  %v12252 = vld [vmem:[%s15 + $0x34] sm:$0xf]
  %v12253 = vld [vmem:[%s15 + $0x38] sm:$0xf]
  %v12254 = vld [vmem:[%s15 + $0x3c] sm:$0xf]
  %v12255 = vld [vmem:[%s15 + $0x40] sm:$0xf]
  %v12256 = vld [vmem:[%s15 + $0x44] sm:$0xf]
  %v12257 = vld [vmem:[%s15 + $0x48] sm:$0xf]
  %v12258 = vld [vmem:[%s15 + $0x4c] sm:$0xf]
  %v12259 = vld [vmem:[%s15 + $0x50] sm:$0xf]
  %v12260 = vld [vmem:[%s15 + $0x54] sm:$0xf]
  %v12261 = vld [vmem:[%s15 + $0x58] sm:$0xf]
  %v12262 = vld [vmem:[%s15 + $0x5c] sm:$0xf]
  %v12263 = vld [vmem:[%s15 + $0x60] sm:$0xf]
  %v12264 = vld [vmem:[%s15 + $0x64] sm:$0xf]
  %v12265 = vld [vmem:[%s15 + $0x68] sm:$0xf]
  %v12266 = vld [vmem:[%s15 + $0x6c] sm:$0xf]
  %v12267 = vld [vmem:[%s15 + $0x70] sm:$0xf]
  %v12268 = vld [vmem:[%s15 + $0x74] sm:$0xf]
  %v12269 = vld [vmem:[%s15 + $0x78] sm:$0xf]
  %v12270 = vld [vmem:[%s15 + $0x7c] sm:$0xf]
  %v12271 = vld [vmem:[%s15 + $0x80] sm:$0xf]
  %v12272 = vld [vmem:[%s15 + $0x84] sm:$0xf]
  %v12273 = vld [vmem:[%s15 + $0x88] sm:$0xf]
  %v12274 = vld [vmem:[%s15 + $0x8c] sm:$0xf]
  %v12275 = vld [vmem:[%s15 + $0x90] sm:$0xf]
  %v12276 = vld [vmem:[%s15 + $0x94] sm:$0xf]
  %v12277 = vld [vmem:[%s15 + $0x98] sm:$0xf]
  %v12278 = vld [vmem:[%s15 + $0x9c] sm:$0xf]
  %v12279 = vld [vmem:[%s15 + $0xa0] sm:$0xf]
  %v12280 = vld [vmem:[%s15 + $0xa4] sm:$0xf]
  %v12281 = vld [vmem:[%s15 + $0xa8] sm:$0xf]
  %v12282 = vld [vmem:[%s15 + $0xac] sm:$0xf]
  %v12283 = vld [vmem:[%s15 + $0xb0] sm:$0xf]
  %v12284 = vld [vmem:[%s15 + $0xb4] sm:$0xf]
  %v12285 = vld [vmem:[%s15 + $0xb8] sm:$0xf]
  %v12286 = vld [vmem:[%s15 + $0xbc] sm:$0xf]
  %v12287 = vld [vmem:[%s15 + $0xc0] sm:$0xf]
  %v12288 = vld [vmem:[%s15 + $0xc4] sm:$0xf]
  %v12289 = vld [vmem:[%s15 + $0xc8] sm:$0xf]
  %v12290 = vld [vmem:[%s15 + $0xcc] sm:$0xf]
  %v12291 = vld [vmem:[%s15 + $0xd0] sm:$0xf]
  %v12292 = vld [vmem:[%s15 + $0xd4] sm:$0xf]
  %v12293 = vld [vmem:[%s15 + $0xd8] sm:$0xf]
  %v12294 = vld [vmem:[%s15 + $0xdc] sm:$0xf]
  %v12295 = vld [vmem:[%s15 + $0xe0] sm:$0xf]
  %v12296 = vld [vmem:[%s15 + $0xe4] sm:$0xf]
  %v12297 = vld [vmem:[%s15 + $0xe8] sm:$0xf]
  %v12298 = vld [vmem:[%s15 + $0xec] sm:$0xf]
  %v12299 = vld [vmem:[%s15 + $0xf0] sm:$0xf]
  %v12300 = vld [vmem:[%s15 + $0xf4] sm:$0xf]
  %v12301 = vld [vmem:[%s15 + $0xf8] sm:$0xf]
  %v12302 = vld [vmem:[%s15 + $0xfc] sm:$0xf]
  %v12303 = vld [vmem:[%s16] sm:$0x1]
  %v12305 = vperm.slane %v12303, 0
  %v12371 = vunpack.c.l.b16 %v12239
  %v12372 = vunpack.c.l.b16 %v12240
  %v12373 = vunpack.c.l.b16 %v12241
  %v12374 = vunpack.c.l.b16 %v12242
  %v12375 = vunpack.c.l.b16 %v12243
  %v12376 = vunpack.c.l.b16 %v12244
  %v12377 = vunpack.c.l.b16 %v12245
  %v12378 = vunpack.c.l.b16 %v12246
  %v12379 = vunpack.c.l.b16 %v12247
  %v12380 = vunpack.c.l.b16 %v12248
  %v12381 = vunpack.c.l.b16 %v12249
  %v12382 = vunpack.c.l.b16 %v12250
  %v12383 = vunpack.c.l.b16 %v12251
  %v12384 = vunpack.c.l.b16 %v12252
  %v12385 = vunpack.c.l.b16 %v12253
  %v12386 = vunpack.c.l.b16 %v12254
  %v12387 = vunpack.c.l.b16 %v12255
  %v12388 = vunpack.c.l.b16 %v12256
  %v12389 = vunpack.c.l.b16 %v12257
  %v12390 = vunpack.c.l.b16 %v12258
  %v12391 = vunpack.c.l.b16 %v12259
  %v12392 = vunpack.c.l.b16 %v12260
  %v12393 = vunpack.c.l.b16 %v12261
  %v12394 = vunpack.c.l.b16 %v12262
  %v12395 = vunpack.c.l.b16 %v12263
  %v12396 = vunpack.c.l.b16 %v12264
  %v12397 = vunpack.c.l.b16 %v12265
  %v12398 = vunpack.c.l.b16 %v12266
  %v12399 = vunpack.c.l.b16 %v12267
  %v12400 = vunpack.c.l.b16 %v12268
  %v12401 = vunpack.c.l.b16 %v12269
  %v12402 = vunpack.c.l.b16 %v12270
  %v12403 = vunpack.c.l.b16 %v12271
  %v12404 = vunpack.c.l.b16 %v12272
  %v12405 = vunpack.c.l.b16 %v12273
  %v12406 = vunpack.c.l.b16 %v12274
  %v12407 = vunpack.c.l.b16 %v12275
  %v12408 = vunpack.c.l.b16 %v12276
  %v12409 = vunpack.c.l.b16 %v12277
  %v12410 = vunpack.c.l.b16 %v12278
  %v12411 = vunpack.c.l.b16 %v12279
  %v12412 = vunpack.c.l.b16 %v12280
  %v12413 = vunpack.c.l.b16 %v12281
  %v12414 = vunpack.c.l.b16 %v12282
  %v12415 = vunpack.c.l.b16 %v12283
  %v12416 = vunpack.c.l.b16 %v12284
  %v12417 = vunpack.c.l.b16 %v12285
  %v12418 = vunpack.c.l.b16 %v12286
  %v12419 = vunpack.c.l.b16 %v12287
  %v12420 = vunpack.c.l.b16 %v12288
  %v12421 = vunpack.c.l.b16 %v12289
  %v12422 = vunpack.c.l.b16 %v12290
  %v12423 = vunpack.c.l.b16 %v12291
  %v12424 = vunpack.c.l.b16 %v12292
  %v12425 = vunpack.c.l.b16 %v12293
  %v12426 = vunpack.c.l.b16 %v12294
  %v12427 = vunpack.c.l.b16 %v12295
  %v12428 = vunpack.c.l.b16 %v12296
  %v12429 = vunpack.c.l.b16 %v12297
  %v12430 = vunpack.c.l.b16 %v12298
  %v12431 = vunpack.c.l.b16 %v12299
  %v12432 = vunpack.c.l.b16 %v12300
  %v12433 = vunpack.c.l.b16 %v12301
  %v12434 = vunpack.c.l.b16 %v12302
  %v12435 = vpack.c.b16 %v12372, %v12371
  %v12436 = vpack.c.b16 %v12374, %v12373
  %v12437 = vpack.c.b16 %v12376, %v12375
  %v12438 = vpack.c.b16 %v12378, %v12377
  %v12439 = vpack.c.b16 %v12380, %v12379
  %v12440 = vpack.c.b16 %v12382, %v12381
  %v12441 = vpack.c.b16 %v12384, %v12383
  %v12442 = vpack.c.b16 %v12386, %v12385
  %v12443 = vpack.c.b16 %v12388, %v12387
  %v12444 = vpack.c.b16 %v12390, %v12389
  %v12445 = vpack.c.b16 %v12392, %v12391
  %v12446 = vpack.c.b16 %v12394, %v12393
  %v12447 = vpack.c.b16 %v12396, %v12395
  %v12448 = vpack.c.b16 %v12398, %v12397
  %v12449 = vpack.c.b16 %v12400, %v12399
  %v12450 = vpack.c.b16 %v12402, %v12401
  %v12451 = vpack.c.b16 %v12404, %v12403
  %v12452 = vpack.c.b16 %v12406, %v12405
  %v12453 = vpack.c.b16 %v12408, %v12407
  %v12454 = vpack.c.b16 %v12410, %v12409
  %v12455 = vpack.c.b16 %v12412, %v12411
  %v12456 = vpack.c.b16 %v12414, %v12413
  %v12457 = vpack.c.b16 %v12416, %v12415
  %v12458 = vpack.c.b16 %v12418, %v12417
  %v12459 = vpack.c.b16 %v12420, %v12419
  %v12460 = vpack.c.b16 %v12422, %v12421
  %v12461 = vpack.c.b16 %v12424, %v12423
  %v12462 = vpack.c.b16 %v12426, %v12425
  %v12463 = vpack.c.b16 %v12428, %v12427
  %v12464 = vpack.c.b16 %v12430, %v12429
  %v12465 = vpack.c.b16 %v12432, %v12431
  %v12466 = vpack.c.b16 %v12434, %v12433
  %12499 = vmatpush.bf16.msra.mxu0 %v12442
  %12500 = vmatpush.bf16.msra.mxu0 %v12441
  %12501 = vmatpush.bf16.msra.mxu0 %v12440
  %12502 = vmatpush.bf16.msra.mxu0 %v12439
  %12503 = vmatpush.bf16.msra.mxu0 %v12438
  %12504 = vmatpush.bf16.msra.mxu0 %v12437
  %12505 = vmatpush.bf16.msra.mxu0 %v12436
  %12506 = vmatpush.bf16.msra.mxu0 %v12435
  %12507 = vmatmul.bf16.gmra.mxu0 %v12235
  %v12508 = vpop.f32.mrf.mxu0
  %v12509 = vadd.f32 %v12305, %v12508
  %v12510 = vpop.f32.mrf.mxu0
  %12511 = vdwg.mxu0
  %12512 = vmatpush.bf16.msra.mxu0 %v12450
  %12513 = vmatpush.bf16.msra.mxu0 %v12449
  %12514 = vmatpush.bf16.msra.mxu0 %v12448
  %12515 = vmatpush.bf16.msra.mxu0 %v12447
  %12516 = vmatpush.bf16.msra.mxu0 %v12446
  %12517 = vmatpush.bf16.msra.mxu0 %v12445
  %12518 = vmatpush.bf16.msra.mxu0 %v12444
  %12519 = vmatpush.bf16.msra.mxu0 %v12443
  %12520 = vmatmul.bf16.gmra.mxu0 %v12236
  %v12521 = vpop.f32.mrf.mxu0
  %v12522 = vadd.f32 %v12509, %v12521
  %v12523 = vpop.f32.mrf.mxu0
  %12524 = vdwg.mxu0
  %12525 = vmatpush.bf16.msra.mxu0 %v12458
  %12526 = vmatpush.bf16.msra.mxu0 %v12457
  %12527 = vmatpush.bf16.msra.mxu0 %v12456
  %12528 = vmatpush.bf16.msra.mxu0 %v12455
  %12529 = vmatpush.bf16.msra.mxu0 %v12454
  %12530 = vmatpush.bf16.msra.mxu0 %v12453
  %12531 = vmatpush.bf16.msra.mxu0 %v12452
  %12532 = vmatpush.bf16.msra.mxu0 %v12451
  %12533 = vmatmul.bf16.gmra.mxu0 %v12237
  %v12534 = vpop.f32.mrf.mxu0
  %v12535 = vadd.f32 %v12522, %v12534
  %v12536 = vpop.f32.mrf.mxu0
  %12537 = vdwg.mxu0
  %12538 = vmatpush.bf16.msra.mxu0 %v12466
  %12539 = vmatpush.bf16.msra.mxu0 %v12465
  %12540 = vmatpush.bf16.msra.mxu0 %v12464
  %12541 = vmatpush.bf16.msra.mxu0 %v12463
  %12542 = vmatpush.bf16.msra.mxu0 %v12462
  %12543 = vmatpush.bf16.msra.mxu0 %v12461
  %12544 = vmatpush.bf16.msra.mxu0 %v12460
  %12545 = vmatpush.bf16.msra.mxu0 %v12459
  %12546 = vmatmul.bf16.gmra.mxu0 %v12238
  %v12547 = vpop.f32.mrf.mxu0
  %v12548 = vadd.f32 %v12535, %v12547
  %v12549 = vpop.f32.mrf.mxu0
  %12550 = vdwg.mxu0
  %v12551 = vpack.c.bf16 %v12231, %v12231
  %v12552 = vpack.c.bf16 %v12232, %v12232
  %v12553 = vpack.c.bf16 %v12233, %v12233
  %v12554 = vpack.c.bf16 %v12234, %v12234
  %v12555 = vld [vmem:[%s17] sm:$0xf]
  %v12556 = vld [vmem:[%s17 + $0x4] sm:$0xf]
  %v12557 = vld [vmem:[%s17 + $0x8] sm:$0xf]
  %v12558 = vld [vmem:[%s17 + $0xc] sm:$0xf]
  %v12559 = vld [vmem:[%s17 + $0x10] sm:$0xf]
  %v12560 = vld [vmem:[%s17 + $0x14] sm:$0xf]
  %v12561 = vld [vmem:[%s17 + $0x18] sm:$0xf]
  %v12562 = vld [vmem:[%s17 + $0x1c] sm:$0xf]
  %v12563 = vld [vmem:[%s17 + $0x20] sm:$0xf]
  %v12564 = vld [vmem:[%s17 + $0x24] sm:$0xf]
  %v12565 = vld [vmem:[%s17 + $0x28] sm:$0xf]
  %v12566 = vld [vmem:[%s17 + $0x2c] sm:$0xf]
  %v12567 = vld [vmem:[%s17 + $0x30] sm:$0xf]
  %v12568 = vld [vmem:[%s17 + $0x34] sm:$0xf]
  %v12569 = vld [vmem:[%s17 + $0x38] sm:$0xf]
  %v12570 = vld [vmem:[%s17 + $0x3c] sm:$0xf]
  %v12571 = vld [vmem:[%s17 + $0x40] sm:$0xf]
  %v12572 = vld [vmem:[%s17 + $0x44] sm:$0xf]
  %v12573 = vld [vmem:[%s17 + $0x48] sm:$0xf]
  %v12574 = vld [vmem:[%s17 + $0x4c] sm:$0xf]
  %v12575 = vld [vmem:[%s17 + $0x50] sm:$0xf]
  %v12576 = vld [vmem:[%s17 + $0x54] sm:$0xf]
  %v12577 = vld [vmem:[%s17 + $0x58] sm:$0xf]
  %v12578 = vld [vmem:[%s17 + $0x5c] sm:$0xf]
  %v12579 = vld [vmem:[%s17 + $0x60] sm:$0xf]
  %v12580 = vld [vmem:[%s17 + $0x64] sm:$0xf]
  %v12581 = vld [vmem:[%s17 + $0x68] sm:$0xf]
  %v12582 = vld [vmem:[%s17 + $0x6c] sm:$0xf]
  %v12583 = vld [vmem:[%s17 + $0x70] sm:$0xf]
  %v12584 = vld [vmem:[%s17 + $0x74] sm:$0xf]
  %v12585 = vld [vmem:[%s17 + $0x78] sm:$0xf]
  %v12586 = vld [vmem:[%s17 + $0x7c] sm:$0xf]
  %v12587 = vld [vmem:[%s17 + $0x80] sm:$0xf]
  %v12588 = vld [vmem:[%s17 + $0x84] sm:$0xf]
  %v12589 = vld [vmem:[%s17 + $0x88] sm:$0xf]
  %v12590 = vld [vmem:[%s17 + $0x8c] sm:$0xf]
  %v12591 = vld [vmem:[%s17 + $0x90] sm:$0xf]
  %v12592 = vld [vmem:[%s17 + $0x94] sm:$0xf]
  %v12593 = vld [vmem:[%s17 + $0x98] sm:$0xf]
  %v12594 = vld [vmem:[%s17 + $0x9c] sm:$0xf]
  %v12595 = vld [vmem:[%s17 + $0xa0] sm:$0xf]
  %v12596 = vld [vmem:[%s17 + $0xa4] sm:$0xf]
  %v12597 = vld [vmem:[%s17 + $0xa8] sm:$0xf]
  %v12598 = vld [vmem:[%s17 + $0xac] sm:$0xf]
  %v12599 = vld [vmem:[%s17 + $0xb0] sm:$0xf]
  %v12600 = vld [vmem:[%s17 + $0xb4] sm:$0xf]
  %v12601 = vld [vmem:[%s17 + $0xb8] sm:$0xf]
  %v12602 = vld [vmem:[%s17 + $0xbc] sm:$0xf]
  %v12603 = vld [vmem:[%s17 + $0xc0] sm:$0xf]
  %v12604 = vld [vmem:[%s17 + $0xc4] sm:$0xf]
  %v12605 = vld [vmem:[%s17 + $0xc8] sm:$0xf]
  %v12606 = vld [vmem:[%s17 + $0xcc] sm:$0xf]
  %v12607 = vld [vmem:[%s17 + $0xd0] sm:$0xf]
  %v12608 = vld [vmem:[%s17 + $0xd4] sm:$0xf]
  %v12609 = vld [vmem:[%s17 + $0xd8] sm:$0xf]
  %v12610 = vld [vmem:[%s17 + $0xdc] sm:$0xf]
  %v12611 = vld [vmem:[%s17 + $0xe0] sm:$0xf]
  %v12612 = vld [vmem:[%s17 + $0xe4] sm:$0xf]
  %v12613 = vld [vmem:[%s17 + $0xe8] sm:$0xf]
  %v12614 = vld [vmem:[%s17 + $0xec] sm:$0xf]
  %v12615 = vld [vmem:[%s17 + $0xf0] sm:$0xf]
  %v12616 = vld [vmem:[%s17 + $0xf4] sm:$0xf]
  %v12617 = vld [vmem:[%s17 + $0xf8] sm:$0xf]
  %v12618 = vld [vmem:[%s17 + $0xfc] sm:$0xf]
  %v12619 = vld [vmem:[#allocation4] sm:$0x1]
  %v12621 = vperm.slane %v12619, 0
  %v12687 = vunpack.c.l.b16 %v12555
  %v12688 = vunpack.c.l.b16 %v12556
  %v12689 = vunpack.c.l.b16 %v12557
  %v12690 = vunpack.c.l.b16 %v12558
  %v12691 = vunpack.c.l.b16 %v12559
  %v12692 = vunpack.c.l.b16 %v12560
  %v12693 = vunpack.c.l.b16 %v12561
  %v12694 = vunpack.c.l.b16 %v12562
  %v12695 = vunpack.c.l.b16 %v12563
  %v12696 = vunpack.c.l.b16 %v12564
  %v12697 = vunpack.c.l.b16 %v12565
  %v12698 = vunpack.c.l.b16 %v12566
  %v12699 = vunpack.c.l.b16 %v12567
  %v12700 = vunpack.c.l.b16 %v12568
  %v12701 = vunpack.c.l.b16 %v12569
  %v12702 = vunpack.c.l.b16 %v12570
  %v12703 = vunpack.c.l.b16 %v12571
  %v12704 = vunpack.c.l.b16 %v12572
  %v12705 = vunpack.c.l.b16 %v12573
  %v12706 = vunpack.c.l.b16 %v12574
  %v12707 = vunpack.c.l.b16 %v12575
  %v12708 = vunpack.c.l.b16 %v12576
  %v12709 = vunpack.c.l.b16 %v12577
  %v12710 = vunpack.c.l.b16 %v12578
  %v12711 = vunpack.c.l.b16 %v12579
  %v12712 = vunpack.c.l.b16 %v12580
  %v12713 = vunpack.c.l.b16 %v12581
  %v12714 = vunpack.c.l.b16 %v12582
  %v12715 = vunpack.c.l.b16 %v12583
  %v12716 = vunpack.c.l.b16 %v12584
  %v12717 = vunpack.c.l.b16 %v12585
  %v12718 = vunpack.c.l.b16 %v12586
  %v12719 = vunpack.c.l.b16 %v12587
  %v12720 = vunpack.c.l.b16 %v12588
  %v12721 = vunpack.c.l.b16 %v12589
  %v12722 = vunpack.c.l.b16 %v12590
  %v12723 = vunpack.c.l.b16 %v12591
  %v12724 = vunpack.c.l.b16 %v12592
  %v12725 = vunpack.c.l.b16 %v12593
  %v12726 = vunpack.c.l.b16 %v12594
  %v12727 = vunpack.c.l.b16 %v12595
  %v12728 = vunpack.c.l.b16 %v12596
  %v12729 = vunpack.c.l.b16 %v12597
  %v12730 = vunpack.c.l.b16 %v12598
  %v12731 = vunpack.c.l.b16 %v12599
  %v12732 = vunpack.c.l.b16 %v12600
  %v12733 = vunpack.c.l.b16 %v12601
  %v12734 = vunpack.c.l.b16 %v12602
  %v12735 = vunpack.c.l.b16 %v12603
  %v12736 = vunpack.c.l.b16 %v12604
  %v12737 = vunpack.c.l.b16 %v12605
  %v12738 = vunpack.c.l.b16 %v12606
  %v12739 = vunpack.c.l.b16 %v12607
  %v12740 = vunpack.c.l.b16 %v12608
  %v12741 = vunpack.c.l.b16 %v12609
  %v12742 = vunpack.c.l.b16 %v12610
  %v12743 = vunpack.c.l.b16 %v12611
  %v12744 = vunpack.c.l.b16 %v12612
  %v12745 = vunpack.c.l.b16 %v12613
  %v12746 = vunpack.c.l.b16 %v12614
  %v12747 = vunpack.c.l.b16 %v12615
  %v12748 = vunpack.c.l.b16 %v12616
  %v12749 = vunpack.c.l.b16 %v12617
  %v12750 = vunpack.c.l.b16 %v12618
  %v12751 = vpack.c.b16 %v12688, %v12687
  %v12752 = vpack.c.b16 %v12690, %v12689
  %v12753 = vpack.c.b16 %v12692, %v12691
  %v12754 = vpack.c.b16 %v12694, %v12693
  %v12755 = vpack.c.b16 %v12696, %v12695
  %v12756 = vpack.c.b16 %v12698, %v12697
  %v12757 = vpack.c.b16 %v12700, %v12699
  %v12758 = vpack.c.b16 %v12702, %v12701
  %v12759 = vpack.c.b16 %v12704, %v12703
  %v12760 = vpack.c.b16 %v12706, %v12705
  %v12761 = vpack.c.b16 %v12708, %v12707
  %v12762 = vpack.c.b16 %v12710, %v12709
  %v12763 = vpack.c.b16 %v12712, %v12711
  %v12764 = vpack.c.b16 %v12714, %v12713
  %v12765 = vpack.c.b16 %v12716, %v12715
  %v12766 = vpack.c.b16 %v12718, %v12717
  %v12767 = vpack.c.b16 %v12720, %v12719
  %v12768 = vpack.c.b16 %v12722, %v12721
  %v12769 = vpack.c.b16 %v12724, %v12723
  %v12770 = vpack.c.b16 %v12726, %v12725
  %v12771 = vpack.c.b16 %v12728, %v12727
  %v12772 = vpack.c.b16 %v12730, %v12729
  %v12773 = vpack.c.b16 %v12732, %v12731
  %v12774 = vpack.c.b16 %v12734, %v12733
  %v12775 = vpack.c.b16 %v12736, %v12735
  %v12776 = vpack.c.b16 %v12738, %v12737
  %v12777 = vpack.c.b16 %v12740, %v12739
  %v12778 = vpack.c.b16 %v12742, %v12741
  %v12779 = vpack.c.b16 %v12744, %v12743
  %v12780 = vpack.c.b16 %v12746, %v12745
  %v12781 = vpack.c.b16 %v12748, %v12747
  %v12782 = vpack.c.b16 %v12750, %v12749
  %12815 = vmatpush.bf16.msra.mxu0 %v12758
  %12816 = vmatpush.bf16.msra.mxu0 %v12757
  %12817 = vmatpush.bf16.msra.mxu0 %v12756
  %12818 = vmatpush.bf16.msra.mxu0 %v12755
  %12819 = vmatpush.bf16.msra.mxu0 %v12754
  %12820 = vmatpush.bf16.msra.mxu0 %v12753
  %12821 = vmatpush.bf16.msra.mxu0 %v12752
  %12822 = vmatpush.bf16.msra.mxu0 %v12751
  %12823 = vmatmul.bf16.gmra.mxu0 %v12551
  %v12824 = vpop.f32.mrf.mxu0
  %v12825 = vadd.f32 %v12621, %v12824
  %v12826 = vpop.f32.mrf.mxu0
  %12827 = vdwg.mxu0
  %12828 = vmatpush.bf16.msra.mxu0 %v12766
  %12829 = vmatpush.bf16.msra.mxu0 %v12765
  %12830 = vmatpush.bf16.msra.mxu0 %v12764
  %12831 = vmatpush.bf16.msra.mxu0 %v12763
  %12832 = vmatpush.bf16.msra.mxu0 %v12762
  %12833 = vmatpush.bf16.msra.mxu0 %v12761
  %12834 = vmatpush.bf16.msra.mxu0 %v12760
  %12835 = vmatpush.bf16.msra.mxu0 %v12759
  %12836 = vmatmul.bf16.gmra.mxu0 %v12552
  %v12837 = vpop.f32.mrf.mxu0
  %v12838 = vadd.f32 %v12825, %v12837
  %v12839 = vpop.f32.mrf.mxu0
  %12840 = vdwg.mxu0
  %12841 = vmatpush.bf16.msra.mxu0 %v12774
  %12842 = vmatpush.bf16.msra.mxu0 %v12773
  %12843 = vmatpush.bf16.msra.mxu0 %v12772
  %12844 = vmatpush.bf16.msra.mxu0 %v12771
  %12845 = vmatpush.bf16.msra.mxu0 %v12770
  %12846 = vmatpush.bf16.msra.mxu0 %v12769
  %12847 = vmatpush.bf16.msra.mxu0 %v12768
  %12848 = vmatpush.bf16.msra.mxu0 %v12767
  %12849 = vmatmul.bf16.gmra.mxu0 %v12553
  %v12850 = vpop.f32.mrf.mxu0
  %v12851 = vadd.f32 %v12838, %v12850
  %v12852 = vpop.f32.mrf.mxu0
  %12853 = vdwg.mxu0
  %12854 = vmatpush.bf16.msra.mxu0 %v12782
  %12855 = vmatpush.bf16.msra.mxu0 %v12781
  %12856 = vmatpush.bf16.msra.mxu0 %v12780
  %12857 = vmatpush.bf16.msra.mxu0 %v12779
  %12858 = vmatpush.bf16.msra.mxu0 %v12778
  %12859 = vmatpush.bf16.msra.mxu0 %v12777
  %12860 = vmatpush.bf16.msra.mxu0 %v12776
  %12861 = vmatpush.bf16.msra.mxu0 %v12775
  %12862 = vmatmul.bf16.gmra.mxu0 %v12554
  %v12863 = vpop.f32.mrf.mxu0
  %v12864 = vadd.f32 %v12851, %v12863
  %v12865 = vpop.f32.mrf.mxu0
  %12866 = vdwg.mxu0
  %vm12867 = vcmask 50176
  %v12868 = vsel %vm12867, %v12548, -inf
  %12869 = vmax.xlane.f32.xlu0 %v12868
  %v12870 = vpop.xlane.xlu0 %12869
  %v12871 = vsub.f32 %v12548, %v12870
  %v12872 = vmul.f32 %v12871, 1.442695
  %v12873 = vpow.pop %v12872
  %v12874 = vsel %vm12867, %v12873, 0.0
  %12875 = vadd.xlane.f32.xlu0 %v12874
  %v12876 = vpop.xlane.xlu0 %12875
  %v12877 = vlog2.pop %v12876
  %v12878 = vmul.f32 %v12877, 0.6931472
  %v12879 = vsub.f32 %v12871, %v12878
  %12881 = vrot.lane.b32.xlu0 %v12864, 7
  %v12882 = vpop.permute.xlu0 %12881
  %vm12884 = vcmask 56320
  %v12885 = vsel %vm12884, %v12879, %v12882
  %vm12886 = vcmask 64512
  %v12887 = vsel %vm12886, %v12885, 0.0
  %12888 = vst [vmem:[%s19] sm:$0x3] %v12887
  // Predicated region
  $region78: #{_lambda_.1} parent=0 // pred_check
    _
  $region79: #{_lambda_.1} parent=0 // pred_check_branch
    %12890 = sbr.rel (0) target = $region81
  $region80: #{_lambda_.1} parent=0 // pred_region
    _
  $region81: #{_lambda_.1} parent=0 // pred_fallthru
    _
  // Predicated region
  $region82: #{_lambda_.1} parent=0 // pred_check
    _
  $region83: #{_lambda_.1} parent=0 // pred_check_branch
    %12892 = sbr.rel (0) target = $region85
  $region84: #{_lambda_.1} parent=0 // pred_region
    _
  $region85: #{_lambda_.1} parent=0 // pred_fallthru
    _

</llo_original>
